<compile_context>
chip_gen: v7x
topology: tpu7x:2x2x1
jax: 0.10.0
libtpu: 0.0.40
codegen_flags: <defaults>
</compile_context>

<pallas_src>
import jax
import jax.numpy as jnp
from jax.experimental import pallas as pl
from jax.experimental.pallas import tpu as pltpu


def _round_up(a, m):
    return ((a + m - 1) // m) * m


# ----------------------------------------------------------------------------
# Fused kernel: conv stack + running max-pool + (deferred b3/ReLU) + FC head.
# Grid: (batch blocks [parallel], point tiles [arbitrary, reduction]).
# ----------------------------------------------------------------------------
def stn_fused_kernel(x_ref, w1_ref, b1_ref, w2_ref, b2_ref, w3_ref, b3_ref,
                     fw1_ref, fb1_ref, fw2_ref, fb2_ref, fw3_ref, fb3_ref,
                     out_ref, pooled_acc):
    ni = pl.program_id(1)
    bB, tn, k = x_ref.shape

    x = x_ref[...].reshape(bB * tn, k)                      # bf16 (rows, k)

    # conv1 (1x1) + folded BN1 + ReLU : (rows, k) @ (k, 64)
    h1 = jnp.maximum(
        jnp.dot(x, w1_ref[...], preferred_element_type=jnp.float32)
        + b1_ref[...], 0.0)
    # conv2 + BN2 + ReLU : (rows, 64) @ (64, 128)
    h2 = jnp.maximum(
        jnp.dot(h1.astype(jnp.bfloat16), w2_ref[...],
                preferred_element_type=jnp.float32) + b2_ref[...], 0.0)
    # conv3 MATMUL ONLY: bias + ReLU are deferred past the max-pool (exact,
    # since both are monotone per output channel) -> hot loop is MXU + max.
    s3 = jnp.dot(h2.astype(jnp.bfloat16), w3_ref[...],
                 preferred_element_type=jnp.float32)        # (rows, 1024) f32

    # running per-sample max of the raw conv3 scores over this point tile
    blk_max = jnp.max(s3.reshape(bB, tn, s3.shape[-1]), axis=1)   # (bB, 1024)

    @pl.when(ni == 0)
    def _():
        pooled_acc[...] = blk_max

    @pl.when(ni > 0)
    def _():
        pooled_acc[...] = jnp.maximum(pooled_acc[...], blk_max)

    # Epilogue (once per batch block): deferred conv3 bias/BN/ReLU + FC head.
    @pl.when(ni == pl.num_programs(1) - 1)
    def _():
        g = jnp.maximum(pooled_acc[...] + b3_ref[...], 0.0)        # (bB, 1024)
        f1 = jnp.maximum(
            jnp.dot(g.astype(jnp.bfloat16), fw1_ref[...],
                    preferred_element_type=jnp.float32) + fb1_ref[...], 0.0)
        f2 = jnp.maximum(
            jnp.dot(f1.astype(jnp.bfloat16), fw2_ref[...],
                    preferred_element_type=jnp.float32) + fb2_ref[...], 0.0)
        out_ref[:, 0, :] = (
            jnp.dot(f2.astype(jnp.bfloat16), fw3_ref[...],
                    preferred_element_type=jnp.float32) + fb3_ref[...])


# ----------------------------------------------------------------------------
# Host-side glue.
# ----------------------------------------------------------------------------
def _fold_bn(w, b, gamma, beta, mean, var, eps=1e-5):
    """Fold an inference-mode BatchNorm into the preceding matmul.

    w: (Cin, Cout), b: (Cout,) -> effective (w_eff, b_eff) with same shapes.
    """
    s = gamma / jnp.sqrt(var + eps)
    return w * s[None, :], (b - mean) * s + beta


def _choose_batch_block(B):
    """Pick a divisor of B, preferring >= 2 batch blocks (v7x dual-TC)."""
    for d in (8, 4, 2, 1):
        if B % d == 0 and B // d >= 2:
            return d
    return 1   # B == 1


def stnkd_forward(x_bkn, params, k, *, batch_block=None, max_rows=None):
    """x_bkn: (B, k, N) float32, matching the PyTorch Conv1d layout."""
    B, kk, N = x_bkn.shape
    assert kk == k

    (w1, b1, g1, be1, m1, v1,
     w2, b2, g2, be2, m2, v2,
     w3, b3, g3, be3, m3, v3,
     fw1, fb1, g4, be4, m4, v4,
     fw2, fb2, g5, be5, m5, v5,
     fw3, fb3) = params

    w1e, b1e = _fold_bn(w1, b1, g1, be1, m1, v1)
    w2e, b2e = _fold_bn(w2, b2, g2, be2, m2, v2)
    w3e, b3e = _fold_bn(w3, b3, g3, be3, m3, v3)
    fw1e, fb1e = _fold_bn(fw1, fb1, g4, be4, m4, v4)
    fw2e, fb2e = _fold_bn(fw2, fb2, g5, be5, m5, v5)
    # fold the flattened identity directly into the fc3 bias (no extra operand)
    fb3e = fb3 + jnp.eye(k, dtype=jnp.float32).reshape(k * k)

    # Generation-aware VMEM budget / tile sizing.
    try:
        vmem_cap = int(pltpu.get_tpu_info().vmem_capacity_bytes)
    except Exception:
        vmem_cap = 64 << 20          # assume smallest (v7x per-TC) if unknown
    vmem_limit = min(vmem_cap * 3 // 4, 100 << 20)   # 48 MiB v7x, ~96 MiB v5e/v6e
    if max_rows is None:
        max_rows = 8192 if vmem_cap >= (100 << 20) else 4096

    bB = batch_block if batch_block is not None else _choose_batch_block(B)
    assert B % bB == 0, "batch_block must divide B"

    # NCW -> (B, N, k): points on sublanes, channels on lanes, so all 1x1
    # convs become plain MXU matmuls.
    x = jnp.transpose(x_bkn, (0, 2, 1)).astype(jnp.float32)

    # Point tile: multiple of 16 (bf16 sublane packing), sized so one grid
    # step processes ~max_rows rows.  Padding duplicates points, which does
    # not change the max-pool.
    tile_n = min(_round_up(N, 16), max(16, (max_rows // bB) // 16 * 16))
    N_pad = _round_up(N, tile_n)
    if N_pad != N:
        x = x[:, jnp.arange(N_pad) % N, :]
    x = x.astype(jnp.bfloat16)

    bf16 = lambda a: a.astype(jnp.bfloat16)
    row = lambda v: v.reshape(1, -1).astype(jnp.float32)
    const = lambda shape: pl.BlockSpec(shape, lambda bi, ni: (0, 0))

    # Single fused pallas_call.  Output kept 3-D (B, 1, k*k) so its last two
    # block dims match the full array dims (lane-dense, layout-safe).
    # NOTE: for very small k (e.g. STN3d, k=3) the x block's last dim and the
    # k*k output width are lane-sparse; padding them to 128 host-side would
    # help there, but is unnecessary for k >= 64.
    out = pl.pallas_call(
        stn_fused_kernel,
        out_shape=jax.ShapeDtypeStruct((B, 1, k * k), jnp.float32),
        grid_spec=pltpu.PrefetchScalarGridSpec(
            num_scalar_prefetch=0,
            grid=(B // bB, N_pad // tile_n),
            in_specs=[
                pl.BlockSpec((bB, tile_n, k), lambda bi, ni: (bi, ni, 0)),
                const((k, 64)),       const((1, 64)),       # conv1 (folded BN1)
                const((64, 128)),     const((1, 128)),      # conv2 (folded BN2)
                const((128, 1024)),   const((1, 1024)),     # conv3 (folded BN3)
                const((1024, 512)),   const((1, 512)),      # fc1 (folded BN4)
                const((512, 256)),    const((1, 256)),      # fc2 (folded BN5)
                const((256, k * k)),  const((1, k * k)),    # fc3 (+ identity)
            ],
            out_specs=pl.BlockSpec((bB, 1, k * k), lambda bi, ni: (bi, 0, 0)),
            scratch_shapes=[pltpu.VMEM((bB, 1024), jnp.float32)],
        ),
        compiler_params=pltpu.CompilerParams(
            dimension_semantics=("parallel", "arbitrary"),
            vmem_limit_bytes=vmem_limit,
        ),
    )(x, bf16(w1e), row(b1e), bf16(w2e), row(b2e), bf16(w3e), row(b3e),
      bf16(fw1e), row(fb1e), bf16(fw2e), row(fb2e), bf16(fw3), row(fb3e))

    return out.reshape(B, k, k)


def init_params(key, k):
    """Deterministic synthetic parameters matching the module's shapes.

    Weights stored already transposed for (x @ W) use: (Cin, Cout).
    BN params are stored as (gamma, beta, running_mean, running_var).
    """
    ks = jax.random.split(key, 16)
    def w(kk, cin, cout, scale=0.05):
        return scale * jax.random.normal(kk, (cin, cout), dtype=jnp.float32)
    def b(kk, c, scale=0.05):
        return scale * jax.random.normal(kk, (c,), dtype=jnp.float32)
    def bn(kk, c):
        k1, k2, k3, k4 = jax.random.split(kk, 4)
        gamma = 1.0 + 0.1 * jax.random.normal(k1, (c,), dtype=jnp.float32)
        beta = 0.1 * jax.random.normal(k2, (c,), dtype=jnp.float32)
        mean = 0.1 * jax.random.normal(k3, (c,), dtype=jnp.float32)
        var = 1.0 + 0.1 * jax.random.uniform(k4, (c,), dtype=jnp.float32)
        return gamma, beta, mean, var

    w1, b1 = w(ks[0], k, 64), b(ks[1], 64)
    g1, be1, m1, v1 = bn(ks[2], 64)
    w2, b2 = w(ks[3], 64, 128), b(ks[4], 128)
    g2, be2, m2, v2 = bn(ks[5], 128)
    w3, b3 = w(ks[6], 128, 1024), b(ks[7], 1024)
    g3, be3, m3, v3 = bn(ks[8], 1024)
    fw1, fb1 = w(ks[9], 1024, 512), b(ks[10], 512)
    g4, be4, m4, v4 = bn(ks[11], 512)
    fw2, fb2 = w(ks[12], 512, 256), b(ks[13], 256)
    g5, be5, m5, v5 = bn(ks[14], 256)
    fw3, fb3 = w(ks[15], 256, k * k), jnp.zeros((k * k,), dtype=jnp.float32)

    return (w1, b1, g1, be1, m1, v1,
            w2, b2, g2, be2, m2, v2,
            w3, b3, g3, be3, m3, v3,
            fw1, fb1, g4, be4, m4, v4,
            fw2, fb2, g5, be5, m5, v5,
            fw3, fb3)


def stnkd_reference(x_bkn, params, k):
    """Pure-JAX f32 reference matching the PyTorch module (inference mode)."""
    (w1, b1, g1, be1, m1, v1,
     w2, b2, g2, be2, m2, v2,
     w3, b3, g3, be3, m3, v3,
     fw1, fb1, g4, be4, m4, v4,
     fw2, fb2, g5, be5, m5, v5,
     fw3, fb3) = params
    x = jnp.transpose(x_bkn, (0, 2, 1))                       # (B, N, k)
    def bn(h, g, be, m, v):
        return (h - m) / jnp.sqrt(v + 1e-5) * g + be
    h = jax.nn.relu(bn(x @ w1 + b1, g1, be1, m1, v1))
    h = jax.nn.relu(bn(h @ w2 + b2, g2, be2, m2, v2))
    h = jax.nn.relu(bn(h @ w3 + b3, g3, be3, m3, v3))
    gmax = jnp.max(h, axis=1)                                 # (B, 1024)
    f = jax.nn.relu(bn(gmax @ fw1 + fb1, g4, be4, m4, v4))
    f = jax.nn.relu(bn(f @ fw2 + fb2, g5, be5, m5, v5))
    f = f @ fw3 + fb3
    f = f + jnp.eye(k, dtype=jnp.float32).reshape(1, k * k)
    return f.reshape(-1, k, k)


if __name__ == "__main__":
    key = jax.random.PRNGKey(0)
    kparam, kx = jax.random.split(key)

    B, K, N = 2, 64, 32          # batch, channel dim k, number of points
    params = init_params(kparam, K)
    x = jax.random.normal(kx, (B, K, N), dtype=jnp.float32)   # PyTorch (B, k, N)

    out = jax.block_until_ready(stnkd_forward(x, params, K))
    ref = stnkd_reference(x, params, K)

    assert out.shape == (B, K, K)
    # bf16 weights/activations (f32 accumulation) vs a pure-f32 reference:
    # tolerance relaxed accordingly.
    max_err = float(jnp.max(jnp.abs(out - ref)))
    assert jnp.allclose(out, ref, atol=5e-2, rtol=5e-2), (
        "mismatch vs reference, max abs err = %e" % max_err)

    print("KERNEL_OK")
</pallas_src>

<mosaic_0001>
module attributes {stable_mosaic.version = 11 : i64} {
  func.func @stn_fused_kernel(%arg0: i32, %arg1: i32, %arg2: memref<1x32x64xbf16, #tpu.memory_space<vmem>>, %arg3: memref<64x64xbf16, #tpu.memory_space<vmem>>, %arg4: memref<1x64xf32, #tpu.memory_space<vmem>>, %arg5: memref<64x128xbf16, #tpu.memory_space<vmem>>, %arg6: memref<1x128xf32, #tpu.memory_space<vmem>>, %arg7: memref<128x1024xbf16, #tpu.memory_space<vmem>>, %arg8: memref<1x1024xf32, #tpu.memory_space<vmem>>, %arg9: memref<1024x512xbf16, #tpu.memory_space<vmem>>, %arg10: memref<1x512xf32, #tpu.memory_space<vmem>>, %arg11: memref<512x256xbf16, #tpu.memory_space<vmem>>, %arg12: memref<1x256xf32, #tpu.memory_space<vmem>>, %arg13: memref<256x4096xbf16, #tpu.memory_space<vmem>>, %arg14: memref<1x4096xf32, #tpu.memory_space<vmem>>, %arg15: memref<1x1x4096xf32, #tpu.memory_space<vmem>>, %arg16: memref<1x1024xf32, #tpu.memory_space<vmem>>) attributes {dimension_semantics = [#tpu.dimension_semantics<parallel>, #tpu.dimension_semantics<arbitrary>], iteration_bounds = array<i64: 2, 1>, scalar_prefetch = 0 : i64, scratch_operands = 1 : i64, tpu.core_type = #tpu.core_type<tc>, window_params = [{transform_indices = @transform_0, window_bounds = array<i64: 1, 32, 64>}, {pipeline_mode = #tpu.pipeline_mode<synchronous>, transform_indices = @transform_1, window_bounds = array<i64: 64, 64>}, {pipeline_mode = #tpu.pipeline_mode<synchronous>, transform_indices = @transform_2, window_bounds = array<i64: 1, 64>}, {pipeline_mode = #tpu.pipeline_mode<synchronous>, transform_indices = @transform_3, window_bounds = array<i64: 64, 128>}, {pipeline_mode = #tpu.pipeline_mode<synchronous>, transform_indices = @transform_4, window_bounds = array<i64: 1, 128>}, {pipeline_mode = #tpu.pipeline_mode<synchronous>, transform_indices = @transform_5, window_bounds = array<i64: 128, 1024>}, {pipeline_mode = #tpu.pipeline_mode<synchronous>, transform_indices = @transform_6, window_bounds = array<i64: 1, 1024>}, {pipeline_mode = #tpu.pipeline_mode<synchronous>, transform_indices = @transform_7, window_bounds = array<i64: 1024, 512>}, {pipeline_mode = #tpu.pipeline_mode<synchronous>, transform_indices = @transform_8, window_bounds = array<i64: 1, 512>}, {pipeline_mode = #tpu.pipeline_mode<synchronous>, transform_indices = @transform_9, window_bounds = array<i64: 512, 256>}, {pipeline_mode = #tpu.pipeline_mode<synchronous>, transform_indices = @transform_10, window_bounds = array<i64: 1, 256>}, {pipeline_mode = #tpu.pipeline_mode<synchronous>, transform_indices = @transform_11, window_bounds = array<i64: 256, 4096>}, {pipeline_mode = #tpu.pipeline_mode<synchronous>, transform_indices = @transform_12, window_bounds = array<i64: 1, 4096>}, {transform_indices = @transform_13, window_bounds = array<i64: 1, 1, 4096>}]} {
    %c0 = arith.constant 0 : index
    %c0_0 = arith.constant 0 : index
    %c0_1 = arith.constant 0 : index
    %0 = vector.load %arg2[%c0, %c0_0, %c0_1] : memref<1x32x64xbf16, #tpu.memory_space<vmem>>, vector<1x32x64xbf16>
    %1 = vector.shape_cast %0 : vector<1x32x64xbf16> to vector<32x64xbf16>
    %c0_2 = arith.constant 0 : index
    %c0_3 = arith.constant 0 : index
    %2 = vector.load %arg3[%c0_2, %c0_3] : memref<64x64xbf16, #tpu.memory_space<vmem>>, vector<64x64xbf16>
    %cst = arith.constant dense<0.000000e+00> : vector<32x64xf32>
    %3 = tpu.matmul %1, %2, %cst {dimension_numbers = #tpu.dot_dimension_numbers<[1], [0], [0], [1], [0, 0, 1, 1], [], []>} : vector<32x64xbf16>, vector<64x64xbf16>, vector<32x64xf32> -> vector<32x64xf32>
    %c0_4 = arith.constant 0 : index
    %c0_5 = arith.constant 0 : index
    %4 = vector.load %arg4[%c0_4, %c0_5] : memref<1x64xf32, #tpu.memory_space<vmem>>, vector<1x64xf32>
    %5 = vector.broadcast %4 : vector<1x64xf32> to vector<32x64xf32>
    %6 = arith.addf %3, %5 : vector<32x64xf32>
    %cst_6 = arith.constant 0.000000e+00 : f32
    %7 = vector.broadcast %cst_6 : f32 to vector<32x64xf32>
    %8 = arith.maximumf %6, %7 : vector<32x64xf32>
    %9 = arith.truncf %8 : vector<32x64xf32> to vector<32x64xbf16>
    %c0_7 = arith.constant 0 : index
    %c0_8 = arith.constant 0 : index
    %10 = vector.load %arg5[%c0_7, %c0_8] : memref<64x128xbf16, #tpu.memory_space<vmem>>, vector<64x128xbf16>
    %cst_9 = arith.constant dense<0.000000e+00> : vector<32x128xf32>
    %11 = tpu.matmul %9, %10, %cst_9 {dimension_numbers = #tpu.dot_dimension_numbers<[1], [0], [0], [1], [0, 0, 1, 1], [], []>} : vector<32x64xbf16>, vector<64x128xbf16>, vector<32x128xf32> -> vector<32x128xf32>
    %c0_10 = arith.constant 0 : index
    %c0_11 = arith.constant 0 : index
    %12 = vector.load %arg6[%c0_10, %c0_11] : memref<1x128xf32, #tpu.memory_space<vmem>>, vector<1x128xf32>
    %13 = vector.broadcast %12 : vector<1x128xf32> to vector<32x128xf32>
    %14 = arith.addf %11, %13 : vector<32x128xf32>
    %cst_12 = arith.constant 0.000000e+00 : f32
    %15 = vector.broadcast %cst_12 : f32 to vector<32x128xf32>
    %16 = arith.maximumf %14, %15 : vector<32x128xf32>
    %17 = arith.truncf %16 : vector<32x128xf32> to vector<32x128xbf16>
    %c0_13 = arith.constant 0 : index
    %c0_14 = arith.constant 0 : index
    %18 = vector.load %arg7[%c0_13, %c0_14] : memref<128x1024xbf16, #tpu.memory_space<vmem>>, vector<128x1024xbf16>
    %cst_15 = arith.constant dense<0.000000e+00> : vector<32x1024xf32>
    %19 = tpu.matmul %17, %18, %cst_15 {dimension_numbers = #tpu.dot_dimension_numbers<[1], [0], [0], [1], [0, 0, 1, 1], [], []>} : vector<32x128xbf16>, vector<128x1024xbf16>, vector<32x1024xf32> -> vector<32x1024xf32>
    %20 = vector.shape_cast %19 : vector<32x1024xf32> to vector<1x32x1024xf32>
    %cst_16 = arith.constant dense<0xFF800000> : vector<1x1024xf32>
    %21 = vector.multi_reduction <maximumf>, %20, %cst_16 [1] : vector<1x32x1024xf32> to vector<1x1024xf32>
    %c0_i32 = arith.constant 0 : i32
    %22 = arith.cmpi eq, %arg1, %c0_i32 : i32
    %23 = arith.extui %22 : i1 to i32
    %c0_i32_17 = arith.constant 0 : i32
    %24 = arith.cmpi ne, %23, %c0_i32_17 : i32
    scf.if %24 {
      %c0_22 = arith.constant 0 : index
      %c0_23 = arith.constant 0 : index
      %31 = vector.load %arg16[%c0_22, %c0_23] : memref<1x1024xf32, #tpu.memory_space<vmem>>, vector<1x1024xf32>
      tpu.vector_store %arg16[%c0_22, %c0_23], %21 {strides = array<i32>} : memref<1x1024xf32, #tpu.memory_space<vmem>>, vector<1x1024xf32>,
    } else {
    }
    %c0_i32_18 = arith.constant 0 : i32
    %25 = arith.cmpi sgt, %arg1, %c0_i32_18 : i32
    %26 = arith.extui %25 : i1 to i32
    %c0_i32_19 = arith.constant 0 : i32
    %27 = arith.cmpi ne, %26, %c0_i32_19 : i32
    scf.if %27 {
      %c0_22 = arith.constant 0 : index
      %c0_23 = arith.constant 0 : index
      %31 = vector.load %arg16[%c0_22, %c0_23] : memref<1x1024xf32, #tpu.memory_space<vmem>>, vector<1x1024xf32>
      %32 = arith.maximumf %31, %21 : vector<1x1024xf32>
      %c0_24 = arith.constant 0 : index
      %c0_25 = arith.constant 0 : index
      %33 = vector.load %arg16[%c0_24, %c0_25] : memref<1x1024xf32, #tpu.memory_space<vmem>>, vector<1x1024xf32>
      tpu.vector_store %arg16[%c0_24, %c0_25], %32 {strides = array<i32>} : memref<1x1024xf32, #tpu.memory_space<vmem>>, vector<1x1024xf32>,
    } else {
    }
    %c0_i32_20 = arith.constant 0 : i32
    %28 = arith.cmpi eq, %arg1, %c0_i32_20 : i32
    %29 = arith.extui %28 : i1 to i32
    %c0_i32_21 = arith.constant 0 : i32
    %30 = arith.cmpi ne, %29, %c0_i32_21 : i32
    scf.if %30 {
      %c0_22 = arith.constant 0 : index
      %c0_23 = arith.constant 0 : index
      %31 = vector.load %arg16[%c0_22, %c0_23] : memref<1x1024xf32, #tpu.memory_space<vmem>>, vector<1x1024xf32>
      %c0_24 = arith.constant 0 : index
      %c0_25 = arith.constant 0 : index
      %32 = vector.load %arg8[%c0_24, %c0_25] : memref<1x1024xf32, #tpu.memory_space<vmem>>, vector<1x1024xf32>
      %33 = arith.addf %31, %32 : vector<1x1024xf32>
      %cst_26 = arith.constant 0.000000e+00 : f32
      %34 = vector.broadcast %cst_26 : f32 to vector<1x1024xf32>
      %35 = arith.maximumf %33, %34 : vector<1x1024xf32>
      %36 = arith.truncf %35 : vector<1x1024xf32> to vector<1x1024xbf16>
      %c0_27 = arith.constant 0 : index
      %c0_28 = arith.constant 0 : index
      %37 = vector.load %arg9[%c0_27, %c0_28] : memref<1024x512xbf16, #tpu.memory_space<vmem>>, vector<1024x512xbf16>
      %cst_29 = arith.constant dense<0.000000e+00> : vector<1x512xf32>
      %38 = tpu.matmul %36, %37, %cst_29 {dimension_numbers = #tpu.dot_dimension_numbers<[1], [0], [0], [1], [0, 0, 1, 1], [], []>} : vector<1x1024xbf16>, vector<1024x512xbf16>, vector<1x512xf32> -> vector<1x512xf32>
      %c0_30 = arith.constant 0 : index
      %c0_31 = arith.constant 0 : index
      %39 = vector.load %arg10[%c0_30, %c0_31] : memref<1x512xf32, #tpu.memory_space<vmem>>, vector<1x512xf32>
      %40 = arith.addf %38, %39 : vector<1x512xf32>
      %cst_32 = arith.constant 0.000000e+00 : f32
      %41 = vector.broadcast %cst_32 : f32 to vector<1x512xf32>
      %42 = arith.maximumf %40, %41 : vector<1x512xf32>
      %43 = arith.truncf %42 : vector<1x512xf32> to vector<1x512xbf16>
      %c0_33 = arith.constant 0 : index
      %c0_34 = arith.constant 0 : index
      %44 = vector.load %arg11[%c0_33, %c0_34] : memref<512x256xbf16, #tpu.memory_space<vmem>>, vector<512x256xbf16>
      %cst_35 = arith.constant dense<0.000000e+00> : vector<1x256xf32>
      %45 = tpu.matmul %43, %44, %cst_35 {dimension_numbers = #tpu.dot_dimension_numbers<[1], [0], [0], [1], [0, 0, 1, 1], [], []>} : vector<1x512xbf16>, vector<512x256xbf16>, vector<1x256xf32> -> vector<1x256xf32>
      %c0_36 = arith.constant 0 : index
      %c0_37 = arith.constant 0 : index
      %46 = vector.load %arg12[%c0_36, %c0_37] : memref<1x256xf32, #tpu.memory_space<vmem>>, vector<1x256xf32>
      %47 = arith.addf %45, %46 : vector<1x256xf32>
      %cst_38 = arith.constant 0.000000e+00 : f32
      %48 = vector.broadcast %cst_38 : f32 to vector<1x256xf32>
      %49 = arith.maximumf %47, %48 : vector<1x256xf32>
      %50 = arith.truncf %49 : vector<1x256xf32> to vector<1x256xbf16>
      %c0_39 = arith.constant 0 : index
      %c0_40 = arith.constant 0 : index
      %51 = vector.load %arg13[%c0_39, %c0_40] : memref<256x4096xbf16, #tpu.memory_space<vmem>>, vector<256x4096xbf16>
      %cst_41 = arith.constant dense<0.000000e+00> : vector<1x4096xf32>
      %52 = tpu.matmul %50, %51, %cst_41 {dimension_numbers = #tpu.dot_dimension_numbers<[1], [0], [0], [1], [0, 0, 1, 1], [], []>} : vector<1x256xbf16>, vector<256x4096xbf16>, vector<1x4096xf32> -> vector<1x4096xf32>
      %c0_42 = arith.constant 0 : index
      %c0_43 = arith.constant 0 : index
      %53 = vector.load %arg14[%c0_42, %c0_43] : memref<1x4096xf32, #tpu.memory_space<vmem>>, vector<1x4096xf32>
      %54 = arith.addf %52, %53 : vector<1x4096xf32>
      %c0_44 = arith.constant 0 : index
      %c0_45 = arith.constant 0 : index
      %c0_46 = arith.constant 0 : index
      %55 = vector.load %arg15[%c0_44, %c0_45, %c0_46] : memref<1x1x4096xf32, #tpu.memory_space<vmem>>, vector<1x1x4096xf32>
      %56 = vector.shape_cast %55 : vector<1x1x4096xf32> to vector<1x4096xf32>
      %57 = vector.shape_cast %54 : vector<1x4096xf32> to vector<1x1x4096xf32>
      tpu.vector_store %arg15[%c0_44, %c0_45, %c0_46], %57 {strides = array<i32>} : memref<1x1x4096xf32, #tpu.memory_space<vmem>>, vector<1x1x4096xf32>,
    } else {
    }
    return
  }
  func.func @transform_0(%arg0: i32, %arg1: i32) -> (i32, i32, i32) {
    %c0_i32 = arith.constant 0 : i32
    %c0_i32_0 = arith.constant 0 : i32
    return %arg0, %arg1, %c0_i32 : i32, i32, i32
  }
  func.func @transform_1(%arg0: i32, %arg1: i32) -> (i32, i32) {
    %c0_i32 = arith.constant 0 : i32
    %c0_i32_0 = arith.constant 0 : i32
    %c0_i32_1 = arith.constant 0 : i32
    return %c0_i32, %c0_i32_0 : i32, i32
  }
  func.func @transform_2(%arg0: i32, %arg1: i32) -> (i32, i32) {
    %c0_i32 = arith.constant 0 : i32
    %c0_i32_0 = arith.constant 0 : i32
    %c0_i32_1 = arith.constant 0 : i32
    return %c0_i32, %c0_i32_0 : i32, i32
  }
  func.func @transform_3(%arg0: i32, %arg1: i32) -> (i32, i32) {
    %c0_i32 = arith.constant 0 : i32
    %c0_i32_0 = arith.constant 0 : i32
    %c0_i32_1 = arith.constant 0 : i32
    return %c0_i32, %c0_i32_0 : i32, i32
  }
  func.func @transform_4(%arg0: i32, %arg1: i32) -> (i32, i32) {
    %c0_i32 = arith.constant 0 : i32
    %c0_i32_0 = arith.constant 0 : i32
    %c0_i32_1 = arith.constant 0 : i32
    return %c0_i32, %c0_i32_0 : i32, i32
  }
  func.func @transform_5(%arg0: i32, %arg1: i32) -> (i32, i32) {
    %c0_i32 = arith.constant 0 : i32
    %c0_i32_0 = arith.constant 0 : i32
    %c0_i32_1 = arith.constant 0 : i32
    return %c0_i32, %c0_i32_0 : i32, i32
  }
  func.func @transform_6(%arg0: i32, %arg1: i32) -> (i32, i32) {
    %c0_i32 = arith.constant 0 : i32
    %c0_i32_0 = arith.constant 0 : i32
    %c0_i32_1 = arith.constant 0 : i32
    return %c0_i32, %c0_i32_0 : i32, i32
  }
  func.func @transform_7(%arg0: i32, %arg1: i32) -> (i32, i32) {
    %c0_i32 = arith.constant 0 : i32
    %c0_i32_0 = arith.constant 0 : i32
    %c0_i32_1 = arith.constant 0 : i32
    return %c0_i32, %c0_i32_0 : i32, i32
  }
  func.func @transform_8(%arg0: i32, %arg1: i32) -> (i32, i32) {
    %c0_i32 = arith.constant 0 : i32
    %c0_i32_0 = arith.constant 0 : i32
    %c0_i32_1 = arith.constant 0 : i32
    return %c0_i32, %c0_i32_0 : i32, i32
  }
  func.func @transform_9(%arg0: i32, %arg1: i32) -> (i32, i32) {
    %c0_i32 = arith.constant 0 : i32
    %c0_i32_0 = arith.constant 0 : i32
    %c0_i32_1 = arith.constant 0 : i32
    return %c0_i32, %c0_i32_0 : i32, i32
  }
  func.func @transform_10(%arg0: i32, %arg1: i32) -> (i32, i32) {
    %c0_i32 = arith.constant 0 : i32
    %c0_i32_0 = arith.constant 0 : i32
    %c0_i32_1 = arith.constant 0 : i32
    return %c0_i32, %c0_i32_0 : i32, i32
  }
  func.func @transform_11(%arg0: i32, %arg1: i32) -> (i32, i32) {
    %c0_i32 = arith.constant 0 : i32
    %c0_i32_0 = arith.constant 0 : i32
    %c0_i32_1 = arith.constant 0 : i32
    return %c0_i32, %c0_i32_0 : i32, i32
  }
  func.func @transform_12(%arg0: i32, %arg1: i32) -> (i32, i32) {
    %c0_i32 = arith.constant 0 : i32
    %c0_i32_0 = arith.constant 0 : i32
    %c0_i32_1 = arith.constant 0 : i32
    return %c0_i32, %c0_i32_0 : i32, i32
  }
  func.func @transform_13(%arg0: i32, %arg1: i32) -> (i32, i32, i32) {
    %c0_i32 = arith.constant 0 : i32
    %c0_i32_0 = arith.constant 0 : i32
    %c0_i32_1 = arith.constant 0 : i32
    return %arg0, %c0_i32, %c0_i32_0 : i32, i32, i32
  }
}

</mosaic_0001>

<llo_original>
// kernel: tpu_custom_call.1
$region0: #{tpu_custom_call.1}
  #allocation0 [shape = 'u32[]', space=smem, size = 0x4, offset = 0x4, fixed_abs, tag = 'smem constant byte address 0x4 - core index']
  #allocation1 [shape = 'u32[144,128]{1,0:T(1,128)}', space=vmem, size = 0x12000, scoped, tag = 'internal scratch']
  #allocation2 [shape = 'f32[1,1024]{1,0:T(1,128)}', space=vmem, size = 0x1000, scoped, tag = 'scratch operand']
  %s0 = inlined_call_operand.hbm [shape: bf16[2,32,64], index: 0, kind: input, shape index: {}]
  %s1 = inlined_call_operand.hbm [shape: bf16[64,64], index: 1, kind: input, shape index: {}]
  %s2 = inlined_call_operand.hbm [shape: f32[1,64], index: 2, kind: input, shape index: {}]
  %s3 = inlined_call_operand.hbm [shape: bf16[64,128], index: 3, kind: input, shape index: {}]
  %s4 = inlined_call_operand.hbm [shape: f32[1,128], index: 4, kind: input, shape index: {}]
  %s5 = inlined_call_operand.hbm [shape: bf16[128,1024], index: 5, kind: input, shape index: {}]
  %s6 = inlined_call_operand.hbm [shape: f32[1,1024], index: 6, kind: input, shape index: {}]
  %s7 = inlined_call_operand.hbm [shape: bf16[1024,512], index: 7, kind: input, shape index: {}]
  %s8 = inlined_call_operand.hbm [shape: f32[1,512], index: 8, kind: input, shape index: {}]
  %s9 = inlined_call_operand.hbm [shape: bf16[512,256], index: 9, kind: input, shape index: {}]
  %s10 = inlined_call_operand.hbm [shape: f32[1,256], index: 10, kind: input, shape index: {}]
  %s11 = inlined_call_operand.hbm [shape: bf16[256,4096], index: 11, kind: input, shape index: {}]
  %s12 = inlined_call_operand.hbm [shape: f32[1,4096], index: 12, kind: input, shape index: {}]
  %s13 = inlined_call_operand.hbm [shape: f32[2,1,4096], index: 13, kind: output, shape index: {}]
  %s14 = sld [smem:[#allocation0]]
  $region149: #{tpu_custom_call.1} parent=0
    _
  %s16 = ssub.s32 1, %s14
  %s17 = scalar_select 0, %s16, %s14
  $region1: #{tpu_custom_call.1} parent=0
    #allocation3 [shape = 'u8[16384]{0}', space=vmem, size = 0x4000, scoped, tag = 'input window, operand 0']
    #allocation4 [shape = 's32[2]{0}', space=sflag, size = 0x8, scoped, tag = 'scoped memory for tpu_custom_call.1']
    #allocation5 [shape = 's32[2]{0}', space=sflag, size = 0x8, scoped, tag = 'scoped memory for tpu_custom_call.1']
    #allocation6 [shape = 'u8[16384]{0}', space=vmem, size = 0x4000, scoped, tag = 'input window, operand 1, single buffered']
    #allocation7 [shape = 's32[1]{0}', space=sflag, size = 0x4, scoped, tag = 'scoped memory for tpu_custom_call.1']
    #allocation8 [shape = 'u8[512]{0}', space=vmem, size = 0x400, scoped, tag = 'input window, operand 2, single buffered']
    #allocation9 [shape = 'u8[16384]{0}', space=vmem, size = 0x4000, scoped, tag = 'input window, operand 3, single buffered']
    #allocation10 [shape = 's32[1]{0}', space=sflag, size = 0x4, scoped, tag = 'scoped memory for tpu_custom_call.1']
    #allocation11 [shape = 'u8[512]{0}', space=vmem, size = 0x400, scoped, tag = 'input window, operand 4, single buffered']
    #allocation12 [shape = 'u8[262144]{0}', space=vmem, size = 0x40000, scoped, tag = 'input window, operand 5, single buffered']
    #allocation13 [shape = 's32[1]{0}', space=sflag, size = 0x4, scoped, tag = 'scoped memory for tpu_custom_call.1']
    #allocation14 [shape = 'u8[4096]{0}', space=vmem, size = 0x1000, scoped, tag = 'input window, operand 6, single buffered']
    #allocation15 [shape = 'u8[1048576]{0}', space=vmem, size = 0x100000, scoped, tag = 'input window, operand 7, single buffered']
    #allocation16 [shape = 's32[1]{0}', space=sflag, size = 0x4, scoped, tag = 'scoped memory for tpu_custom_call.1']
    #allocation17 [shape = 'u8[2048]{0}', space=vmem, size = 0x800, scoped, tag = 'input window, operand 8, single buffered']
    #allocation18 [shape = 'u8[262144]{0}', space=vmem, size = 0x40000, scoped, tag = 'input window, operand 9, single buffered']
    #allocation19 [shape = 's32[1]{0}', space=sflag, size = 0x4, scoped, tag = 'scoped memory for tpu_custom_call.1']
    #allocation20 [shape = 'u8[1024]{0}', space=vmem, size = 0x400, scoped, tag = 'input window, operand 10, single buffered']
    #allocation21 [shape = 'u8[2097152]{0}', space=vmem, size = 0x200000, scoped, tag = 'input window, operand 11, single buffered']
    #allocation22 [shape = 's32[1]{0}', space=sflag, size = 0x4, scoped, tag = 'scoped memory for tpu_custom_call.1']
    #allocation23 [shape = 'u8[16384]{0}', space=vmem, size = 0x4000, scoped, tag = 'input window, operand 12, single buffered']
    #allocation24 [shape = 'u8[32768]{0}', space=vmem, size = 0x8000, scoped, tag = 'output window, operand 0']
    %18 = vsyncpa [#allocation4], 0
    %s19 = scalar_lea.sflag [#allocation4], 1
    %20 = vsyncpa %s19, 0
    %21 = vsyncpa [#allocation7], 0
    %22 = vsyncpa [#allocation10], 0
    %23 = vsyncpa [#allocation13], 0
    %24 = vsyncpa [#allocation16], 0
    %25 = vsyncpa [#allocation19], 0
    %26 = vsyncpa [#allocation22], 0
    %27 = vsyncpa [#allocation5], 0
    %s28 = scalar_lea.sflag [#allocation5], 1
    %29 = vsyncpa %s28, 0
    loop: start=0, step=1, limit=4
    $region2: #{tpu_custom_call.1} parent=1 // loop_pre_header
      _
    $region3: #{tpu_custom_call.1} parent=1 // loop_header
      %s31 = sphi 0, %s35
      %p32 = scmp.ge.s32.totalorder %s31, 4
      %s38 = sphi 0, %s50
      %s39 = sphi 0, %s46
      %s40 = sphi 0, %s38
      %s41 = sphi 0, %s39
      %s42 = sphi 0, %s40
      %s43 = sphi 0, %s41
      %s55 = sphi 0, %s57
      %s58 = sphi 0, %s55
      %s59 = sphi 0, %s58
      %s75 = sphi 0, %s59
      %s79 = sphi 0, %s79
      %s81 = sphi 0, %s79
      %s82 = sphi 0, %s81
      %s96 = sphi 0, %s82
      %s100 = sphi 0, %s100
      %s102 = sphi 0, %s100
      %s103 = sphi 0, %s102
      %s117 = sphi 0, %s103
      %s121 = sphi 0, %s121
      %s123 = sphi 0, %s121
      %s124 = sphi 0, %s123
      %s138 = sphi 0, %s124
      %s142 = sphi 0, %s142
      %s144 = sphi 0, %s142
      %s145 = sphi 0, %s144
      %s159 = sphi 0, %s145
      %s163 = sphi 0, %s163
      %s165 = sphi 0, %s163
      %s166 = sphi 0, %s165
      %s180 = sphi 0, %s166
      %s184 = sphi 0, %s184
      %s186 = sphi 0, %s184
      %s187 = sphi 0, %s186
      %s201 = sphi 0, %s187
      %s205 = sphi 0, %s205
      %s207 = sphi 0, %s205
      %s208 = sphi 0, %s207
      %s222 = sphi 0, %s208
      %s226 = sphi 0, %s226
      %s228 = sphi 0, %s226
      %s229 = sphi 0, %s228
      %s243 = sphi 0, %s229
      %s247 = sphi 0, %s247
      %s249 = sphi 0, %s247
      %s250 = sphi 0, %s249
      %s264 = sphi 0, %s250
      %s268 = sphi 0, %s268
      %s270 = sphi 0, %s268
      %s271 = sphi 0, %s270
      %s285 = sphi 0, %s271
      %s289 = sphi 0, %s289
      %s291 = sphi 0, %s289
      %s292 = sphi 0, %s291
      %s306 = sphi 0, %s292
      %s310 = sphi 0, %s310
      %s312 = sphi 0, %s310
      %s313 = sphi 0, %s312
      %s327 = sphi 0, %s313
      %s333 = sphi 0, %s335
      %s336 = sphi 0, %s333
      %s337 = sphi 0, %s336
      %s353 = sphi 0, %s337
    $region4: #{tpu_custom_call.1} parent=1 // loop_header_branch
      %34 = sbr.rel (%p32) target = $region8
    $region5: #{tpu_custom_call.1} parent=1 // loop_body
      %s36 = ssub.s32 %s31, 1
      %s37 = ssub.s32 %s31, 2
      %s44 = sadd.s32 1, %s39
      %p45 = scmp.ge.s32.totalorder %s44, 1
      %s46 = scalar_select %p45, 0, %s44
      %s47 = sadd.s32 1, %s38
      %s48 = scalar_select %p45, %s47, %s38
      %p49 = scmp.ge.s32.totalorder %s48, 2
      %s50 = scalar_select %p49, 0, %s48
      %s51 = ssub.s32 %s38, %s50
      %s52 = ssub.s32 %s39, %s46
      %s53 = sor.u32 %s51, %s52
      %p54 = scmp.eq.s32.totalorder %s53, 0
      %s56 = sadd.s32 %s55, 1
      %s57 = scalar_select %p54, %s55, %s56
      %p60 = pneg %p54
      %p61 = scmp.eq.s32.totalorder %s31, 1
      %p62 = por %p60, %p61
      %p63 = scmp.ne.s32.totalorder %s55, %s58
      %p64 = scmp.eq.s32.totalorder %s31, 0
      %p65 = por %p63, %p64
      %p66 = scmp.ne.s32.totalorder %s55, %s58
      %p67 = scmp.eq.s32.totalorder %s36, 1
      %p68 = por %p66, %p67
      %p69 = scmp.ne.s32.totalorder %s58, %s59
      %p70 = scmp.eq.s32.totalorder %s36, 0
      %p71 = por %p69, %p70
      %p72 = scmp.ne.s32.totalorder %s58, %s59
      %p73 = scmp.eq.s32.totalorder %s37, 1
      %p74 = por %p72, %p73
      %p76 = scmp.ne.s32.totalorder %s59, %s75
      %p77 = scmp.eq.s32.totalorder %s37, 0
      %p78 = por %p76, %p77
      %s80 = sadd.s32 %s79, 1
      %p83 = scmp.eq.s32.totalorder %s31, 1
      %p84 = scmp.ne.s32.totalorder %s79, %s81
      %p85 = scmp.eq.s32.totalorder %s31, 0
      %p86 = por %p84, %p85
      %p87 = scmp.ne.s32.totalorder %s79, %s81
      %p88 = scmp.eq.s32.totalorder %s36, 1
      %p89 = por %p87, %p88
      %p90 = scmp.ne.s32.totalorder %s81, %s82
      %p91 = scmp.eq.s32.totalorder %s36, 0
      %p92 = por %p90, %p91
      %p93 = scmp.ne.s32.totalorder %s81, %s82
      %p94 = scmp.eq.s32.totalorder %s37, 1
      %p95 = por %p93, %p94
      %p97 = scmp.ne.s32.totalorder %s82, %s96
      %p98 = scmp.eq.s32.totalorder %s37, 0
      %p99 = por %p97, %p98
      %s101 = sadd.s32 %s100, 1
      %p104 = scmp.eq.s32.totalorder %s31, 1
      %p105 = scmp.ne.s32.totalorder %s100, %s102
      %p106 = scmp.eq.s32.totalorder %s31, 0
      %p107 = por %p105, %p106
      %p108 = scmp.ne.s32.totalorder %s100, %s102
      %p109 = scmp.eq.s32.totalorder %s36, 1
      %p110 = por %p108, %p109
      %p111 = scmp.ne.s32.totalorder %s102, %s103
      %p112 = scmp.eq.s32.totalorder %s36, 0
      %p113 = por %p111, %p112
      %p114 = scmp.ne.s32.totalorder %s102, %s103
      %p115 = scmp.eq.s32.totalorder %s37, 1
      %p116 = por %p114, %p115
      %p118 = scmp.ne.s32.totalorder %s103, %s117
      %p119 = scmp.eq.s32.totalorder %s37, 0
      %p120 = por %p118, %p119
      %s122 = sadd.s32 %s121, 1
      %p125 = scmp.eq.s32.totalorder %s31, 1
      %p126 = scmp.ne.s32.totalorder %s121, %s123
      %p127 = scmp.eq.s32.totalorder %s31, 0
      %p128 = por %p126, %p127
      %p129 = scmp.ne.s32.totalorder %s121, %s123
      %p130 = scmp.eq.s32.totalorder %s36, 1
      %p131 = por %p129, %p130
      %p132 = scmp.ne.s32.totalorder %s123, %s124
      %p133 = scmp.eq.s32.totalorder %s36, 0
      %p134 = por %p132, %p133
      %p135 = scmp.ne.s32.totalorder %s123, %s124
      %p136 = scmp.eq.s32.totalorder %s37, 1
      %p137 = por %p135, %p136
      %p139 = scmp.ne.s32.totalorder %s124, %s138
      %p140 = scmp.eq.s32.totalorder %s37, 0
      %p141 = por %p139, %p140
      %s143 = sadd.s32 %s142, 1
      %p146 = scmp.eq.s32.totalorder %s31, 1
      %p147 = scmp.ne.s32.totalorder %s142, %s144
      %p148 = scmp.eq.s32.totalorder %s31, 0
      %p149 = por %p147, %p148
      %p150 = scmp.ne.s32.totalorder %s142, %s144
      %p151 = scmp.eq.s32.totalorder %s36, 1
      %p152 = por %p150, %p151
      %p153 = scmp.ne.s32.totalorder %s144, %s145
      %p154 = scmp.eq.s32.totalorder %s36, 0
      %p155 = por %p153, %p154
      %p156 = scmp.ne.s32.totalorder %s144, %s145
      %p157 = scmp.eq.s32.totalorder %s37, 1
      %p158 = por %p156, %p157
      %p160 = scmp.ne.s32.totalorder %s145, %s159
      %p161 = scmp.eq.s32.totalorder %s37, 0
      %p162 = por %p160, %p161
      %s164 = sadd.s32 %s163, 1
      %p167 = scmp.eq.s32.totalorder %s31, 1
      %p168 = scmp.ne.s32.totalorder %s163, %s165
      %p169 = scmp.eq.s32.totalorder %s31, 0
      %p170 = por %p168, %p169
      %p171 = scmp.ne.s32.totalorder %s163, %s165
      %p172 = scmp.eq.s32.totalorder %s36, 1
      %p173 = por %p171, %p172
      %p174 = scmp.ne.s32.totalorder %s165, %s166
      %p175 = scmp.eq.s32.totalorder %s36, 0
      %p176 = por %p174, %p175
      %p177 = scmp.ne.s32.totalorder %s165, %s166
      %p178 = scmp.eq.s32.totalorder %s37, 1
      %p179 = por %p177, %p178
      %p181 = scmp.ne.s32.totalorder %s166, %s180
      %p182 = scmp.eq.s32.totalorder %s37, 0
      %p183 = por %p181, %p182
      %s185 = sadd.s32 %s184, 1
      %p188 = scmp.eq.s32.totalorder %s31, 1
      %p189 = scmp.ne.s32.totalorder %s184, %s186
      %p190 = scmp.eq.s32.totalorder %s31, 0
      %p191 = por %p189, %p190
      %p192 = scmp.ne.s32.totalorder %s184, %s186
      %p193 = scmp.eq.s32.totalorder %s36, 1
      %p194 = por %p192, %p193
      %p195 = scmp.ne.s32.totalorder %s186, %s187
      %p196 = scmp.eq.s32.totalorder %s36, 0
      %p197 = por %p195, %p196
      %p198 = scmp.ne.s32.totalorder %s186, %s187
      %p199 = scmp.eq.s32.totalorder %s37, 1
      %p200 = por %p198, %p199
      %p202 = scmp.ne.s32.totalorder %s187, %s201
      %p203 = scmp.eq.s32.totalorder %s37, 0
      %p204 = por %p202, %p203
      %s206 = sadd.s32 %s205, 1
      %p209 = scmp.eq.s32.totalorder %s31, 1
      %p210 = scmp.ne.s32.totalorder %s205, %s207
      %p211 = scmp.eq.s32.totalorder %s31, 0
      %p212 = por %p210, %p211
      %p213 = scmp.ne.s32.totalorder %s205, %s207
      %p214 = scmp.eq.s32.totalorder %s36, 1
      %p215 = por %p213, %p214
      %p216 = scmp.ne.s32.totalorder %s207, %s208
      %p217 = scmp.eq.s32.totalorder %s36, 0
      %p218 = por %p216, %p217
      %p219 = scmp.ne.s32.totalorder %s207, %s208
      %p220 = scmp.eq.s32.totalorder %s37, 1
      %p221 = por %p219, %p220
      %p223 = scmp.ne.s32.totalorder %s208, %s222
      %p224 = scmp.eq.s32.totalorder %s37, 0
      %p225 = por %p223, %p224
      %s227 = sadd.s32 %s226, 1
      %p230 = scmp.eq.s32.totalorder %s31, 1
      %p231 = scmp.ne.s32.totalorder %s226, %s228
      %p232 = scmp.eq.s32.totalorder %s31, 0
      %p233 = por %p231, %p232
      %p234 = scmp.ne.s32.totalorder %s226, %s228
      %p235 = scmp.eq.s32.totalorder %s36, 1
      %p236 = por %p234, %p235
      %p237 = scmp.ne.s32.totalorder %s228, %s229
      %p238 = scmp.eq.s32.totalorder %s36, 0
      %p239 = por %p237, %p238
      %p240 = scmp.ne.s32.totalorder %s228, %s229
      %p241 = scmp.eq.s32.totalorder %s37, 1
      %p242 = por %p240, %p241
      %p244 = scmp.ne.s32.totalorder %s229, %s243
      %p245 = scmp.eq.s32.totalorder %s37, 0
      %p246 = por %p244, %p245
      %s248 = sadd.s32 %s247, 1
      %p251 = scmp.eq.s32.totalorder %s31, 1
      %p252 = scmp.ne.s32.totalorder %s247, %s249
      %p253 = scmp.eq.s32.totalorder %s31, 0
      %p254 = por %p252, %p253
      %p255 = scmp.ne.s32.totalorder %s247, %s249
      %p256 = scmp.eq.s32.totalorder %s36, 1
      %p257 = por %p255, %p256
      %p258 = scmp.ne.s32.totalorder %s249, %s250
      %p259 = scmp.eq.s32.totalorder %s36, 0
      %p260 = por %p258, %p259
      %p261 = scmp.ne.s32.totalorder %s249, %s250
      %p262 = scmp.eq.s32.totalorder %s37, 1
      %p263 = por %p261, %p262
      %p265 = scmp.ne.s32.totalorder %s250, %s264
      %p266 = scmp.eq.s32.totalorder %s37, 0
      %p267 = por %p265, %p266
      %s269 = sadd.s32 %s268, 1
      %p272 = scmp.eq.s32.totalorder %s31, 1
      %p273 = scmp.ne.s32.totalorder %s268, %s270
      %p274 = scmp.eq.s32.totalorder %s31, 0
      %p275 = por %p273, %p274
      %p276 = scmp.ne.s32.totalorder %s268, %s270
      %p277 = scmp.eq.s32.totalorder %s36, 1
      %p278 = por %p276, %p277
      %p279 = scmp.ne.s32.totalorder %s270, %s271
      %p280 = scmp.eq.s32.totalorder %s36, 0
      %p281 = por %p279, %p280
      %p282 = scmp.ne.s32.totalorder %s270, %s271
      %p283 = scmp.eq.s32.totalorder %s37, 1
      %p284 = por %p282, %p283
      %p286 = scmp.ne.s32.totalorder %s271, %s285
      %p287 = scmp.eq.s32.totalorder %s37, 0
      %p288 = por %p286, %p287
      %s290 = sadd.s32 %s289, 1
      %p293 = scmp.eq.s32.totalorder %s31, 1
      %p294 = scmp.ne.s32.totalorder %s289, %s291
      %p295 = scmp.eq.s32.totalorder %s31, 0
      %p296 = por %p294, %p295
      %p297 = scmp.ne.s32.totalorder %s289, %s291
      %p298 = scmp.eq.s32.totalorder %s36, 1
      %p299 = por %p297, %p298
      %p300 = scmp.ne.s32.totalorder %s291, %s292
      %p301 = scmp.eq.s32.totalorder %s36, 0
      %p302 = por %p300, %p301
      %p303 = scmp.ne.s32.totalorder %s291, %s292
      %p304 = scmp.eq.s32.totalorder %s37, 1
      %p305 = por %p303, %p304
      %p307 = scmp.ne.s32.totalorder %s292, %s306
      %p308 = scmp.eq.s32.totalorder %s37, 0
      %p309 = por %p307, %p308
      %s311 = sadd.s32 %s310, 1
      %p314 = scmp.eq.s32.totalorder %s31, 1
      %p315 = scmp.ne.s32.totalorder %s310, %s312
      %p316 = scmp.eq.s32.totalorder %s31, 0
      %p317 = por %p315, %p316
      %p318 = scmp.ne.s32.totalorder %s310, %s312
      %p319 = scmp.eq.s32.totalorder %s36, 1
      %p320 = por %p318, %p319
      %p321 = scmp.ne.s32.totalorder %s312, %s313
      %p322 = scmp.eq.s32.totalorder %s36, 0
      %p323 = por %p321, %p322
      %p324 = scmp.ne.s32.totalorder %s312, %s313
      %p325 = scmp.eq.s32.totalorder %s37, 1
      %p326 = por %p324, %p325
      %p328 = scmp.ne.s32.totalorder %s313, %s327
      %p329 = scmp.eq.s32.totalorder %s37, 0
      %p330 = por %p328, %p329
      %s331 = ssub.s32 %s38, %s50
      %p332 = scmp.eq.s32.totalorder %s331, 0
      %s334 = sadd.s32 %s333, 1
      %s335 = scalar_select %p332, %s333, %s334
      %p338 = pneg %p332
      %p339 = scmp.eq.s32.totalorder %s31, 1
      %p340 = por %p338, %p339
      %p341 = scmp.ne.s32.totalorder %s333, %s336
      %p342 = scmp.eq.s32.totalorder %s31, 0
      %p343 = por %p341, %p342
      %p344 = scmp.ne.s32.totalorder %s333, %s336
      %p345 = scmp.eq.s32.totalorder %s36, 1
      %p346 = por %p344, %p345
      %p347 = scmp.ne.s32.totalorder %s336, %s337
      %p348 = scmp.eq.s32.totalorder %s36, 0
      %p349 = por %p347, %p348
      %p350 = scmp.ne.s32.totalorder %s336, %s337
      %p351 = scmp.eq.s32.totalorder %s37, 1
      %p352 = por %p350, %p351
      %p354 = scmp.ne.s32.totalorder %s337, %s353
      %p355 = scmp.eq.s32.totalorder %s37, 0
      %p356 = por %p354, %p355
      %p357 = scmp.le.s32.totalorder 1, %s31
      %p358 = scmp.lt.s32.totalorder %s31, 3
      %p359 = pnand %p357, %p358
      %p360 = pneg %p359
      // Predicated region
      $region9: #{tpu_custom_call.1} parent=5 // pred_check
        _
      $region10: #{tpu_custom_call.1} parent=5 // pred_check_branch
        %362 = sbr.rel (%p359) target = $region12
      $region11: #{tpu_custom_call.1} parent=5 // pred_region
        %s363 = ssub.s32 %s31, 1
        // Predicated region
        $region13: #{tpu_custom_call.1} parent=11 // pred_check
          %p364 = pneg %p92
        $region14: #{tpu_custom_call.1} parent=11 // pred_check_branch
          %366 = sbr.rel (%p364) target = $region16
        $region15: #{tpu_custom_call.1} parent=11 // pred_region
          %s368 = ssub.s32 512, 512
          %369 = vsyncadd [#allocation7], %s368
          %s370 = sshll.u32 [#allocation6], 4
          %s371 = int_to_ptr.vmem [resolvable:$true] %s370
          %376 = dma.hbm_to_vmem [thread:$0]  %s1, 512, %s371, [#allocation7], 64, 64, 4
        $region16: #{tpu_custom_call.1} parent=11 // pred_fallthru
          _
        // Predicated region
        $region17: #{tpu_custom_call.1} parent=11 // pred_check
          %p377 = pneg %p113
        $region18: #{tpu_custom_call.1} parent=11 // pred_check_branch
          %379 = sbr.rel (%p377) target = $region20
        $region19: #{tpu_custom_call.1} parent=11 // pred_region
          %s381 = ssub.s32 16, 16
          %382 = vsyncadd [#allocation7], %s381
          %s384 = sshll.u32 [#allocation8], 4
          %s385 = int_to_ptr.vmem [resolvable:$true] %s384
          %387 = dma.hbm_to_vmem [thread:$0]  %s2, 16, %s385, [#allocation7]
        $region20: #{tpu_custom_call.1} parent=11 // pred_fallthru
          _
        // Predicated region
        $region21: #{tpu_custom_call.1} parent=11 // pred_check
          %p388 = pneg %p134
        $region22: #{tpu_custom_call.1} parent=11 // pred_check_branch
          %390 = sbr.rel (%p388) target = $region24
        $region23: #{tpu_custom_call.1} parent=11 // pred_region
          %s392 = ssub.s32 512, 512
          %393 = vsyncadd [#allocation10], %s392
          %s394 = sshll.u32 [#allocation9], 4
          %s395 = int_to_ptr.vmem [resolvable:$true] %s394
          %400 = dma.hbm_to_vmem [thread:$0]  %s3, 512, %s395, [#allocation10], 64, 64, 4
        $region24: #{tpu_custom_call.1} parent=11 // pred_fallthru
          _
        // Predicated region
        $region25: #{tpu_custom_call.1} parent=11 // pred_check
          %p401 = pneg %p155
        $region26: #{tpu_custom_call.1} parent=11 // pred_check_branch
          %403 = sbr.rel (%p401) target = $region28
        $region27: #{tpu_custom_call.1} parent=11 // pred_region
          %s405 = ssub.s32 16, 16
          %406 = vsyncadd [#allocation10], %s405
          %s408 = sshll.u32 [#allocation11], 4
          %s409 = int_to_ptr.vmem [resolvable:$true] %s408
          %411 = dma.hbm_to_vmem [thread:$0]  %s4, 16, %s409, [#allocation10]
        $region28: #{tpu_custom_call.1} parent=11 // pred_fallthru
          _
        // Predicated region
        $region29: #{tpu_custom_call.1} parent=11 // pred_check
          %p412 = pneg %p176
        $region30: #{tpu_custom_call.1} parent=11 // pred_check_branch
          %414 = sbr.rel (%p412) target = $region32
        $region31: #{tpu_custom_call.1} parent=11 // pred_region
          %s416 = ssub.s32 8192, 8192
          %417 = vsyncadd [#allocation13], %s416
          %s418 = sshll.u32 [#allocation12], 4
          %s419 = int_to_ptr.vmem [resolvable:$true] %s418
          %424 = dma.hbm_to_vmem [thread:$0]  %s5, 8192, %s419, [#allocation13], 512, 512, 32
        $region32: #{tpu_custom_call.1} parent=11 // pred_fallthru
          _
        // Predicated region
        $region33: #{tpu_custom_call.1} parent=11 // pred_check
          %p425 = pneg %p197
        $region34: #{tpu_custom_call.1} parent=11 // pred_check_branch
          %427 = sbr.rel (%p425) target = $region36
        $region35: #{tpu_custom_call.1} parent=11 // pred_region
          %s429 = ssub.s32 128, 128
          %430 = vsyncadd [#allocation13], %s429
          %s432 = sshll.u32 [#allocation14], 4
          %s433 = int_to_ptr.vmem [resolvable:$true] %s432
          %435 = dma.hbm_to_vmem [thread:$0]  %s6, 128, %s433, [#allocation13]
        $region36: #{tpu_custom_call.1} parent=11 // pred_fallthru
          _
        // Predicated region
        $region37: #{tpu_custom_call.1} parent=11 // pred_check
          %p436 = pneg %p218
        $region38: #{tpu_custom_call.1} parent=11 // pred_check_branch
          %438 = sbr.rel (%p436) target = $region40
        $region39: #{tpu_custom_call.1} parent=11 // pred_region
          %s440 = ssub.s32 32768, 32768
          %441 = vsyncadd [#allocation16], %s440
          %s442 = sshll.u32 [#allocation15], 4
          %s443 = int_to_ptr.vmem [resolvable:$true] %s442
          %448 = dma.hbm_to_vmem [thread:$0]  %s7, 32768, %s443, [#allocation16], 256, 256, 16
        $region40: #{tpu_custom_call.1} parent=11 // pred_fallthru
          _
        // Predicated region
        $region41: #{tpu_custom_call.1} parent=11 // pred_check
          %p449 = pneg %p239
        $region42: #{tpu_custom_call.1} parent=11 // pred_check_branch
          %451 = sbr.rel (%p449) target = $region44
        $region43: #{tpu_custom_call.1} parent=11 // pred_region
          %s453 = ssub.s32 64, 64
          %454 = vsyncadd [#allocation16], %s453
          %s456 = sshll.u32 [#allocation17], 4
          %s457 = int_to_ptr.vmem [resolvable:$true] %s456
          %459 = dma.hbm_to_vmem [thread:$0]  %s8, 64, %s457, [#allocation16]
        $region44: #{tpu_custom_call.1} parent=11 // pred_fallthru
          _
        // Predicated region
        $region45: #{tpu_custom_call.1} parent=11 // pred_check
          %p460 = pneg %p260
        $region46: #{tpu_custom_call.1} parent=11 // pred_check_branch
          %462 = sbr.rel (%p460) target = $region48
        $region47: #{tpu_custom_call.1} parent=11 // pred_region
          %s464 = ssub.s32 8192, 8192
          %465 = vsyncadd [#allocation19], %s464
          %s466 = sshll.u32 [#allocation18], 4
          %s467 = int_to_ptr.vmem [resolvable:$true] %s466
          %472 = dma.hbm_to_vmem [thread:$0]  %s9, 8192, %s467, [#allocation19], 128, 128, 8
        $region48: #{tpu_custom_call.1} parent=11 // pred_fallthru
          _
        // Predicated region
        $region49: #{tpu_custom_call.1} parent=11 // pred_check
          %p473 = pneg %p281
        $region50: #{tpu_custom_call.1} parent=11 // pred_check_branch
          %475 = sbr.rel (%p473) target = $region52
        $region51: #{tpu_custom_call.1} parent=11 // pred_region
          %s477 = ssub.s32 32, 32
          %478 = vsyncadd [#allocation19], %s477
          %s480 = sshll.u32 [#allocation20], 4
          %s481 = int_to_ptr.vmem [resolvable:$true] %s480
          %483 = dma.hbm_to_vmem [thread:$0]  %s10, 32, %s481, [#allocation19]
        $region52: #{tpu_custom_call.1} parent=11 // pred_fallthru
          _
        // Predicated region
        $region53: #{tpu_custom_call.1} parent=11 // pred_check
          %p484 = pneg %p302
        $region54: #{tpu_custom_call.1} parent=11 // pred_check_branch
          %486 = sbr.rel (%p484) target = $region56
        $region55: #{tpu_custom_call.1} parent=11 // pred_region
          %s488 = ssub.s32 65536, 65536
          %489 = vsyncadd [#allocation22], %s488
          %s490 = sshll.u32 [#allocation21], 4
          %s491 = int_to_ptr.vmem [resolvable:$true] %s490
          %496 = dma.hbm_to_vmem [thread:$0]  %s11, 65536, %s491, [#allocation22], 2048, 2048, 128
        $region56: #{tpu_custom_call.1} parent=11 // pred_fallthru
          _
        // Predicated region
        $region57: #{tpu_custom_call.1} parent=11 // pred_check
          %p497 = pneg %p323
        $region58: #{tpu_custom_call.1} parent=11 // pred_check_branch
          %499 = sbr.rel (%p497) target = $region60
        $region59: #{tpu_custom_call.1} parent=11 // pred_region
          %s501 = ssub.s32 512, 512
          %502 = vsyncadd [#allocation22], %s501
          %s504 = sshll.u32 [#allocation23], 4
          %s505 = int_to_ptr.vmem [resolvable:$true] %s504
          %507 = dma.hbm_to_vmem [thread:$0]  %s12, 512, %s505, [#allocation22]
        $region60: #{tpu_custom_call.1} parent=11 // pred_fallthru
          _
      $region12: #{tpu_custom_call.1} parent=5 // pred_fallthru
        _
      %p508 = scmp.lt.s32.totalorder %s31, 2
      // Predicated region
      $region61: #{tpu_custom_call.1} parent=5 // pred_check
        %p509 = pneg %p508
      $region62: #{tpu_custom_call.1} parent=5 // pred_check_branch
        %511 = sbr.rel (%p509) target = $region64
      $region63: #{tpu_custom_call.1} parent=5 // pred_region
        // Predicated region
        $region65: #{tpu_custom_call.1} parent=63 // pred_check
          %p512 = pneg %p65
        $region66: #{tpu_custom_call.1} parent=63 // pred_check_branch
          %514 = sbr.rel (%p512) target = $region68
        $region67: #{tpu_custom_call.1} parent=63 // pred_region
          %s515 = sand.u32 %s55, 1
          %s516 = scalar_lea.sflag [#allocation4], %s515
          %s517 = sand.u32 %s55, 1
          %s518 = smul.addr %s517, 16
          %s519 = scalar_lea.vmem [#allocation3], %s518
          %s520 = smul.u32 4, %s39
          %s522 = ssub.s32 256, 256
          %523 = vsyncadd %s516, %s522
          %s524 = smul.addr %s38, 4
          %s525 = sadd.s32 %s520, %s524
          %s526 = smul.addr %s525, 64
          %s527 = scalar_lea.hbm %s0, %s526
          %s528 = sshll.u32 %s519, 4
          %s529 = int_to_ptr.vmem [resolvable:$true] %s528
          %534 = dma.hbm_to_vmem [thread:$0]  %s527, 256, %s529, %s516, 64, 64, 4
        $region68: #{tpu_custom_call.1} parent=63 // pred_fallthru
          _
      $region64: #{tpu_custom_call.1} parent=5 // pred_fallthru
        _
      %p535 = scmp.le.s32.totalorder 1, %s31
      %p536 = scmp.lt.s32.totalorder %s31, 3
      %p537 = pnand %p535, %p536
      %p538 = pneg %p537
      // Predicated region
      $region69: #{tpu_custom_call.1} parent=5 // pred_check
        _
      $region70: #{tpu_custom_call.1} parent=5 // pred_check_branch
        %540 = sbr.rel (%p537) target = $region72
      $region71: #{tpu_custom_call.1} parent=5 // pred_region
        %s541 = ssub.s32 %s31, 1
        %s542 = sand.u32 %s58, 1
        %s543 = scalar_lea.sflag [#allocation4], %s542
        %s544 = sand.u32 %s58, 1
        %s545 = smul.addr %s544, 16
        %s546 = scalar_lea.vmem [#allocation3], %s545
        // Predicated region
        $region73: #{tpu_custom_call.1} parent=71 // pred_check
          %p547 = pneg %p71
        $region74: #{tpu_custom_call.1} parent=71 // pred_check_branch
          %549 = sbr.rel (%p547) target = $region76
        $region75: #{tpu_custom_call.1} parent=71 // pred_region
          %550 = dma.done %s543, 256
        $region76: #{tpu_custom_call.1} parent=71 // pred_fallthru
          _
        // Predicated region
        $region77: #{tpu_custom_call.1} parent=71 // pred_check
          %p551 = pneg %p92
        $region78: #{tpu_custom_call.1} parent=71 // pred_check_branch
          %553 = sbr.rel (%p551) target = $region80
        $region79: #{tpu_custom_call.1} parent=71 // pred_region
          %554 = dma.done [#allocation7], 512
        $region80: #{tpu_custom_call.1} parent=71 // pred_fallthru
          _
        // Predicated region
        $region81: #{tpu_custom_call.1} parent=71 // pred_check
          %p555 = pneg %p113
        $region82: #{tpu_custom_call.1} parent=71 // pred_check_branch
          %557 = sbr.rel (%p555) target = $region84
        $region83: #{tpu_custom_call.1} parent=71 // pred_region
          %558 = dma.done [#allocation7], 16
        $region84: #{tpu_custom_call.1} parent=71 // pred_fallthru
          _
        // Predicated region
        $region85: #{tpu_custom_call.1} parent=71 // pred_check
          %p559 = pneg %p134
        $region86: #{tpu_custom_call.1} parent=71 // pred_check_branch
          %561 = sbr.rel (%p559) target = $region88
        $region87: #{tpu_custom_call.1} parent=71 // pred_region
          %562 = dma.done [#allocation10], 512
        $region88: #{tpu_custom_call.1} parent=71 // pred_fallthru
          _
        // Predicated region
        $region89: #{tpu_custom_call.1} parent=71 // pred_check
          %p563 = pneg %p155
        $region90: #{tpu_custom_call.1} parent=71 // pred_check_branch
          %565 = sbr.rel (%p563) target = $region92
        $region91: #{tpu_custom_call.1} parent=71 // pred_region
          %566 = dma.done [#allocation10], 16
        $region92: #{tpu_custom_call.1} parent=71 // pred_fallthru
          _
        // Predicated region
        $region93: #{tpu_custom_call.1} parent=71 // pred_check
          %p567 = pneg %p176
        $region94: #{tpu_custom_call.1} parent=71 // pred_check_branch
          %569 = sbr.rel (%p567) target = $region96
        $region95: #{tpu_custom_call.1} parent=71 // pred_region
          %570 = dma.done [#allocation13], 8192
        $region96: #{tpu_custom_call.1} parent=71 // pred_fallthru
          _
        // Predicated region
        $region97: #{tpu_custom_call.1} parent=71 // pred_check
          %p571 = pneg %p197
        $region98: #{tpu_custom_call.1} parent=71 // pred_check_branch
          %573 = sbr.rel (%p571) target = $region100
        $region99: #{tpu_custom_call.1} parent=71 // pred_region
          %574 = dma.done [#allocation13], 128
        $region100: #{tpu_custom_call.1} parent=71 // pred_fallthru
          _
        // Predicated region
        $region101: #{tpu_custom_call.1} parent=71 // pred_check
          %p575 = pneg %p218
        $region102: #{tpu_custom_call.1} parent=71 // pred_check_branch
          %577 = sbr.rel (%p575) target = $region104
        $region103: #{tpu_custom_call.1} parent=71 // pred_region
          %578 = dma.done [#allocation16], 32768
        $region104: #{tpu_custom_call.1} parent=71 // pred_fallthru
          _
        // Predicated region
        $region105: #{tpu_custom_call.1} parent=71 // pred_check
          %p579 = pneg %p239
        $region106: #{tpu_custom_call.1} parent=71 // pred_check_branch
          %581 = sbr.rel (%p579) target = $region108
        $region107: #{tpu_custom_call.1} parent=71 // pred_region
          %582 = dma.done [#allocation16], 64
        $region108: #{tpu_custom_call.1} parent=71 // pred_fallthru
          _
        // Predicated region
        $region109: #{tpu_custom_call.1} parent=71 // pred_check
          %p583 = pneg %p260
        $region110: #{tpu_custom_call.1} parent=71 // pred_check_branch
          %585 = sbr.rel (%p583) target = $region112
        $region111: #{tpu_custom_call.1} parent=71 // pred_region
          %586 = dma.done [#allocation19], 8192
        $region112: #{tpu_custom_call.1} parent=71 // pred_fallthru
          _
        // Predicated region
        $region113: #{tpu_custom_call.1} parent=71 // pred_check
          %p587 = pneg %p281
        $region114: #{tpu_custom_call.1} parent=71 // pred_check_branch
          %589 = sbr.rel (%p587) target = $region116
        $region115: #{tpu_custom_call.1} parent=71 // pred_region
          %590 = dma.done [#allocation19], 32
        $region116: #{tpu_custom_call.1} parent=71 // pred_fallthru
          _
        // Predicated region
        $region117: #{tpu_custom_call.1} parent=71 // pred_check
          %p591 = pneg %p302
        $region118: #{tpu_custom_call.1} parent=71 // pred_check_branch
          %593 = sbr.rel (%p591) target = $region120
        $region119: #{tpu_custom_call.1} parent=71 // pred_region
          %594 = dma.done [#allocation22], 65536
        $region120: #{tpu_custom_call.1} parent=71 // pred_fallthru
          _
        // Predicated region
        $region121: #{tpu_custom_call.1} parent=71 // pred_check
          %p595 = pneg %p323
        $region122: #{tpu_custom_call.1} parent=71 // pred_check_branch
          %597 = sbr.rel (%p595) target = $region124
        $region123: #{tpu_custom_call.1} parent=71 // pred_region
          %598 = dma.done [#allocation22], 512
        $region124: #{tpu_custom_call.1} parent=71 // pred_fallthru
          _
        %s599 = sand.u32 %s58, 1
        %s600 = scalar_lea.sflag [#allocation4], %s599
        %s601 = sand.u32 %s58, 1
        %s602 = smul.addr %s601, 16
        %s603 = scalar_lea.vmem [#allocation3], %s602
        %p604 = pneg %p71
        %p605 = pneg %p68
        %p606 = pneg %p92
        %p607 = pneg %p89
        %p608 = pneg %p113
        %p609 = pneg %p110
        %p610 = pneg %p134
        %p611 = pneg %p131
        %p612 = pneg %p155
        %p613 = pneg %p152
        %p614 = pneg %p176
        %p615 = pneg %p173
        %p616 = pneg %p197
        %p617 = pneg %p194
        %p618 = pneg %p218
        %p619 = pneg %p215
        %p620 = pneg %p239
        %p621 = pneg %p236
        %p622 = pneg %p260
        %p623 = pneg %p257
        %p624 = pneg %p281
        %p625 = pneg %p278
        %p626 = pneg %p302
        %p627 = pneg %p299
        %p628 = pneg %p323
        %p629 = pneg %p320
        %p630 = pneg %p349
        %p631 = pneg %p346
        %s632 = sand.u32 %s336, 1
        %s633 = scalar_lea.sflag [#allocation5], %s632
        %s634 = sand.u32 %s336, 1
        %s635 = smul.addr %s634, 32
        %s636 = scalar_lea.vmem [#allocation24], %s635
        %s637 = smul.u32 4, %s41
        %v639 = vld [vmem:[%s546] sm:$0xf]
        %v640 = vld [vmem:[%s546 + $0x4] sm:$0xf]
        %v641 = vld [vmem:[%s546 + $0x8] sm:$0xf]
        %v642 = vld [vmem:[%s546 + $0xc] sm:$0xf]
        %v643 = vld [vmem:[#allocation6] sm:$0xf]
        %v644 = vld [vmem:[#allocation6 + $0x4] sm:$0xf]
        %v645 = vld [vmem:[#allocation6 + $0x8] sm:$0xf]
        %v646 = vld [vmem:[#allocation6 + $0xc] sm:$0xf]
        %v647 = vld [vmem:[#allocation6 + $0x10] sm:$0xf]
        %v648 = vld [vmem:[#allocation6 + $0x14] sm:$0xf]
        %v649 = vld [vmem:[#allocation6 + $0x18] sm:$0xf]
        %v650 = vld [vmem:[#allocation6 + $0x1c] sm:$0xf]
        %v651 = vld [vmem:[#allocation8] sm:$0x1]
        %v653 = vlaneseq
        %v654 = vshrl.u32 %v653, 7
        %v655 = vsub.s32 0, %v654
        %v656 = vrot.slane %v651, %v655
        %v662 = vunpack.c.l.b16 %v639
        %v663 = vunpack.c.l.b16 %v640
        %v664 = vunpack.c.l.b16 %v641
        %v665 = vunpack.c.l.b16 %v642
        %v666 = vpack.c.b16 %v663, %v662
        %v667 = vpack.c.b16 %v665, %v664
        %v676 = vunpack.c.l.b16 %v643
        %v677 = vunpack.c.l.b16 %v644
        %v678 = vunpack.c.l.b16 %v645
        %v679 = vunpack.c.l.b16 %v646
        %v680 = vunpack.c.l.b16 %v647
        %v681 = vunpack.c.l.b16 %v648
        %v682 = vunpack.c.l.b16 %v649
        %v683 = vunpack.c.l.b16 %v650
        %v684 = vpack.c.b16 %v677, %v676
        %v685 = vpack.c.b16 %v679, %v678
        %v686 = vpack.c.b16 %v681, %v680
        %v687 = vpack.c.b16 %v683, %v682
        %vm692 = vcmask 523264
        %v694 = vsel %vm692, %v666, 0
        %v697 = vsel %vm692, %v667, 0
        %699 = vmatprep.subr.bf16.mxu0 0
        %700 = vmatpush1.bf16.msra.mxu0 %v684
        %701 = vmatprep.subr.bf16.mxu0 0
        %702 = vmatpush1.bf16.msra.mxu0 %v685
        %703 = vmatprep.subr.bf16.mxu0 0
        %704 = vmatpush1.bf16.msra.mxu0 %v686
        %705 = vmatprep.subr.bf16.mxu0 0
        %706 = vmatpush1.bf16.msra.mxu0 %v687
        %707 = vmatprep.subr.bf16.mxu0 0
        %708 = vmatpush1.bf16.msra.mxu0 0
        %709 = vmatprep.subr.bf16.mxu0 0
        %710 = vmatpush1.bf16.msra.mxu0 0
        %711 = vmatprep.subr.bf16.mxu0 0
        %712 = vmatpush1.bf16.msra.mxu0 0
        %713 = vmatprep.subr.bf16.mxu0 0
        %714 = vmatpush1.bf16.msra.mxu0 0
        %715 = vmatprep.subr.bf16.mxu0 0
        %716 = vmatpush1.bf16.msra.mxu0 0
        %717 = vmatprep.subr.bf16.mxu0 0
        %718 = vmatpush1.bf16.msra.mxu0 0
        %719 = vmatprep.subr.bf16.mxu0 0
        %720 = vmatpush1.bf16.msra.mxu0 0
        %721 = vmatprep.subr.bf16.mxu0 0
        %722 = vmatpush1.bf16.msra.mxu0 0
        %723 = vmatprep.subr.bf16.mxu0 0
        %724 = vmatpush1.bf16.msra.mxu0 0
        %725 = vmatprep.subr.bf16.mxu0 0
        %726 = vmatpush1.bf16.msra.mxu0 0
        %727 = vmatprep.subr.bf16.mxu0 0
        %728 = vmatpush1.bf16.msra.mxu0 0
        %729 = vmatprep.subr.bf16.mxu0 0
        %730 = vmatpush1.bf16.msra.mxu0 0
        %731 = vmatprep.mubr.bf16.mxu0 0
        %732 = vmatmul.mubr.bf16.gmra.mrb[0].mxu0 %v694
        %v733 = vpop.f32.mrb[0].mxu0
        %v734 = vadd.f32 %v656, %v733
        %v735 = vpop.f32.mrb[0].mxu0
        %v736 = vpop.f32.mrb[0].mxu0
        %v737 = vadd.f32 %v656, %v736
        %v738 = vpop.f32.mrb[0].mxu0
        %739 = vmatprep.mubr.bf16.mxu0 0
        %740 = vmatmul.mubr.bf16.gmra.mrb[0].mxu0 %v697
        %v741 = vpop.f32.mrb[0].mxu0
        %v742 = vadd.f32 %v656, %v741
        %v743 = vpop.f32.mrb[0].mxu0
        %v744 = vpop.f32.mrb[0].mxu0
        %v745 = vadd.f32 %v656, %v744
        %v746 = vpop.f32.mrb[0].mxu0
        %747 = vdwg.mxu0
        %v748 = vmax.f32 %v734, 0.0
        %v749 = vmax.f32 %v737, 0.0
        %v750 = vmax.f32 %v742, 0.0
        %v751 = vmax.f32 %v745, 0.0
        %v752 = vpack.c.bf16 %v749, %v748
        %v753 = vpack.c.bf16 %v751, %v750
        %v754 = vld [vmem:[#allocation9] sm:$0xf]
        %v755 = vld [vmem:[#allocation9 + $0x4] sm:$0xf]
        %v756 = vld [vmem:[#allocation9 + $0x8] sm:$0xf]
        %v757 = vld [vmem:[#allocation9 + $0xc] sm:$0xf]
        %v758 = vld [vmem:[#allocation9 + $0x10] sm:$0xf]
        %v759 = vld [vmem:[#allocation9 + $0x14] sm:$0xf]
        %v760 = vld [vmem:[#allocation9 + $0x18] sm:$0xf]
        %v761 = vld [vmem:[#allocation9 + $0x1c] sm:$0xf]
        %v762 = vld [vmem:[#allocation11] sm:$0x1]
        %v764 = vlaneseq
        %v765 = vshrl.u32 %v764, 7
        %v766 = vsub.s32 0, %v765
        %v767 = vrot.slane %v762, %v766
        %v777 = vunpack.c.l.b16 %v754
        %v778 = vunpack.c.l.b16 %v755
        %v779 = vunpack.c.l.b16 %v756
        %v780 = vunpack.c.l.b16 %v757
        %v781 = vunpack.c.l.b16 %v758
        %v782 = vunpack.c.l.b16 %v759
        %v783 = vunpack.c.l.b16 %v760
        %v784 = vunpack.c.l.b16 %v761
        %v785 = vpack.c.b16 %v778, %v777
        %v786 = vpack.c.b16 %v780, %v779
        %v787 = vpack.c.b16 %v782, %v781
        %v788 = vpack.c.b16 %v784, %v783
        %v794 = vsel %vm692, %v752, 0
        %v797 = vsel %vm692, %v753, 0
        %799 = vmatprep.subr.bf16.mxu0 0
        %800 = vmatpush1.bf16.msra.mxu0 %v785
        %801 = vmatprep.subr.bf16.mxu0 0
        %802 = vmatpush1.bf16.msra.mxu0 %v786
        %803 = vmatprep.subr.bf16.mxu0 0
        %804 = vmatpush1.bf16.msra.mxu0 %v787
        %805 = vmatprep.subr.bf16.mxu0 0
        %806 = vmatpush1.bf16.msra.mxu0 %v788
        %807 = vmatprep.subr.bf16.mxu0 0
        %808 = vmatpush1.bf16.msra.mxu0 0
        %809 = vmatprep.subr.bf16.mxu0 0
        %810 = vmatpush1.bf16.msra.mxu0 0
        %811 = vmatprep.subr.bf16.mxu0 0
        %812 = vmatpush1.bf16.msra.mxu0 0
        %813 = vmatprep.subr.bf16.mxu0 0
        %814 = vmatpush1.bf16.msra.mxu0 0
        %815 = vmatprep.subr.bf16.mxu0 0
        %816 = vmatpush1.bf16.msra.mxu0 0
        %817 = vmatprep.subr.bf16.mxu0 0
        %818 = vmatpush1.bf16.msra.mxu0 0
        %819 = vmatprep.subr.bf16.mxu0 0
        %820 = vmatpush1.bf16.msra.mxu0 0
        %821 = vmatprep.subr.bf16.mxu0 0
        %822 = vmatpush1.bf16.msra.mxu0 0
        %823 = vmatprep.subr.bf16.mxu0 0
        %824 = vmatpush1.bf16.msra.mxu0 0
        %825 = vmatprep.subr.bf16.mxu0 0
        %826 = vmatpush1.bf16.msra.mxu0 0
        %827 = vmatprep.subr.bf16.mxu0 0
        %828 = vmatpush1.bf16.msra.mxu0 0
        %829 = vmatprep.subr.bf16.mxu0 0
        %830 = vmatpush1.bf16.msra.mxu0 0
        %831 = vmatprep.mubr.bf16.mxu0 0
        %832 = vmatmul.mubr.bf16.gmra.mrb[0].mxu0 %v794
        %v833 = vpop.f32.mrb[0].mxu0
        %v834 = vadd.f32 %v767, %v833
        %v835 = vpop.f32.mrb[0].mxu0
        %v836 = vpop.f32.mrb[0].mxu0
        %v837 = vadd.f32 %v767, %v836
        %v838 = vpop.f32.mrb[0].mxu0
        %839 = vmatprep.mubr.bf16.mxu0 0
        %840 = vmatmul.mubr.bf16.gmra.mrb[0].mxu0 %v797
        %v841 = vpop.f32.mrb[0].mxu0
        %v842 = vadd.f32 %v767, %v841
        %v843 = vpop.f32.mrb[0].mxu0
        %v844 = vpop.f32.mrb[0].mxu0
        %v845 = vadd.f32 %v767, %v844
        %v846 = vpop.f32.mrb[0].mxu0
        %847 = vdwg.mxu0
        %v848 = vmax.f32 %v834, 0.0
        %v849 = vmax.f32 %v837, 0.0
        %v850 = vmax.f32 %v842, 0.0
        %v851 = vmax.f32 %v845, 0.0
        %v852 = vpack.c.bf16 %v849, %v848
        %v853 = vpack.c.bf16 %v851, %v850
        %v854 = vld [vmem:[#allocation12] sm:$0xff]
        %v855 = vld [vmem:[#allocation12 + $0x8] sm:$0xff]
        %v856 = vld [vmem:[#allocation12 + $0x10] sm:$0xff]
        %v857 = vld [vmem:[#allocation12 + $0x18] sm:$0xff]
        %v858 = vld [vmem:[#allocation12 + $0x20] sm:$0xff]
        %v859 = vld [vmem:[#allocation12 + $0x28] sm:$0xff]
        %v860 = vld [vmem:[#allocation12 + $0x30] sm:$0xff]
        %v861 = vld [vmem:[#allocation12 + $0x38] sm:$0xff]
        %v862 = vld [vmem:[#allocation12 + $0x40] sm:$0xff]
        %v863 = vld [vmem:[#allocation12 + $0x48] sm:$0xff]
        %v864 = vld [vmem:[#allocation12 + $0x50] sm:$0xff]
        %v865 = vld [vmem:[#allocation12 + $0x58] sm:$0xff]
        %v866 = vld [vmem:[#allocation12 + $0x60] sm:$0xff]
        %v867 = vld [vmem:[#allocation12 + $0x68] sm:$0xff]
        %v868 = vld [vmem:[#allocation12 + $0x70] sm:$0xff]
        %v869 = vld [vmem:[#allocation12 + $0x78] sm:$0xff]
        %v870 = vld [vmem:[#allocation12 + $0x80] sm:$0xff]
        %v871 = vld [vmem:[#allocation12 + $0x88] sm:$0xff]
        %v872 = vld [vmem:[#allocation12 + $0x90] sm:$0xff]
        %v873 = vld [vmem:[#allocation12 + $0x98] sm:$0xff]
        %v874 = vld [vmem:[#allocation12 + $0xa0] sm:$0xff]
        %v875 = vld [vmem:[#allocation12 + $0xa8] sm:$0xff]
        %v876 = vld [vmem:[#allocation12 + $0xb0] sm:$0xff]
        %v877 = vld [vmem:[#allocation12 + $0xb8] sm:$0xff]
        %v878 = vld [vmem:[#allocation12 + $0xc0] sm:$0xff]
        %v879 = vld [vmem:[#allocation12 + $0xc8] sm:$0xff]
        %v880 = vld [vmem:[#allocation12 + $0xd0] sm:$0xff]
        %v881 = vld [vmem:[#allocation12 + $0xd8] sm:$0xff]
        %v882 = vld [vmem:[#allocation12 + $0xe0] sm:$0xff]
        %v883 = vld [vmem:[#allocation12 + $0xe8] sm:$0xff]
        %v884 = vld [vmem:[#allocation12 + $0xf0] sm:$0xff]
        %v885 = vld [vmem:[#allocation12 + $0xf8] sm:$0xff]
        %v886 = vld [vmem:[#allocation12 + $0x100] sm:$0xff]
        %v887 = vld [vmem:[#allocation12 + $0x108] sm:$0xff]
        %v888 = vld [vmem:[#allocation12 + $0x110] sm:$0xff]
        %v889 = vld [vmem:[#allocation12 + $0x118] sm:$0xff]
        %v890 = vld [vmem:[#allocation12 + $0x120] sm:$0xff]
        %v891 = vld [vmem:[#allocation12 + $0x128] sm:$0xff]
        %v892 = vld [vmem:[#allocation12 + $0x130] sm:$0xff]
        %v893 = vld [vmem:[#allocation12 + $0x138] sm:$0xff]
        %v894 = vld [vmem:[#allocation12 + $0x140] sm:$0xff]
        %v895 = vld [vmem:[#allocation12 + $0x148] sm:$0xff]
        %v896 = vld [vmem:[#allocation12 + $0x150] sm:$0xff]
        %v897 = vld [vmem:[#allocation12 + $0x158] sm:$0xff]
        %v898 = vld [vmem:[#allocation12 + $0x160] sm:$0xff]
        %v899 = vld [vmem:[#allocation12 + $0x168] sm:$0xff]
        %v900 = vld [vmem:[#allocation12 + $0x170] sm:$0xff]
        %v901 = vld [vmem:[#allocation12 + $0x178] sm:$0xff]
        %v902 = vld [vmem:[#allocation12 + $0x180] sm:$0xff]
        %v903 = vld [vmem:[#allocation12 + $0x188] sm:$0xff]
        %v904 = vld [vmem:[#allocation12 + $0x190] sm:$0xff]
        %v905 = vld [vmem:[#allocation12 + $0x198] sm:$0xff]
        %v906 = vld [vmem:[#allocation12 + $0x1a0] sm:$0xff]
        %v907 = vld [vmem:[#allocation12 + $0x1a8] sm:$0xff]
        %v908 = vld [vmem:[#allocation12 + $0x1b0] sm:$0xff]
        %v909 = vld [vmem:[#allocation12 + $0x1b8] sm:$0xff]
        %v910 = vld [vmem:[#allocation12 + $0x1c0] sm:$0xff]
        %v911 = vld [vmem:[#allocation12 + $0x1c8] sm:$0xff]
        %v912 = vld [vmem:[#allocation12 + $0x1d0] sm:$0xff]
        %v913 = vld [vmem:[#allocation12 + $0x1d8] sm:$0xff]
        %v914 = vld [vmem:[#allocation12 + $0x1e0] sm:$0xff]
        %v915 = vld [vmem:[#allocation12 + $0x1e8] sm:$0xff]
        %v916 = vld [vmem:[#allocation12 + $0x1f0] sm:$0xff]
        %v917 = vld [vmem:[#allocation12 + $0x1f8] sm:$0xff]
        %v982 = vunpack.c.l.b16 %v854
        %v983 = vunpack.c.h.b16 %v854
        %v984 = vunpack.c.l.b16 %v855
        %v985 = vunpack.c.h.b16 %v855
        %v986 = vunpack.c.l.b16 %v856
        %v987 = vunpack.c.h.b16 %v856
        %v988 = vunpack.c.l.b16 %v857
        %v989 = vunpack.c.h.b16 %v857
        %v990 = vunpack.c.l.b16 %v858
        %v991 = vunpack.c.h.b16 %v858
        %v992 = vunpack.c.l.b16 %v859
        %v993 = vunpack.c.h.b16 %v859
        %v994 = vunpack.c.l.b16 %v860
        %v995 = vunpack.c.h.b16 %v860
        %v996 = vunpack.c.l.b16 %v861
        %v997 = vunpack.c.h.b16 %v861
        %v998 = vunpack.c.l.b16 %v862
        %v999 = vunpack.c.h.b16 %v862
        %v1000 = vunpack.c.l.b16 %v863
        %v1001 = vunpack.c.h.b16 %v863
        %v1002 = vunpack.c.l.b16 %v864
        %v1003 = vunpack.c.h.b16 %v864
        %v1004 = vunpack.c.l.b16 %v865
        %v1005 = vunpack.c.h.b16 %v865
        %v1006 = vunpack.c.l.b16 %v866
        %v1007 = vunpack.c.h.b16 %v866
        %v1008 = vunpack.c.l.b16 %v867
        %v1009 = vunpack.c.h.b16 %v867
        %v1010 = vunpack.c.l.b16 %v868
        %v1011 = vunpack.c.h.b16 %v868
        %v1012 = vunpack.c.l.b16 %v869
        %v1013 = vunpack.c.h.b16 %v869
        %v1014 = vunpack.c.l.b16 %v870
        %v1015 = vunpack.c.h.b16 %v870
        %v1016 = vunpack.c.l.b16 %v871
        %v1017 = vunpack.c.h.b16 %v871
        %v1018 = vunpack.c.l.b16 %v872
        %v1019 = vunpack.c.h.b16 %v872
        %v1020 = vunpack.c.l.b16 %v873
        %v1021 = vunpack.c.h.b16 %v873
        %v1022 = vunpack.c.l.b16 %v874
        %v1023 = vunpack.c.h.b16 %v874
        %v1024 = vunpack.c.l.b16 %v875
        %v1025 = vunpack.c.h.b16 %v875
        %v1026 = vunpack.c.l.b16 %v876
        %v1027 = vunpack.c.h.b16 %v876
        %v1028 = vunpack.c.l.b16 %v877
        %v1029 = vunpack.c.h.b16 %v877
        %v1030 = vunpack.c.l.b16 %v878
        %v1031 = vunpack.c.h.b16 %v878
        %v1032 = vunpack.c.l.b16 %v879
        %v1033 = vunpack.c.h.b16 %v879
        %v1034 = vunpack.c.l.b16 %v880
        %v1035 = vunpack.c.h.b16 %v880
        %v1036 = vunpack.c.l.b16 %v881
        %v1037 = vunpack.c.h.b16 %v881
        %v1038 = vunpack.c.l.b16 %v882
        %v1039 = vunpack.c.h.b16 %v882
        %v1040 = vunpack.c.l.b16 %v883
        %v1041 = vunpack.c.h.b16 %v883
        %v1042 = vunpack.c.l.b16 %v884
        %v1043 = vunpack.c.h.b16 %v884
        %v1044 = vunpack.c.l.b16 %v885
        %v1045 = vunpack.c.h.b16 %v885
        %v1046 = vunpack.c.l.b16 %v886
        %v1047 = vunpack.c.h.b16 %v886
        %v1048 = vunpack.c.l.b16 %v887
        %v1049 = vunpack.c.h.b16 %v887
        %v1050 = vunpack.c.l.b16 %v888
        %v1051 = vunpack.c.h.b16 %v888
        %v1052 = vunpack.c.l.b16 %v889
        %v1053 = vunpack.c.h.b16 %v889
        %v1054 = vunpack.c.l.b16 %v890
        %v1055 = vunpack.c.h.b16 %v890
        %v1056 = vunpack.c.l.b16 %v891
        %v1057 = vunpack.c.h.b16 %v891
        %v1058 = vunpack.c.l.b16 %v892
        %v1059 = vunpack.c.h.b16 %v892
        %v1060 = vunpack.c.l.b16 %v893
        %v1061 = vunpack.c.h.b16 %v893
        %v1062 = vunpack.c.l.b16 %v894
        %v1063 = vunpack.c.h.b16 %v894
        %v1064 = vunpack.c.l.b16 %v895
        %v1065 = vunpack.c.h.b16 %v895
        %v1066 = vunpack.c.l.b16 %v896
        %v1067 = vunpack.c.h.b16 %v896
        %v1068 = vunpack.c.l.b16 %v897
        %v1069 = vunpack.c.h.b16 %v897
        %v1070 = vunpack.c.l.b16 %v898
        %v1071 = vunpack.c.h.b16 %v898
        %v1072 = vunpack.c.l.b16 %v899
        %v1073 = vunpack.c.h.b16 %v899
        %v1074 = vunpack.c.l.b16 %v900
        %v1075 = vunpack.c.h.b16 %v900
        %v1076 = vunpack.c.l.b16 %v901
        %v1077 = vunpack.c.h.b16 %v901
        %v1078 = vunpack.c.l.b16 %v902
        %v1079 = vunpack.c.h.b16 %v902
        %v1080 = vunpack.c.l.b16 %v903
        %v1081 = vunpack.c.h.b16 %v903
        %v1082 = vunpack.c.l.b16 %v904
        %v1083 = vunpack.c.h.b16 %v904
        %v1084 = vunpack.c.l.b16 %v905
        %v1085 = vunpack.c.h.b16 %v905
        %v1086 = vunpack.c.l.b16 %v906
        %v1087 = vunpack.c.h.b16 %v906
        %v1088 = vunpack.c.l.b16 %v907
        %v1089 = vunpack.c.h.b16 %v907
        %v1090 = vunpack.c.l.b16 %v908
        %v1091 = vunpack.c.h.b16 %v908
        %v1092 = vunpack.c.l.b16 %v909
        %v1093 = vunpack.c.h.b16 %v909
        %v1094 = vunpack.c.l.b16 %v910
        %v1095 = vunpack.c.h.b16 %v910
        %v1096 = vunpack.c.l.b16 %v911
        %v1097 = vunpack.c.h.b16 %v911
        %v1098 = vunpack.c.l.b16 %v912
        %v1099 = vunpack.c.h.b16 %v912
        %v1100 = vunpack.c.l.b16 %v913
        %v1101 = vunpack.c.h.b16 %v913
        %v1102 = vunpack.c.l.b16 %v914
        %v1103 = vunpack.c.h.b16 %v914
        %v1104 = vunpack.c.l.b16 %v915
        %v1105 = vunpack.c.h.b16 %v915
        %v1106 = vunpack.c.l.b16 %v916
        %v1107 = vunpack.c.h.b16 %v916
        %v1108 = vunpack.c.l.b16 %v917
        %v1109 = vunpack.c.h.b16 %v917
        %v1110 = vpack.c.b16 %v990, %v982
        %v1111 = vpack.c.b16 %v991, %v983
        %v1112 = vpack.c.b16 %v992, %v984
        %v1113 = vpack.c.b16 %v993, %v985
        %v1114 = vpack.c.b16 %v994, %v986
        %v1115 = vpack.c.b16 %v995, %v987
        %v1116 = vpack.c.b16 %v996, %v988
        %v1117 = vpack.c.b16 %v997, %v989
        %v1118 = vpack.c.b16 %v1006, %v998
        %v1119 = vpack.c.b16 %v1007, %v999
        %v1120 = vpack.c.b16 %v1008, %v1000
        %v1121 = vpack.c.b16 %v1009, %v1001
        %v1122 = vpack.c.b16 %v1010, %v1002
        %v1123 = vpack.c.b16 %v1011, %v1003
        %v1124 = vpack.c.b16 %v1012, %v1004
        %v1125 = vpack.c.b16 %v1013, %v1005
        %v1126 = vpack.c.b16 %v1022, %v1014
        %v1127 = vpack.c.b16 %v1023, %v1015
        %v1128 = vpack.c.b16 %v1024, %v1016
        %v1129 = vpack.c.b16 %v1025, %v1017
        %v1130 = vpack.c.b16 %v1026, %v1018
        %v1131 = vpack.c.b16 %v1027, %v1019
        %v1132 = vpack.c.b16 %v1028, %v1020
        %v1133 = vpack.c.b16 %v1029, %v1021
        %v1134 = vpack.c.b16 %v1038, %v1030
        %v1135 = vpack.c.b16 %v1039, %v1031
        %v1136 = vpack.c.b16 %v1040, %v1032
        %v1137 = vpack.c.b16 %v1041, %v1033
        %v1138 = vpack.c.b16 %v1042, %v1034
        %v1139 = vpack.c.b16 %v1043, %v1035
        %v1140 = vpack.c.b16 %v1044, %v1036
        %v1141 = vpack.c.b16 %v1045, %v1037
        %v1142 = vpack.c.b16 %v1054, %v1046
        %v1143 = vpack.c.b16 %v1055, %v1047
        %v1144 = vpack.c.b16 %v1056, %v1048
        %v1145 = vpack.c.b16 %v1057, %v1049
        %v1146 = vpack.c.b16 %v1058, %v1050
        %v1147 = vpack.c.b16 %v1059, %v1051
        %v1148 = vpack.c.b16 %v1060, %v1052
        %v1149 = vpack.c.b16 %v1061, %v1053
        %v1150 = vpack.c.b16 %v1070, %v1062
        %v1151 = vpack.c.b16 %v1071, %v1063
        %v1152 = vpack.c.b16 %v1072, %v1064
        %v1153 = vpack.c.b16 %v1073, %v1065
        %v1154 = vpack.c.b16 %v1074, %v1066
        %v1155 = vpack.c.b16 %v1075, %v1067
        %v1156 = vpack.c.b16 %v1076, %v1068
        %v1157 = vpack.c.b16 %v1077, %v1069
        %v1158 = vpack.c.b16 %v1086, %v1078
        %v1159 = vpack.c.b16 %v1087, %v1079
        %v1160 = vpack.c.b16 %v1088, %v1080
        %v1161 = vpack.c.b16 %v1089, %v1081
        %v1162 = vpack.c.b16 %v1090, %v1082
        %v1163 = vpack.c.b16 %v1091, %v1083
        %v1164 = vpack.c.b16 %v1092, %v1084
        %v1165 = vpack.c.b16 %v1093, %v1085
        %v1166 = vpack.c.b16 %v1102, %v1094
        %v1167 = vpack.c.b16 %v1103, %v1095
        %v1168 = vpack.c.b16 %v1104, %v1096
        %v1169 = vpack.c.b16 %v1105, %v1097
        %v1170 = vpack.c.b16 %v1106, %v1098
        %v1171 = vpack.c.b16 %v1107, %v1099
        %v1172 = vpack.c.b16 %v1108, %v1100
        %v1173 = vpack.c.b16 %v1109, %v1101
        %1238 = vmatprep.subr.bf16.mxu0 %v1111
        %1239 = vmatpush1.bf16.msra.mxu0 %v1110
        %1240 = vmatprep.subr.bf16.mxu0 %v1119
        %1241 = vmatpush1.bf16.msra.mxu0 %v1118
        %1242 = vmatprep.subr.bf16.mxu0 %v1127
        %1243 = vmatpush1.bf16.msra.mxu0 %v1126
        %1244 = vmatprep.subr.bf16.mxu0 %v1135
        %1245 = vmatpush1.bf16.msra.mxu0 %v1134
        %1246 = vmatprep.subr.bf16.mxu0 %v1143
        %1247 = vmatpush1.bf16.msra.mxu0 %v1142
        %1248 = vmatprep.subr.bf16.mxu0 %v1151
        %1249 = vmatpush1.bf16.msra.mxu0 %v1150
        %1250 = vmatprep.subr.bf16.mxu0 %v1159
        %1251 = vmatpush1.bf16.msra.mxu0 %v1158
        %1252 = vmatprep.subr.bf16.mxu0 %v1167
        %1253 = vmatpush1.bf16.msra.mxu0 %v1166
        %1254 = vmatprep.subr.bf16.mxu0 0
        %1255 = vmatpush1.bf16.msra.mxu0 0
        %1256 = vmatprep.subr.bf16.mxu0 0
        %1257 = vmatpush1.bf16.msra.mxu0 0
        %1258 = vmatprep.subr.bf16.mxu0 0
        %1259 = vmatpush1.bf16.msra.mxu0 0
        %1260 = vmatprep.subr.bf16.mxu0 0
        %1261 = vmatpush1.bf16.msra.mxu0 0
        %1262 = vmatprep.subr.bf16.mxu0 0
        %1263 = vmatpush1.bf16.msra.mxu0 0
        %1264 = vmatprep.subr.bf16.mxu0 0
        %1265 = vmatpush1.bf16.msra.mxu0 0
        %1266 = vmatprep.subr.bf16.mxu0 0
        %1267 = vmatpush1.bf16.msra.mxu0 0
        %1268 = vmatprep.subr.bf16.mxu0 0
        %1269 = vmatpush1.bf16.msra.mxu0 0
        %1270 = vmatprep.mubr.bf16.mxu0 0
        %1271 = vmatmul.mubr.bf16.gmra.mrb[0].mxu0 %v852
        %v1272 = vpop.f32.mrb[0].mxu0
        %v1273 = vadd.f32 0.0, %v1272
        %v1274 = vpop.f32.mrb[0].mxu0
        %v1275 = vadd.f32 0.0, %v1274
        %v1276 = vpop.f32.mrb[0].mxu0
        %v1277 = vadd.f32 0.0, %v1276
        %v1278 = vpop.f32.mrb[0].mxu0
        %v1279 = vadd.f32 0.0, %v1278
        %1280 = vmatprep.mubr.bf16.mxu0 0
        %1281 = vmatmul.mubr.bf16.gmra.mrb[0].mxu0 %v853
        %v1282 = vpop.f32.mrb[0].mxu0
        %v1283 = vadd.f32 0.0, %v1282
        %v1284 = vpop.f32.mrb[0].mxu0
        %v1285 = vadd.f32 0.0, %v1284
        %v1286 = vpop.f32.mrb[0].mxu0
        %v1287 = vadd.f32 0.0, %v1286
        %v1288 = vpop.f32.mrb[0].mxu0
        %v1289 = vadd.f32 0.0, %v1288
        %1290 = vdwg.mxu0
        %1291 = vmatprep.subr.bf16.mxu0 %v1113
        %1292 = vmatpush1.bf16.msra.mxu0 %v1112
        %1293 = vmatprep.subr.bf16.mxu0 %v1121
        %1294 = vmatpush1.bf16.msra.mxu0 %v1120
        %1295 = vmatprep.subr.bf16.mxu0 %v1129
        %1296 = vmatpush1.bf16.msra.mxu0 %v1128
        %1297 = vmatprep.subr.bf16.mxu0 %v1137
        %1298 = vmatpush1.bf16.msra.mxu0 %v1136
        %1299 = vmatprep.subr.bf16.mxu0 %v1145
        %1300 = vmatpush1.bf16.msra.mxu0 %v1144
        %1301 = vmatprep.subr.bf16.mxu0 %v1153
        %1302 = vmatpush1.bf16.msra.mxu0 %v1152
        %1303 = vmatprep.subr.bf16.mxu0 %v1161
        %1304 = vmatpush1.bf16.msra.mxu0 %v1160
        %1305 = vmatprep.subr.bf16.mxu0 %v1169
        %1306 = vmatpush1.bf16.msra.mxu0 %v1168
        %1307 = vmatprep.subr.bf16.mxu0 0
        %1308 = vmatpush1.bf16.msra.mxu0 0
        %1309 = vmatprep.subr.bf16.mxu0 0
        %1310 = vmatpush1.bf16.msra.mxu0 0
        %1311 = vmatprep.subr.bf16.mxu0 0
        %1312 = vmatpush1.bf16.msra.mxu0 0
        %1313 = vmatprep.subr.bf16.mxu0 0
        %1314 = vmatpush1.bf16.msra.mxu0 0
        %1315 = vmatprep.subr.bf16.mxu0 0
        %1316 = vmatpush1.bf16.msra.mxu0 0
        %1317 = vmatprep.subr.bf16.mxu0 0
        %1318 = vmatpush1.bf16.msra.mxu0 0
        %1319 = vmatprep.subr.bf16.mxu0 0
        %1320 = vmatpush1.bf16.msra.mxu0 0
        %1321 = vmatprep.subr.bf16.mxu0 0
        %1322 = vmatpush1.bf16.msra.mxu0 0
        %1323 = vmatprep.mubr.bf16.mxu0 0
        %1324 = vmatmul.mubr.bf16.gmra.mrb[0].mxu0 %v852
        %v1325 = vpop.f32.mrb[0].mxu0
        %v1326 = vadd.f32 0.0, %v1325
        %v1327 = vpop.f32.mrb[0].mxu0
        %v1328 = vadd.f32 0.0, %v1327
        %v1329 = vpop.f32.mrb[0].mxu0
        %v1330 = vadd.f32 0.0, %v1329
        %v1331 = vpop.f32.mrb[0].mxu0
        %v1332 = vadd.f32 0.0, %v1331
        %1333 = vmatprep.mubr.bf16.mxu0 0
        %1334 = vmatmul.mubr.bf16.gmra.mrb[0].mxu0 %v853
        %v1335 = vpop.f32.mrb[0].mxu0
        %v1336 = vadd.f32 0.0, %v1335
        %v1337 = vpop.f32.mrb[0].mxu0
        %v1338 = vadd.f32 0.0, %v1337
        %v1339 = vpop.f32.mrb[0].mxu0
        %v1340 = vadd.f32 0.0, %v1339
        %v1341 = vpop.f32.mrb[0].mxu0
        %v1342 = vadd.f32 0.0, %v1341
        %1343 = vdwg.mxu0
        %1344 = vmatprep.subr.bf16.mxu0 %v1115
        %1345 = vmatpush1.bf16.msra.mxu0 %v1114
        %1346 = vmatprep.subr.bf16.mxu0 %v1123
        %1347 = vmatpush1.bf16.msra.mxu0 %v1122
        %1348 = vmatprep.subr.bf16.mxu0 %v1131
        %1349 = vmatpush1.bf16.msra.mxu0 %v1130
        %1350 = vmatprep.subr.bf16.mxu0 %v1139
        %1351 = vmatpush1.bf16.msra.mxu0 %v1138
        %1352 = vmatprep.subr.bf16.mxu0 %v1147
        %1353 = vmatpush1.bf16.msra.mxu0 %v1146
        %1354 = vmatprep.subr.bf16.mxu0 %v1155
        %1355 = vmatpush1.bf16.msra.mxu0 %v1154
        %1356 = vmatprep.subr.bf16.mxu0 %v1163
        %1357 = vmatpush1.bf16.msra.mxu0 %v1162
        %1358 = vmatprep.subr.bf16.mxu0 %v1171
        %1359 = vmatpush1.bf16.msra.mxu0 %v1170
        %1360 = vmatprep.subr.bf16.mxu0 0
        %1361 = vmatpush1.bf16.msra.mxu0 0
        %1362 = vmatprep.subr.bf16.mxu0 0
        %1363 = vmatpush1.bf16.msra.mxu0 0
        %1364 = vmatprep.subr.bf16.mxu0 0
        %1365 = vmatpush1.bf16.msra.mxu0 0
        %1366 = vmatprep.subr.bf16.mxu0 0
        %1367 = vmatpush1.bf16.msra.mxu0 0
        %1368 = vmatprep.subr.bf16.mxu0 0
        %1369 = vmatpush1.bf16.msra.mxu0 0
        %1370 = vmatprep.subr.bf16.mxu0 0
        %1371 = vmatpush1.bf16.msra.mxu0 0
        %1372 = vmatprep.subr.bf16.mxu0 0
        %1373 = vmatpush1.bf16.msra.mxu0 0
        %1374 = vmatprep.subr.bf16.mxu0 0
        %1375 = vmatpush1.bf16.msra.mxu0 0
        %1376 = vmatprep.mubr.bf16.mxu0 0
        %1377 = vmatmul.mubr.bf16.gmra.mrb[0].mxu0 %v852
        %v1378 = vpop.f32.mrb[0].mxu0
        %v1379 = vadd.f32 0.0, %v1378
        %v1380 = vpop.f32.mrb[0].mxu0
        %v1381 = vadd.f32 0.0, %v1380
        %v1382 = vpop.f32.mrb[0].mxu0
        %v1383 = vadd.f32 0.0, %v1382
        %v1384 = vpop.f32.mrb[0].mxu0
        %v1385 = vadd.f32 0.0, %v1384
        %1386 = vmatprep.mubr.bf16.mxu0 0
        %1387 = vmatmul.mubr.bf16.gmra.mrb[0].mxu0 %v853
        %v1388 = vpop.f32.mrb[0].mxu0
        %v1389 = vadd.f32 0.0, %v1388
        %v1390 = vpop.f32.mrb[0].mxu0
        %v1391 = vadd.f32 0.0, %v1390
        %v1392 = vpop.f32.mrb[0].mxu0
        %v1393 = vadd.f32 0.0, %v1392
        %v1394 = vpop.f32.mrb[0].mxu0
        %v1395 = vadd.f32 0.0, %v1394
        %1396 = vdwg.mxu0
        %1397 = vmatprep.subr.bf16.mxu0 %v1117
        %1398 = vmatpush1.bf16.msra.mxu0 %v1116
        %1399 = vmatprep.subr.bf16.mxu0 %v1125
        %1400 = vmatpush1.bf16.msra.mxu0 %v1124
        %1401 = vmatprep.subr.bf16.mxu0 %v1133
        %1402 = vmatpush1.bf16.msra.mxu0 %v1132
        %1403 = vmatprep.subr.bf16.mxu0 %v1141
        %1404 = vmatpush1.bf16.msra.mxu0 %v1140
        %1405 = vmatprep.subr.bf16.mxu0 %v1149
        %1406 = vmatpush1.bf16.msra.mxu0 %v1148
        %1407 = vmatprep.subr.bf16.mxu0 %v1157
        %1408 = vmatpush1.bf16.msra.mxu0 %v1156
        %1409 = vmatprep.subr.bf16.mxu0 %v1165
        %1410 = vmatpush1.bf16.msra.mxu0 %v1164
        %1411 = vmatprep.subr.bf16.mxu0 %v1173
        %1412 = vmatpush1.bf16.msra.mxu0 %v1172
        %1413 = vmatprep.subr.bf16.mxu0 0
        %1414 = vmatpush1.bf16.msra.mxu0 0
        %1415 = vmatprep.subr.bf16.mxu0 0
        %1416 = vmatpush1.bf16.msra.mxu0 0
        %1417 = vmatprep.subr.bf16.mxu0 0
        %1418 = vmatpush1.bf16.msra.mxu0 0
        %1419 = vmatprep.subr.bf16.mxu0 0
        %1420 = vmatpush1.bf16.msra.mxu0 0
        %1421 = vmatprep.subr.bf16.mxu0 0
        %1422 = vmatpush1.bf16.msra.mxu0 0
        %1423 = vmatprep.subr.bf16.mxu0 0
        %1424 = vmatpush1.bf16.msra.mxu0 0
        %1425 = vmatprep.subr.bf16.mxu0 0
        %1426 = vmatpush1.bf16.msra.mxu0 0
        %1427 = vmatprep.subr.bf16.mxu0 0
        %1428 = vmatpush1.bf16.msra.mxu0 0
        %1429 = vmatprep.mubr.bf16.mxu0 0
        %1430 = vmatmul.mubr.bf16.gmra.mrb[0].mxu0 %v852
        %v1431 = vpop.f32.mrb[0].mxu0
        %v1432 = vadd.f32 0.0, %v1431
        %v1433 = vpop.f32.mrb[0].mxu0
        %v1434 = vadd.f32 0.0, %v1433
        %v1435 = vpop.f32.mrb[0].mxu0
        %v1436 = vadd.f32 0.0, %v1435
        %v1437 = vpop.f32.mrb[0].mxu0
        %v1438 = vadd.f32 0.0, %v1437
        %1439 = vmatprep.mubr.bf16.mxu0 0
        %1440 = vmatmul.mubr.bf16.gmra.mrb[0].mxu0 %v853
        %v1441 = vpop.f32.mrb[0].mxu0
        %v1442 = vadd.f32 0.0, %v1441
        %v1443 = vpop.f32.mrb[0].mxu0
        %v1444 = vadd.f32 0.0, %v1443
        %v1445 = vpop.f32.mrb[0].mxu0
        %v1446 = vadd.f32 0.0, %v1445
        %v1447 = vpop.f32.mrb[0].mxu0
        %v1448 = vadd.f32 0.0, %v1447
        %1449 = vdwg.mxu0
        %v1450 = vmax.f32 %v1273, %v1277
        %v1451 = vmax.f32 %v1450, %v1283
        %v1452 = vmax.f32 %v1451, %v1287
        %v1453 = vrot.slane %v1452, 4
        %v1454 = vmax.f32 %v1452, %v1453
        %v1455 = vrot.slane %v1454, 2
        %v1456 = vmax.f32 %v1454, %v1455
        %v1457 = vrot.slane %v1456, 1
        %v1458 = vmax.f32 %v1456, %v1457
        %v1459 = vmax.f32 %v1275, %v1279
        %v1460 = vmax.f32 %v1459, %v1285
        %v1461 = vmax.f32 %v1460, %v1289
        %v1462 = vrot.slane %v1461, 4
        %v1463 = vmax.f32 %v1461, %v1462
        %v1464 = vrot.slane %v1463, 2
        %v1465 = vmax.f32 %v1463, %v1464
        %v1466 = vrot.slane %v1465, 1
        %v1467 = vmax.f32 %v1465, %v1466
        %v1468 = vmax.f32 %v1326, %v1330
        %v1469 = vmax.f32 %v1468, %v1336
        %v1470 = vmax.f32 %v1469, %v1340
        %v1471 = vrot.slane %v1470, 4
        %v1472 = vmax.f32 %v1470, %v1471
        %v1473 = vrot.slane %v1472, 2
        %v1474 = vmax.f32 %v1472, %v1473
        %v1475 = vrot.slane %v1474, 1
        %v1476 = vmax.f32 %v1474, %v1475
        %v1477 = vmax.f32 %v1328, %v1332
        %v1478 = vmax.f32 %v1477, %v1338
        %v1479 = vmax.f32 %v1478, %v1342
        %v1480 = vrot.slane %v1479, 4
        %v1481 = vmax.f32 %v1479, %v1480
        %v1482 = vrot.slane %v1481, 2
        %v1483 = vmax.f32 %v1481, %v1482
        %v1484 = vrot.slane %v1483, 1
        %v1485 = vmax.f32 %v1483, %v1484
        %v1486 = vmax.f32 %v1379, %v1383
        %v1487 = vmax.f32 %v1486, %v1389
        %v1488 = vmax.f32 %v1487, %v1393
        %v1489 = vrot.slane %v1488, 4
        %v1490 = vmax.f32 %v1488, %v1489
        %v1491 = vrot.slane %v1490, 2
        %v1492 = vmax.f32 %v1490, %v1491
        %v1493 = vrot.slane %v1492, 1
        %v1494 = vmax.f32 %v1492, %v1493
        %v1495 = vmax.f32 %v1381, %v1385
        %v1496 = vmax.f32 %v1495, %v1391
        %v1497 = vmax.f32 %v1496, %v1395
        %v1498 = vrot.slane %v1497, 4
        %v1499 = vmax.f32 %v1497, %v1498
        %v1500 = vrot.slane %v1499, 2
        %v1501 = vmax.f32 %v1499, %v1500
        %v1502 = vrot.slane %v1501, 1
        %v1503 = vmax.f32 %v1501, %v1502
        %v1504 = vmax.f32 %v1432, %v1436
        %v1505 = vmax.f32 %v1504, %v1442
        %v1506 = vmax.f32 %v1505, %v1446
        %v1507 = vrot.slane %v1506, 4
        %v1508 = vmax.f32 %v1506, %v1507
        %v1509 = vrot.slane %v1508, 2
        %v1510 = vmax.f32 %v1508, %v1509
        %v1511 = vrot.slane %v1510, 1
        %v1512 = vmax.f32 %v1510, %v1511
        %v1513 = vmax.f32 %v1434, %v1438
        %v1514 = vmax.f32 %v1513, %v1444
        %v1515 = vmax.f32 %v1514, %v1448
        %v1516 = vrot.slane %v1515, 4
        %v1517 = vmax.f32 %v1515, %v1516
        %v1518 = vrot.slane %v1517, 2
        %v1519 = vmax.f32 %v1517, %v1518
        %v1520 = vrot.slane %v1519, 1
        %v1521 = vmax.f32 %v1519, %v1520
        %p1522 = scmp.eq.s32.totalorder %s41, 0
        // Predicated region
        $region125: #{tpu_custom_call.1} parent=71 // pred_check
          %p1523 = pneg %p1522
        $region126: #{tpu_custom_call.1} parent=71 // pred_check_branch
          %1525 = sbr.rel (%p1523) target = $region128
        $region127: #{tpu_custom_call.1} parent=71 // pred_region
          %v1534 = vcombine.low %v1458, %v1467
          %v1535 = vcombine.low %v1476, %v1485
          %v1536 = vcombine.low %v1494, %v1503
          %v1537 = vcombine.low %v1512, %v1521
          %v1539 = vunpack.c.l.s4 1966171168
          %v1540 = vunpack.c.0.s8 %v1539
          %v1541 = vlaneseq
          %v1542 = vshrl.u32 %v1541, 7
          %v1543 = vsub.s32 %v1540, %v1542
          %v1544 = vrot.slane %v1534, %v1543
          %v1546 = vunpack.c.l.s4 1966171168
          %v1547 = vunpack.c.0.s8 %v1546
          %v1548 = vlaneseq
          %v1549 = vshrl.u32 %v1548, 7
          %v1550 = vsub.s32 %v1547, %v1549
          %v1551 = vrot.slane %v1535, %v1550
          %v1553 = vunpack.c.l.s4 1966171168
          %v1554 = vunpack.c.0.s8 %v1553
          %v1555 = vlaneseq
          %v1556 = vshrl.u32 %v1555, 7
          %v1557 = vsub.s32 %v1554, %v1556
          %v1558 = vrot.slane %v1536, %v1557
          %v1560 = vunpack.c.l.s4 1966171168
          %v1561 = vunpack.c.0.s8 %v1560
          %v1562 = vlaneseq
          %v1563 = vshrl.u32 %v1562, 7
          %v1564 = vsub.s32 %v1561, %v1563
          %v1565 = vrot.slane %v1537, %v1564
          %v1566 = vcombine.low %v1544, %v1551
          %v1567 = vcombine.low %v1558, %v1565
          %v1569 = vunpack.c.l.s4 1966171168
          %v1570 = vunpack.c.0.s8 %v1569
          %v1571 = vlaneseq
          %v1572 = vshrl.u32 %v1571, 7
          %v1573 = vsub.s32 %v1570, %v1572
          %v1574 = vrot.slane %v1566, %v1573
          %v1576 = vunpack.c.l.s4 1966171168
          %v1577 = vunpack.c.0.s8 %v1576
          %v1578 = vlaneseq
          %v1579 = vshrl.u32 %v1578, 7
          %v1580 = vsub.s32 %v1577, %v1579
          %v1581 = vrot.slane %v1567, %v1580
          %v1582 = vcombine.low %v1574, %v1581
          %1584 = vst [vmem:[#allocation2] sm:$0xff] %v1582
        $region128: #{tpu_custom_call.1} parent=71 // pred_fallthru
          _
        %p1585 = scmp.gt.s32.totalorder %s41, 0
        // Predicated region
        $region129: #{tpu_custom_call.1} parent=71 // pred_check
          %p1586 = pneg %p1585
        $region130: #{tpu_custom_call.1} parent=71 // pred_check_branch
          %1588 = sbr.rel (%p1586) target = $region132
        $region131: #{tpu_custom_call.1} parent=71 // pred_region
          %v1589 = vld [vmem:[#allocation2] sm:$0xff]
          %v1598 = vcombine.low %v1458, %v1467
          %v1599 = vcombine.low %v1476, %v1485
          %v1600 = vcombine.low %v1494, %v1503
          %v1601 = vcombine.low %v1512, %v1521
          %v1603 = vunpack.c.l.s4 1966171168
          %v1604 = vunpack.c.0.s8 %v1603
          %v1605 = vlaneseq
          %v1606 = vshrl.u32 %v1605, 7
          %v1607 = vsub.s32 %v1604, %v1606
          %v1608 = vrot.slane %v1598, %v1607
          %v1610 = vunpack.c.l.s4 1966171168
          %v1611 = vunpack.c.0.s8 %v1610
          %v1612 = vlaneseq
          %v1613 = vshrl.u32 %v1612, 7
          %v1614 = vsub.s32 %v1611, %v1613
          %v1615 = vrot.slane %v1599, %v1614
          %v1617 = vunpack.c.l.s4 1966171168
          %v1618 = vunpack.c.0.s8 %v1617
          %v1619 = vlaneseq
          %v1620 = vshrl.u32 %v1619, 7
          %v1621 = vsub.s32 %v1618, %v1620
          %v1622 = vrot.slane %v1600, %v1621
          %v1624 = vunpack.c.l.s4 1966171168
          %v1625 = vunpack.c.0.s8 %v1624
          %v1626 = vlaneseq
          %v1627 = vshrl.u32 %v1626, 7
          %v1628 = vsub.s32 %v1625, %v1627
          %v1629 = vrot.slane %v1601, %v1628
          %v1630 = vcombine.low %v1608, %v1615
          %v1631 = vcombine.low %v1622, %v1629
          %v1633 = vunpack.c.l.s4 1966171168
          %v1634 = vunpack.c.0.s8 %v1633
          %v1635 = vlaneseq
          %v1636 = vshrl.u32 %v1635, 7
          %v1637 = vsub.s32 %v1634, %v1636
          %v1638 = vrot.slane %v1630, %v1637
          %v1640 = vunpack.c.l.s4 1966171168
          %v1641 = vunpack.c.0.s8 %v1640
          %v1642 = vlaneseq
          %v1643 = vshrl.u32 %v1642, 7
          %v1644 = vsub.s32 %v1641, %v1643
          %v1645 = vrot.slane %v1631, %v1644
          %v1646 = vcombine.low %v1638, %v1645
          %v1648 = vmax.f32 %v1589, %v1646
          %1649 = vst [vmem:[#allocation2] sm:$0xff] %v1648
        $region132: #{tpu_custom_call.1} parent=71 // pred_fallthru
          _
        // Predicated region
        $region133: #{tpu_custom_call.1} parent=71 // pred_check
          %p1650 = pneg %p1522
        $region134: #{tpu_custom_call.1} parent=71 // pred_check_branch
          %1652 = sbr.rel (%p1650) target = $region136
        $region135: #{tpu_custom_call.1} parent=71 // pred_region
          %v1653 = vld [vmem:[#allocation2] sm:$0xff]
          %v1654 = vld [vmem:[#allocation14] sm:$0xff]
          %v1655 = vadd.f32 %v1653, %v1654
          %v1656 = vmax.f32 %v1655, 0.0
          %v1658 = vlaneseq
          %v1659 = vshrl.u32 %v1658, 7
          %v1660 = vsub.s32 0, %v1659
          %v1661 = vrot.slane %v1656, %v1660
          %v1662 = vlaneseq
          %v1663 = vshrl.u32 %v1662, 7
          %v1664 = vsub.s32 1, %v1663
          %v1665 = vrot.slane %v1656, %v1664
          %v1666 = vlaneseq
          %v1667 = vshrl.u32 %v1666, 7
          %v1668 = vsub.s32 2, %v1667
          %v1669 = vrot.slane %v1656, %v1668
          %v1670 = vlaneseq
          %v1671 = vshrl.u32 %v1670, 7
          %v1672 = vsub.s32 3, %v1671
          %v1673 = vrot.slane %v1656, %v1672
          %v1674 = vlaneseq
          %v1675 = vshrl.u32 %v1674, 7
          %v1676 = vsub.s32 4, %v1675
          %v1677 = vrot.slane %v1656, %v1676
          %v1678 = vlaneseq
          %v1679 = vshrl.u32 %v1678, 7
          %v1680 = vsub.s32 5, %v1679
          %v1681 = vrot.slane %v1656, %v1680
          %v1682 = vlaneseq
          %v1683 = vshrl.u32 %v1682, 7
          %v1684 = vsub.s32 6, %v1683
          %v1685 = vrot.slane %v1656, %v1684
          %v1686 = vlaneseq
          %v1687 = vshrl.u32 %v1686, 7
          %v1688 = vsub.s32 7, %v1687
          %v1689 = vrot.slane %v1656, %v1688
          %v1698 = vpack.c.bf16 %v1661, %v1661
          %v1699 = vpack.c.bf16 %v1665, %v1665
          %v1700 = vpack.c.bf16 %v1669, %v1669
          %v1701 = vpack.c.bf16 %v1673, %v1673
          %v1702 = vpack.c.bf16 %v1677, %v1677
          %v1703 = vpack.c.bf16 %v1681, %v1681
          %v1704 = vpack.c.bf16 %v1685, %v1685
          %v1705 = vpack.c.bf16 %v1689, %v1689
          %v1706 = vld [vmem:[#allocation15] sm:$0xff]
          %v1707 = vld [vmem:[#allocation15 + $0x8] sm:$0xff]
          %v1708 = vld [vmem:[#allocation15 + $0x10] sm:$0xff]
          %v1709 = vld [vmem:[#allocation15 + $0x18] sm:$0xff]
          %v1710 = vld [vmem:[#allocation15 + $0x20] sm:$0xff]
          %v1711 = vld [vmem:[#allocation15 + $0x28] sm:$0xff]
          %v1712 = vld [vmem:[#allocation15 + $0x30] sm:$0xff]
          %v1713 = vld [vmem:[#allocation15 + $0x38] sm:$0xff]
          %v1714 = vld [vmem:[#allocation15 + $0x40] sm:$0xff]
          %v1715 = vld [vmem:[#allocation15 + $0x48] sm:$0xff]
          %v1716 = vld [vmem:[#allocation15 + $0x50] sm:$0xff]
          %v1717 = vld [vmem:[#allocation15 + $0x58] sm:$0xff]
          %v1718 = vld [vmem:[#allocation15 + $0x60] sm:$0xff]
          %v1719 = vld [vmem:[#allocation15 + $0x68] sm:$0xff]
          %v1720 = vld [vmem:[#allocation15 + $0x70] sm:$0xff]
          %v1721 = vld [vmem:[#allocation15 + $0x78] sm:$0xff]
          %v1722 = vld [vmem:[#allocation15 + $0x80] sm:$0xff]
          %v1723 = vld [vmem:[#allocation15 + $0x88] sm:$0xff]
          %v1724 = vld [vmem:[#allocation15 + $0x90] sm:$0xff]
          %v1725 = vld [vmem:[#allocation15 + $0x98] sm:$0xff]
          %v1726 = vld [vmem:[#allocation15 + $0xa0] sm:$0xff]
          %v1727 = vld [vmem:[#allocation15 + $0xa8] sm:$0xff]
          %v1728 = vld [vmem:[#allocation15 + $0xb0] sm:$0xff]
          %v1729 = vld [vmem:[#allocation15 + $0xb8] sm:$0xff]
          %v1730 = vld [vmem:[#allocation15 + $0xc0] sm:$0xff]
          %v1731 = vld [vmem:[#allocation15 + $0xc8] sm:$0xff]
          %v1732 = vld [vmem:[#allocation15 + $0xd0] sm:$0xff]
          %v1733 = vld [vmem:[#allocation15 + $0xd8] sm:$0xff]
          %v1734 = vld [vmem:[#allocation15 + $0xe0] sm:$0xff]
          %v1735 = vld [vmem:[#allocation15 + $0xe8] sm:$0xff]
          %v1736 = vld [vmem:[#allocation15 + $0xf0] sm:$0xff]
          %v1737 = vld [vmem:[#allocation15 + $0xf8] sm:$0xff]
          %v1738 = vld [vmem:[#allocation15 + $0x100] sm:$0xff]
          %v1739 = vld [vmem:[#allocation15 + $0x108] sm:$0xff]
          %v1740 = vld [vmem:[#allocation15 + $0x110] sm:$0xff]
          %v1741 = vld [vmem:[#allocation15 + $0x118] sm:$0xff]
          %v1742 = vld [vmem:[#allocation15 + $0x120] sm:$0xff]
          %v1743 = vld [vmem:[#allocation15 + $0x128] sm:$0xff]
          %v1744 = vld [vmem:[#allocation15 + $0x130] sm:$0xff]
          %v1745 = vld [vmem:[#allocation15 + $0x138] sm:$0xff]
          %v1746 = vld [vmem:[#allocation15 + $0x140] sm:$0xff]
          %v1747 = vld [vmem:[#allocation15 + $0x148] sm:$0xff]
          %v1748 = vld [vmem:[#allocation15 + $0x150] sm:$0xff]
          %v1749 = vld [vmem:[#allocation15 + $0x158] sm:$0xff]
          %v1750 = vld [vmem:[#allocation15 + $0x160] sm:$0xff]
          %v1751 = vld [vmem:[#allocation15 + $0x168] sm:$0xff]
          %v1752 = vld [vmem:[#allocation15 + $0x170] sm:$0xff]
          %v1753 = vld [vmem:[#allocation15 + $0x178] sm:$0xff]
          %v1754 = vld [vmem:[#allocation15 + $0x180] sm:$0xff]
          %v1755 = vld [vmem:[#allocation15 + $0x188] sm:$0xff]
          %v1756 = vld [vmem:[#allocation15 + $0x190] sm:$0xff]
          %v1757 = vld [vmem:[#allocation15 + $0x198] sm:$0xff]
          %v1758 = vld [vmem:[#allocation15 + $0x1a0] sm:$0xff]
          %v1759 = vld [vmem:[#allocation15 + $0x1a8] sm:$0xff]
          %v1760 = vld [vmem:[#allocation15 + $0x1b0] sm:$0xff]
          %v1761 = vld [vmem:[#allocation15 + $0x1b8] sm:$0xff]
          %v1762 = vld [vmem:[#allocation15 + $0x1c0] sm:$0xff]
          %v1763 = vld [vmem:[#allocation15 + $0x1c8] sm:$0xff]
          %v1764 = vld [vmem:[#allocation15 + $0x1d0] sm:$0xff]
          %v1765 = vld [vmem:[#allocation15 + $0x1d8] sm:$0xff]
          %v1766 = vld [vmem:[#allocation15 + $0x1e0] sm:$0xff]
          %v1767 = vld [vmem:[#allocation15 + $0x1e8] sm:$0xff]
          %v1768 = vld [vmem:[#allocation15 + $0x1f0] sm:$0xff]
          %v1769 = vld [vmem:[#allocation15 + $0x1f8] sm:$0xff]
          %v1770 = vld [vmem:[#allocation15 + $0x200] sm:$0xff]
          %v1771 = vld [vmem:[#allocation15 + $0x208] sm:$0xff]
          %v1772 = vld [vmem:[#allocation15 + $0x210] sm:$0xff]
          %v1773 = vld [vmem:[#allocation15 + $0x218] sm:$0xff]
          %v1774 = vld [vmem:[#allocation15 + $0x220] sm:$0xff]
          %v1775 = vld [vmem:[#allocation15 + $0x228] sm:$0xff]
          %v1776 = vld [vmem:[#allocation15 + $0x230] sm:$0xff]
          %v1777 = vld [vmem:[#allocation15 + $0x238] sm:$0xff]
          %v1778 = vld [vmem:[#allocation15 + $0x240] sm:$0xff]
          %v1779 = vld [vmem:[#allocation15 + $0x248] sm:$0xff]
          %v1780 = vld [vmem:[#allocation15 + $0x250] sm:$0xff]
          %v1781 = vld [vmem:[#allocation15 + $0x258] sm:$0xff]
          %v1782 = vld [vmem:[#allocation15 + $0x260] sm:$0xff]
          %v1783 = vld [vmem:[#allocation15 + $0x268] sm:$0xff]
          %v1784 = vld [vmem:[#allocation15 + $0x270] sm:$0xff]
          %v1785 = vld [vmem:[#allocation15 + $0x278] sm:$0xff]
          %v1786 = vld [vmem:[#allocation15 + $0x280] sm:$0xff]
          %v1787 = vld [vmem:[#allocation15 + $0x288] sm:$0xff]
          %v1788 = vld [vmem:[#allocation15 + $0x290] sm:$0xff]
          %v1789 = vld [vmem:[#allocation15 + $0x298] sm:$0xff]
          %v1790 = vld [vmem:[#allocation15 + $0x2a0] sm:$0xff]
          %v1791 = vld [vmem:[#allocation15 + $0x2a8] sm:$0xff]
          %v1792 = vld [vmem:[#allocation15 + $0x2b0] sm:$0xff]
          %v1793 = vld [vmem:[#allocation15 + $0x2b8] sm:$0xff]
          %v1794 = vld [vmem:[#allocation15 + $0x2c0] sm:$0xff]
          %v1795 = vld [vmem:[#allocation15 + $0x2c8] sm:$0xff]
          %v1796 = vld [vmem:[#allocation15 + $0x2d0] sm:$0xff]
          %v1797 = vld [vmem:[#allocation15 + $0x2d8] sm:$0xff]
          %v1798 = vld [vmem:[#allocation15 + $0x2e0] sm:$0xff]
          %v1799 = vld [vmem:[#allocation15 + $0x2e8] sm:$0xff]
          %v1800 = vld [vmem:[#allocation15 + $0x2f0] sm:$0xff]
          %v1801 = vld [vmem:[#allocation15 + $0x2f8] sm:$0xff]
          %v1802 = vld [vmem:[#allocation15 + $0x300] sm:$0xff]
          %v1803 = vld [vmem:[#allocation15 + $0x308] sm:$0xff]
          %v1804 = vld [vmem:[#allocation15 + $0x310] sm:$0xff]
          %v1805 = vld [vmem:[#allocation15 + $0x318] sm:$0xff]
          %v1806 = vld [vmem:[#allocation15 + $0x320] sm:$0xff]
          %v1807 = vld [vmem:[#allocation15 + $0x328] sm:$0xff]
          %v1808 = vld [vmem:[#allocation15 + $0x330] sm:$0xff]
          %v1809 = vld [vmem:[#allocation15 + $0x338] sm:$0xff]
          %v1810 = vld [vmem:[#allocation15 + $0x340] sm:$0xff]
          %v1811 = vld [vmem:[#allocation15 + $0x348] sm:$0xff]
          %v1812 = vld [vmem:[#allocation15 + $0x350] sm:$0xff]
          %v1813 = vld [vmem:[#allocation15 + $0x358] sm:$0xff]
          %v1814 = vld [vmem:[#allocation15 + $0x360] sm:$0xff]
          %v1815 = vld [vmem:[#allocation15 + $0x368] sm:$0xff]
          %v1816 = vld [vmem:[#allocation15 + $0x370] sm:$0xff]
          %v1817 = vld [vmem:[#allocation15 + $0x378] sm:$0xff]
          %v1818 = vld [vmem:[#allocation15 + $0x380] sm:$0xff]
          %v1819 = vld [vmem:[#allocation15 + $0x388] sm:$0xff]
          %v1820 = vld [vmem:[#allocation15 + $0x390] sm:$0xff]
          %v1821 = vld [vmem:[#allocation15 + $0x398] sm:$0xff]
          %v1822 = vld [vmem:[#allocation15 + $0x3a0] sm:$0xff]
          %v1823 = vld [vmem:[#allocation15 + $0x3a8] sm:$0xff]
          %v1824 = vld [vmem:[#allocation15 + $0x3b0] sm:$0xff]
          %v1825 = vld [vmem:[#allocation15 + $0x3b8] sm:$0xff]
          %v1826 = vld [vmem:[#allocation15 + $0x3c0] sm:$0xff]
          %v1827 = vld [vmem:[#allocation15 + $0x3c8] sm:$0xff]
          %v1828 = vld [vmem:[#allocation15 + $0x3d0] sm:$0xff]
          %v1829 = vld [vmem:[#allocation15 + $0x3d8] sm:$0xff]
          %v1830 = vld [vmem:[#allocation15 + $0x3e0] sm:$0xff]
          %v1831 = vld [vmem:[#allocation15 + $0x3e8] sm:$0xff]
          %v1832 = vld [vmem:[#allocation15 + $0x3f0] sm:$0xff]
          %v1833 = vld [vmem:[#allocation15 + $0x3f8] sm:$0xff]
          %v1834 = vld [vmem:[#allocation15 + $0x400] sm:$0xff]
          %v1835 = vld [vmem:[#allocation15 + $0x408] sm:$0xff]
          %v1836 = vld [vmem:[#allocation15 + $0x410] sm:$0xff]
          %v1837 = vld [vmem:[#allocation15 + $0x418] sm:$0xff]
          %v1838 = vld [vmem:[#allocation15 + $0x420] sm:$0xff]
          %v1839 = vld [vmem:[#allocation15 + $0x428] sm:$0xff]
          %v1840 = vld [vmem:[#allocation15 + $0x430] sm:$0xff]
          %v1841 = vld [vmem:[#allocation15 + $0x438] sm:$0xff]
          %v1842 = vld [vmem:[#allocation15 + $0x440] sm:$0xff]
          %v1843 = vld [vmem:[#allocation15 + $0x448] sm:$0xff]
          %v1844 = vld [vmem:[#allocation15 + $0x450] sm:$0xff]
          %v1845 = vld [vmem:[#allocation15 + $0x458] sm:$0xff]
          %v1846 = vld [vmem:[#allocation15 + $0x460] sm:$0xff]
          %v1847 = vld [vmem:[#allocation15 + $0x468] sm:$0xff]
          %v1848 = vld [vmem:[#allocation15 + $0x470] sm:$0xff]
          %v1849 = vld [vmem:[#allocation15 + $0x478] sm:$0xff]
          %v1850 = vld [vmem:[#allocation15 + $0x480] sm:$0xff]
          %v1851 = vld [vmem:[#allocation15 + $0x488] sm:$0xff]
          %v1852 = vld [vmem:[#allocation15 + $0x490] sm:$0xff]
          %v1853 = vld [vmem:[#allocation15 + $0x498] sm:$0xff]
          %v1854 = vld [vmem:[#allocation15 + $0x4a0] sm:$0xff]
          %v1855 = vld [vmem:[#allocation15 + $0x4a8] sm:$0xff]
          %v1856 = vld [vmem:[#allocation15 + $0x4b0] sm:$0xff]
          %v1857 = vld [vmem:[#allocation15 + $0x4b8] sm:$0xff]
          %v1858 = vld [vmem:[#allocation15 + $0x4c0] sm:$0xff]
          %v1859 = vld [vmem:[#allocation15 + $0x4c8] sm:$0xff]
          %v1860 = vld [vmem:[#allocation15 + $0x4d0] sm:$0xff]
          %v1861 = vld [vmem:[#allocation15 + $0x4d8] sm:$0xff]
          %v1862 = vld [vmem:[#allocation15 + $0x4e0] sm:$0xff]
          %v1863 = vld [vmem:[#allocation15 + $0x4e8] sm:$0xff]
          %v1864 = vld [vmem:[#allocation15 + $0x4f0] sm:$0xff]
          %v1865 = vld [vmem:[#allocation15 + $0x4f8] sm:$0xff]
          %v1866 = vld [vmem:[#allocation15 + $0x500] sm:$0xff]
          %v1867 = vld [vmem:[#allocation15 + $0x508] sm:$0xff]
          %v1868 = vld [vmem:[#allocation15 + $0x510] sm:$0xff]
          %v1869 = vld [vmem:[#allocation15 + $0x518] sm:$0xff]
          %v1870 = vld [vmem:[#allocation15 + $0x520] sm:$0xff]
          %v1871 = vld [vmem:[#allocation15 + $0x528] sm:$0xff]
          %v1872 = vld [vmem:[#allocation15 + $0x530] sm:$0xff]
          %v1873 = vld [vmem:[#allocation15 + $0x538] sm:$0xff]
          %v1874 = vld [vmem:[#allocation15 + $0x540] sm:$0xff]
          %v1875 = vld [vmem:[#allocation15 + $0x548] sm:$0xff]
          %v1876 = vld [vmem:[#allocation15 + $0x550] sm:$0xff]
          %v1877 = vld [vmem:[#allocation15 + $0x558] sm:$0xff]
          %v1878 = vld [vmem:[#allocation15 + $0x560] sm:$0xff]
          %v1879 = vld [vmem:[#allocation15 + $0x568] sm:$0xff]
          %v1880 = vld [vmem:[#allocation15 + $0x570] sm:$0xff]
          %v1881 = vld [vmem:[#allocation15 + $0x578] sm:$0xff]
          %v1882 = vld [vmem:[#allocation15 + $0x580] sm:$0xff]
          %v1883 = vld [vmem:[#allocation15 + $0x588] sm:$0xff]
          %v1884 = vld [vmem:[#allocation15 + $0x590] sm:$0xff]
          %v1885 = vld [vmem:[#allocation15 + $0x598] sm:$0xff]
          %v1886 = vld [vmem:[#allocation15 + $0x5a0] sm:$0xff]
          %v1887 = vld [vmem:[#allocation15 + $0x5a8] sm:$0xff]
          %v1888 = vld [vmem:[#allocation15 + $0x5b0] sm:$0xff]
          %v1889 = vld [vmem:[#allocation15 + $0x5b8] sm:$0xff]
          %v1890 = vld [vmem:[#allocation15 + $0x5c0] sm:$0xff]
          %v1891 = vld [vmem:[#allocation15 + $0x5c8] sm:$0xff]
          %v1892 = vld [vmem:[#allocation15 + $0x5d0] sm:$0xff]
          %v1893 = vld [vmem:[#allocation15 + $0x5d8] sm:$0xff]
          %v1894 = vld [vmem:[#allocation15 + $0x5e0] sm:$0xff]
          %v1895 = vld [vmem:[#allocation15 + $0x5e8] sm:$0xff]
          %v1896 = vld [vmem:[#allocation15 + $0x5f0] sm:$0xff]
          %v1897 = vld [vmem:[#allocation15 + $0x5f8] sm:$0xff]
          %v1898 = vld [vmem:[#allocation15 + $0x600] sm:$0xff]
          %v1899 = vld [vmem:[#allocation15 + $0x608] sm:$0xff]
          %v1900 = vld [vmem:[#allocation15 + $0x610] sm:$0xff]
          %v1901 = vld [vmem:[#allocation15 + $0x618] sm:$0xff]
          %v1902 = vld [vmem:[#allocation15 + $0x620] sm:$0xff]
          %v1903 = vld [vmem:[#allocation15 + $0x628] sm:$0xff]
          %v1904 = vld [vmem:[#allocation15 + $0x630] sm:$0xff]
          %v1905 = vld [vmem:[#allocation15 + $0x638] sm:$0xff]
          %v1906 = vld [vmem:[#allocation15 + $0x640] sm:$0xff]
          %v1907 = vld [vmem:[#allocation15 + $0x648] sm:$0xff]
          %v1908 = vld [vmem:[#allocation15 + $0x650] sm:$0xff]
          %v1909 = vld [vmem:[#allocation15 + $0x658] sm:$0xff]
          %v1910 = vld [vmem:[#allocation15 + $0x660] sm:$0xff]
          %v1911 = vld [vmem:[#allocation15 + $0x668] sm:$0xff]
          %v1912 = vld [vmem:[#allocation15 + $0x670] sm:$0xff]
          %v1913 = vld [vmem:[#allocation15 + $0x678] sm:$0xff]
          %v1914 = vld [vmem:[#allocation15 + $0x680] sm:$0xff]
          %v1915 = vld [vmem:[#allocation15 + $0x688] sm:$0xff]
          %v1916 = vld [vmem:[#allocation15 + $0x690] sm:$0xff]
          %v1917 = vld [vmem:[#allocation15 + $0x698] sm:$0xff]
          %v1918 = vld [vmem:[#allocation15 + $0x6a0] sm:$0xff]
          %v1919 = vld [vmem:[#allocation15 + $0x6a8] sm:$0xff]
          %v1920 = vld [vmem:[#allocation15 + $0x6b0] sm:$0xff]
          %v1921 = vld [vmem:[#allocation15 + $0x6b8] sm:$0xff]
          %v1922 = vld [vmem:[#allocation15 + $0x6c0] sm:$0xff]
          %v1923 = vld [vmem:[#allocation15 + $0x6c8] sm:$0xff]
          %v1924 = vld [vmem:[#allocation15 + $0x6d0] sm:$0xff]
          %v1925 = vld [vmem:[#allocation15 + $0x6d8] sm:$0xff]
          %v1926 = vld [vmem:[#allocation15 + $0x6e0] sm:$0xff]
          %v1927 = vld [vmem:[#allocation15 + $0x6e8] sm:$0xff]
          %v1928 = vld [vmem:[#allocation15 + $0x6f0] sm:$0xff]
          %v1929 = vld [vmem:[#allocation15 + $0x6f8] sm:$0xff]
          %v1930 = vld [vmem:[#allocation15 + $0x700] sm:$0xff]
          %v1931 = vld [vmem:[#allocation15 + $0x708] sm:$0xff]
          %v1932 = vld [vmem:[#allocation15 + $0x710] sm:$0xff]
          %v1933 = vld [vmem:[#allocation15 + $0x718] sm:$0xff]
          %v1934 = vld [vmem:[#allocation15 + $0x720] sm:$0xff]
          %v1935 = vld [vmem:[#allocation15 + $0x728] sm:$0xff]
          %v1936 = vld [vmem:[#allocation15 + $0x730] sm:$0xff]
          %v1937 = vld [vmem:[#allocation15 + $0x738] sm:$0xff]
          %v1938 = vld [vmem:[#allocation15 + $0x740] sm:$0xff]
          %v1939 = vld [vmem:[#allocation15 + $0x748] sm:$0xff]
          %v1940 = vld [vmem:[#allocation15 + $0x750] sm:$0xff]
          %v1941 = vld [vmem:[#allocation15 + $0x758] sm:$0xff]
          %v1942 = vld [vmem:[#allocation15 + $0x760] sm:$0xff]
          %v1943 = vld [vmem:[#allocation15 + $0x768] sm:$0xff]
          %v1944 = vld [vmem:[#allocation15 + $0x770] sm:$0xff]
          %v1945 = vld [vmem:[#allocation15 + $0x778] sm:$0xff]
          %v1946 = vld [vmem:[#allocation15 + $0x780] sm:$0xff]
          %v1947 = vld [vmem:[#allocation15 + $0x788] sm:$0xff]
          %v1948 = vld [vmem:[#allocation15 + $0x790] sm:$0xff]
          %v1949 = vld [vmem:[#allocation15 + $0x798] sm:$0xff]
          %v1950 = vld [vmem:[#allocation15 + $0x7a0] sm:$0xff]
          %v1951 = vld [vmem:[#allocation15 + $0x7a8] sm:$0xff]
          %v1952 = vld [vmem:[#allocation15 + $0x7b0] sm:$0xff]
          %v1953 = vld [vmem:[#allocation15 + $0x7b8] sm:$0xff]
          %v1954 = vld [vmem:[#allocation15 + $0x7c0] sm:$0xff]
          %v1955 = vld [vmem:[#allocation15 + $0x7c8] sm:$0xff]
          %v1956 = vld [vmem:[#allocation15 + $0x7d0] sm:$0xff]
          %v1957 = vld [vmem:[#allocation15 + $0x7d8] sm:$0xff]
          %v1958 = vld [vmem:[#allocation15 + $0x7e0] sm:$0xff]
          %v1959 = vld [vmem:[#allocation15 + $0x7e8] sm:$0xff]
          %v1960 = vld [vmem:[#allocation15 + $0x7f0] sm:$0xff]
          %v1961 = vld [vmem:[#allocation15 + $0x7f8] sm:$0xff]
          %v1962 = vld [vmem:[#allocation17] sm:$0xf]
          %v2219 = vunpack.c.l.b16 %v1706
          %v2220 = vunpack.c.h.b16 %v1706
          %v2221 = vunpack.c.l.b16 %v1707
          %v2222 = vunpack.c.h.b16 %v1707
          %v2223 = vunpack.c.l.b16 %v1708
          %v2224 = vunpack.c.h.b16 %v1708
          %v2225 = vunpack.c.l.b16 %v1709
          %v2226 = vunpack.c.h.b16 %v1709
          %v2227 = vunpack.c.l.b16 %v1710
          %v2228 = vunpack.c.h.b16 %v1710
          %v2229 = vunpack.c.l.b16 %v1711
          %v2230 = vunpack.c.h.b16 %v1711
          %v2231 = vunpack.c.l.b16 %v1712
          %v2232 = vunpack.c.h.b16 %v1712
          %v2233 = vunpack.c.l.b16 %v1713
          %v2234 = vunpack.c.h.b16 %v1713
          %v2235 = vunpack.c.l.b16 %v1714
          %v2236 = vunpack.c.h.b16 %v1714
          %v2237 = vunpack.c.l.b16 %v1715
          %v2238 = vunpack.c.h.b16 %v1715
          %v2239 = vunpack.c.l.b16 %v1716
          %v2240 = vunpack.c.h.b16 %v1716
          %v2241 = vunpack.c.l.b16 %v1717
          %v2242 = vunpack.c.h.b16 %v1717
          %v2243 = vunpack.c.l.b16 %v1718
          %v2244 = vunpack.c.h.b16 %v1718
          %v2245 = vunpack.c.l.b16 %v1719
          %v2246 = vunpack.c.h.b16 %v1719
          %v2247 = vunpack.c.l.b16 %v1720
          %v2248 = vunpack.c.h.b16 %v1720
          %v2249 = vunpack.c.l.b16 %v1721
          %v2250 = vunpack.c.h.b16 %v1721
          %v2251 = vunpack.c.l.b16 %v1722
          %v2252 = vunpack.c.h.b16 %v1722
          %v2253 = vunpack.c.l.b16 %v1723
          %v2254 = vunpack.c.h.b16 %v1723
          %v2255 = vunpack.c.l.b16 %v1724
          %v2256 = vunpack.c.h.b16 %v1724
          %v2257 = vunpack.c.l.b16 %v1725
          %v2258 = vunpack.c.h.b16 %v1725
          %v2259 = vunpack.c.l.b16 %v1726
          %v2260 = vunpack.c.h.b16 %v1726
          %v2261 = vunpack.c.l.b16 %v1727
          %v2262 = vunpack.c.h.b16 %v1727
          %v2263 = vunpack.c.l.b16 %v1728
          %v2264 = vunpack.c.h.b16 %v1728
          %v2265 = vunpack.c.l.b16 %v1729
          %v2266 = vunpack.c.h.b16 %v1729
          %v2267 = vunpack.c.l.b16 %v1730
          %v2268 = vunpack.c.h.b16 %v1730
          %v2269 = vunpack.c.l.b16 %v1731
          %v2270 = vunpack.c.h.b16 %v1731
          %v2271 = vunpack.c.l.b16 %v1732
          %v2272 = vunpack.c.h.b16 %v1732
          %v2273 = vunpack.c.l.b16 %v1733
          %v2274 = vunpack.c.h.b16 %v1733
          %v2275 = vunpack.c.l.b16 %v1734
          %v2276 = vunpack.c.h.b16 %v1734
          %v2277 = vunpack.c.l.b16 %v1735
          %v2278 = vunpack.c.h.b16 %v1735
          %v2279 = vunpack.c.l.b16 %v1736
          %v2280 = vunpack.c.h.b16 %v1736
          %v2281 = vunpack.c.l.b16 %v1737
          %v2282 = vunpack.c.h.b16 %v1737
          %v2283 = vunpack.c.l.b16 %v1738
          %v2284 = vunpack.c.h.b16 %v1738
          %v2285 = vunpack.c.l.b16 %v1739
          %v2286 = vunpack.c.h.b16 %v1739
          %v2287 = vunpack.c.l.b16 %v1740
          %v2288 = vunpack.c.h.b16 %v1740
          %v2289 = vunpack.c.l.b16 %v1741
          %v2290 = vunpack.c.h.b16 %v1741
          %v2291 = vunpack.c.l.b16 %v1742
          %v2292 = vunpack.c.h.b16 %v1742
          %v2293 = vunpack.c.l.b16 %v1743
          %v2294 = vunpack.c.h.b16 %v1743
          %v2295 = vunpack.c.l.b16 %v1744
          %v2296 = vunpack.c.h.b16 %v1744
          %v2297 = vunpack.c.l.b16 %v1745
          %v2298 = vunpack.c.h.b16 %v1745
          %v2299 = vunpack.c.l.b16 %v1746
          %v2300 = vunpack.c.h.b16 %v1746
          %v2301 = vunpack.c.l.b16 %v1747
          %v2302 = vunpack.c.h.b16 %v1747
          %v2303 = vunpack.c.l.b16 %v1748
          %v2304 = vunpack.c.h.b16 %v1748
          %v2305 = vunpack.c.l.b16 %v1749
          %v2306 = vunpack.c.h.b16 %v1749
          %v2307 = vunpack.c.l.b16 %v1750
          %v2308 = vunpack.c.h.b16 %v1750
          %v2309 = vunpack.c.l.b16 %v1751
          %v2310 = vunpack.c.h.b16 %v1751
          %v2311 = vunpack.c.l.b16 %v1752
          %v2312 = vunpack.c.h.b16 %v1752
          %v2313 = vunpack.c.l.b16 %v1753
          %v2314 = vunpack.c.h.b16 %v1753
          %v2315 = vunpack.c.l.b16 %v1754
          %v2316 = vunpack.c.h.b16 %v1754
          %v2317 = vunpack.c.l.b16 %v1755
          %v2318 = vunpack.c.h.b16 %v1755
          %v2319 = vunpack.c.l.b16 %v1756
          %v2320 = vunpack.c.h.b16 %v1756
          %v2321 = vunpack.c.l.b16 %v1757
          %v2322 = vunpack.c.h.b16 %v1757
          %v2323 = vunpack.c.l.b16 %v1758
          %v2324 = vunpack.c.h.b16 %v1758
          %v2325 = vunpack.c.l.b16 %v1759
          %v2326 = vunpack.c.h.b16 %v1759
          %v2327 = vunpack.c.l.b16 %v1760
          %v2328 = vunpack.c.h.b16 %v1760
          %v2329 = vunpack.c.l.b16 %v1761
          %v2330 = vunpack.c.h.b16 %v1761
          %v2331 = vunpack.c.l.b16 %v1762
          %v2332 = vunpack.c.h.b16 %v1762
          %v2333 = vunpack.c.l.b16 %v1763
          %v2334 = vunpack.c.h.b16 %v1763
          %v2335 = vunpack.c.l.b16 %v1764
          %v2336 = vunpack.c.h.b16 %v1764
          %v2337 = vunpack.c.l.b16 %v1765
          %v2338 = vunpack.c.h.b16 %v1765
          %v2339 = vunpack.c.l.b16 %v1766
          %v2340 = vunpack.c.h.b16 %v1766
          %v2341 = vunpack.c.l.b16 %v1767
          %v2342 = vunpack.c.h.b16 %v1767
          %v2343 = vunpack.c.l.b16 %v1768
          %v2344 = vunpack.c.h.b16 %v1768
          %v2345 = vunpack.c.l.b16 %v1769
          %v2346 = vunpack.c.h.b16 %v1769
          %v2347 = vunpack.c.l.b16 %v1770
          %v2348 = vunpack.c.h.b16 %v1770
          %v2349 = vunpack.c.l.b16 %v1771
          %v2350 = vunpack.c.h.b16 %v1771
          %v2351 = vunpack.c.l.b16 %v1772
          %v2352 = vunpack.c.h.b16 %v1772
          %v2353 = vunpack.c.l.b16 %v1773
          %v2354 = vunpack.c.h.b16 %v1773
          %v2355 = vunpack.c.l.b16 %v1774
          %v2356 = vunpack.c.h.b16 %v1774
          %v2357 = vunpack.c.l.b16 %v1775
          %v2358 = vunpack.c.h.b16 %v1775
          %v2359 = vunpack.c.l.b16 %v1776
          %v2360 = vunpack.c.h.b16 %v1776
          %v2361 = vunpack.c.l.b16 %v1777
          %v2362 = vunpack.c.h.b16 %v1777
          %v2363 = vunpack.c.l.b16 %v1778
          %v2364 = vunpack.c.h.b16 %v1778
          %v2365 = vunpack.c.l.b16 %v1779
          %v2366 = vunpack.c.h.b16 %v1779
          %v2367 = vunpack.c.l.b16 %v1780
          %v2368 = vunpack.c.h.b16 %v1780
          %v2369 = vunpack.c.l.b16 %v1781
          %v2370 = vunpack.c.h.b16 %v1781
          %v2371 = vunpack.c.l.b16 %v1782
          %v2372 = vunpack.c.h.b16 %v1782
          %v2373 = vunpack.c.l.b16 %v1783
          %v2374 = vunpack.c.h.b16 %v1783
          %v2375 = vunpack.c.l.b16 %v1784
          %v2376 = vunpack.c.h.b16 %v1784
          %v2377 = vunpack.c.l.b16 %v1785
          %v2378 = vunpack.c.h.b16 %v1785
          %v2379 = vunpack.c.l.b16 %v1786
          %v2380 = vunpack.c.h.b16 %v1786
          %v2381 = vunpack.c.l.b16 %v1787
          %v2382 = vunpack.c.h.b16 %v1787
          %v2383 = vunpack.c.l.b16 %v1788
          %v2384 = vunpack.c.h.b16 %v1788
          %v2385 = vunpack.c.l.b16 %v1789
          %v2386 = vunpack.c.h.b16 %v1789
          %v2387 = vunpack.c.l.b16 %v1790
          %v2388 = vunpack.c.h.b16 %v1790
          %v2389 = vunpack.c.l.b16 %v1791
          %v2390 = vunpack.c.h.b16 %v1791
          %v2391 = vunpack.c.l.b16 %v1792
          %v2392 = vunpack.c.h.b16 %v1792
          %v2393 = vunpack.c.l.b16 %v1793
          %v2394 = vunpack.c.h.b16 %v1793
          %v2395 = vunpack.c.l.b16 %v1794
          %v2396 = vunpack.c.h.b16 %v1794
          %v2397 = vunpack.c.l.b16 %v1795
          %v2398 = vunpack.c.h.b16 %v1795
          %v2399 = vunpack.c.l.b16 %v1796
          %v2400 = vunpack.c.h.b16 %v1796
          %v2401 = vunpack.c.l.b16 %v1797
          %v2402 = vunpack.c.h.b16 %v1797
          %v2403 = vunpack.c.l.b16 %v1798
          %v2404 = vunpack.c.h.b16 %v1798
          %v2405 = vunpack.c.l.b16 %v1799
          %v2406 = vunpack.c.h.b16 %v1799
          %v2407 = vunpack.c.l.b16 %v1800
          %v2408 = vunpack.c.h.b16 %v1800
          %v2409 = vunpack.c.l.b16 %v1801
          %v2410 = vunpack.c.h.b16 %v1801
          %v2411 = vunpack.c.l.b16 %v1802
          %v2412 = vunpack.c.h.b16 %v1802
          %v2413 = vunpack.c.l.b16 %v1803
          %v2414 = vunpack.c.h.b16 %v1803
          %v2415 = vunpack.c.l.b16 %v1804
          %v2416 = vunpack.c.h.b16 %v1804
          %v2417 = vunpack.c.l.b16 %v1805
          %v2418 = vunpack.c.h.b16 %v1805
          %v2419 = vunpack.c.l.b16 %v1806
          %v2420 = vunpack.c.h.b16 %v1806
          %v2421 = vunpack.c.l.b16 %v1807
          %v2422 = vunpack.c.h.b16 %v1807
          %v2423 = vunpack.c.l.b16 %v1808
          %v2424 = vunpack.c.h.b16 %v1808
          %v2425 = vunpack.c.l.b16 %v1809
          %v2426 = vunpack.c.h.b16 %v1809
          %v2427 = vunpack.c.l.b16 %v1810
          %v2428 = vunpack.c.h.b16 %v1810
          %v2429 = vunpack.c.l.b16 %v1811
          %v2430 = vunpack.c.h.b16 %v1811
          %v2431 = vunpack.c.l.b16 %v1812
          %v2432 = vunpack.c.h.b16 %v1812
          %v2433 = vunpack.c.l.b16 %v1813
          %v2434 = vunpack.c.h.b16 %v1813
          %v2435 = vunpack.c.l.b16 %v1814
          %v2436 = vunpack.c.h.b16 %v1814
          %v2437 = vunpack.c.l.b16 %v1815
          %v2438 = vunpack.c.h.b16 %v1815
          %v2439 = vunpack.c.l.b16 %v1816
          %v2440 = vunpack.c.h.b16 %v1816
          %v2441 = vunpack.c.l.b16 %v1817
          %v2442 = vunpack.c.h.b16 %v1817
          %v2443 = vunpack.c.l.b16 %v1818
          %v2444 = vunpack.c.h.b16 %v1818
          %v2445 = vunpack.c.l.b16 %v1819
          %v2446 = vunpack.c.h.b16 %v1819
          %v2447 = vunpack.c.l.b16 %v1820
          %v2448 = vunpack.c.h.b16 %v1820
          %v2449 = vunpack.c.l.b16 %v1821
          %v2450 = vunpack.c.h.b16 %v1821
          %v2451 = vunpack.c.l.b16 %v1822
          %v2452 = vunpack.c.h.b16 %v1822
          %v2453 = vunpack.c.l.b16 %v1823
          %v2454 = vunpack.c.h.b16 %v1823
          %v2455 = vunpack.c.l.b16 %v1824
          %v2456 = vunpack.c.h.b16 %v1824
          %v2457 = vunpack.c.l.b16 %v1825
          %v2458 = vunpack.c.h.b16 %v1825
          %v2459 = vunpack.c.l.b16 %v1826
          %v2460 = vunpack.c.h.b16 %v1826
          %v2461 = vunpack.c.l.b16 %v1827
          %v2462 = vunpack.c.h.b16 %v1827
          %v2463 = vunpack.c.l.b16 %v1828
          %v2464 = vunpack.c.h.b16 %v1828
          %v2465 = vunpack.c.l.b16 %v1829
          %v2466 = vunpack.c.h.b16 %v1829
          %v2467 = vunpack.c.l.b16 %v1830
          %v2468 = vunpack.c.h.b16 %v1830
          %v2469 = vunpack.c.l.b16 %v1831
          %v2470 = vunpack.c.h.b16 %v1831
          %v2471 = vunpack.c.l.b16 %v1832
          %v2472 = vunpack.c.h.b16 %v1832
          %v2473 = vunpack.c.l.b16 %v1833
          %v2474 = vunpack.c.h.b16 %v1833
          %v2475 = vunpack.c.l.b16 %v1834
          %v2476 = vunpack.c.h.b16 %v1834
          %v2477 = vunpack.c.l.b16 %v1835
          %v2478 = vunpack.c.h.b16 %v1835
          %v2479 = vunpack.c.l.b16 %v1836
          %v2480 = vunpack.c.h.b16 %v1836
          %v2481 = vunpack.c.l.b16 %v1837
          %v2482 = vunpack.c.h.b16 %v1837
          %v2483 = vunpack.c.l.b16 %v1838
          %v2484 = vunpack.c.h.b16 %v1838
          %v2485 = vunpack.c.l.b16 %v1839
          %v2486 = vunpack.c.h.b16 %v1839
          %v2487 = vunpack.c.l.b16 %v1840
          %v2488 = vunpack.c.h.b16 %v1840
          %v2489 = vunpack.c.l.b16 %v1841
          %v2490 = vunpack.c.h.b16 %v1841
          %v2491 = vunpack.c.l.b16 %v1842
          %v2492 = vunpack.c.h.b16 %v1842
          %v2493 = vunpack.c.l.b16 %v1843
          %v2494 = vunpack.c.h.b16 %v1843
          %v2495 = vunpack.c.l.b16 %v1844
          %v2496 = vunpack.c.h.b16 %v1844
          %v2497 = vunpack.c.l.b16 %v1845
          %v2498 = vunpack.c.h.b16 %v1845
          %v2499 = vunpack.c.l.b16 %v1846
          %v2500 = vunpack.c.h.b16 %v1846
          %v2501 = vunpack.c.l.b16 %v1847
          %v2502 = vunpack.c.h.b16 %v1847
          %v2503 = vunpack.c.l.b16 %v1848
          %v2504 = vunpack.c.h.b16 %v1848
          %v2505 = vunpack.c.l.b16 %v1849
          %v2506 = vunpack.c.h.b16 %v1849
          %v2507 = vunpack.c.l.b16 %v1850
          %v2508 = vunpack.c.h.b16 %v1850
          %v2509 = vunpack.c.l.b16 %v1851
          %v2510 = vunpack.c.h.b16 %v1851
          %v2511 = vunpack.c.l.b16 %v1852
          %v2512 = vunpack.c.h.b16 %v1852
          %v2513 = vunpack.c.l.b16 %v1853
          %v2514 = vunpack.c.h.b16 %v1853
          %v2515 = vunpack.c.l.b16 %v1854
          %v2516 = vunpack.c.h.b16 %v1854
          %v2517 = vunpack.c.l.b16 %v1855
          %v2518 = vunpack.c.h.b16 %v1855
          %v2519 = vunpack.c.l.b16 %v1856
          %v2520 = vunpack.c.h.b16 %v1856
          %v2521 = vunpack.c.l.b16 %v1857
          %v2522 = vunpack.c.h.b16 %v1857
          %v2523 = vunpack.c.l.b16 %v1858
          %v2524 = vunpack.c.h.b16 %v1858
          %v2525 = vunpack.c.l.b16 %v1859
          %v2526 = vunpack.c.h.b16 %v1859
          %v2527 = vunpack.c.l.b16 %v1860
          %v2528 = vunpack.c.h.b16 %v1860
          %v2529 = vunpack.c.l.b16 %v1861
          %v2530 = vunpack.c.h.b16 %v1861
          %v2531 = vunpack.c.l.b16 %v1862
          %v2532 = vunpack.c.h.b16 %v1862
          %v2533 = vunpack.c.l.b16 %v1863
          %v2534 = vunpack.c.h.b16 %v1863
          %v2535 = vunpack.c.l.b16 %v1864
          %v2536 = vunpack.c.h.b16 %v1864
          %v2537 = vunpack.c.l.b16 %v1865
          %v2538 = vunpack.c.h.b16 %v1865
          %v2539 = vunpack.c.l.b16 %v1866
          %v2540 = vunpack.c.h.b16 %v1866
          %v2541 = vunpack.c.l.b16 %v1867
          %v2542 = vunpack.c.h.b16 %v1867
          %v2543 = vunpack.c.l.b16 %v1868
          %v2544 = vunpack.c.h.b16 %v1868
          %v2545 = vunpack.c.l.b16 %v1869
          %v2546 = vunpack.c.h.b16 %v1869
          %v2547 = vunpack.c.l.b16 %v1870
          %v2548 = vunpack.c.h.b16 %v1870
          %v2549 = vunpack.c.l.b16 %v1871
          %v2550 = vunpack.c.h.b16 %v1871
          %v2551 = vunpack.c.l.b16 %v1872
          %v2552 = vunpack.c.h.b16 %v1872
          %v2553 = vunpack.c.l.b16 %v1873
          %v2554 = vunpack.c.h.b16 %v1873
          %v2555 = vunpack.c.l.b16 %v1874
          %v2556 = vunpack.c.h.b16 %v1874
          %v2557 = vunpack.c.l.b16 %v1875
          %v2558 = vunpack.c.h.b16 %v1875
          %v2559 = vunpack.c.l.b16 %v1876
          %v2560 = vunpack.c.h.b16 %v1876
          %v2561 = vunpack.c.l.b16 %v1877
          %v2562 = vunpack.c.h.b16 %v1877
          %v2563 = vunpack.c.l.b16 %v1878
          %v2564 = vunpack.c.h.b16 %v1878
          %v2565 = vunpack.c.l.b16 %v1879
          %v2566 = vunpack.c.h.b16 %v1879
          %v2567 = vunpack.c.l.b16 %v1880
          %v2568 = vunpack.c.h.b16 %v1880
          %v2569 = vunpack.c.l.b16 %v1881
          %v2570 = vunpack.c.h.b16 %v1881
          %v2571 = vunpack.c.l.b16 %v1882
          %v2572 = vunpack.c.h.b16 %v1882
          %v2573 = vunpack.c.l.b16 %v1883
          %v2574 = vunpack.c.h.b16 %v1883
          %v2575 = vunpack.c.l.b16 %v1884
          %v2576 = vunpack.c.h.b16 %v1884
          %v2577 = vunpack.c.l.b16 %v1885
          %v2578 = vunpack.c.h.b16 %v1885
          %v2579 = vunpack.c.l.b16 %v1886
          %v2580 = vunpack.c.h.b16 %v1886
          %v2581 = vunpack.c.l.b16 %v1887
          %v2582 = vunpack.c.h.b16 %v1887
          %v2583 = vunpack.c.l.b16 %v1888
          %v2584 = vunpack.c.h.b16 %v1888
          %v2585 = vunpack.c.l.b16 %v1889
          %v2586 = vunpack.c.h.b16 %v1889
          %v2587 = vunpack.c.l.b16 %v1890
          %v2588 = vunpack.c.h.b16 %v1890
          %v2589 = vunpack.c.l.b16 %v1891
          %v2590 = vunpack.c.h.b16 %v1891
          %v2591 = vunpack.c.l.b16 %v1892
          %v2592 = vunpack.c.h.b16 %v1892
          %v2593 = vunpack.c.l.b16 %v1893
          %v2594 = vunpack.c.h.b16 %v1893
          %v2595 = vunpack.c.l.b16 %v1894
          %v2596 = vunpack.c.h.b16 %v1894
          %v2597 = vunpack.c.l.b16 %v1895
          %v2598 = vunpack.c.h.b16 %v1895
          %v2599 = vunpack.c.l.b16 %v1896
          %v2600 = vunpack.c.h.b16 %v1896
          %v2601 = vunpack.c.l.b16 %v1897
          %v2602 = vunpack.c.h.b16 %v1897
          %v2603 = vunpack.c.l.b16 %v1898
          %v2604 = vunpack.c.h.b16 %v1898
          %v2605 = vunpack.c.l.b16 %v1899
          %v2606 = vunpack.c.h.b16 %v1899
          %v2607 = vunpack.c.l.b16 %v1900
          %v2608 = vunpack.c.h.b16 %v1900
          %v2609 = vunpack.c.l.b16 %v1901
          %v2610 = vunpack.c.h.b16 %v1901
          %v2611 = vunpack.c.l.b16 %v1902
          %v2612 = vunpack.c.h.b16 %v1902
          %v2613 = vunpack.c.l.b16 %v1903
          %v2614 = vunpack.c.h.b16 %v1903
          %v2615 = vunpack.c.l.b16 %v1904
          %v2616 = vunpack.c.h.b16 %v1904
          %v2617 = vunpack.c.l.b16 %v1905
          %v2618 = vunpack.c.h.b16 %v1905
          %v2619 = vunpack.c.l.b16 %v1906
          %v2620 = vunpack.c.h.b16 %v1906
          %v2621 = vunpack.c.l.b16 %v1907
          %v2622 = vunpack.c.h.b16 %v1907
          %v2623 = vunpack.c.l.b16 %v1908
          %v2624 = vunpack.c.h.b16 %v1908
          %v2625 = vunpack.c.l.b16 %v1909
          %v2626 = vunpack.c.h.b16 %v1909
          %v2627 = vunpack.c.l.b16 %v1910
          %v2628 = vunpack.c.h.b16 %v1910
          %v2629 = vunpack.c.l.b16 %v1911
          %v2630 = vunpack.c.h.b16 %v1911
          %v2631 = vunpack.c.l.b16 %v1912
          %v2632 = vunpack.c.h.b16 %v1912
          %v2633 = vunpack.c.l.b16 %v1913
          %v2634 = vunpack.c.h.b16 %v1913
          %v2635 = vunpack.c.l.b16 %v1914
          %v2636 = vunpack.c.h.b16 %v1914
          %v2637 = vunpack.c.l.b16 %v1915
          %v2638 = vunpack.c.h.b16 %v1915
          %v2639 = vunpack.c.l.b16 %v1916
          %v2640 = vunpack.c.h.b16 %v1916
          %v2641 = vunpack.c.l.b16 %v1917
          %v2642 = vunpack.c.h.b16 %v1917
          %v2643 = vunpack.c.l.b16 %v1918
          %v2644 = vunpack.c.h.b16 %v1918
          %v2645 = vunpack.c.l.b16 %v1919
          %v2646 = vunpack.c.h.b16 %v1919
          %v2647 = vunpack.c.l.b16 %v1920
          %v2648 = vunpack.c.h.b16 %v1920
          %v2649 = vunpack.c.l.b16 %v1921
          %v2650 = vunpack.c.h.b16 %v1921
          %v2651 = vunpack.c.l.b16 %v1922
          %v2652 = vunpack.c.h.b16 %v1922
          %v2653 = vunpack.c.l.b16 %v1923
          %v2654 = vunpack.c.h.b16 %v1923
          %v2655 = vunpack.c.l.b16 %v1924
          %v2656 = vunpack.c.h.b16 %v1924
          %v2657 = vunpack.c.l.b16 %v1925
          %v2658 = vunpack.c.h.b16 %v1925
          %v2659 = vunpack.c.l.b16 %v1926
          %v2660 = vunpack.c.h.b16 %v1926
          %v2661 = vunpack.c.l.b16 %v1927
          %v2662 = vunpack.c.h.b16 %v1927
          %v2663 = vunpack.c.l.b16 %v1928
          %v2664 = vunpack.c.h.b16 %v1928
          %v2665 = vunpack.c.l.b16 %v1929
          %v2666 = vunpack.c.h.b16 %v1929
          %v2667 = vunpack.c.l.b16 %v1930
          %v2668 = vunpack.c.h.b16 %v1930
          %v2669 = vunpack.c.l.b16 %v1931
          %v2670 = vunpack.c.h.b16 %v1931
          %v2671 = vunpack.c.l.b16 %v1932
          %v2672 = vunpack.c.h.b16 %v1932
          %v2673 = vunpack.c.l.b16 %v1933
          %v2674 = vunpack.c.h.b16 %v1933
          %v2675 = vunpack.c.l.b16 %v1934
          %v2676 = vunpack.c.h.b16 %v1934
          %v2677 = vunpack.c.l.b16 %v1935
          %v2678 = vunpack.c.h.b16 %v1935
          %v2679 = vunpack.c.l.b16 %v1936
          %v2680 = vunpack.c.h.b16 %v1936
          %v2681 = vunpack.c.l.b16 %v1937
          %v2682 = vunpack.c.h.b16 %v1937
          %v2683 = vunpack.c.l.b16 %v1938
          %v2684 = vunpack.c.h.b16 %v1938
          %v2685 = vunpack.c.l.b16 %v1939
          %v2686 = vunpack.c.h.b16 %v1939
          %v2687 = vunpack.c.l.b16 %v1940
          %v2688 = vunpack.c.h.b16 %v1940
          %v2689 = vunpack.c.l.b16 %v1941
          %v2690 = vunpack.c.h.b16 %v1941
          %v2691 = vunpack.c.l.b16 %v1942
          %v2692 = vunpack.c.h.b16 %v1942
          %v2693 = vunpack.c.l.b16 %v1943
          %v2694 = vunpack.c.h.b16 %v1943
          %v2695 = vunpack.c.l.b16 %v1944
          %v2696 = vunpack.c.h.b16 %v1944
          %v2697 = vunpack.c.l.b16 %v1945
          %v2698 = vunpack.c.h.b16 %v1945
          %v2699 = vunpack.c.l.b16 %v1946
          %v2700 = vunpack.c.h.b16 %v1946
          %v2701 = vunpack.c.l.b16 %v1947
          %v2702 = vunpack.c.h.b16 %v1947
          %v2703 = vunpack.c.l.b16 %v1948
          %v2704 = vunpack.c.h.b16 %v1948
          %v2705 = vunpack.c.l.b16 %v1949
          %v2706 = vunpack.c.h.b16 %v1949
          %v2707 = vunpack.c.l.b16 %v1950
          %v2708 = vunpack.c.h.b16 %v1950
          %v2709 = vunpack.c.l.b16 %v1951
          %v2710 = vunpack.c.h.b16 %v1951
          %v2711 = vunpack.c.l.b16 %v1952
          %v2712 = vunpack.c.h.b16 %v1952
          %v2713 = vunpack.c.l.b16 %v1953
          %v2714 = vunpack.c.h.b16 %v1953
          %v2715 = vunpack.c.l.b16 %v1954
          %v2716 = vunpack.c.h.b16 %v1954
          %v2717 = vunpack.c.l.b16 %v1955
          %v2718 = vunpack.c.h.b16 %v1955
          %v2719 = vunpack.c.l.b16 %v1956
          %v2720 = vunpack.c.h.b16 %v1956
          %v2721 = vunpack.c.l.b16 %v1957
          %v2722 = vunpack.c.h.b16 %v1957
          %v2723 = vunpack.c.l.b16 %v1958
          %v2724 = vunpack.c.h.b16 %v1958
          %v2725 = vunpack.c.l.b16 %v1959
          %v2726 = vunpack.c.h.b16 %v1959
          %v2727 = vunpack.c.l.b16 %v1960
          %v2728 = vunpack.c.h.b16 %v1960
          %v2729 = vunpack.c.l.b16 %v1961
          %v2730 = vunpack.c.h.b16 %v1961
          %v2731 = vpack.c.b16 %v2223, %v2219
          %v2732 = vpack.c.b16 %v2224, %v2220
          %v2733 = vpack.c.b16 %v2225, %v2221
          %v2734 = vpack.c.b16 %v2226, %v2222
          %v2735 = vpack.c.b16 %v2231, %v2227
          %v2736 = vpack.c.b16 %v2232, %v2228
          %v2737 = vpack.c.b16 %v2233, %v2229
          %v2738 = vpack.c.b16 %v2234, %v2230
          %v2739 = vpack.c.b16 %v2239, %v2235
          %v2740 = vpack.c.b16 %v2240, %v2236
          %v2741 = vpack.c.b16 %v2241, %v2237
          %v2742 = vpack.c.b16 %v2242, %v2238
          %v2743 = vpack.c.b16 %v2247, %v2243
          %v2744 = vpack.c.b16 %v2248, %v2244
          %v2745 = vpack.c.b16 %v2249, %v2245
          %v2746 = vpack.c.b16 %v2250, %v2246
          %v2747 = vpack.c.b16 %v2255, %v2251
          %v2748 = vpack.c.b16 %v2256, %v2252
          %v2749 = vpack.c.b16 %v2257, %v2253
          %v2750 = vpack.c.b16 %v2258, %v2254
          %v2751 = vpack.c.b16 %v2263, %v2259
          %v2752 = vpack.c.b16 %v2264, %v2260
          %v2753 = vpack.c.b16 %v2265, %v2261
          %v2754 = vpack.c.b16 %v2266, %v2262
          %v2755 = vpack.c.b16 %v2271, %v2267
          %v2756 = vpack.c.b16 %v2272, %v2268
          %v2757 = vpack.c.b16 %v2273, %v2269
          %v2758 = vpack.c.b16 %v2274, %v2270
          %v2759 = vpack.c.b16 %v2279, %v2275
          %v2760 = vpack.c.b16 %v2280, %v2276
          %v2761 = vpack.c.b16 %v2281, %v2277
          %v2762 = vpack.c.b16 %v2282, %v2278
          %v2763 = vpack.c.b16 %v2287, %v2283
          %v2764 = vpack.c.b16 %v2288, %v2284
          %v2765 = vpack.c.b16 %v2289, %v2285
          %v2766 = vpack.c.b16 %v2290, %v2286
          %v2767 = vpack.c.b16 %v2295, %v2291
          %v2768 = vpack.c.b16 %v2296, %v2292
          %v2769 = vpack.c.b16 %v2297, %v2293
          %v2770 = vpack.c.b16 %v2298, %v2294
          %v2771 = vpack.c.b16 %v2303, %v2299
          %v2772 = vpack.c.b16 %v2304, %v2300
          %v2773 = vpack.c.b16 %v2305, %v2301
          %v2774 = vpack.c.b16 %v2306, %v2302
          %v2775 = vpack.c.b16 %v2311, %v2307
          %v2776 = vpack.c.b16 %v2312, %v2308
          %v2777 = vpack.c.b16 %v2313, %v2309
          %v2778 = vpack.c.b16 %v2314, %v2310
          %v2779 = vpack.c.b16 %v2319, %v2315
          %v2780 = vpack.c.b16 %v2320, %v2316
          %v2781 = vpack.c.b16 %v2321, %v2317
          %v2782 = vpack.c.b16 %v2322, %v2318
          %v2783 = vpack.c.b16 %v2327, %v2323
          %v2784 = vpack.c.b16 %v2328, %v2324
          %v2785 = vpack.c.b16 %v2329, %v2325
          %v2786 = vpack.c.b16 %v2330, %v2326
          %v2787 = vpack.c.b16 %v2335, %v2331
          %v2788 = vpack.c.b16 %v2336, %v2332
          %v2789 = vpack.c.b16 %v2337, %v2333
          %v2790 = vpack.c.b16 %v2338, %v2334
          %v2791 = vpack.c.b16 %v2343, %v2339
          %v2792 = vpack.c.b16 %v2344, %v2340
          %v2793 = vpack.c.b16 %v2345, %v2341
          %v2794 = vpack.c.b16 %v2346, %v2342
          %v2795 = vpack.c.b16 %v2351, %v2347
          %v2796 = vpack.c.b16 %v2352, %v2348
          %v2797 = vpack.c.b16 %v2353, %v2349
          %v2798 = vpack.c.b16 %v2354, %v2350
          %v2799 = vpack.c.b16 %v2359, %v2355
          %v2800 = vpack.c.b16 %v2360, %v2356
          %v2801 = vpack.c.b16 %v2361, %v2357
          %v2802 = vpack.c.b16 %v2362, %v2358
          %v2803 = vpack.c.b16 %v2367, %v2363
          %v2804 = vpack.c.b16 %v2368, %v2364
          %v2805 = vpack.c.b16 %v2369, %v2365
          %v2806 = vpack.c.b16 %v2370, %v2366
          %v2807 = vpack.c.b16 %v2375, %v2371
          %v2808 = vpack.c.b16 %v2376, %v2372
          %v2809 = vpack.c.b16 %v2377, %v2373
          %v2810 = vpack.c.b16 %v2378, %v2374
          %v2811 = vpack.c.b16 %v2383, %v2379
          %v2812 = vpack.c.b16 %v2384, %v2380
          %v2813 = vpack.c.b16 %v2385, %v2381
          %v2814 = vpack.c.b16 %v2386, %v2382
          %v2815 = vpack.c.b16 %v2391, %v2387
          %v2816 = vpack.c.b16 %v2392, %v2388
          %v2817 = vpack.c.b16 %v2393, %v2389
          %v2818 = vpack.c.b16 %v2394, %v2390
          %v2819 = vpack.c.b16 %v2399, %v2395
          %v2820 = vpack.c.b16 %v2400, %v2396
          %v2821 = vpack.c.b16 %v2401, %v2397
          %v2822 = vpack.c.b16 %v2402, %v2398
          %v2823 = vpack.c.b16 %v2407, %v2403
          %v2824 = vpack.c.b16 %v2408, %v2404
          %v2825 = vpack.c.b16 %v2409, %v2405
          %v2826 = vpack.c.b16 %v2410, %v2406
          %v2827 = vpack.c.b16 %v2415, %v2411
          %v2828 = vpack.c.b16 %v2416, %v2412
          %v2829 = vpack.c.b16 %v2417, %v2413
          %v2830 = vpack.c.b16 %v2418, %v2414
          %v2831 = vpack.c.b16 %v2423, %v2419
          %v2832 = vpack.c.b16 %v2424, %v2420
          %v2833 = vpack.c.b16 %v2425, %v2421
          %v2834 = vpack.c.b16 %v2426, %v2422
          %v2835 = vpack.c.b16 %v2431, %v2427
          %v2836 = vpack.c.b16 %v2432, %v2428
          %v2837 = vpack.c.b16 %v2433, %v2429
          %v2838 = vpack.c.b16 %v2434, %v2430
          %v2839 = vpack.c.b16 %v2439, %v2435
          %v2840 = vpack.c.b16 %v2440, %v2436
          %v2841 = vpack.c.b16 %v2441, %v2437
          %v2842 = vpack.c.b16 %v2442, %v2438
          %v2843 = vpack.c.b16 %v2447, %v2443
          %v2844 = vpack.c.b16 %v2448, %v2444
          %v2845 = vpack.c.b16 %v2449, %v2445
          %v2846 = vpack.c.b16 %v2450, %v2446
          %v2847 = vpack.c.b16 %v2455, %v2451
          %v2848 = vpack.c.b16 %v2456, %v2452
          %v2849 = vpack.c.b16 %v2457, %v2453
          %v2850 = vpack.c.b16 %v2458, %v2454
          %v2851 = vpack.c.b16 %v2463, %v2459
          %v2852 = vpack.c.b16 %v2464, %v2460
          %v2853 = vpack.c.b16 %v2465, %v2461
          %v2854 = vpack.c.b16 %v2466, %v2462
          %v2855 = vpack.c.b16 %v2471, %v2467
          %v2856 = vpack.c.b16 %v2472, %v2468
          %v2857 = vpack.c.b16 %v2473, %v2469
          %v2858 = vpack.c.b16 %v2474, %v2470
          %v2859 = vpack.c.b16 %v2479, %v2475
          %v2860 = vpack.c.b16 %v2480, %v2476
          %v2861 = vpack.c.b16 %v2481, %v2477
          %v2862 = vpack.c.b16 %v2482, %v2478
          %v2863 = vpack.c.b16 %v2487, %v2483
          %v2864 = vpack.c.b16 %v2488, %v2484
          %v2865 = vpack.c.b16 %v2489, %v2485
          %v2866 = vpack.c.b16 %v2490, %v2486
          %v2867 = vpack.c.b16 %v2495, %v2491
          %v2868 = vpack.c.b16 %v2496, %v2492
          %v2869 = vpack.c.b16 %v2497, %v2493
          %v2870 = vpack.c.b16 %v2498, %v2494
          %v2871 = vpack.c.b16 %v2503, %v2499
          %v2872 = vpack.c.b16 %v2504, %v2500
          %v2873 = vpack.c.b16 %v2505, %v2501
          %v2874 = vpack.c.b16 %v2506, %v2502
          %v2875 = vpack.c.b16 %v2511, %v2507
          %v2876 = vpack.c.b16 %v2512, %v2508
          %v2877 = vpack.c.b16 %v2513, %v2509
          %v2878 = vpack.c.b16 %v2514, %v2510
          %v2879 = vpack.c.b16 %v2519, %v2515
          %v2880 = vpack.c.b16 %v2520, %v2516
          %v2881 = vpack.c.b16 %v2521, %v2517
          %v2882 = vpack.c.b16 %v2522, %v2518
          %v2883 = vpack.c.b16 %v2527, %v2523
          %v2884 = vpack.c.b16 %v2528, %v2524
          %v2885 = vpack.c.b16 %v2529, %v2525
          %v2886 = vpack.c.b16 %v2530, %v2526
          %v2887 = vpack.c.b16 %v2535, %v2531
          %v2888 = vpack.c.b16 %v2536, %v2532
          %v2889 = vpack.c.b16 %v2537, %v2533
          %v2890 = vpack.c.b16 %v2538, %v2534
          %v2891 = vpack.c.b16 %v2543, %v2539
          %v2892 = vpack.c.b16 %v2544, %v2540
          %v2893 = vpack.c.b16 %v2545, %v2541
          %v2894 = vpack.c.b16 %v2546, %v2542
          %v2895 = vpack.c.b16 %v2551, %v2547
          %v2896 = vpack.c.b16 %v2552, %v2548
          %v2897 = vpack.c.b16 %v2553, %v2549
          %v2898 = vpack.c.b16 %v2554, %v2550
          %v2899 = vpack.c.b16 %v2559, %v2555
          %v2900 = vpack.c.b16 %v2560, %v2556
          %v2901 = vpack.c.b16 %v2561, %v2557
          %v2902 = vpack.c.b16 %v2562, %v2558
          %v2903 = vpack.c.b16 %v2567, %v2563
          %v2904 = vpack.c.b16 %v2568, %v2564
          %v2905 = vpack.c.b16 %v2569, %v2565
          %v2906 = vpack.c.b16 %v2570, %v2566
          %v2907 = vpack.c.b16 %v2575, %v2571
          %v2908 = vpack.c.b16 %v2576, %v2572
          %v2909 = vpack.c.b16 %v2577, %v2573
          %v2910 = vpack.c.b16 %v2578, %v2574
          %v2911 = vpack.c.b16 %v2583, %v2579
          %v2912 = vpack.c.b16 %v2584, %v2580
          %v2913 = vpack.c.b16 %v2585, %v2581
          %v2914 = vpack.c.b16 %v2586, %v2582
          %v2915 = vpack.c.b16 %v2591, %v2587
          %v2916 = vpack.c.b16 %v2592, %v2588
          %v2917 = vpack.c.b16 %v2593, %v2589
          %v2918 = vpack.c.b16 %v2594, %v2590
          %v2919 = vpack.c.b16 %v2599, %v2595
          %v2920 = vpack.c.b16 %v2600, %v2596
          %v2921 = vpack.c.b16 %v2601, %v2597
          %v2922 = vpack.c.b16 %v2602, %v2598
          %v2923 = vpack.c.b16 %v2607, %v2603
          %v2924 = vpack.c.b16 %v2608, %v2604
          %v2925 = vpack.c.b16 %v2609, %v2605
          %v2926 = vpack.c.b16 %v2610, %v2606
          %v2927 = vpack.c.b16 %v2615, %v2611
          %v2928 = vpack.c.b16 %v2616, %v2612
          %v2929 = vpack.c.b16 %v2617, %v2613
          %v2930 = vpack.c.b16 %v2618, %v2614
          %v2931 = vpack.c.b16 %v2623, %v2619
          %v2932 = vpack.c.b16 %v2624, %v2620
          %v2933 = vpack.c.b16 %v2625, %v2621
          %v2934 = vpack.c.b16 %v2626, %v2622
          %v2935 = vpack.c.b16 %v2631, %v2627
          %v2936 = vpack.c.b16 %v2632, %v2628
          %v2937 = vpack.c.b16 %v2633, %v2629
          %v2938 = vpack.c.b16 %v2634, %v2630
          %v2939 = vpack.c.b16 %v2639, %v2635
          %v2940 = vpack.c.b16 %v2640, %v2636
          %v2941 = vpack.c.b16 %v2641, %v2637
          %v2942 = vpack.c.b16 %v2642, %v2638
          %v2943 = vpack.c.b16 %v2647, %v2643
          %v2944 = vpack.c.b16 %v2648, %v2644
          %v2945 = vpack.c.b16 %v2649, %v2645
          %v2946 = vpack.c.b16 %v2650, %v2646
          %v2947 = vpack.c.b16 %v2655, %v2651
          %v2948 = vpack.c.b16 %v2656, %v2652
          %v2949 = vpack.c.b16 %v2657, %v2653
          %v2950 = vpack.c.b16 %v2658, %v2654
          %v2951 = vpack.c.b16 %v2663, %v2659
          %v2952 = vpack.c.b16 %v2664, %v2660
          %v2953 = vpack.c.b16 %v2665, %v2661
          %v2954 = vpack.c.b16 %v2666, %v2662
          %v2955 = vpack.c.b16 %v2671, %v2667
          %v2956 = vpack.c.b16 %v2672, %v2668
          %v2957 = vpack.c.b16 %v2673, %v2669
          %v2958 = vpack.c.b16 %v2674, %v2670
          %v2959 = vpack.c.b16 %v2679, %v2675
          %v2960 = vpack.c.b16 %v2680, %v2676
          %v2961 = vpack.c.b16 %v2681, %v2677
          %v2962 = vpack.c.b16 %v2682, %v2678
          %v2963 = vpack.c.b16 %v2687, %v2683
          %v2964 = vpack.c.b16 %v2688, %v2684
          %v2965 = vpack.c.b16 %v2689, %v2685
          %v2966 = vpack.c.b16 %v2690, %v2686
          %v2967 = vpack.c.b16 %v2695, %v2691
          %v2968 = vpack.c.b16 %v2696, %v2692
          %v2969 = vpack.c.b16 %v2697, %v2693
          %v2970 = vpack.c.b16 %v2698, %v2694
          %v2971 = vpack.c.b16 %v2703, %v2699
          %v2972 = vpack.c.b16 %v2704, %v2700
          %v2973 = vpack.c.b16 %v2705, %v2701
          %v2974 = vpack.c.b16 %v2706, %v2702
          %v2975 = vpack.c.b16 %v2711, %v2707
          %v2976 = vpack.c.b16 %v2712, %v2708
          %v2977 = vpack.c.b16 %v2713, %v2709
          %v2978 = vpack.c.b16 %v2714, %v2710
          %v2979 = vpack.c.b16 %v2719, %v2715
          %v2980 = vpack.c.b16 %v2720, %v2716
          %v2981 = vpack.c.b16 %v2721, %v2717
          %v2982 = vpack.c.b16 %v2722, %v2718
          %v2983 = vpack.c.b16 %v2727, %v2723
          %v2984 = vpack.c.b16 %v2728, %v2724
          %v2985 = vpack.c.b16 %v2729, %v2725
          %v2986 = vpack.c.b16 %v2730, %v2726
          %v3244 = vlaneseq
          %v3245 = vshrl.u32 %v3244, 7
          %v3246 = vsub.s32 0, %v3245
          %v3247 = vrot.slane %v1962, %v3246
          %v3248 = vlaneseq
          %v3249 = vshrl.u32 %v3248, 7
          %v3250 = vsub.s32 1, %v3249
          %v3251 = vrot.slane %v1962, %v3250
          %v3252 = vlaneseq
          %v3253 = vshrl.u32 %v3252, 7
          %v3254 = vsub.s32 2, %v3253
          %v3255 = vrot.slane %v1962, %v3254
          %v3256 = vlaneseq
          %v3257 = vshrl.u32 %v3256, 7
          %v3258 = vsub.s32 3, %v3257
          %v3259 = vrot.slane %v1962, %v3258
          %3264 = vmatprep.subr.bf16.mxu0 %v2732
          %3265 = vmatpush1.bf16.msra.mxu0 %v2731
          %3266 = vmatprep.subr.bf16.mxu0 %v2736
          %3267 = vmatpush1.bf16.msra.mxu0 %v2735
          %3268 = vmatprep.subr.bf16.mxu0 %v2740
          %3269 = vmatpush1.bf16.msra.mxu0 %v2739
          %3270 = vmatprep.subr.bf16.mxu0 %v2744
          %3271 = vmatpush1.bf16.msra.mxu0 %v2743
          %3272 = vmatprep.subr.bf16.mxu0 %v2748
          %3273 = vmatpush1.bf16.msra.mxu0 %v2747
          %3274 = vmatprep.subr.bf16.mxu0 %v2752
          %3275 = vmatpush1.bf16.msra.mxu0 %v2751
          %3276 = vmatprep.subr.bf16.mxu0 %v2756
          %3277 = vmatpush1.bf16.msra.mxu0 %v2755
          %3278 = vmatprep.subr.bf16.mxu0 %v2760
          %3279 = vmatpush1.bf16.msra.mxu0 %v2759
          %3280 = vmatprep.subr.bf16.mxu0 %v2764
          %3281 = vmatpush1.bf16.msra.mxu0 %v2763
          %3282 = vmatprep.subr.bf16.mxu0 %v2768
          %3283 = vmatpush1.bf16.msra.mxu0 %v2767
          %3284 = vmatprep.subr.bf16.mxu0 %v2772
          %3285 = vmatpush1.bf16.msra.mxu0 %v2771
          %3286 = vmatprep.subr.bf16.mxu0 %v2776
          %3287 = vmatpush1.bf16.msra.mxu0 %v2775
          %3288 = vmatprep.subr.bf16.mxu0 %v2780
          %3289 = vmatpush1.bf16.msra.mxu0 %v2779
          %3290 = vmatprep.subr.bf16.mxu0 %v2784
          %3291 = vmatpush1.bf16.msra.mxu0 %v2783
          %3292 = vmatprep.subr.bf16.mxu0 %v2788
          %3293 = vmatpush1.bf16.msra.mxu0 %v2787
          %3294 = vmatprep.subr.bf16.mxu0 %v2792
          %3295 = vmatpush1.bf16.msra.mxu0 %v2791
          %3296 = vmatprep.mubr.bf16.mxu0 %v1699
          %3297 = vmatmul.mubr.bf16.gmra.mrb[0].mxu0 %v1698
          %v3298 = vpop.f32.mrb[0].mxu0
          %v3299 = vadd.f32 %v3247, %v3298
          %v3300 = vpop.f32.mrb[0].mxu0
          %v3301 = vadd.f32 %v3251, %v3300
          %v3302 = vpop.f32.mrb[0].mxu0
          %v3303 = vpop.f32.mrb[0].mxu0
          %3304 = vdwg.mxu0
          %3305 = vmatprep.subr.bf16.mxu0 %v2796
          %3306 = vmatpush1.bf16.msra.mxu0 %v2795
          %3307 = vmatprep.subr.bf16.mxu0 %v2800
          %3308 = vmatpush1.bf16.msra.mxu0 %v2799
          %3309 = vmatprep.subr.bf16.mxu0 %v2804
          %3310 = vmatpush1.bf16.msra.mxu0 %v2803
          %3311 = vmatprep.subr.bf16.mxu0 %v2808
          %3312 = vmatpush1.bf16.msra.mxu0 %v2807
          %3313 = vmatprep.subr.bf16.mxu0 %v2812
          %3314 = vmatpush1.bf16.msra.mxu0 %v2811
          %3315 = vmatprep.subr.bf16.mxu0 %v2816
          %3316 = vmatpush1.bf16.msra.mxu0 %v2815
          %3317 = vmatprep.subr.bf16.mxu0 %v2820
          %3318 = vmatpush1.bf16.msra.mxu0 %v2819
          %3319 = vmatprep.subr.bf16.mxu0 %v2824
          %3320 = vmatpush1.bf16.msra.mxu0 %v2823
          %3321 = vmatprep.subr.bf16.mxu0 %v2828
          %3322 = vmatpush1.bf16.msra.mxu0 %v2827
          %3323 = vmatprep.subr.bf16.mxu0 %v2832
          %3324 = vmatpush1.bf16.msra.mxu0 %v2831
          %3325 = vmatprep.subr.bf16.mxu0 %v2836
          %3326 = vmatpush1.bf16.msra.mxu0 %v2835
          %3327 = vmatprep.subr.bf16.mxu0 %v2840
          %3328 = vmatpush1.bf16.msra.mxu0 %v2839
          %3329 = vmatprep.subr.bf16.mxu0 %v2844
          %3330 = vmatpush1.bf16.msra.mxu0 %v2843
          %3331 = vmatprep.subr.bf16.mxu0 %v2848
          %3332 = vmatpush1.bf16.msra.mxu0 %v2847
          %3333 = vmatprep.subr.bf16.mxu0 %v2852
          %3334 = vmatpush1.bf16.msra.mxu0 %v2851
          %3335 = vmatprep.subr.bf16.mxu0 %v2856
          %3336 = vmatpush1.bf16.msra.mxu0 %v2855
          %3337 = vmatprep.mubr.bf16.mxu0 %v1701
          %3338 = vmatmul.mubr.bf16.gmra.mrb[0].mxu0 %v1700
          %v3339 = vpop.f32.mrb[0].mxu0
          %v3340 = vadd.f32 %v3299, %v3339
          %v3341 = vpop.f32.mrb[0].mxu0
          %v3342 = vadd.f32 %v3301, %v3341
          %v3343 = vpop.f32.mrb[0].mxu0
          %v3344 = vpop.f32.mrb[0].mxu0
          %3345 = vdwg.mxu0
          %3346 = vmatprep.subr.bf16.mxu0 %v2860
          %3347 = vmatpush1.bf16.msra.mxu0 %v2859
          %3348 = vmatprep.subr.bf16.mxu0 %v2864
          %3349 = vmatpush1.bf16.msra.mxu0 %v2863
          %3350 = vmatprep.subr.bf16.mxu0 %v2868
          %3351 = vmatpush1.bf16.msra.mxu0 %v2867
          %3352 = vmatprep.subr.bf16.mxu0 %v2872
          %3353 = vmatpush1.bf16.msra.mxu0 %v2871
          %3354 = vmatprep.subr.bf16.mxu0 %v2876
          %3355 = vmatpush1.bf16.msra.mxu0 %v2875
          %3356 = vmatprep.subr.bf16.mxu0 %v2880
          %3357 = vmatpush1.bf16.msra.mxu0 %v2879
          %3358 = vmatprep.subr.bf16.mxu0 %v2884
          %3359 = vmatpush1.bf16.msra.mxu0 %v2883
          %3360 = vmatprep.subr.bf16.mxu0 %v2888
          %3361 = vmatpush1.bf16.msra.mxu0 %v2887
          %3362 = vmatprep.subr.bf16.mxu0 %v2892
          %3363 = vmatpush1.bf16.msra.mxu0 %v2891
          %3364 = vmatprep.subr.bf16.mxu0 %v2896
          %3365 = vmatpush1.bf16.msra.mxu0 %v2895
          %3366 = vmatprep.subr.bf16.mxu0 %v2900
          %3367 = vmatpush1.bf16.msra.mxu0 %v2899
          %3368 = vmatprep.subr.bf16.mxu0 %v2904
          %3369 = vmatpush1.bf16.msra.mxu0 %v2903
          %3370 = vmatprep.subr.bf16.mxu0 %v2908
          %3371 = vmatpush1.bf16.msra.mxu0 %v2907
          %3372 = vmatprep.subr.bf16.mxu0 %v2912
          %3373 = vmatpush1.bf16.msra.mxu0 %v2911
          %3374 = vmatprep.subr.bf16.mxu0 %v2916
          %3375 = vmatpush1.bf16.msra.mxu0 %v2915
          %3376 = vmatprep.subr.bf16.mxu0 %v2920
          %3377 = vmatpush1.bf16.msra.mxu0 %v2919
          %3378 = vmatprep.mubr.bf16.mxu0 %v1703
          %3379 = vmatmul.mubr.bf16.gmra.mrb[0].mxu0 %v1702
          %v3380 = vpop.f32.mrb[0].mxu0
          %v3381 = vadd.f32 %v3340, %v3380
          %v3382 = vpop.f32.mrb[0].mxu0
          %v3383 = vadd.f32 %v3342, %v3382
          %v3384 = vpop.f32.mrb[0].mxu0
          %v3385 = vpop.f32.mrb[0].mxu0
          %3386 = vdwg.mxu0
          %3387 = vmatprep.subr.bf16.mxu0 %v2924
          %3388 = vmatpush1.bf16.msra.mxu0 %v2923
          %3389 = vmatprep.subr.bf16.mxu0 %v2928
          %3390 = vmatpush1.bf16.msra.mxu0 %v2927
          %3391 = vmatprep.subr.bf16.mxu0 %v2932
          %3392 = vmatpush1.bf16.msra.mxu0 %v2931
          %3393 = vmatprep.subr.bf16.mxu0 %v2936
          %3394 = vmatpush1.bf16.msra.mxu0 %v2935
          %3395 = vmatprep.subr.bf16.mxu0 %v2940
          %3396 = vmatpush1.bf16.msra.mxu0 %v2939
          %3397 = vmatprep.subr.bf16.mxu0 %v2944
          %3398 = vmatpush1.bf16.msra.mxu0 %v2943
          %3399 = vmatprep.subr.bf16.mxu0 %v2948
          %3400 = vmatpush1.bf16.msra.mxu0 %v2947
          %3401 = vmatprep.subr.bf16.mxu0 %v2952
          %3402 = vmatpush1.bf16.msra.mxu0 %v2951
          %3403 = vmatprep.subr.bf16.mxu0 %v2956
          %3404 = vmatpush1.bf16.msra.mxu0 %v2955
          %3405 = vmatprep.subr.bf16.mxu0 %v2960
          %3406 = vmatpush1.bf16.msra.mxu0 %v2959
          %3407 = vmatprep.subr.bf16.mxu0 %v2964
          %3408 = vmatpush1.bf16.msra.mxu0 %v2963
          %3409 = vmatprep.subr.bf16.mxu0 %v2968
          %3410 = vmatpush1.bf16.msra.mxu0 %v2967
          %3411 = vmatprep.subr.bf16.mxu0 %v2972
          %3412 = vmatpush1.bf16.msra.mxu0 %v2971
          %3413 = vmatprep.subr.bf16.mxu0 %v2976
          %3414 = vmatpush1.bf16.msra.mxu0 %v2975
          %3415 = vmatprep.subr.bf16.mxu0 %v2980
          %3416 = vmatpush1.bf16.msra.mxu0 %v2979
          %3417 = vmatprep.subr.bf16.mxu0 %v2984
          %3418 = vmatpush1.bf16.msra.mxu0 %v2983
          %3419 = vmatprep.mubr.bf16.mxu0 %v1705
          %3420 = vmatmul.mubr.bf16.gmra.mrb[0].mxu0 %v1704
          %v3421 = vpop.f32.mrb[0].mxu0
          %v3422 = vadd.f32 %v3381, %v3421
          %v3423 = vpop.f32.mrb[0].mxu0
          %v3424 = vadd.f32 %v3383, %v3423
          %v3425 = vpop.f32.mrb[0].mxu0
          %v3426 = vpop.f32.mrb[0].mxu0
          %3427 = vdwg.mxu0
          %3428 = vmatprep.subr.bf16.mxu0 %v2734
          %3429 = vmatpush1.bf16.msra.mxu0 %v2733
          %3430 = vmatprep.subr.bf16.mxu0 %v2738
          %3431 = vmatpush1.bf16.msra.mxu0 %v2737
          %3432 = vmatprep.subr.bf16.mxu0 %v2742
          %3433 = vmatpush1.bf16.msra.mxu0 %v2741
          %3434 = vmatprep.subr.bf16.mxu0 %v2746
          %3435 = vmatpush1.bf16.msra.mxu0 %v2745
          %3436 = vmatprep.subr.bf16.mxu0 %v2750
          %3437 = vmatpush1.bf16.msra.mxu0 %v2749
          %3438 = vmatprep.subr.bf16.mxu0 %v2754
          %3439 = vmatpush1.bf16.msra.mxu0 %v2753
          %3440 = vmatprep.subr.bf16.mxu0 %v2758
          %3441 = vmatpush1.bf16.msra.mxu0 %v2757
          %3442 = vmatprep.subr.bf16.mxu0 %v2762
          %3443 = vmatpush1.bf16.msra.mxu0 %v2761
          %3444 = vmatprep.subr.bf16.mxu0 %v2766
          %3445 = vmatpush1.bf16.msra.mxu0 %v2765
          %3446 = vmatprep.subr.bf16.mxu0 %v2770
          %3447 = vmatpush1.bf16.msra.mxu0 %v2769
          %3448 = vmatprep.subr.bf16.mxu0 %v2774
          %3449 = vmatpush1.bf16.msra.mxu0 %v2773
          %3450 = vmatprep.subr.bf16.mxu0 %v2778
          %3451 = vmatpush1.bf16.msra.mxu0 %v2777
          %3452 = vmatprep.subr.bf16.mxu0 %v2782
          %3453 = vmatpush1.bf16.msra.mxu0 %v2781
          %3454 = vmatprep.subr.bf16.mxu0 %v2786
          %3455 = vmatpush1.bf16.msra.mxu0 %v2785
          %3456 = vmatprep.subr.bf16.mxu0 %v2790
          %3457 = vmatpush1.bf16.msra.mxu0 %v2789
          %3458 = vmatprep.subr.bf16.mxu0 %v2794
          %3459 = vmatpush1.bf16.msra.mxu0 %v2793
          %3460 = vmatprep.mubr.bf16.mxu0 %v1699
          %3461 = vmatmul.mubr.bf16.gmra.mrb[0].mxu0 %v1698
          %v3462 = vpop.f32.mrb[0].mxu0
          %v3463 = vadd.f32 %v3255, %v3462
          %v3464 = vpop.f32.mrb[0].mxu0
          %v3465 = vadd.f32 %v3259, %v3464
          %v3466 = vpop.f32.mrb[0].mxu0
          %v3467 = vpop.f32.mrb[0].mxu0
          %3468 = vdwg.mxu0
          %3469 = vmatprep.subr.bf16.mxu0 %v2798
          %3470 = vmatpush1.bf16.msra.mxu0 %v2797
          %3471 = vmatprep.subr.bf16.mxu0 %v2802
          %3472 = vmatpush1.bf16.msra.mxu0 %v2801
          %3473 = vmatprep.subr.bf16.mxu0 %v2806
          %3474 = vmatpush1.bf16.msra.mxu0 %v2805
          %3475 = vmatprep.subr.bf16.mxu0 %v2810
          %3476 = vmatpush1.bf16.msra.mxu0 %v2809
          %3477 = vmatprep.subr.bf16.mxu0 %v2814
          %3478 = vmatpush1.bf16.msra.mxu0 %v2813
          %3479 = vmatprep.subr.bf16.mxu0 %v2818
          %3480 = vmatpush1.bf16.msra.mxu0 %v2817
          %3481 = vmatprep.subr.bf16.mxu0 %v2822
          %3482 = vmatpush1.bf16.msra.mxu0 %v2821
          %3483 = vmatprep.subr.bf16.mxu0 %v2826
          %3484 = vmatpush1.bf16.msra.mxu0 %v2825
          %3485 = vmatprep.subr.bf16.mxu0 %v2830
          %3486 = vmatpush1.bf16.msra.mxu0 %v2829
          %3487 = vmatprep.subr.bf16.mxu0 %v2834
          %3488 = vmatpush1.bf16.msra.mxu0 %v2833
          %3489 = vmatprep.subr.bf16.mxu0 %v2838
          %3490 = vmatpush1.bf16.msra.mxu0 %v2837
          %3491 = vmatprep.subr.bf16.mxu0 %v2842
          %3492 = vmatpush1.bf16.msra.mxu0 %v2841
          %3493 = vmatprep.subr.bf16.mxu0 %v2846
          %3494 = vmatpush1.bf16.msra.mxu0 %v2845
          %3495 = vmatprep.subr.bf16.mxu0 %v2850
          %3496 = vmatpush1.bf16.msra.mxu0 %v2849
          %3497 = vmatprep.subr.bf16.mxu0 %v2854
          %3498 = vmatpush1.bf16.msra.mxu0 %v2853
          %3499 = vmatprep.subr.bf16.mxu0 %v2858
          %3500 = vmatpush1.bf16.msra.mxu0 %v2857
          %3501 = vmatprep.mubr.bf16.mxu0 %v1701
          %3502 = vmatmul.mubr.bf16.gmra.mrb[0].mxu0 %v1700
          %v3503 = vpop.f32.mrb[0].mxu0
          %v3504 = vadd.f32 %v3463, %v3503
          %v3505 = vpop.f32.mrb[0].mxu0
          %v3506 = vadd.f32 %v3465, %v3505
          %v3507 = vpop.f32.mrb[0].mxu0
          %v3508 = vpop.f32.mrb[0].mxu0
          %3509 = vdwg.mxu0
          %3510 = vmatprep.subr.bf16.mxu0 %v2862
          %3511 = vmatpush1.bf16.msra.mxu0 %v2861
          %3512 = vmatprep.subr.bf16.mxu0 %v2866
          %3513 = vmatpush1.bf16.msra.mxu0 %v2865
          %3514 = vmatprep.subr.bf16.mxu0 %v2870
          %3515 = vmatpush1.bf16.msra.mxu0 %v2869
          %3516 = vmatprep.subr.bf16.mxu0 %v2874
          %3517 = vmatpush1.bf16.msra.mxu0 %v2873
          %3518 = vmatprep.subr.bf16.mxu0 %v2878
          %3519 = vmatpush1.bf16.msra.mxu0 %v2877
          %3520 = vmatprep.subr.bf16.mxu0 %v2882
          %3521 = vmatpush1.bf16.msra.mxu0 %v2881
          %3522 = vmatprep.subr.bf16.mxu0 %v2886
          %3523 = vmatpush1.bf16.msra.mxu0 %v2885
          %3524 = vmatprep.subr.bf16.mxu0 %v2890
          %3525 = vmatpush1.bf16.msra.mxu0 %v2889
          %3526 = vmatprep.subr.bf16.mxu0 %v2894
          %3527 = vmatpush1.bf16.msra.mxu0 %v2893
          %3528 = vmatprep.subr.bf16.mxu0 %v2898
          %3529 = vmatpush1.bf16.msra.mxu0 %v2897
          %3530 = vmatprep.subr.bf16.mxu0 %v2902
          %3531 = vmatpush1.bf16.msra.mxu0 %v2901
          %3532 = vmatprep.subr.bf16.mxu0 %v2906
          %3533 = vmatpush1.bf16.msra.mxu0 %v2905
          %3534 = vmatprep.subr.bf16.mxu0 %v2910
          %3535 = vmatpush1.bf16.msra.mxu0 %v2909
          %3536 = vmatprep.subr.bf16.mxu0 %v2914
          %3537 = vmatpush1.bf16.msra.mxu0 %v2913
          %3538 = vmatprep.subr.bf16.mxu0 %v2918
          %3539 = vmatpush1.bf16.msra.mxu0 %v2917
          %3540 = vmatprep.subr.bf16.mxu0 %v2922
          %3541 = vmatpush1.bf16.msra.mxu0 %v2921
          %3542 = vmatprep.mubr.bf16.mxu0 %v1703
          %3543 = vmatmul.mubr.bf16.gmra.mrb[0].mxu0 %v1702
          %v3544 = vpop.f32.mrb[0].mxu0
          %v3545 = vadd.f32 %v3504, %v3544
          %v3546 = vpop.f32.mrb[0].mxu0
          %v3547 = vadd.f32 %v3506, %v3546
          %v3548 = vpop.f32.mrb[0].mxu0
          %v3549 = vpop.f32.mrb[0].mxu0
          %3550 = vdwg.mxu0
          %3551 = vmatprep.subr.bf16.mxu0 %v2926
          %3552 = vmatpush1.bf16.msra.mxu0 %v2925
          %3553 = vmatprep.subr.bf16.mxu0 %v2930
          %3554 = vmatpush1.bf16.msra.mxu0 %v2929
          %3555 = vmatprep.subr.bf16.mxu0 %v2934
          %3556 = vmatpush1.bf16.msra.mxu0 %v2933
          %3557 = vmatprep.subr.bf16.mxu0 %v2938
          %3558 = vmatpush1.bf16.msra.mxu0 %v2937
          %3559 = vmatprep.subr.bf16.mxu0 %v2942
          %3560 = vmatpush1.bf16.msra.mxu0 %v2941
          %3561 = vmatprep.subr.bf16.mxu0 %v2946
          %3562 = vmatpush1.bf16.msra.mxu0 %v2945
          %3563 = vmatprep.subr.bf16.mxu0 %v2950
          %3564 = vmatpush1.bf16.msra.mxu0 %v2949
          %3565 = vmatprep.subr.bf16.mxu0 %v2954
          %3566 = vmatpush1.bf16.msra.mxu0 %v2953
          %3567 = vmatprep.subr.bf16.mxu0 %v2958
          %3568 = vmatpush1.bf16.msra.mxu0 %v2957
          %3569 = vmatprep.subr.bf16.mxu0 %v2962
          %3570 = vmatpush1.bf16.msra.mxu0 %v2961
          %3571 = vmatprep.subr.bf16.mxu0 %v2966
          %3572 = vmatpush1.bf16.msra.mxu0 %v2965
          %3573 = vmatprep.subr.bf16.mxu0 %v2970
          %3574 = vmatpush1.bf16.msra.mxu0 %v2969
          %3575 = vmatprep.subr.bf16.mxu0 %v2974
          %3576 = vmatpush1.bf16.msra.mxu0 %v2973
          %3577 = vmatprep.subr.bf16.mxu0 %v2978
          %3578 = vmatpush1.bf16.msra.mxu0 %v2977
          %3579 = vmatprep.subr.bf16.mxu0 %v2982
          %3580 = vmatpush1.bf16.msra.mxu0 %v2981
          %3581 = vmatprep.subr.bf16.mxu0 %v2986
          %3582 = vmatpush1.bf16.msra.mxu0 %v2985
          %3583 = vmatprep.mubr.bf16.mxu0 %v1705
          %3584 = vmatmul.mubr.bf16.gmra.mrb[0].mxu0 %v1704
          %v3585 = vpop.f32.mrb[0].mxu0
          %v3586 = vadd.f32 %v3545, %v3585
          %v3587 = vpop.f32.mrb[0].mxu0
          %v3588 = vadd.f32 %v3547, %v3587
          %v3589 = vpop.f32.mrb[0].mxu0
          %v3590 = vpop.f32.mrb[0].mxu0
          %3591 = vdwg.mxu0
          %v3592 = vmax.f32 %v3422, 0.0
          %v3593 = vmax.f32 %v3424, 0.0
          %v3594 = vmax.f32 %v3586, 0.0
          %v3595 = vmax.f32 %v3588, 0.0
          %v3596 = vpack.c.bf16 %v3592, %v3592
          %v3597 = vpack.c.bf16 %v3593, %v3593
          %v3598 = vpack.c.bf16 %v3594, %v3594
          %v3599 = vpack.c.bf16 %v3595, %v3595
          %v3600 = vld [vmem:[#allocation18] sm:$0xff]
          %v3601 = vld [vmem:[#allocation18 + $0x8] sm:$0xff]
          %v3602 = vld [vmem:[#allocation18 + $0x10] sm:$0xff]
          %v3603 = vld [vmem:[#allocation18 + $0x18] sm:$0xff]
          %v3604 = vld [vmem:[#allocation18 + $0x20] sm:$0xff]
          %v3605 = vld [vmem:[#allocation18 + $0x28] sm:$0xff]
          %v3606 = vld [vmem:[#allocation18 + $0x30] sm:$0xff]
          %v3607 = vld [vmem:[#allocation18 + $0x38] sm:$0xff]
          %v3608 = vld [vmem:[#allocation18 + $0x40] sm:$0xff]
          %v3609 = vld [vmem:[#allocation18 + $0x48] sm:$0xff]
          %v3610 = vld [vmem:[#allocation18 + $0x50] sm:$0xff]
          %v3611 = vld [vmem:[#allocation18 + $0x58] sm:$0xff]
          %v3612 = vld [vmem:[#allocation18 + $0x60] sm:$0xff]
          %v3613 = vld [vmem:[#allocation18 + $0x68] sm:$0xff]
          %v3614 = vld [vmem:[#allocation18 + $0x70] sm:$0xff]
          %v3615 = vld [vmem:[#allocation18 + $0x78] sm:$0xff]
          %v3616 = vld [vmem:[#allocation18 + $0x80] sm:$0xff]
          %v3617 = vld [vmem:[#allocation18 + $0x88] sm:$0xff]
          %v3618 = vld [vmem:[#allocation18 + $0x90] sm:$0xff]
          %v3619 = vld [vmem:[#allocation18 + $0x98] sm:$0xff]
          %v3620 = vld [vmem:[#allocation18 + $0xa0] sm:$0xff]
          %v3621 = vld [vmem:[#allocation18 + $0xa8] sm:$0xff]
          %v3622 = vld [vmem:[#allocation18 + $0xb0] sm:$0xff]
          %v3623 = vld [vmem:[#allocation18 + $0xb8] sm:$0xff]
          %v3624 = vld [vmem:[#allocation18 + $0xc0] sm:$0xff]
          %v3625 = vld [vmem:[#allocation18 + $0xc8] sm:$0xff]
          %v3626 = vld [vmem:[#allocation18 + $0xd0] sm:$0xff]
          %v3627 = vld [vmem:[#allocation18 + $0xd8] sm:$0xff]
          %v3628 = vld [vmem:[#allocation18 + $0xe0] sm:$0xff]
          %v3629 = vld [vmem:[#allocation18 + $0xe8] sm:$0xff]
          %v3630 = vld [vmem:[#allocation18 + $0xf0] sm:$0xff]
          %v3631 = vld [vmem:[#allocation18 + $0xf8] sm:$0xff]
          %v3632 = vld [vmem:[#allocation18 + $0x100] sm:$0xff]
          %v3633 = vld [vmem:[#allocation18 + $0x108] sm:$0xff]
          %v3634 = vld [vmem:[#allocation18 + $0x110] sm:$0xff]
          %v3635 = vld [vmem:[#allocation18 + $0x118] sm:$0xff]
          %v3636 = vld [vmem:[#allocation18 + $0x120] sm:$0xff]
          %v3637 = vld [vmem:[#allocation18 + $0x128] sm:$0xff]
          %v3638 = vld [vmem:[#allocation18 + $0x130] sm:$0xff]
          %v3639 = vld [vmem:[#allocation18 + $0x138] sm:$0xff]
          %v3640 = vld [vmem:[#allocation18 + $0x140] sm:$0xff]
          %v3641 = vld [vmem:[#allocation18 + $0x148] sm:$0xff]
          %v3642 = vld [vmem:[#allocation18 + $0x150] sm:$0xff]
          %v3643 = vld [vmem:[#allocation18 + $0x158] sm:$0xff]
          %v3644 = vld [vmem:[#allocation18 + $0x160] sm:$0xff]
          %v3645 = vld [vmem:[#allocation18 + $0x168] sm:$0xff]
          %v3646 = vld [vmem:[#allocation18 + $0x170] sm:$0xff]
          %v3647 = vld [vmem:[#allocation18 + $0x178] sm:$0xff]
          %v3648 = vld [vmem:[#allocation18 + $0x180] sm:$0xff]
          %v3649 = vld [vmem:[#allocation18 + $0x188] sm:$0xff]
          %v3650 = vld [vmem:[#allocation18 + $0x190] sm:$0xff]
          %v3651 = vld [vmem:[#allocation18 + $0x198] sm:$0xff]
          %v3652 = vld [vmem:[#allocation18 + $0x1a0] sm:$0xff]
          %v3653 = vld [vmem:[#allocation18 + $0x1a8] sm:$0xff]
          %v3654 = vld [vmem:[#allocation18 + $0x1b0] sm:$0xff]
          %v3655 = vld [vmem:[#allocation18 + $0x1b8] sm:$0xff]
          %v3656 = vld [vmem:[#allocation18 + $0x1c0] sm:$0xff]
          %v3657 = vld [vmem:[#allocation18 + $0x1c8] sm:$0xff]
          %v3658 = vld [vmem:[#allocation18 + $0x1d0] sm:$0xff]
          %v3659 = vld [vmem:[#allocation18 + $0x1d8] sm:$0xff]
          %v3660 = vld [vmem:[#allocation18 + $0x1e0] sm:$0xff]
          %v3661 = vld [vmem:[#allocation18 + $0x1e8] sm:$0xff]
          %v3662 = vld [vmem:[#allocation18 + $0x1f0] sm:$0xff]
          %v3663 = vld [vmem:[#allocation18 + $0x1f8] sm:$0xff]
          %v3664 = vld [vmem:[#allocation20] sm:$0x3]
          %v3729 = vunpack.c.l.b16 %v3600
          %v3730 = vunpack.c.h.b16 %v3600
          %v3731 = vunpack.c.l.b16 %v3601
          %v3732 = vunpack.c.h.b16 %v3601
          %v3733 = vunpack.c.l.b16 %v3602
          %v3734 = vunpack.c.h.b16 %v3602
          %v3735 = vunpack.c.l.b16 %v3603
          %v3736 = vunpack.c.h.b16 %v3603
          %v3737 = vunpack.c.l.b16 %v3604
          %v3738 = vunpack.c.h.b16 %v3604
          %v3739 = vunpack.c.l.b16 %v3605
          %v3740 = vunpack.c.h.b16 %v3605
          %v3741 = vunpack.c.l.b16 %v3606
          %v3742 = vunpack.c.h.b16 %v3606
          %v3743 = vunpack.c.l.b16 %v3607
          %v3744 = vunpack.c.h.b16 %v3607
          %v3745 = vunpack.c.l.b16 %v3608
          %v3746 = vunpack.c.h.b16 %v3608
          %v3747 = vunpack.c.l.b16 %v3609
          %v3748 = vunpack.c.h.b16 %v3609
          %v3749 = vunpack.c.l.b16 %v3610
          %v3750 = vunpack.c.h.b16 %v3610
          %v3751 = vunpack.c.l.b16 %v3611
          %v3752 = vunpack.c.h.b16 %v3611
          %v3753 = vunpack.c.l.b16 %v3612
          %v3754 = vunpack.c.h.b16 %v3612
          %v3755 = vunpack.c.l.b16 %v3613
          %v3756 = vunpack.c.h.b16 %v3613
          %v3757 = vunpack.c.l.b16 %v3614
          %v3758 = vunpack.c.h.b16 %v3614
          %v3759 = vunpack.c.l.b16 %v3615
          %v3760 = vunpack.c.h.b16 %v3615
          %v3761 = vunpack.c.l.b16 %v3616
          %v3762 = vunpack.c.h.b16 %v3616
          %v3763 = vunpack.c.l.b16 %v3617
          %v3764 = vunpack.c.h.b16 %v3617
          %v3765 = vunpack.c.l.b16 %v3618
          %v3766 = vunpack.c.h.b16 %v3618
          %v3767 = vunpack.c.l.b16 %v3619
          %v3768 = vunpack.c.h.b16 %v3619
          %v3769 = vunpack.c.l.b16 %v3620
          %v3770 = vunpack.c.h.b16 %v3620
          %v3771 = vunpack.c.l.b16 %v3621
          %v3772 = vunpack.c.h.b16 %v3621
          %v3773 = vunpack.c.l.b16 %v3622
          %v3774 = vunpack.c.h.b16 %v3622
          %v3775 = vunpack.c.l.b16 %v3623
          %v3776 = vunpack.c.h.b16 %v3623
          %v3777 = vunpack.c.l.b16 %v3624
          %v3778 = vunpack.c.h.b16 %v3624
          %v3779 = vunpack.c.l.b16 %v3625
          %v3780 = vunpack.c.h.b16 %v3625
          %v3781 = vunpack.c.l.b16 %v3626
          %v3782 = vunpack.c.h.b16 %v3626
          %v3783 = vunpack.c.l.b16 %v3627
          %v3784 = vunpack.c.h.b16 %v3627
          %v3785 = vunpack.c.l.b16 %v3628
          %v3786 = vunpack.c.h.b16 %v3628
          %v3787 = vunpack.c.l.b16 %v3629
          %v3788 = vunpack.c.h.b16 %v3629
          %v3789 = vunpack.c.l.b16 %v3630
          %v3790 = vunpack.c.h.b16 %v3630
          %v3791 = vunpack.c.l.b16 %v3631
          %v3792 = vunpack.c.h.b16 %v3631
          %v3793 = vunpack.c.l.b16 %v3632
          %v3794 = vunpack.c.h.b16 %v3632
          %v3795 = vunpack.c.l.b16 %v3633
          %v3796 = vunpack.c.h.b16 %v3633
          %v3797 = vunpack.c.l.b16 %v3634
          %v3798 = vunpack.c.h.b16 %v3634
          %v3799 = vunpack.c.l.b16 %v3635
          %v3800 = vunpack.c.h.b16 %v3635
          %v3801 = vunpack.c.l.b16 %v3636
          %v3802 = vunpack.c.h.b16 %v3636
          %v3803 = vunpack.c.l.b16 %v3637
          %v3804 = vunpack.c.h.b16 %v3637
          %v3805 = vunpack.c.l.b16 %v3638
          %v3806 = vunpack.c.h.b16 %v3638
          %v3807 = vunpack.c.l.b16 %v3639
          %v3808 = vunpack.c.h.b16 %v3639
          %v3809 = vunpack.c.l.b16 %v3640
          %v3810 = vunpack.c.h.b16 %v3640
          %v3811 = vunpack.c.l.b16 %v3641
          %v3812 = vunpack.c.h.b16 %v3641
          %v3813 = vunpack.c.l.b16 %v3642
          %v3814 = vunpack.c.h.b16 %v3642
          %v3815 = vunpack.c.l.b16 %v3643
          %v3816 = vunpack.c.h.b16 %v3643
          %v3817 = vunpack.c.l.b16 %v3644
          %v3818 = vunpack.c.h.b16 %v3644
          %v3819 = vunpack.c.l.b16 %v3645
          %v3820 = vunpack.c.h.b16 %v3645
          %v3821 = vunpack.c.l.b16 %v3646
          %v3822 = vunpack.c.h.b16 %v3646
          %v3823 = vunpack.c.l.b16 %v3647
          %v3824 = vunpack.c.h.b16 %v3647
          %v3825 = vunpack.c.l.b16 %v3648
          %v3826 = vunpack.c.h.b16 %v3648
          %v3827 = vunpack.c.l.b16 %v3649
          %v3828 = vunpack.c.h.b16 %v3649
          %v3829 = vunpack.c.l.b16 %v3650
          %v3830 = vunpack.c.h.b16 %v3650
          %v3831 = vunpack.c.l.b16 %v3651
          %v3832 = vunpack.c.h.b16 %v3651
          %v3833 = vunpack.c.l.b16 %v3652
          %v3834 = vunpack.c.h.b16 %v3652
          %v3835 = vunpack.c.l.b16 %v3653
          %v3836 = vunpack.c.h.b16 %v3653
          %v3837 = vunpack.c.l.b16 %v3654
          %v3838 = vunpack.c.h.b16 %v3654
          %v3839 = vunpack.c.l.b16 %v3655
          %v3840 = vunpack.c.h.b16 %v3655
          %v3841 = vunpack.c.l.b16 %v3656
          %v3842 = vunpack.c.h.b16 %v3656
          %v3843 = vunpack.c.l.b16 %v3657
          %v3844 = vunpack.c.h.b16 %v3657
          %v3845 = vunpack.c.l.b16 %v3658
          %v3846 = vunpack.c.h.b16 %v3658
          %v3847 = vunpack.c.l.b16 %v3659
          %v3848 = vunpack.c.h.b16 %v3659
          %v3849 = vunpack.c.l.b16 %v3660
          %v3850 = vunpack.c.h.b16 %v3660
          %v3851 = vunpack.c.l.b16 %v3661
          %v3852 = vunpack.c.h.b16 %v3661
          %v3853 = vunpack.c.l.b16 %v3662
          %v3854 = vunpack.c.h.b16 %v3662
          %v3855 = vunpack.c.l.b16 %v3663
          %v3856 = vunpack.c.h.b16 %v3663
          %v3857 = vpack.c.b16 %v3731, %v3729
          %v3858 = vpack.c.b16 %v3732, %v3730
          %v3859 = vpack.c.b16 %v3735, %v3733
          %v3860 = vpack.c.b16 %v3736, %v3734
          %v3861 = vpack.c.b16 %v3739, %v3737
          %v3862 = vpack.c.b16 %v3740, %v3738
          %v3863 = vpack.c.b16 %v3743, %v3741
          %v3864 = vpack.c.b16 %v3744, %v3742
          %v3865 = vpack.c.b16 %v3747, %v3745
          %v3866 = vpack.c.b16 %v3748, %v3746
          %v3867 = vpack.c.b16 %v3751, %v3749
          %v3868 = vpack.c.b16 %v3752, %v3750
          %v3869 = vpack.c.b16 %v3755, %v3753
          %v3870 = vpack.c.b16 %v3756, %v3754
          %v3871 = vpack.c.b16 %v3759, %v3757
          %v3872 = vpack.c.b16 %v3760, %v3758
          %v3873 = vpack.c.b16 %v3763, %v3761
          %v3874 = vpack.c.b16 %v3764, %v3762
          %v3875 = vpack.c.b16 %v3767, %v3765
          %v3876 = vpack.c.b16 %v3768, %v3766
          %v3877 = vpack.c.b16 %v3771, %v3769
          %v3878 = vpack.c.b16 %v3772, %v3770
          %v3879 = vpack.c.b16 %v3775, %v3773
          %v3880 = vpack.c.b16 %v3776, %v3774
          %v3881 = vpack.c.b16 %v3779, %v3777
          %v3882 = vpack.c.b16 %v3780, %v3778
          %v3883 = vpack.c.b16 %v3783, %v3781
          %v3884 = vpack.c.b16 %v3784, %v3782
          %v3885 = vpack.c.b16 %v3787, %v3785
          %v3886 = vpack.c.b16 %v3788, %v3786
          %v3887 = vpack.c.b16 %v3791, %v3789
          %v3888 = vpack.c.b16 %v3792, %v3790
          %v3889 = vpack.c.b16 %v3795, %v3793
          %v3890 = vpack.c.b16 %v3796, %v3794
          %v3891 = vpack.c.b16 %v3799, %v3797
          %v3892 = vpack.c.b16 %v3800, %v3798
          %v3893 = vpack.c.b16 %v3803, %v3801
          %v3894 = vpack.c.b16 %v3804, %v3802
          %v3895 = vpack.c.b16 %v3807, %v3805
          %v3896 = vpack.c.b16 %v3808, %v3806
          %v3897 = vpack.c.b16 %v3811, %v3809
          %v3898 = vpack.c.b16 %v3812, %v3810
          %v3899 = vpack.c.b16 %v3815, %v3813
          %v3900 = vpack.c.b16 %v3816, %v3814
          %v3901 = vpack.c.b16 %v3819, %v3817
          %v3902 = vpack.c.b16 %v3820, %v3818
          %v3903 = vpack.c.b16 %v3823, %v3821
          %v3904 = vpack.c.b16 %v3824, %v3822
          %v3905 = vpack.c.b16 %v3827, %v3825
          %v3906 = vpack.c.b16 %v3828, %v3826
          %v3907 = vpack.c.b16 %v3831, %v3829
          %v3908 = vpack.c.b16 %v3832, %v3830
          %v3909 = vpack.c.b16 %v3835, %v3833
          %v3910 = vpack.c.b16 %v3836, %v3834
          %v3911 = vpack.c.b16 %v3839, %v3837
          %v3912 = vpack.c.b16 %v3840, %v3838
          %v3913 = vpack.c.b16 %v3843, %v3841
          %v3914 = vpack.c.b16 %v3844, %v3842
          %v3915 = vpack.c.b16 %v3847, %v3845
          %v3916 = vpack.c.b16 %v3848, %v3846
          %v3917 = vpack.c.b16 %v3851, %v3849
          %v3918 = vpack.c.b16 %v3852, %v3850
          %v3919 = vpack.c.b16 %v3855, %v3853
          %v3920 = vpack.c.b16 %v3856, %v3854
          %v3986 = vlaneseq
          %v3987 = vshrl.u32 %v3986, 7
          %v3988 = vsub.s32 0, %v3987
          %v3989 = vrot.slane %v3664, %v3988
          %v3990 = vlaneseq
          %v3991 = vshrl.u32 %v3990, 7
          %v3992 = vsub.s32 1, %v3991
          %v3993 = vrot.slane %v3664, %v3992
          %3996 = vmatprep.subr.bf16.mxu0 %v3858
          %3997 = vmatpush1.bf16.msra.mxu0 %v3857
          %3998 = vmatprep.subr.bf16.mxu0 %v3860
          %3999 = vmatpush1.bf16.msra.mxu0 %v3859
          %4000 = vmatprep.subr.bf16.mxu0 %v3862
          %4001 = vmatpush1.bf16.msra.mxu0 %v3861
          %4002 = vmatprep.subr.bf16.mxu0 %v3864
          %4003 = vmatpush1.bf16.msra.mxu0 %v3863
          %4004 = vmatprep.subr.bf16.mxu0 %v3866
          %4005 = vmatpush1.bf16.msra.mxu0 %v3865
          %4006 = vmatprep.subr.bf16.mxu0 %v3868
          %4007 = vmatpush1.bf16.msra.mxu0 %v3867
          %4008 = vmatprep.subr.bf16.mxu0 %v3870
          %4009 = vmatpush1.bf16.msra.mxu0 %v3869
          %4010 = vmatprep.subr.bf16.mxu0 %v3872
          %4011 = vmatpush1.bf16.msra.mxu0 %v3871
          %4012 = vmatprep.subr.bf16.mxu0 %v3874
          %4013 = vmatpush1.bf16.msra.mxu0 %v3873
          %4014 = vmatprep.subr.bf16.mxu0 %v3876
          %4015 = vmatpush1.bf16.msra.mxu0 %v3875
          %4016 = vmatprep.subr.bf16.mxu0 %v3878
          %4017 = vmatpush1.bf16.msra.mxu0 %v3877
          %4018 = vmatprep.subr.bf16.mxu0 %v3880
          %4019 = vmatpush1.bf16.msra.mxu0 %v3879
          %4020 = vmatprep.subr.bf16.mxu0 %v3882
          %4021 = vmatpush1.bf16.msra.mxu0 %v3881
          %4022 = vmatprep.subr.bf16.mxu0 %v3884
          %4023 = vmatpush1.bf16.msra.mxu0 %v3883
          %4024 = vmatprep.subr.bf16.mxu0 %v3886
          %4025 = vmatpush1.bf16.msra.mxu0 %v3885
          %4026 = vmatprep.subr.bf16.mxu0 %v3888
          %4027 = vmatpush1.bf16.msra.mxu0 %v3887
          %4028 = vmatprep.mubr.bf16.mxu0 %v3597
          %4029 = vmatmul.mubr.bf16.gmra.mrb[0].mxu0 %v3596
          %v4030 = vpop.f32.mrb[0].mxu0
          %v4031 = vadd.f32 %v3989, %v4030
          %v4032 = vpop.f32.mrb[0].mxu0
          %v4033 = vadd.f32 %v3993, %v4032
          %v4034 = vpop.f32.mrb[0].mxu0
          %v4035 = vpop.f32.mrb[0].mxu0
          %4036 = vdwg.mxu0
          %4037 = vmatprep.subr.bf16.mxu0 %v3890
          %4038 = vmatpush1.bf16.msra.mxu0 %v3889
          %4039 = vmatprep.subr.bf16.mxu0 %v3892
          %4040 = vmatpush1.bf16.msra.mxu0 %v3891
          %4041 = vmatprep.subr.bf16.mxu0 %v3894
          %4042 = vmatpush1.bf16.msra.mxu0 %v3893
          %4043 = vmatprep.subr.bf16.mxu0 %v3896
          %4044 = vmatpush1.bf16.msra.mxu0 %v3895
          %4045 = vmatprep.subr.bf16.mxu0 %v3898
          %4046 = vmatpush1.bf16.msra.mxu0 %v3897
          %4047 = vmatprep.subr.bf16.mxu0 %v3900
          %4048 = vmatpush1.bf16.msra.mxu0 %v3899
          %4049 = vmatprep.subr.bf16.mxu0 %v3902
          %4050 = vmatpush1.bf16.msra.mxu0 %v3901
          %4051 = vmatprep.subr.bf16.mxu0 %v3904
          %4052 = vmatpush1.bf16.msra.mxu0 %v3903
          %4053 = vmatprep.subr.bf16.mxu0 %v3906
          %4054 = vmatpush1.bf16.msra.mxu0 %v3905
          %4055 = vmatprep.subr.bf16.mxu0 %v3908
          %4056 = vmatpush1.bf16.msra.mxu0 %v3907
          %4057 = vmatprep.subr.bf16.mxu0 %v3910
          %4058 = vmatpush1.bf16.msra.mxu0 %v3909
          %4059 = vmatprep.subr.bf16.mxu0 %v3912
          %4060 = vmatpush1.bf16.msra.mxu0 %v3911
          %4061 = vmatprep.subr.bf16.mxu0 %v3914
          %4062 = vmatpush1.bf16.msra.mxu0 %v3913
          %4063 = vmatprep.subr.bf16.mxu0 %v3916
          %4064 = vmatpush1.bf16.msra.mxu0 %v3915
          %4065 = vmatprep.subr.bf16.mxu0 %v3918
          %4066 = vmatpush1.bf16.msra.mxu0 %v3917
          %4067 = vmatprep.subr.bf16.mxu0 %v3920
          %4068 = vmatpush1.bf16.msra.mxu0 %v3919
          %4069 = vmatprep.mubr.bf16.mxu0 %v3599
          %4070 = vmatmul.mubr.bf16.gmra.mrb[0].mxu0 %v3598
          %v4071 = vpop.f32.mrb[0].mxu0
          %v4072 = vadd.f32 %v4031, %v4071
          %v4073 = vpop.f32.mrb[0].mxu0
          %v4074 = vadd.f32 %v4033, %v4073
          %v4075 = vpop.f32.mrb[0].mxu0
          %v4076 = vpop.f32.mrb[0].mxu0
          %4077 = vdwg.mxu0
          %v4078 = vmax.f32 %v4072, 0.0
          %v4079 = vmax.f32 %v4074, 0.0
          %v4080 = vpack.c.bf16 %v4078, %v4078
          %v4081 = vpack.c.bf16 %v4079, %v4079
          %v4082 = vld [vmem:[#allocation21] sm:$0xff]
          %v4083 = vld [vmem:[#allocation21 + $0x8] sm:$0xff]
          %v4084 = vld [vmem:[#allocation21 + $0x10] sm:$0xff]
          %v4085 = vld [vmem:[#allocation21 + $0x18] sm:$0xff]
          %v4086 = vld [vmem:[#allocation21 + $0x20] sm:$0xff]
          %v4087 = vld [vmem:[#allocation21 + $0x28] sm:$0xff]
          %v4088 = vld [vmem:[#allocation21 + $0x30] sm:$0xff]
          %v4089 = vld [vmem:[#allocation21 + $0x38] sm:$0xff]
          %v4090 = vld [vmem:[#allocation21 + $0x40] sm:$0xff]
          %v4091 = vld [vmem:[#allocation21 + $0x48] sm:$0xff]
          %v4092 = vld [vmem:[#allocation21 + $0x50] sm:$0xff]
          %v4093 = vld [vmem:[#allocation21 + $0x58] sm:$0xff]
          %v4094 = vld [vmem:[#allocation21 + $0x60] sm:$0xff]
          %v4095 = vld [vmem:[#allocation21 + $0x68] sm:$0xff]
          %v4096 = vld [vmem:[#allocation21 + $0x70] sm:$0xff]
          %v4097 = vld [vmem:[#allocation21 + $0x78] sm:$0xff]
          %v4098 = vld [vmem:[#allocation21 + $0x80] sm:$0xff]
          %v4099 = vld [vmem:[#allocation21 + $0x88] sm:$0xff]
          %v4100 = vld [vmem:[#allocation21 + $0x90] sm:$0xff]
          %v4101 = vld [vmem:[#allocation21 + $0x98] sm:$0xff]
          %v4102 = vld [vmem:[#allocation21 + $0xa0] sm:$0xff]
          %v4103 = vld [vmem:[#allocation21 + $0xa8] sm:$0xff]
          %v4104 = vld [vmem:[#allocation21 + $0xb0] sm:$0xff]
          %v4105 = vld [vmem:[#allocation21 + $0xb8] sm:$0xff]
          %v4106 = vld [vmem:[#allocation21 + $0xc0] sm:$0xff]
          %v4107 = vld [vmem:[#allocation21 + $0xc8] sm:$0xff]
          %v4108 = vld [vmem:[#allocation21 + $0xd0] sm:$0xff]
          %v4109 = vld [vmem:[#allocation21 + $0xd8] sm:$0xff]
          %v4110 = vld [vmem:[#allocation21 + $0xe0] sm:$0xff]
          %v4111 = vld [vmem:[#allocation21 + $0xe8] sm:$0xff]
          %v4112 = vld [vmem:[#allocation21 + $0xf0] sm:$0xff]
          %v4113 = vld [vmem:[#allocation21 + $0xf8] sm:$0xff]
          %v4114 = vld [vmem:[#allocation21 + $0x100] sm:$0xff]
          %v4115 = vld [vmem:[#allocation21 + $0x108] sm:$0xff]
          %v4116 = vld [vmem:[#allocation21 + $0x110] sm:$0xff]
          %v4117 = vld [vmem:[#allocation21 + $0x118] sm:$0xff]
          %v4118 = vld [vmem:[#allocation21 + $0x120] sm:$0xff]
          %v4119 = vld [vmem:[#allocation21 + $0x128] sm:$0xff]
          %v4120 = vld [vmem:[#allocation21 + $0x130] sm:$0xff]
          %v4121 = vld [vmem:[#allocation21 + $0x138] sm:$0xff]
          %v4122 = vld [vmem:[#allocation21 + $0x140] sm:$0xff]
          %v4123 = vld [vmem:[#allocation21 + $0x148] sm:$0xff]
          %v4124 = vld [vmem:[#allocation21 + $0x150] sm:$0xff]
          %v4125 = vld [vmem:[#allocation21 + $0x158] sm:$0xff]
          %v4126 = vld [vmem:[#allocation21 + $0x160] sm:$0xff]
          %v4127 = vld [vmem:[#allocation21 + $0x168] sm:$0xff]
          %v4128 = vld [vmem:[#allocation21 + $0x170] sm:$0xff]
          %v4129 = vld [vmem:[#allocation21 + $0x178] sm:$0xff]
          %v4130 = vld [vmem:[#allocation21 + $0x180] sm:$0xff]
          %v4131 = vld [vmem:[#allocation21 + $0x188] sm:$0xff]
          %v4132 = vld [vmem:[#allocation21 + $0x190] sm:$0xff]
          %v4133 = vld [vmem:[#allocation21 + $0x198] sm:$0xff]
          %v4134 = vld [vmem:[#allocation21 + $0x1a0] sm:$0xff]
          %v4135 = vld [vmem:[#allocation21 + $0x1a8] sm:$0xff]
          %v4136 = vld [vmem:[#allocation21 + $0x1b0] sm:$0xff]
          %v4137 = vld [vmem:[#allocation21 + $0x1b8] sm:$0xff]
          %v4138 = vld [vmem:[#allocation21 + $0x1c0] sm:$0xff]
          %v4139 = vld [vmem:[#allocation21 + $0x1c8] sm:$0xff]
          %v4140 = vld [vmem:[#allocation21 + $0x1d0] sm:$0xff]
          %v4141 = vld [vmem:[#allocation21 + $0x1d8] sm:$0xff]
          %v4142 = vld [vmem:[#allocation21 + $0x1e0] sm:$0xff]
          %v4143 = vld [vmem:[#allocation21 + $0x1e8] sm:$0xff]
          %v4144 = vld [vmem:[#allocation21 + $0x1f0] sm:$0xff]
          %v4145 = vld [vmem:[#allocation21 + $0x1f8] sm:$0xff]
          %v4146 = vld [vmem:[#allocation21 + $0x200] sm:$0xff]
          %v4147 = vld [vmem:[#allocation21 + $0x208] sm:$0xff]
          %v4148 = vld [vmem:[#allocation21 + $0x210] sm:$0xff]
          %v4149 = vld [vmem:[#allocation21 + $0x218] sm:$0xff]
          %v4150 = vld [vmem:[#allocation21 + $0x220] sm:$0xff]
          %v4151 = vld [vmem:[#allocation21 + $0x228] sm:$0xff]
          %v4152 = vld [vmem:[#allocation21 + $0x230] sm:$0xff]
          %v4153 = vld [vmem:[#allocation21 + $0x238] sm:$0xff]
          %v4154 = vld [vmem:[#allocation21 + $0x240] sm:$0xff]
          %v4155 = vld [vmem:[#allocation21 + $0x248] sm:$0xff]
          %v4156 = vld [vmem:[#allocation21 + $0x250] sm:$0xff]
          %v4157 = vld [vmem:[#allocation21 + $0x258] sm:$0xff]
          %v4158 = vld [vmem:[#allocation21 + $0x260] sm:$0xff]
          %v4159 = vld [vmem:[#allocation21 + $0x268] sm:$0xff]
          %v4160 = vld [vmem:[#allocation21 + $0x270] sm:$0xff]
          %v4161 = vld [vmem:[#allocation21 + $0x278] sm:$0xff]
          %v4162 = vld [vmem:[#allocation21 + $0x280] sm:$0xff]
          %v4163 = vld [vmem:[#allocation21 + $0x288] sm:$0xff]
          %v4164 = vld [vmem:[#allocation21 + $0x290] sm:$0xff]
          %v4165 = vld [vmem:[#allocation21 + $0x298] sm:$0xff]
          %v4166 = vld [vmem:[#allocation21 + $0x2a0] sm:$0xff]
          %v4167 = vld [vmem:[#allocation21 + $0x2a8] sm:$0xff]
          %v4168 = vld [vmem:[#allocation21 + $0x2b0] sm:$0xff]
          %v4169 = vld [vmem:[#allocation21 + $0x2b8] sm:$0xff]
          %v4170 = vld [vmem:[#allocation21 + $0x2c0] sm:$0xff]
          %v4171 = vld [vmem:[#allocation21 + $0x2c8] sm:$0xff]
          %v4172 = vld [vmem:[#allocation21 + $0x2d0] sm:$0xff]
          %v4173 = vld [vmem:[#allocation21 + $0x2d8] sm:$0xff]
          %v4174 = vld [vmem:[#allocation21 + $0x2e0] sm:$0xff]
          %v4175 = vld [vmem:[#allocation21 + $0x2e8] sm:$0xff]
          %v4176 = vld [vmem:[#allocation21 + $0x2f0] sm:$0xff]
          %v4177 = vld [vmem:[#allocation21 + $0x2f8] sm:$0xff]
          %v4178 = vld [vmem:[#allocation21 + $0x300] sm:$0xff]
          %v4179 = vld [vmem:[#allocation21 + $0x308] sm:$0xff]
          %v4180 = vld [vmem:[#allocation21 + $0x310] sm:$0xff]
          %v4181 = vld [vmem:[#allocation21 + $0x318] sm:$0xff]
          %v4182 = vld [vmem:[#allocation21 + $0x320] sm:$0xff]
          %v4183 = vld [vmem:[#allocation21 + $0x328] sm:$0xff]
          %v4184 = vld [vmem:[#allocation21 + $0x330] sm:$0xff]
          %v4185 = vld [vmem:[#allocation21 + $0x338] sm:$0xff]
          %v4186 = vld [vmem:[#allocation21 + $0x340] sm:$0xff]
          %v4187 = vld [vmem:[#allocation21 + $0x348] sm:$0xff]
          %v4188 = vld [vmem:[#allocation21 + $0x350] sm:$0xff]
          %v4189 = vld [vmem:[#allocation21 + $0x358] sm:$0xff]
          %v4190 = vld [vmem:[#allocation21 + $0x360] sm:$0xff]
          %v4191 = vld [vmem:[#allocation21 + $0x368] sm:$0xff]
          %v4192 = vld [vmem:[#allocation21 + $0x370] sm:$0xff]
          %v4193 = vld [vmem:[#allocation21 + $0x378] sm:$0xff]
          %v4194 = vld [vmem:[#allocation21 + $0x380] sm:$0xff]
          %v4195 = vld [vmem:[#allocation21 + $0x388] sm:$0xff]
          %v4196 = vld [vmem:[#allocation21 + $0x390] sm:$0xff]
          %v4197 = vld [vmem:[#allocation21 + $0x398] sm:$0xff]
          %v4198 = vld [vmem:[#allocation21 + $0x3a0] sm:$0xff]
          %v4199 = vld [vmem:[#allocation21 + $0x3a8] sm:$0xff]
          %v4200 = vld [vmem:[#allocation21 + $0x3b0] sm:$0xff]
          %v4201 = vld [vmem:[#allocation21 + $0x3b8] sm:$0xff]
          %v4202 = vld [vmem:[#allocation21 + $0x3c0] sm:$0xff]
          %v4203 = vld [vmem:[#allocation21 + $0x3c8] sm:$0xff]
          %v4204 = vld [vmem:[#allocation21 + $0x3d0] sm:$0xff]
          %v4205 = vld [vmem:[#allocation21 + $0x3d8] sm:$0xff]
          %v4206 = vld [vmem:[#allocation21 + $0x3e0] sm:$0xff]
          %v4207 = vld [vmem:[#allocation21 + $0x3e8] sm:$0xff]
          %v4208 = vld [vmem:[#allocation21 + $0x3f0] sm:$0xff]
          %v4209 = vld [vmem:[#allocation21 + $0x3f8] sm:$0xff]
          %v4210 = vld [vmem:[#allocation21 + $0x400] sm:$0xff]
          %v4211 = vld [vmem:[#allocation21 + $0x408] sm:$0xff]
          %v4212 = vld [vmem:[#allocation21 + $0x410] sm:$0xff]
          %v4213 = vld [vmem:[#allocation21 + $0x418] sm:$0xff]
          %v4214 = vld [vmem:[#allocation21 + $0x420] sm:$0xff]
          %v4215 = vld [vmem:[#allocation21 + $0x428] sm:$0xff]
          %v4216 = vld [vmem:[#allocation21 + $0x430] sm:$0xff]
          %v4217 = vld [vmem:[#allocation21 + $0x438] sm:$0xff]
          %v4218 = vld [vmem:[#allocation21 + $0x440] sm:$0xff]
          %v4219 = vld [vmem:[#allocation21 + $0x448] sm:$0xff]
          %v4220 = vld [vmem:[#allocation21 + $0x450] sm:$0xff]
          %v4221 = vld [vmem:[#allocation21 + $0x458] sm:$0xff]
          %v4222 = vld [vmem:[#allocation21 + $0x460] sm:$0xff]
          %v4223 = vld [vmem:[#allocation21 + $0x468] sm:$0xff]
          %v4224 = vld [vmem:[#allocation21 + $0x470] sm:$0xff]
          %v4225 = vld [vmem:[#allocation21 + $0x478] sm:$0xff]
          %v4226 = vld [vmem:[#allocation21 + $0x480] sm:$0xff]
          %v4227 = vld [vmem:[#allocation21 + $0x488] sm:$0xff]
          %v4228 = vld [vmem:[#allocation21 + $0x490] sm:$0xff]
          %v4229 = vld [vmem:[#allocation21 + $0x498] sm:$0xff]
          %v4230 = vld [vmem:[#allocation21 + $0x4a0] sm:$0xff]
          %v4231 = vld [vmem:[#allocation21 + $0x4a8] sm:$0xff]
          %v4232 = vld [vmem:[#allocation21 + $0x4b0] sm:$0xff]
          %v4233 = vld [vmem:[#allocation21 + $0x4b8] sm:$0xff]
          %v4234 = vld [vmem:[#allocation21 + $0x4c0] sm:$0xff]
          %v4235 = vld [vmem:[#allocation21 + $0x4c8] sm:$0xff]
          %v4236 = vld [vmem:[#allocation21 + $0x4d0] sm:$0xff]
          %v4237 = vld [vmem:[#allocation21 + $0x4d8] sm:$0xff]
          %v4238 = vld [vmem:[#allocation21 + $0x4e0] sm:$0xff]
          %v4239 = vld [vmem:[#allocation21 + $0x4e8] sm:$0xff]
          %v4240 = vld [vmem:[#allocation21 + $0x4f0] sm:$0xff]
          %v4241 = vld [vmem:[#allocation21 + $0x4f8] sm:$0xff]
          %v4242 = vld [vmem:[#allocation21 + $0x500] sm:$0xff]
          %v4243 = vld [vmem:[#allocation21 + $0x508] sm:$0xff]
          %v4244 = vld [vmem:[#allocation21 + $0x510] sm:$0xff]
          %v4245 = vld [vmem:[#allocation21 + $0x518] sm:$0xff]
          %v4246 = vld [vmem:[#allocation21 + $0x520] sm:$0xff]
          %v4247 = vld [vmem:[#allocation21 + $0x528] sm:$0xff]
          %v4248 = vld [vmem:[#allocation21 + $0x530] sm:$0xff]
          %v4249 = vld [vmem:[#allocation21 + $0x538] sm:$0xff]
          %v4250 = vld [vmem:[#allocation21 + $0x540] sm:$0xff]
          %v4251 = vld [vmem:[#allocation21 + $0x548] sm:$0xff]
          %v4252 = vld [vmem:[#allocation21 + $0x550] sm:$0xff]
          %v4253 = vld [vmem:[#allocation21 + $0x558] sm:$0xff]
          %v4254 = vld [vmem:[#allocation21 + $0x560] sm:$0xff]
          %v4255 = vld [vmem:[#allocation21 + $0x568] sm:$0xff]
          %v4256 = vld [vmem:[#allocation21 + $0x570] sm:$0xff]
          %v4257 = vld [vmem:[#allocation21 + $0x578] sm:$0xff]
          %v4258 = vld [vmem:[#allocation21 + $0x580] sm:$0xff]
          %v4259 = vld [vmem:[#allocation21 + $0x588] sm:$0xff]
          %v4260 = vld [vmem:[#allocation21 + $0x590] sm:$0xff]
          %v4261 = vld [vmem:[#allocation21 + $0x598] sm:$0xff]
          %v4262 = vld [vmem:[#allocation21 + $0x5a0] sm:$0xff]
          %v4263 = vld [vmem:[#allocation21 + $0x5a8] sm:$0xff]
          %v4264 = vld [vmem:[#allocation21 + $0x5b0] sm:$0xff]
          %v4265 = vld [vmem:[#allocation21 + $0x5b8] sm:$0xff]
          %v4266 = vld [vmem:[#allocation21 + $0x5c0] sm:$0xff]
          %v4267 = vld [vmem:[#allocation21 + $0x5c8] sm:$0xff]
          %v4268 = vld [vmem:[#allocation21 + $0x5d0] sm:$0xff]
          %v4269 = vld [vmem:[#allocation21 + $0x5d8] sm:$0xff]
          %v4270 = vld [vmem:[#allocation21 + $0x5e0] sm:$0xff]
          %v4271 = vld [vmem:[#allocation21 + $0x5e8] sm:$0xff]
          %v4272 = vld [vmem:[#allocation21 + $0x5f0] sm:$0xff]
          %v4273 = vld [vmem:[#allocation21 + $0x5f8] sm:$0xff]
          %v4274 = vld [vmem:[#allocation21 + $0x600] sm:$0xff]
          %v4275 = vld [vmem:[#allocation21 + $0x608] sm:$0xff]
          %v4276 = vld [vmem:[#allocation21 + $0x610] sm:$0xff]
          %v4277 = vld [vmem:[#allocation21 + $0x618] sm:$0xff]
          %v4278 = vld [vmem:[#allocation21 + $0x620] sm:$0xff]
          %v4279 = vld [vmem:[#allocation21 + $0x628] sm:$0xff]
          %v4280 = vld [vmem:[#allocation21 + $0x630] sm:$0xff]
          %v4281 = vld [vmem:[#allocation21 + $0x638] sm:$0xff]
          %v4282 = vld [vmem:[#allocation21 + $0x640] sm:$0xff]
          %v4283 = vld [vmem:[#allocation21 + $0x648] sm:$0xff]
          %v4284 = vld [vmem:[#allocation21 + $0x650] sm:$0xff]
          %v4285 = vld [vmem:[#allocation21 + $0x658] sm:$0xff]
          %v4286 = vld [vmem:[#allocation21 + $0x660] sm:$0xff]
          %v4287 = vld [vmem:[#allocation21 + $0x668] sm:$0xff]
          %v4288 = vld [vmem:[#allocation21 + $0x670] sm:$0xff]
          %v4289 = vld [vmem:[#allocation21 + $0x678] sm:$0xff]
          %v4290 = vld [vmem:[#allocation21 + $0x680] sm:$0xff]
          %v4291 = vld [vmem:[#allocation21 + $0x688] sm:$0xff]
          %v4292 = vld [vmem:[#allocation21 + $0x690] sm:$0xff]
          %v4293 = vld [vmem:[#allocation21 + $0x698] sm:$0xff]
          %v4294 = vld [vmem:[#allocation21 + $0x6a0] sm:$0xff]
          %v4295 = vld [vmem:[#allocation21 + $0x6a8] sm:$0xff]
          %v4296 = vld [vmem:[#allocation21 + $0x6b0] sm:$0xff]
          %v4297 = vld [vmem:[#allocation21 + $0x6b8] sm:$0xff]
          %v4298 = vld [vmem:[#allocation21 + $0x6c0] sm:$0xff]
          %v4299 = vld [vmem:[#allocation21 + $0x6c8] sm:$0xff]
          %v4300 = vld [vmem:[#allocation21 + $0x6d0] sm:$0xff]
          %v4301 = vld [vmem:[#allocation21 + $0x6d8] sm:$0xff]
          %v4302 = vld [vmem:[#allocation21 + $0x6e0] sm:$0xff]
          %v4303 = vld [vmem:[#allocation21 + $0x6e8] sm:$0xff]
          %v4304 = vld [vmem:[#allocation21 + $0x6f0] sm:$0xff]
          %v4305 = vld [vmem:[#allocation21 + $0x6f8] sm:$0xff]
          %v4306 = vld [vmem:[#allocation21 + $0x700] sm:$0xff]
          %v4307 = vld [vmem:[#allocation21 + $0x708] sm:$0xff]
          %v4308 = vld [vmem:[#allocation21 + $0x710] sm:$0xff]
          %v4309 = vld [vmem:[#allocation21 + $0x718] sm:$0xff]
          %v4310 = vld [vmem:[#allocation21 + $0x720] sm:$0xff]
          %v4311 = vld [vmem:[#allocation21 + $0x728] sm:$0xff]
          %v4312 = vld [vmem:[#allocation21 + $0x730] sm:$0xff]
          %v4313 = vld [vmem:[#allocation21 + $0x738] sm:$0xff]
          %v4314 = vld [vmem:[#allocation21 + $0x740] sm:$0xff]
          %v4315 = vld [vmem:[#allocation21 + $0x748] sm:$0xff]
          %v4316 = vld [vmem:[#allocation21 + $0x750] sm:$0xff]
          %v4317 = vld [vmem:[#allocation21 + $0x758] sm:$0xff]
          %v4318 = vld [vmem:[#allocation21 + $0x760] sm:$0xff]
          %v4319 = vld [vmem:[#allocation21 + $0x768] sm:$0xff]
          %v4320 = vld [vmem:[#allocation21 + $0x770] sm:$0xff]
          %v4321 = vld [vmem:[#allocation21 + $0x778] sm:$0xff]
          %v4322 = vld [vmem:[#allocation21 + $0x780] sm:$0xff]
          %v4323 = vld [vmem:[#allocation21 + $0x788] sm:$0xff]
          %v4324 = vld [vmem:[#allocation21 + $0x790] sm:$0xff]
          %v4325 = vld [vmem:[#allocation21 + $0x798] sm:$0xff]
          %v4326 = vld [vmem:[#allocation21 + $0x7a0] sm:$0xff]
          %v4327 = vld [vmem:[#allocation21 + $0x7a8] sm:$0xff]
          %v4328 = vld [vmem:[#allocation21 + $0x7b0] sm:$0xff]
          %v4329 = vld [vmem:[#allocation21 + $0x7b8] sm:$0xff]
          %v4330 = vld [vmem:[#allocation21 + $0x7c0] sm:$0xff]
          %v4331 = vld [vmem:[#allocation21 + $0x7c8] sm:$0xff]
          %v4332 = vld [vmem:[#allocation21 + $0x7d0] sm:$0xff]
          %v4333 = vld [vmem:[#allocation21 + $0x7d8] sm:$0xff]
          %v4334 = vld [vmem:[#allocation21 + $0x7e0] sm:$0xff]
          %v4335 = vld [vmem:[#allocation21 + $0x7e8] sm:$0xff]
          %v4336 = vld [vmem:[#allocation21 + $0x7f0] sm:$0xff]
          %v4337 = vld [vmem:[#allocation21 + $0x7f8] sm:$0xff]
          %v4338 = vld [vmem:[#allocation21 + $0x800] sm:$0xff]
          %v4339 = vld [vmem:[#allocation21 + $0x808] sm:$0xff]
          %v4340 = vld [vmem:[#allocation21 + $0x810] sm:$0xff]
          %v4341 = vld [vmem:[#allocation21 + $0x818] sm:$0xff]
          %v4342 = vld [vmem:[#allocation21 + $0x820] sm:$0xff]
          %v4343 = vld [vmem:[#allocation21 + $0x828] sm:$0xff]
          %v4344 = vld [vmem:[#allocation21 + $0x830] sm:$0xff]
          %v4345 = vld [vmem:[#allocation21 + $0x838] sm:$0xff]
          %v4346 = vld [vmem:[#allocation21 + $0x840] sm:$0xff]
          %v4347 = vld [vmem:[#allocation21 + $0x848] sm:$0xff]
          %v4348 = vld [vmem:[#allocation21 + $0x850] sm:$0xff]
          %v4349 = vld [vmem:[#allocation21 + $0x858] sm:$0xff]
          %v4350 = vld [vmem:[#allocation21 + $0x860] sm:$0xff]
          %v4351 = vld [vmem:[#allocation21 + $0x868] sm:$0xff]
          %v4352 = vld [vmem:[#allocation21 + $0x870] sm:$0xff]
          %v4353 = vld [vmem:[#allocation21 + $0x878] sm:$0xff]
          %v4354 = vld [vmem:[#allocation21 + $0x880] sm:$0xff]
          %v4355 = vld [vmem:[#allocation21 + $0x888] sm:$0xff]
          %v4356 = vld [vmem:[#allocation21 + $0x890] sm:$0xff]
          %v4357 = vld [vmem:[#allocation21 + $0x898] sm:$0xff]
          %v4358 = vld [vmem:[#allocation21 + $0x8a0] sm:$0xff]
          %v4359 = vld [vmem:[#allocation21 + $0x8a8] sm:$0xff]
          %v4360 = vld [vmem:[#allocation21 + $0x8b0] sm:$0xff]
          %v4361 = vld [vmem:[#allocation21 + $0x8b8] sm:$0xff]
          %v4362 = vld [vmem:[#allocation21 + $0x8c0] sm:$0xff]
          %v4363 = vld [vmem:[#allocation21 + $0x8c8] sm:$0xff]
          %v4364 = vld [vmem:[#allocation21 + $0x8d0] sm:$0xff]
          %v4365 = vld [vmem:[#allocation21 + $0x8d8] sm:$0xff]
          %v4366 = vld [vmem:[#allocation21 + $0x8e0] sm:$0xff]
          %v4367 = vld [vmem:[#allocation21 + $0x8e8] sm:$0xff]
          %v4368 = vld [vmem:[#allocation21 + $0x8f0] sm:$0xff]
          %v4369 = vld [vmem:[#allocation21 + $0x8f8] sm:$0xff]
          %v4370 = vld [vmem:[#allocation21 + $0x900] sm:$0xff]
          %v4371 = vld [vmem:[#allocation21 + $0x908] sm:$0xff]
          %v4372 = vld [vmem:[#allocation21 + $0x910] sm:$0xff]
          %v4373 = vld [vmem:[#allocation21 + $0x918] sm:$0xff]
          %v4374 = vld [vmem:[#allocation21 + $0x920] sm:$0xff]
          %v4375 = vld [vmem:[#allocation21 + $0x928] sm:$0xff]
          %v4376 = vld [vmem:[#allocation21 + $0x930] sm:$0xff]
          %v4377 = vld [vmem:[#allocation21 + $0x938] sm:$0xff]
          %v4378 = vld [vmem:[#allocation21 + $0x940] sm:$0xff]
          %v4379 = vld [vmem:[#allocation21 + $0x948] sm:$0xff]
          %v4380 = vld [vmem:[#allocation21 + $0x950] sm:$0xff]
          %v4381 = vld [vmem:[#allocation21 + $0x958] sm:$0xff]
          %v4382 = vld [vmem:[#allocation21 + $0x960] sm:$0xff]
          %v4383 = vld [vmem:[#allocation21 + $0x968] sm:$0xff]
          %v4384 = vld [vmem:[#allocation21 + $0x970] sm:$0xff]
          %v4385 = vld [vmem:[#allocation21 + $0x978] sm:$0xff]
          %v4386 = vld [vmem:[#allocation21 + $0x980] sm:$0xff]
          %v4387 = vld [vmem:[#allocation21 + $0x988] sm:$0xff]
          %v4388 = vld [vmem:[#allocation21 + $0x990] sm:$0xff]
          %v4389 = vld [vmem:[#allocation21 + $0x998] sm:$0xff]
          %v4390 = vld [vmem:[#allocation21 + $0x9a0] sm:$0xff]
          %v4391 = vld [vmem:[#allocation21 + $0x9a8] sm:$0xff]
          %v4392 = vld [vmem:[#allocation21 + $0x9b0] sm:$0xff]
          %v4393 = vld [vmem:[#allocation21 + $0x9b8] sm:$0xff]
          %v4394 = vld [vmem:[#allocation21 + $0x9c0] sm:$0xff]
          %v4395 = vld [vmem:[#allocation21 + $0x9c8] sm:$0xff]
          %v4396 = vld [vmem:[#allocation21 + $0x9d0] sm:$0xff]
          %v4397 = vld [vmem:[#allocation21 + $0x9d8] sm:$0xff]
          %v4398 = vld [vmem:[#allocation21 + $0x9e0] sm:$0xff]
          %v4399 = vld [vmem:[#allocation21 + $0x9e8] sm:$0xff]
          %v4400 = vld [vmem:[#allocation21 + $0x9f0] sm:$0xff]
          %v4401 = vld [vmem:[#allocation21 + $0x9f8] sm:$0xff]
          %v4402 = vld [vmem:[#allocation21 + $0xa00] sm:$0xff]
          %v4403 = vld [vmem:[#allocation21 + $0xa08] sm:$0xff]
          %v4404 = vld [vmem:[#allocation21 + $0xa10] sm:$0xff]
          %v4405 = vld [vmem:[#allocation21 + $0xa18] sm:$0xff]
          %v4406 = vld [vmem:[#allocation21 + $0xa20] sm:$0xff]
          %v4407 = vld [vmem:[#allocation21 + $0xa28] sm:$0xff]
          %v4408 = vld [vmem:[#allocation21 + $0xa30] sm:$0xff]
          %v4409 = vld [vmem:[#allocation21 + $0xa38] sm:$0xff]
          %v4410 = vld [vmem:[#allocation21 + $0xa40] sm:$0xff]
          %v4411 = vld [vmem:[#allocation21 + $0xa48] sm:$0xff]
          %v4412 = vld [vmem:[#allocation21 + $0xa50] sm:$0xff]
          %v4413 = vld [vmem:[#allocation21 + $0xa58] sm:$0xff]
          %v4414 = vld [vmem:[#allocation21 + $0xa60] sm:$0xff]
          %v4415 = vld [vmem:[#allocation21 + $0xa68] sm:$0xff]
          %v4416 = vld [vmem:[#allocation21 + $0xa70] sm:$0xff]
          %v4417 = vld [vmem:[#allocation21 + $0xa78] sm:$0xff]
          %v4418 = vld [vmem:[#allocation21 + $0xa80] sm:$0xff]
          %v4419 = vld [vmem:[#allocation21 + $0xa88] sm:$0xff]
          %v4420 = vld [vmem:[#allocation21 + $0xa90] sm:$0xff]
          %v4421 = vld [vmem:[#allocation21 + $0xa98] sm:$0xff]
          %v4422 = vld [vmem:[#allocation21 + $0xaa0] sm:$0xff]
          %v4423 = vld [vmem:[#allocation21 + $0xaa8] sm:$0xff]
          %v4424 = vld [vmem:[#allocation21 + $0xab0] sm:$0xff]
          %v4425 = vld [vmem:[#allocation21 + $0xab8] sm:$0xff]
          %v4426 = vld [vmem:[#allocation21 + $0xac0] sm:$0xff]
          %v4427 = vld [vmem:[#allocation21 + $0xac8] sm:$0xff]
          %v4428 = vld [vmem:[#allocation21 + $0xad0] sm:$0xff]
          %v4429 = vld [vmem:[#allocation21 + $0xad8] sm:$0xff]
          %v4430 = vld [vmem:[#allocation21 + $0xae0] sm:$0xff]
          %v4431 = vld [vmem:[#allocation21 + $0xae8] sm:$0xff]
          %v4432 = vld [vmem:[#allocation21 + $0xaf0] sm:$0xff]
          %v4433 = vld [vmem:[#allocation21 + $0xaf8] sm:$0xff]
          %v4434 = vld [vmem:[#allocation21 + $0xb00] sm:$0xff]
          %v4435 = vld [vmem:[#allocation21 + $0xb08] sm:$0xff]
          %v4436 = vld [vmem:[#allocation21 + $0xb10] sm:$0xff]
          %v4437 = vld [vmem:[#allocation21 + $0xb18] sm:$0xff]
          %v4438 = vld [vmem:[#allocation21 + $0xb20] sm:$0xff]
          %v4439 = vld [vmem:[#allocation21 + $0xb28] sm:$0xff]
          %v4440 = vld [vmem:[#allocation21 + $0xb30] sm:$0xff]
          %v4441 = vld [vmem:[#allocation21 + $0xb38] sm:$0xff]
          %v4442 = vld [vmem:[#allocation21 + $0xb40] sm:$0xff]
          %v4443 = vld [vmem:[#allocation21 + $0xb48] sm:$0xff]
          %v4444 = vld [vmem:[#allocation21 + $0xb50] sm:$0xff]
          %v4445 = vld [vmem:[#allocation21 + $0xb58] sm:$0xff]
          %v4446 = vld [vmem:[#allocation21 + $0xb60] sm:$0xff]
          %v4447 = vld [vmem:[#allocation21 + $0xb68] sm:$0xff]
          %v4448 = vld [vmem:[#allocation21 + $0xb70] sm:$0xff]
          %v4449 = vld [vmem:[#allocation21 + $0xb78] sm:$0xff]
          %v4450 = vld [vmem:[#allocation21 + $0xb80] sm:$0xff]
          %v4451 = vld [vmem:[#allocation21 + $0xb88] sm:$0xff]
          %v4452 = vld [vmem:[#allocation21 + $0xb90] sm:$0xff]
          %v4453 = vld [vmem:[#allocation21 + $0xb98] sm:$0xff]
          %v4454 = vld [vmem:[#allocation21 + $0xba0] sm:$0xff]
          %v4455 = vld [vmem:[#allocation21 + $0xba8] sm:$0xff]
          %v4456 = vld [vmem:[#allocation21 + $0xbb0] sm:$0xff]
          %v4457 = vld [vmem:[#allocation21 + $0xbb8] sm:$0xff]
          %v4458 = vld [vmem:[#allocation21 + $0xbc0] sm:$0xff]
          %v4459 = vld [vmem:[#allocation21 + $0xbc8] sm:$0xff]
          %v4460 = vld [vmem:[#allocation21 + $0xbd0] sm:$0xff]
          %v4461 = vld [vmem:[#allocation21 + $0xbd8] sm:$0xff]
          %v4462 = vld [vmem:[#allocation21 + $0xbe0] sm:$0xff]
          %v4463 = vld [vmem:[#allocation21 + $0xbe8] sm:$0xff]
          %v4464 = vld [vmem:[#allocation21 + $0xbf0] sm:$0xff]
          %v4465 = vld [vmem:[#allocation21 + $0xbf8] sm:$0xff]
          %v4466 = vld [vmem:[#allocation21 + $0xc00] sm:$0xff]
          %v4467 = vld [vmem:[#allocation21 + $0xc08] sm:$0xff]
          %v4468 = vld [vmem:[#allocation21 + $0xc10] sm:$0xff]
          %v4469 = vld [vmem:[#allocation21 + $0xc18] sm:$0xff]
          %v4470 = vld [vmem:[#allocation21 + $0xc20] sm:$0xff]
          %v4471 = vld [vmem:[#allocation21 + $0xc28] sm:$0xff]
          %v4472 = vld [vmem:[#allocation21 + $0xc30] sm:$0xff]
          %v4473 = vld [vmem:[#allocation21 + $0xc38] sm:$0xff]
          %v4474 = vld [vmem:[#allocation21 + $0xc40] sm:$0xff]
          %v4475 = vld [vmem:[#allocation21 + $0xc48] sm:$0xff]
          %v4476 = vld [vmem:[#allocation21 + $0xc50] sm:$0xff]
          %v4477 = vld [vmem:[#allocation21 + $0xc58] sm:$0xff]
          %v4478 = vld [vmem:[#allocation21 + $0xc60] sm:$0xff]
          %v4479 = vld [vmem:[#allocation21 + $0xc68] sm:$0xff]
          %v4480 = vld [vmem:[#allocation21 + $0xc70] sm:$0xff]
          %v4481 = vld [vmem:[#allocation21 + $0xc78] sm:$0xff]
          %v4482 = vld [vmem:[#allocation21 + $0xc80] sm:$0xff]
          %v4483 = vld [vmem:[#allocation21 + $0xc88] sm:$0xff]
          %v4484 = vld [vmem:[#allocation21 + $0xc90] sm:$0xff]
          %v4485 = vld [vmem:[#allocation21 + $0xc98] sm:$0xff]
          %v4486 = vld [vmem:[#allocation21 + $0xca0] sm:$0xff]
          %v4487 = vld [vmem:[#allocation21 + $0xca8] sm:$0xff]
          %v4488 = vld [vmem:[#allocation21 + $0xcb0] sm:$0xff]
          %v4489 = vld [vmem:[#allocation21 + $0xcb8] sm:$0xff]
          %v4490 = vld [vmem:[#allocation21 + $0xcc0] sm:$0xff]
          %v4491 = vld [vmem:[#allocation21 + $0xcc8] sm:$0xff]
          %v4492 = vld [vmem:[#allocation21 + $0xcd0] sm:$0xff]
          %v4493 = vld [vmem:[#allocation21 + $0xcd8] sm:$0xff]
          %v4494 = vld [vmem:[#allocation21 + $0xce0] sm:$0xff]
          %v4495 = vld [vmem:[#allocation21 + $0xce8] sm:$0xff]
          %v4496 = vld [vmem:[#allocation21 + $0xcf0] sm:$0xff]
          %v4497 = vld [vmem:[#allocation21 + $0xcf8] sm:$0xff]
          %v4498 = vld [vmem:[#allocation21 + $0xd00] sm:$0xff]
          %v4499 = vld [vmem:[#allocation21 + $0xd08] sm:$0xff]
          %v4500 = vld [vmem:[#allocation21 + $0xd10] sm:$0xff]
          %v4501 = vld [vmem:[#allocation21 + $0xd18] sm:$0xff]
          %v4502 = vld [vmem:[#allocation21 + $0xd20] sm:$0xff]
          %v4503 = vld [vmem:[#allocation21 + $0xd28] sm:$0xff]
          %v4504 = vld [vmem:[#allocation21 + $0xd30] sm:$0xff]
          %v4505 = vld [vmem:[#allocation21 + $0xd38] sm:$0xff]
          %v4506 = vld [vmem:[#allocation21 + $0xd40] sm:$0xff]
          %v4507 = vld [vmem:[#allocation21 + $0xd48] sm:$0xff]
          %v4508 = vld [vmem:[#allocation21 + $0xd50] sm:$0xff]
          %v4509 = vld [vmem:[#allocation21 + $0xd58] sm:$0xff]
          %v4510 = vld [vmem:[#allocation21 + $0xd60] sm:$0xff]
          %v4511 = vld [vmem:[#allocation21 + $0xd68] sm:$0xff]
          %v4512 = vld [vmem:[#allocation21 + $0xd70] sm:$0xff]
          %v4513 = vld [vmem:[#allocation21 + $0xd78] sm:$0xff]
          %v4514 = vld [vmem:[#allocation21 + $0xd80] sm:$0xff]
          %v4515 = vld [vmem:[#allocation21 + $0xd88] sm:$0xff]
          %v4516 = vld [vmem:[#allocation21 + $0xd90] sm:$0xff]
          %v4517 = vld [vmem:[#allocation21 + $0xd98] sm:$0xff]
          %v4518 = vld [vmem:[#allocation21 + $0xda0] sm:$0xff]
          %v4519 = vld [vmem:[#allocation21 + $0xda8] sm:$0xff]
          %v4520 = vld [vmem:[#allocation21 + $0xdb0] sm:$0xff]
          %v4521 = vld [vmem:[#allocation21 + $0xdb8] sm:$0xff]
          %v4522 = vld [vmem:[#allocation21 + $0xdc0] sm:$0xff]
          %v4523 = vld [vmem:[#allocation21 + $0xdc8] sm:$0xff]
          %v4524 = vld [vmem:[#allocation21 + $0xdd0] sm:$0xff]
          %v4525 = vld [vmem:[#allocation21 + $0xdd8] sm:$0xff]
          %v4526 = vld [vmem:[#allocation21 + $0xde0] sm:$0xff]
          %v4527 = vld [vmem:[#allocation21 + $0xde8] sm:$0xff]
          %v4528 = vld [vmem:[#allocation21 + $0xdf0] sm:$0xff]
          %v4529 = vld [vmem:[#allocation21 + $0xdf8] sm:$0xff]
          %v4530 = vld [vmem:[#allocation21 + $0xe00] sm:$0xff]
          %v4531 = vld [vmem:[#allocation21 + $0xe08] sm:$0xff]
          %v4532 = vld [vmem:[#allocation21 + $0xe10] sm:$0xff]
          %v4533 = vld [vmem:[#allocation21 + $0xe18] sm:$0xff]
          %v4534 = vld [vmem:[#allocation21 + $0xe20] sm:$0xff]
          %v4535 = vld [vmem:[#allocation21 + $0xe28] sm:$0xff]
          %v4536 = vld [vmem:[#allocation21 + $0xe30] sm:$0xff]
          %v4537 = vld [vmem:[#allocation21 + $0xe38] sm:$0xff]
          %v4538 = vld [vmem:[#allocation21 + $0xe40] sm:$0xff]
          %v4539 = vld [vmem:[#allocation21 + $0xe48] sm:$0xff]
          %v4540 = vld [vmem:[#allocation21 + $0xe50] sm:$0xff]
          %v4541 = vld [vmem:[#allocation21 + $0xe58] sm:$0xff]
          %v4542 = vld [vmem:[#allocation21 + $0xe60] sm:$0xff]
          %v4543 = vld [vmem:[#allocation21 + $0xe68] sm:$0xff]
          %v4544 = vld [vmem:[#allocation21 + $0xe70] sm:$0xff]
          %v4545 = vld [vmem:[#allocation21 + $0xe78] sm:$0xff]
          %v4546 = vld [vmem:[#allocation21 + $0xe80] sm:$0xff]
          %v4547 = vld [vmem:[#allocation21 + $0xe88] sm:$0xff]
          %v4548 = vld [vmem:[#allocation21 + $0xe90] sm:$0xff]
          %v4549 = vld [vmem:[#allocation21 + $0xe98] sm:$0xff]
          %v4550 = vld [vmem:[#allocation21 + $0xea0] sm:$0xff]
          %v4551 = vld [vmem:[#allocation21 + $0xea8] sm:$0xff]
          %v4552 = vld [vmem:[#allocation21 + $0xeb0] sm:$0xff]
          %v4553 = vld [vmem:[#allocation21 + $0xeb8] sm:$0xff]
          %v4554 = vld [vmem:[#allocation21 + $0xec0] sm:$0xff]
          %v4555 = vld [vmem:[#allocation21 + $0xec8] sm:$0xff]
          %v4556 = vld [vmem:[#allocation21 + $0xed0] sm:$0xff]
          %v4557 = vld [vmem:[#allocation21 + $0xed8] sm:$0xff]
          %v4558 = vld [vmem:[#allocation21 + $0xee0] sm:$0xff]
          %v4559 = vld [vmem:[#allocation21 + $0xee8] sm:$0xff]
          %v4560 = vld [vmem:[#allocation21 + $0xef0] sm:$0xff]
          %v4561 = vld [vmem:[#allocation21 + $0xef8] sm:$0xff]
          %v4562 = vld [vmem:[#allocation21 + $0xf00] sm:$0xff]
          %v4563 = vld [vmem:[#allocation21 + $0xf08] sm:$0xff]
          %v4564 = vld [vmem:[#allocation21 + $0xf10] sm:$0xff]
          %v4565 = vld [vmem:[#allocation21 + $0xf18] sm:$0xff]
          %v4566 = vld [vmem:[#allocation21 + $0xf20] sm:$0xff]
          %v4567 = vld [vmem:[#allocation21 + $0xf28] sm:$0xff]
          %v4568 = vld [vmem:[#allocation21 + $0xf30] sm:$0xff]
          %v4569 = vld [vmem:[#allocation21 + $0xf38] sm:$0xff]
          %v4570 = vld [vmem:[#allocation21 + $0xf40] sm:$0xff]
          %v4571 = vld [vmem:[#allocation21 + $0xf48] sm:$0xff]
          %v4572 = vld [vmem:[#allocation21 + $0xf50] sm:$0xff]
          %v4573 = vld [vmem:[#allocation21 + $0xf58] sm:$0xff]
          %v4574 = vld [vmem:[#allocation21 + $0xf60] sm:$0xff]
          %v4575 = vld [vmem:[#allocation21 + $0xf68] sm:$0xff]
          %v4576 = vld [vmem:[#allocation21 + $0xf70] sm:$0xff]
          %v4577 = vld [vmem:[#allocation21 + $0xf78] sm:$0xff]
          %v4578 = vld [vmem:[#allocation21 + $0xf80] sm:$0xff]
          %v4579 = vld [vmem:[#allocation21 + $0xf88] sm:$0xff]
          %v4580 = vld [vmem:[#allocation21 + $0xf90] sm:$0xff]
          %v4581 = vld [vmem:[#allocation21 + $0xf98] sm:$0xff]
          %v4582 = vld [vmem:[#allocation21 + $0xfa0] sm:$0xff]
          %v4583 = vld [vmem:[#allocation21 + $0xfa8] sm:$0xff]
          %v4584 = vld [vmem:[#allocation21 + $0xfb0] sm:$0xff]
          %v4585 = vld [vmem:[#allocation21 + $0xfb8] sm:$0xff]
          %v4586 = vld [vmem:[#allocation21 + $0xfc0] sm:$0xff]
          %v4587 = vld [vmem:[#allocation21 + $0xfc8] sm:$0xff]
          %v4588 = vld [vmem:[#allocation21 + $0xfd0] sm:$0xff]
          %v4589 = vld [vmem:[#allocation21 + $0xfd8] sm:$0xff]
          %v4590 = vld [vmem:[#allocation21 + $0xfe0] sm:$0xff]
          %v4591 = vld [vmem:[#allocation21 + $0xfe8] sm:$0xff]
          %v4592 = vld [vmem:[#allocation21 + $0xff0] sm:$0xff]
          %v4593 = vld [vmem:[#allocation21 + $0xff8] sm:$0xff]
          %v4594 = vld [vmem:[#allocation23] sm:$0xff]
          %v4595 = vld [vmem:[#allocation23 + $0x8] sm:$0xff]
          %v4596 = vld [vmem:[#allocation23 + $0x10] sm:$0xff]
          %v4597 = vld [vmem:[#allocation23 + $0x18] sm:$0xff]
          %v5110 = vunpack.c.l.b16 %v4082
          %v5111 = vunpack.c.h.b16 %v4082
          %v5112 = vunpack.c.l.b16 %v4083
          %v5113 = vunpack.c.h.b16 %v4083
          %v5114 = vunpack.c.l.b16 %v4084
          %v5115 = vunpack.c.h.b16 %v4084
          %v5116 = vunpack.c.l.b16 %v4085
          %v5117 = vunpack.c.h.b16 %v4085
          %v5118 = vunpack.c.l.b16 %v4086
          %v5119 = vunpack.c.h.b16 %v4086
          %v5120 = vunpack.c.l.b16 %v4087
          %v5121 = vunpack.c.h.b16 %v4087
          %v5122 = vunpack.c.l.b16 %v4088
          %v5123 = vunpack.c.h.b16 %v4088
          %v5124 = vunpack.c.l.b16 %v4089
          %v5125 = vunpack.c.h.b16 %v4089
          %v5126 = vunpack.c.l.b16 %v4090
          %v5127 = vunpack.c.h.b16 %v4090
          %v5128 = vunpack.c.l.b16 %v4091
          %v5129 = vunpack.c.h.b16 %v4091
          %v5130 = vunpack.c.l.b16 %v4092
          %v5131 = vunpack.c.h.b16 %v4092
          %v5132 = vunpack.c.l.b16 %v4093
          %v5133 = vunpack.c.h.b16 %v4093
          %v5134 = vunpack.c.l.b16 %v4094
          %v5135 = vunpack.c.h.b16 %v4094
          %v5136 = vunpack.c.l.b16 %v4095
          %v5137 = vunpack.c.h.b16 %v4095
          %v5138 = vunpack.c.l.b16 %v4096
          %v5139 = vunpack.c.h.b16 %v4096
          %v5140 = vunpack.c.l.b16 %v4097
          %v5141 = vunpack.c.h.b16 %v4097
          %v5142 = vunpack.c.l.b16 %v4098
          %v5143 = vunpack.c.h.b16 %v4098
          %v5144 = vunpack.c.l.b16 %v4099
          %v5145 = vunpack.c.h.b16 %v4099
          %v5146 = vunpack.c.l.b16 %v4100
          %v5147 = vunpack.c.h.b16 %v4100
          %v5148 = vunpack.c.l.b16 %v4101
          %v5149 = vunpack.c.h.b16 %v4101
          %v5150 = vunpack.c.l.b16 %v4102
          %v5151 = vunpack.c.h.b16 %v4102
          %v5152 = vunpack.c.l.b16 %v4103
          %v5153 = vunpack.c.h.b16 %v4103
          %v5154 = vunpack.c.l.b16 %v4104
          %v5155 = vunpack.c.h.b16 %v4104
          %v5156 = vunpack.c.l.b16 %v4105
          %v5157 = vunpack.c.h.b16 %v4105
          %v5158 = vunpack.c.l.b16 %v4106
          %v5159 = vunpack.c.h.b16 %v4106
          %v5160 = vunpack.c.l.b16 %v4107
          %v5161 = vunpack.c.h.b16 %v4107
          %v5162 = vunpack.c.l.b16 %v4108
          %v5163 = vunpack.c.h.b16 %v4108
          %v5164 = vunpack.c.l.b16 %v4109
          %v5165 = vunpack.c.h.b16 %v4109
          %v5166 = vunpack.c.l.b16 %v4110
          %v5167 = vunpack.c.h.b16 %v4110
          %v5168 = vunpack.c.l.b16 %v4111
          %v5169 = vunpack.c.h.b16 %v4111
          %v5170 = vunpack.c.l.b16 %v4112
          %v5171 = vunpack.c.h.b16 %v4112
          %v5172 = vunpack.c.l.b16 %v4113
          %v5173 = vunpack.c.h.b16 %v4113
          %v5174 = vunpack.c.l.b16 %v4114
          %v5175 = vunpack.c.h.b16 %v4114
          %v5176 = vunpack.c.l.b16 %v4115
          %v5177 = vunpack.c.h.b16 %v4115
          %v5178 = vunpack.c.l.b16 %v4116
          %v5179 = vunpack.c.h.b16 %v4116
          %v5180 = vunpack.c.l.b16 %v4117
          %v5181 = vunpack.c.h.b16 %v4117
          %v5182 = vunpack.c.l.b16 %v4118
          %v5183 = vunpack.c.h.b16 %v4118
          %v5184 = vunpack.c.l.b16 %v4119
          %v5185 = vunpack.c.h.b16 %v4119
          %v5186 = vunpack.c.l.b16 %v4120
          %v5187 = vunpack.c.h.b16 %v4120
          %v5188 = vunpack.c.l.b16 %v4121
          %v5189 = vunpack.c.h.b16 %v4121
          %v5190 = vunpack.c.l.b16 %v4122
          %v5191 = vunpack.c.h.b16 %v4122
          %v5192 = vunpack.c.l.b16 %v4123
          %v5193 = vunpack.c.h.b16 %v4123
          %v5194 = vunpack.c.l.b16 %v4124
          %v5195 = vunpack.c.h.b16 %v4124
          %v5196 = vunpack.c.l.b16 %v4125
          %v5197 = vunpack.c.h.b16 %v4125
          %v5198 = vunpack.c.l.b16 %v4126
          %v5199 = vunpack.c.h.b16 %v4126
          %v5200 = vunpack.c.l.b16 %v4127
          %v5201 = vunpack.c.h.b16 %v4127
          %v5202 = vunpack.c.l.b16 %v4128
          %v5203 = vunpack.c.h.b16 %v4128
          %v5204 = vunpack.c.l.b16 %v4129
          %v5205 = vunpack.c.h.b16 %v4129
          %v5206 = vunpack.c.l.b16 %v4130
          %v5207 = vunpack.c.h.b16 %v4130
          %v5208 = vunpack.c.l.b16 %v4131
          %v5209 = vunpack.c.h.b16 %v4131
          %v5210 = vunpack.c.l.b16 %v4132
          %v5211 = vunpack.c.h.b16 %v4132
          %v5212 = vunpack.c.l.b16 %v4133
          %v5213 = vunpack.c.h.b16 %v4133
          %v5214 = vunpack.c.l.b16 %v4134
          %v5215 = vunpack.c.h.b16 %v4134
          %v5216 = vunpack.c.l.b16 %v4135
          %v5217 = vunpack.c.h.b16 %v4135
          %v5218 = vunpack.c.l.b16 %v4136
          %v5219 = vunpack.c.h.b16 %v4136
          %v5220 = vunpack.c.l.b16 %v4137
          %v5221 = vunpack.c.h.b16 %v4137
          %v5222 = vunpack.c.l.b16 %v4138
          %v5223 = vunpack.c.h.b16 %v4138
          %v5224 = vunpack.c.l.b16 %v4139
          %v5225 = vunpack.c.h.b16 %v4139
          %v5226 = vunpack.c.l.b16 %v4140
          %v5227 = vunpack.c.h.b16 %v4140
          %v5228 = vunpack.c.l.b16 %v4141
          %v5229 = vunpack.c.h.b16 %v4141
          %v5230 = vunpack.c.l.b16 %v4142
          %v5231 = vunpack.c.h.b16 %v4142
          %v5232 = vunpack.c.l.b16 %v4143
          %v5233 = vunpack.c.h.b16 %v4143
          %v5234 = vunpack.c.l.b16 %v4144
          %v5235 = vunpack.c.h.b16 %v4144
          %v5236 = vunpack.c.l.b16 %v4145
          %v5237 = vunpack.c.h.b16 %v4145
          %v5238 = vunpack.c.l.b16 %v4146
          %v5239 = vunpack.c.h.b16 %v4146
          %v5240 = vunpack.c.l.b16 %v4147
          %v5241 = vunpack.c.h.b16 %v4147
          %v5242 = vunpack.c.l.b16 %v4148
          %v5243 = vunpack.c.h.b16 %v4148
          %v5244 = vunpack.c.l.b16 %v4149
          %v5245 = vunpack.c.h.b16 %v4149
          %v5246 = vunpack.c.l.b16 %v4150
          %v5247 = vunpack.c.h.b16 %v4150
          %v5248 = vunpack.c.l.b16 %v4151
          %v5249 = vunpack.c.h.b16 %v4151
          %v5250 = vunpack.c.l.b16 %v4152
          %v5251 = vunpack.c.h.b16 %v4152
          %v5252 = vunpack.c.l.b16 %v4153
          %v5253 = vunpack.c.h.b16 %v4153
          %v5254 = vunpack.c.l.b16 %v4154
          %v5255 = vunpack.c.h.b16 %v4154
          %v5256 = vunpack.c.l.b16 %v4155
          %v5257 = vunpack.c.h.b16 %v4155
          %v5258 = vunpack.c.l.b16 %v4156
          %v5259 = vunpack.c.h.b16 %v4156
          %v5260 = vunpack.c.l.b16 %v4157
          %v5261 = vunpack.c.h.b16 %v4157
          %v5262 = vunpack.c.l.b16 %v4158
          %v5263 = vunpack.c.h.b16 %v4158
          %v5264 = vunpack.c.l.b16 %v4159
          %v5265 = vunpack.c.h.b16 %v4159
          %v5266 = vunpack.c.l.b16 %v4160
          %v5267 = vunpack.c.h.b16 %v4160
          %v5268 = vunpack.c.l.b16 %v4161
          %v5269 = vunpack.c.h.b16 %v4161
          %v5270 = vunpack.c.l.b16 %v4162
          %v5271 = vunpack.c.h.b16 %v4162
          %v5272 = vunpack.c.l.b16 %v4163
          %v5273 = vunpack.c.h.b16 %v4163
          %v5274 = vunpack.c.l.b16 %v4164
          %v5275 = vunpack.c.h.b16 %v4164
          %v5276 = vunpack.c.l.b16 %v4165
          %v5277 = vunpack.c.h.b16 %v4165
          %v5278 = vunpack.c.l.b16 %v4166
          %v5279 = vunpack.c.h.b16 %v4166
          %v5280 = vunpack.c.l.b16 %v4167
          %v5281 = vunpack.c.h.b16 %v4167
          %v5282 = vunpack.c.l.b16 %v4168
          %v5283 = vunpack.c.h.b16 %v4168
          %v5284 = vunpack.c.l.b16 %v4169
          %v5285 = vunpack.c.h.b16 %v4169
          %v5286 = vunpack.c.l.b16 %v4170
          %v5287 = vunpack.c.h.b16 %v4170
          %v5288 = vunpack.c.l.b16 %v4171
          %v5289 = vunpack.c.h.b16 %v4171
          %v5290 = vunpack.c.l.b16 %v4172
          %v5291 = vunpack.c.h.b16 %v4172
          %v5292 = vunpack.c.l.b16 %v4173
          %v5293 = vunpack.c.h.b16 %v4173
          %v5294 = vunpack.c.l.b16 %v4174
          %v5295 = vunpack.c.h.b16 %v4174
          %v5296 = vunpack.c.l.b16 %v4175
          %v5297 = vunpack.c.h.b16 %v4175
          %v5298 = vunpack.c.l.b16 %v4176
          %v5299 = vunpack.c.h.b16 %v4176
          %v5300 = vunpack.c.l.b16 %v4177
          %v5301 = vunpack.c.h.b16 %v4177
          %v5302 = vunpack.c.l.b16 %v4178
          %v5303 = vunpack.c.h.b16 %v4178
          %v5304 = vunpack.c.l.b16 %v4179
          %v5305 = vunpack.c.h.b16 %v4179
          %v5306 = vunpack.c.l.b16 %v4180
          %v5307 = vunpack.c.h.b16 %v4180
          %v5308 = vunpack.c.l.b16 %v4181
          %v5309 = vunpack.c.h.b16 %v4181
          %v5310 = vunpack.c.l.b16 %v4182
          %v5311 = vunpack.c.h.b16 %v4182
          %v5312 = vunpack.c.l.b16 %v4183
          %v5313 = vunpack.c.h.b16 %v4183
          %v5314 = vunpack.c.l.b16 %v4184
          %v5315 = vunpack.c.h.b16 %v4184
          %v5316 = vunpack.c.l.b16 %v4185
          %v5317 = vunpack.c.h.b16 %v4185
          %v5318 = vunpack.c.l.b16 %v4186
          %v5319 = vunpack.c.h.b16 %v4186
          %v5320 = vunpack.c.l.b16 %v4187
          %v5321 = vunpack.c.h.b16 %v4187
          %v5322 = vunpack.c.l.b16 %v4188
          %v5323 = vunpack.c.h.b16 %v4188
          %v5324 = vunpack.c.l.b16 %v4189
          %v5325 = vunpack.c.h.b16 %v4189
          %v5326 = vunpack.c.l.b16 %v4190
          %v5327 = vunpack.c.h.b16 %v4190
          %v5328 = vunpack.c.l.b16 %v4191
          %v5329 = vunpack.c.h.b16 %v4191
          %v5330 = vunpack.c.l.b16 %v4192
          %v5331 = vunpack.c.h.b16 %v4192
          %v5332 = vunpack.c.l.b16 %v4193
          %v5333 = vunpack.c.h.b16 %v4193
          %v5334 = vunpack.c.l.b16 %v4194
          %v5335 = vunpack.c.h.b16 %v4194
          %v5336 = vunpack.c.l.b16 %v4195
          %v5337 = vunpack.c.h.b16 %v4195
          %v5338 = vunpack.c.l.b16 %v4196
          %v5339 = vunpack.c.h.b16 %v4196
          %v5340 = vunpack.c.l.b16 %v4197
          %v5341 = vunpack.c.h.b16 %v4197
          %v5342 = vunpack.c.l.b16 %v4198
          %v5343 = vunpack.c.h.b16 %v4198
          %v5344 = vunpack.c.l.b16 %v4199
          %v5345 = vunpack.c.h.b16 %v4199
          %v5346 = vunpack.c.l.b16 %v4200
          %v5347 = vunpack.c.h.b16 %v4200
          %v5348 = vunpack.c.l.b16 %v4201
          %v5349 = vunpack.c.h.b16 %v4201
          %v5350 = vunpack.c.l.b16 %v4202
          %v5351 = vunpack.c.h.b16 %v4202
          %v5352 = vunpack.c.l.b16 %v4203
          %v5353 = vunpack.c.h.b16 %v4203
          %v5354 = vunpack.c.l.b16 %v4204
          %v5355 = vunpack.c.h.b16 %v4204
          %v5356 = vunpack.c.l.b16 %v4205
          %v5357 = vunpack.c.h.b16 %v4205
          %v5358 = vunpack.c.l.b16 %v4206
          %v5359 = vunpack.c.h.b16 %v4206
          %v5360 = vunpack.c.l.b16 %v4207
          %v5361 = vunpack.c.h.b16 %v4207
          %v5362 = vunpack.c.l.b16 %v4208
          %v5363 = vunpack.c.h.b16 %v4208
          %v5364 = vunpack.c.l.b16 %v4209
          %v5365 = vunpack.c.h.b16 %v4209
          %v5366 = vunpack.c.l.b16 %v4210
          %v5367 = vunpack.c.h.b16 %v4210
          %v5368 = vunpack.c.l.b16 %v4211
          %v5369 = vunpack.c.h.b16 %v4211
          %v5370 = vunpack.c.l.b16 %v4212
          %v5371 = vunpack.c.h.b16 %v4212
          %v5372 = vunpack.c.l.b16 %v4213
          %v5373 = vunpack.c.h.b16 %v4213
          %v5374 = vunpack.c.l.b16 %v4214
          %v5375 = vunpack.c.h.b16 %v4214
          %v5376 = vunpack.c.l.b16 %v4215
          %v5377 = vunpack.c.h.b16 %v4215
          %v5378 = vunpack.c.l.b16 %v4216
          %v5379 = vunpack.c.h.b16 %v4216
          %v5380 = vunpack.c.l.b16 %v4217
          %v5381 = vunpack.c.h.b16 %v4217
          %v5382 = vunpack.c.l.b16 %v4218
          %v5383 = vunpack.c.h.b16 %v4218
          %v5384 = vunpack.c.l.b16 %v4219
          %v5385 = vunpack.c.h.b16 %v4219
          %v5386 = vunpack.c.l.b16 %v4220
          %v5387 = vunpack.c.h.b16 %v4220
          %v5388 = vunpack.c.l.b16 %v4221
          %v5389 = vunpack.c.h.b16 %v4221
          %v5390 = vunpack.c.l.b16 %v4222
          %v5391 = vunpack.c.h.b16 %v4222
          %v5392 = vunpack.c.l.b16 %v4223
          %v5393 = vunpack.c.h.b16 %v4223
          %v5394 = vunpack.c.l.b16 %v4224
          %v5395 = vunpack.c.h.b16 %v4224
          %v5396 = vunpack.c.l.b16 %v4225
          %v5397 = vunpack.c.h.b16 %v4225
          %v5398 = vunpack.c.l.b16 %v4226
          %v5399 = vunpack.c.h.b16 %v4226
          %v5400 = vunpack.c.l.b16 %v4227
          %v5401 = vunpack.c.h.b16 %v4227
          %v5402 = vunpack.c.l.b16 %v4228
          %v5403 = vunpack.c.h.b16 %v4228
          %v5404 = vunpack.c.l.b16 %v4229
          %v5405 = vunpack.c.h.b16 %v4229
          %v5406 = vunpack.c.l.b16 %v4230
          %v5407 = vunpack.c.h.b16 %v4230
          %v5408 = vunpack.c.l.b16 %v4231
          %v5409 = vunpack.c.h.b16 %v4231
          %v5410 = vunpack.c.l.b16 %v4232
          %v5411 = vunpack.c.h.b16 %v4232
          %v5412 = vunpack.c.l.b16 %v4233
          %v5413 = vunpack.c.h.b16 %v4233
          %v5414 = vunpack.c.l.b16 %v4234
          %v5415 = vunpack.c.h.b16 %v4234
          %v5416 = vunpack.c.l.b16 %v4235
          %v5417 = vunpack.c.h.b16 %v4235
          %v5418 = vunpack.c.l.b16 %v4236
          %v5419 = vunpack.c.h.b16 %v4236
          %v5420 = vunpack.c.l.b16 %v4237
          %v5421 = vunpack.c.h.b16 %v4237
          %v5422 = vunpack.c.l.b16 %v4238
          %v5423 = vunpack.c.h.b16 %v4238
          %v5424 = vunpack.c.l.b16 %v4239
          %v5425 = vunpack.c.h.b16 %v4239
          %v5426 = vunpack.c.l.b16 %v4240
          %v5427 = vunpack.c.h.b16 %v4240
          %v5428 = vunpack.c.l.b16 %v4241
          %v5429 = vunpack.c.h.b16 %v4241
          %v5430 = vunpack.c.l.b16 %v4242
          %v5431 = vunpack.c.h.b16 %v4242
          %v5432 = vunpack.c.l.b16 %v4243
          %v5433 = vunpack.c.h.b16 %v4243
          %v5434 = vunpack.c.l.b16 %v4244
          %v5435 = vunpack.c.h.b16 %v4244
          %v5436 = vunpack.c.l.b16 %v4245
          %v5437 = vunpack.c.h.b16 %v4245
          %v5438 = vunpack.c.l.b16 %v4246
          %v5439 = vunpack.c.h.b16 %v4246
          %v5440 = vunpack.c.l.b16 %v4247
          %v5441 = vunpack.c.h.b16 %v4247
          %v5442 = vunpack.c.l.b16 %v4248
          %v5443 = vunpack.c.h.b16 %v4248
          %v5444 = vunpack.c.l.b16 %v4249
          %v5445 = vunpack.c.h.b16 %v4249
          %v5446 = vunpack.c.l.b16 %v4250
          %v5447 = vunpack.c.h.b16 %v4250
          %v5448 = vunpack.c.l.b16 %v4251
          %v5449 = vunpack.c.h.b16 %v4251
          %v5450 = vunpack.c.l.b16 %v4252
          %v5451 = vunpack.c.h.b16 %v4252
          %v5452 = vunpack.c.l.b16 %v4253
          %v5453 = vunpack.c.h.b16 %v4253
          %v5454 = vunpack.c.l.b16 %v4254
          %v5455 = vunpack.c.h.b16 %v4254
          %v5456 = vunpack.c.l.b16 %v4255
          %v5457 = vunpack.c.h.b16 %v4255
          %v5458 = vunpack.c.l.b16 %v4256
          %v5459 = vunpack.c.h.b16 %v4256
          %v5460 = vunpack.c.l.b16 %v4257
          %v5461 = vunpack.c.h.b16 %v4257
          %v5462 = vunpack.c.l.b16 %v4258
          %v5463 = vunpack.c.h.b16 %v4258
          %v5464 = vunpack.c.l.b16 %v4259
          %v5465 = vunpack.c.h.b16 %v4259
          %v5466 = vunpack.c.l.b16 %v4260
          %v5467 = vunpack.c.h.b16 %v4260
          %v5468 = vunpack.c.l.b16 %v4261
          %v5469 = vunpack.c.h.b16 %v4261
          %v5470 = vunpack.c.l.b16 %v4262
          %v5471 = vunpack.c.h.b16 %v4262
          %v5472 = vunpack.c.l.b16 %v4263
          %v5473 = vunpack.c.h.b16 %v4263
          %v5474 = vunpack.c.l.b16 %v4264
          %v5475 = vunpack.c.h.b16 %v4264
          %v5476 = vunpack.c.l.b16 %v4265
          %v5477 = vunpack.c.h.b16 %v4265
          %v5478 = vunpack.c.l.b16 %v4266
          %v5479 = vunpack.c.h.b16 %v4266
          %v5480 = vunpack.c.l.b16 %v4267
          %v5481 = vunpack.c.h.b16 %v4267
          %v5482 = vunpack.c.l.b16 %v4268
          %v5483 = vunpack.c.h.b16 %v4268
          %v5484 = vunpack.c.l.b16 %v4269
          %v5485 = vunpack.c.h.b16 %v4269
          %v5486 = vunpack.c.l.b16 %v4270
          %v5487 = vunpack.c.h.b16 %v4270
          %v5488 = vunpack.c.l.b16 %v4271
          %v5489 = vunpack.c.h.b16 %v4271
          %v5490 = vunpack.c.l.b16 %v4272
          %v5491 = vunpack.c.h.b16 %v4272
          %v5492 = vunpack.c.l.b16 %v4273
          %v5493 = vunpack.c.h.b16 %v4273
          %v5494 = vunpack.c.l.b16 %v4274
          %v5495 = vunpack.c.h.b16 %v4274
          %v5496 = vunpack.c.l.b16 %v4275
          %v5497 = vunpack.c.h.b16 %v4275
          %v5498 = vunpack.c.l.b16 %v4276
          %v5499 = vunpack.c.h.b16 %v4276
          %v5500 = vunpack.c.l.b16 %v4277
          %v5501 = vunpack.c.h.b16 %v4277
          %v5502 = vunpack.c.l.b16 %v4278
          %v5503 = vunpack.c.h.b16 %v4278
          %v5504 = vunpack.c.l.b16 %v4279
          %v5505 = vunpack.c.h.b16 %v4279
          %v5506 = vunpack.c.l.b16 %v4280
          %v5507 = vunpack.c.h.b16 %v4280
          %v5508 = vunpack.c.l.b16 %v4281
          %v5509 = vunpack.c.h.b16 %v4281
          %v5510 = vunpack.c.l.b16 %v4282
          %v5511 = vunpack.c.h.b16 %v4282
          %v5512 = vunpack.c.l.b16 %v4283
          %v5513 = vunpack.c.h.b16 %v4283
          %v5514 = vunpack.c.l.b16 %v4284
          %v5515 = vunpack.c.h.b16 %v4284
          %v5516 = vunpack.c.l.b16 %v4285
          %v5517 = vunpack.c.h.b16 %v4285
          %v5518 = vunpack.c.l.b16 %v4286
          %v5519 = vunpack.c.h.b16 %v4286
          %v5520 = vunpack.c.l.b16 %v4287
          %v5521 = vunpack.c.h.b16 %v4287
          %v5522 = vunpack.c.l.b16 %v4288
          %v5523 = vunpack.c.h.b16 %v4288
          %v5524 = vunpack.c.l.b16 %v4289
          %v5525 = vunpack.c.h.b16 %v4289
          %v5526 = vunpack.c.l.b16 %v4290
          %v5527 = vunpack.c.h.b16 %v4290
          %v5528 = vunpack.c.l.b16 %v4291
          %v5529 = vunpack.c.h.b16 %v4291
          %v5530 = vunpack.c.l.b16 %v4292
          %v5531 = vunpack.c.h.b16 %v4292
          %v5532 = vunpack.c.l.b16 %v4293
          %v5533 = vunpack.c.h.b16 %v4293
          %v5534 = vunpack.c.l.b16 %v4294
          %v5535 = vunpack.c.h.b16 %v4294
          %v5536 = vunpack.c.l.b16 %v4295
          %v5537 = vunpack.c.h.b16 %v4295
          %v5538 = vunpack.c.l.b16 %v4296
          %v5539 = vunpack.c.h.b16 %v4296
          %v5540 = vunpack.c.l.b16 %v4297
          %v5541 = vunpack.c.h.b16 %v4297
          %v5542 = vunpack.c.l.b16 %v4298
          %v5543 = vunpack.c.h.b16 %v4298
          %v5544 = vunpack.c.l.b16 %v4299
          %v5545 = vunpack.c.h.b16 %v4299
          %v5546 = vunpack.c.l.b16 %v4300
          %v5547 = vunpack.c.h.b16 %v4300
          %v5548 = vunpack.c.l.b16 %v4301
          %v5549 = vunpack.c.h.b16 %v4301
          %v5550 = vunpack.c.l.b16 %v4302
          %v5551 = vunpack.c.h.b16 %v4302
          %v5552 = vunpack.c.l.b16 %v4303
          %v5553 = vunpack.c.h.b16 %v4303
          %v5554 = vunpack.c.l.b16 %v4304
          %v5555 = vunpack.c.h.b16 %v4304
          %v5556 = vunpack.c.l.b16 %v4305
          %v5557 = vunpack.c.h.b16 %v4305
          %v5558 = vunpack.c.l.b16 %v4306
          %v5559 = vunpack.c.h.b16 %v4306
          %v5560 = vunpack.c.l.b16 %v4307
          %v5561 = vunpack.c.h.b16 %v4307
          %v5562 = vunpack.c.l.b16 %v4308
          %v5563 = vunpack.c.h.b16 %v4308
          %v5564 = vunpack.c.l.b16 %v4309
          %v5565 = vunpack.c.h.b16 %v4309
          %v5566 = vunpack.c.l.b16 %v4310
          %v5567 = vunpack.c.h.b16 %v4310
          %v5568 = vunpack.c.l.b16 %v4311
          %v5569 = vunpack.c.h.b16 %v4311
          %v5570 = vunpack.c.l.b16 %v4312
          %v5571 = vunpack.c.h.b16 %v4312
          %v5572 = vunpack.c.l.b16 %v4313
          %v5573 = vunpack.c.h.b16 %v4313
          %v5574 = vunpack.c.l.b16 %v4314
          %v5575 = vunpack.c.h.b16 %v4314
          %v5576 = vunpack.c.l.b16 %v4315
          %v5577 = vunpack.c.h.b16 %v4315
          %v5578 = vunpack.c.l.b16 %v4316
          %v5579 = vunpack.c.h.b16 %v4316
          %v5580 = vunpack.c.l.b16 %v4317
          %v5581 = vunpack.c.h.b16 %v4317
          %v5582 = vunpack.c.l.b16 %v4318
          %v5583 = vunpack.c.h.b16 %v4318
          %v5584 = vunpack.c.l.b16 %v4319
          %v5585 = vunpack.c.h.b16 %v4319
          %v5586 = vunpack.c.l.b16 %v4320
          %v5587 = vunpack.c.h.b16 %v4320
          %v5588 = vunpack.c.l.b16 %v4321
          %v5589 = vunpack.c.h.b16 %v4321
          %v5590 = vunpack.c.l.b16 %v4322
          %v5591 = vunpack.c.h.b16 %v4322
          %v5592 = vunpack.c.l.b16 %v4323
          %v5593 = vunpack.c.h.b16 %v4323
          %v5594 = vunpack.c.l.b16 %v4324
          %v5595 = vunpack.c.h.b16 %v4324
          %v5596 = vunpack.c.l.b16 %v4325
          %v5597 = vunpack.c.h.b16 %v4325
          %v5598 = vunpack.c.l.b16 %v4326
          %v5599 = vunpack.c.h.b16 %v4326
          %v5600 = vunpack.c.l.b16 %v4327
          %v5601 = vunpack.c.h.b16 %v4327
          %v5602 = vunpack.c.l.b16 %v4328
          %v5603 = vunpack.c.h.b16 %v4328
          %v5604 = vunpack.c.l.b16 %v4329
          %v5605 = vunpack.c.h.b16 %v4329
          %v5606 = vunpack.c.l.b16 %v4330
          %v5607 = vunpack.c.h.b16 %v4330
          %v5608 = vunpack.c.l.b16 %v4331
          %v5609 = vunpack.c.h.b16 %v4331
          %v5610 = vunpack.c.l.b16 %v4332
          %v5611 = vunpack.c.h.b16 %v4332
          %v5612 = vunpack.c.l.b16 %v4333
          %v5613 = vunpack.c.h.b16 %v4333
          %v5614 = vunpack.c.l.b16 %v4334
          %v5615 = vunpack.c.h.b16 %v4334
          %v5616 = vunpack.c.l.b16 %v4335
          %v5617 = vunpack.c.h.b16 %v4335
          %v5618 = vunpack.c.l.b16 %v4336
          %v5619 = vunpack.c.h.b16 %v4336
          %v5620 = vunpack.c.l.b16 %v4337
          %v5621 = vunpack.c.h.b16 %v4337
          %v5622 = vunpack.c.l.b16 %v4338
          %v5623 = vunpack.c.h.b16 %v4338
          %v5624 = vunpack.c.l.b16 %v4339
          %v5625 = vunpack.c.h.b16 %v4339
          %v5626 = vunpack.c.l.b16 %v4340
          %v5627 = vunpack.c.h.b16 %v4340
          %v5628 = vunpack.c.l.b16 %v4341
          %v5629 = vunpack.c.h.b16 %v4341
          %v5630 = vunpack.c.l.b16 %v4342
          %v5631 = vunpack.c.h.b16 %v4342
          %v5632 = vunpack.c.l.b16 %v4343
          %v5633 = vunpack.c.h.b16 %v4343
          %v5634 = vunpack.c.l.b16 %v4344
          %v5635 = vunpack.c.h.b16 %v4344
          %v5636 = vunpack.c.l.b16 %v4345
          %v5637 = vunpack.c.h.b16 %v4345
          %v5638 = vunpack.c.l.b16 %v4346
          %v5639 = vunpack.c.h.b16 %v4346
          %v5640 = vunpack.c.l.b16 %v4347
          %v5641 = vunpack.c.h.b16 %v4347
          %v5642 = vunpack.c.l.b16 %v4348
          %v5643 = vunpack.c.h.b16 %v4348
          %v5644 = vunpack.c.l.b16 %v4349
          %v5645 = vunpack.c.h.b16 %v4349
          %v5646 = vunpack.c.l.b16 %v4350
          %v5647 = vunpack.c.h.b16 %v4350
          %v5648 = vunpack.c.l.b16 %v4351
          %v5649 = vunpack.c.h.b16 %v4351
          %v5650 = vunpack.c.l.b16 %v4352
          %v5651 = vunpack.c.h.b16 %v4352
          %v5652 = vunpack.c.l.b16 %v4353
          %v5653 = vunpack.c.h.b16 %v4353
          %v5654 = vunpack.c.l.b16 %v4354
          %v5655 = vunpack.c.h.b16 %v4354
          %v5656 = vunpack.c.l.b16 %v4355
          %v5657 = vunpack.c.h.b16 %v4355
          %v5658 = vunpack.c.l.b16 %v4356
          %v5659 = vunpack.c.h.b16 %v4356
          %v5660 = vunpack.c.l.b16 %v4357
          %v5661 = vunpack.c.h.b16 %v4357
          %v5662 = vunpack.c.l.b16 %v4358
          %v5663 = vunpack.c.h.b16 %v4358
          %v5664 = vunpack.c.l.b16 %v4359
          %v5665 = vunpack.c.h.b16 %v4359
          %v5666 = vunpack.c.l.b16 %v4360
          %v5667 = vunpack.c.h.b16 %v4360
          %v5668 = vunpack.c.l.b16 %v4361
          %v5669 = vunpack.c.h.b16 %v4361
          %v5670 = vunpack.c.l.b16 %v4362
          %v5671 = vunpack.c.h.b16 %v4362
          %v5672 = vunpack.c.l.b16 %v4363
          %v5673 = vunpack.c.h.b16 %v4363
          %v5674 = vunpack.c.l.b16 %v4364
          %v5675 = vunpack.c.h.b16 %v4364
          %v5676 = vunpack.c.l.b16 %v4365
          %v5677 = vunpack.c.h.b16 %v4365
          %v5678 = vunpack.c.l.b16 %v4366
          %v5679 = vunpack.c.h.b16 %v4366
          %v5680 = vunpack.c.l.b16 %v4367
          %v5681 = vunpack.c.h.b16 %v4367
          %v5682 = vunpack.c.l.b16 %v4368
          %v5683 = vunpack.c.h.b16 %v4368
          %v5684 = vunpack.c.l.b16 %v4369
          %v5685 = vunpack.c.h.b16 %v4369
          %v5686 = vunpack.c.l.b16 %v4370
          %v5687 = vunpack.c.h.b16 %v4370
          %v5688 = vunpack.c.l.b16 %v4371
          %v5689 = vunpack.c.h.b16 %v4371
          %v5690 = vunpack.c.l.b16 %v4372
          %v5691 = vunpack.c.h.b16 %v4372
          %v5692 = vunpack.c.l.b16 %v4373
          %v5693 = vunpack.c.h.b16 %v4373
          %v5694 = vunpack.c.l.b16 %v4374
          %v5695 = vunpack.c.h.b16 %v4374
          %v5696 = vunpack.c.l.b16 %v4375
          %v5697 = vunpack.c.h.b16 %v4375
          %v5698 = vunpack.c.l.b16 %v4376
          %v5699 = vunpack.c.h.b16 %v4376
          %v5700 = vunpack.c.l.b16 %v4377
          %v5701 = vunpack.c.h.b16 %v4377
          %v5702 = vunpack.c.l.b16 %v4378
          %v5703 = vunpack.c.h.b16 %v4378
          %v5704 = vunpack.c.l.b16 %v4379
          %v5705 = vunpack.c.h.b16 %v4379
          %v5706 = vunpack.c.l.b16 %v4380
          %v5707 = vunpack.c.h.b16 %v4380
          %v5708 = vunpack.c.l.b16 %v4381
          %v5709 = vunpack.c.h.b16 %v4381
          %v5710 = vunpack.c.l.b16 %v4382
          %v5711 = vunpack.c.h.b16 %v4382
          %v5712 = vunpack.c.l.b16 %v4383
          %v5713 = vunpack.c.h.b16 %v4383
          %v5714 = vunpack.c.l.b16 %v4384
          %v5715 = vunpack.c.h.b16 %v4384
          %v5716 = vunpack.c.l.b16 %v4385
          %v5717 = vunpack.c.h.b16 %v4385
          %v5718 = vunpack.c.l.b16 %v4386
          %v5719 = vunpack.c.h.b16 %v4386
          %v5720 = vunpack.c.l.b16 %v4387
          %v5721 = vunpack.c.h.b16 %v4387
          %v5722 = vunpack.c.l.b16 %v4388
          %v5723 = vunpack.c.h.b16 %v4388
          %v5724 = vunpack.c.l.b16 %v4389
          %v5725 = vunpack.c.h.b16 %v4389
          %v5726 = vunpack.c.l.b16 %v4390
          %v5727 = vunpack.c.h.b16 %v4390
          %v5728 = vunpack.c.l.b16 %v4391
          %v5729 = vunpack.c.h.b16 %v4391
          %v5730 = vunpack.c.l.b16 %v4392
          %v5731 = vunpack.c.h.b16 %v4392
          %v5732 = vunpack.c.l.b16 %v4393
          %v5733 = vunpack.c.h.b16 %v4393
          %v5734 = vunpack.c.l.b16 %v4394
          %v5735 = vunpack.c.h.b16 %v4394
          %v5736 = vunpack.c.l.b16 %v4395
          %v5737 = vunpack.c.h.b16 %v4395
          %v5738 = vunpack.c.l.b16 %v4396
          %v5739 = vunpack.c.h.b16 %v4396
          %v5740 = vunpack.c.l.b16 %v4397
          %v5741 = vunpack.c.h.b16 %v4397
          %v5742 = vunpack.c.l.b16 %v4398
          %v5743 = vunpack.c.h.b16 %v4398
          %v5744 = vunpack.c.l.b16 %v4399
          %v5745 = vunpack.c.h.b16 %v4399
          %v5746 = vunpack.c.l.b16 %v4400
          %v5747 = vunpack.c.h.b16 %v4400
          %v5748 = vunpack.c.l.b16 %v4401
          %v5749 = vunpack.c.h.b16 %v4401
          %v5750 = vunpack.c.l.b16 %v4402
          %v5751 = vunpack.c.h.b16 %v4402
          %v5752 = vunpack.c.l.b16 %v4403
          %v5753 = vunpack.c.h.b16 %v4403
          %v5754 = vunpack.c.l.b16 %v4404
          %v5755 = vunpack.c.h.b16 %v4404
          %v5756 = vunpack.c.l.b16 %v4405
          %v5757 = vunpack.c.h.b16 %v4405
          %v5758 = vunpack.c.l.b16 %v4406
          %v5759 = vunpack.c.h.b16 %v4406
          %v5760 = vunpack.c.l.b16 %v4407
          %v5761 = vunpack.c.h.b16 %v4407
          %v5762 = vunpack.c.l.b16 %v4408
          %v5763 = vunpack.c.h.b16 %v4408
          %v5764 = vunpack.c.l.b16 %v4409
          %v5765 = vunpack.c.h.b16 %v4409
          %v5766 = vunpack.c.l.b16 %v4410
          %v5767 = vunpack.c.h.b16 %v4410
          %v5768 = vunpack.c.l.b16 %v4411
          %v5769 = vunpack.c.h.b16 %v4411
          %v5770 = vunpack.c.l.b16 %v4412
          %v5771 = vunpack.c.h.b16 %v4412
          %v5772 = vunpack.c.l.b16 %v4413
          %v5773 = vunpack.c.h.b16 %v4413
          %v5774 = vunpack.c.l.b16 %v4414
          %v5775 = vunpack.c.h.b16 %v4414
          %v5776 = vunpack.c.l.b16 %v4415
          %v5777 = vunpack.c.h.b16 %v4415
          %v5778 = vunpack.c.l.b16 %v4416
          %v5779 = vunpack.c.h.b16 %v4416
          %v5780 = vunpack.c.l.b16 %v4417
          %v5781 = vunpack.c.h.b16 %v4417
          %v5782 = vunpack.c.l.b16 %v4418
          %v5783 = vunpack.c.h.b16 %v4418
          %v5784 = vunpack.c.l.b16 %v4419
          %v5785 = vunpack.c.h.b16 %v4419
          %v5786 = vunpack.c.l.b16 %v4420
          %v5787 = vunpack.c.h.b16 %v4420
          %v5788 = vunpack.c.l.b16 %v4421
          %v5789 = vunpack.c.h.b16 %v4421
          %v5790 = vunpack.c.l.b16 %v4422
          %v5791 = vunpack.c.h.b16 %v4422
          %v5792 = vunpack.c.l.b16 %v4423
          %v5793 = vunpack.c.h.b16 %v4423
          %v5794 = vunpack.c.l.b16 %v4424
          %v5795 = vunpack.c.h.b16 %v4424
          %v5796 = vunpack.c.l.b16 %v4425
          %v5797 = vunpack.c.h.b16 %v4425
          %v5798 = vunpack.c.l.b16 %v4426
          %v5799 = vunpack.c.h.b16 %v4426
          %v5800 = vunpack.c.l.b16 %v4427
          %v5801 = vunpack.c.h.b16 %v4427
          %v5802 = vunpack.c.l.b16 %v4428
          %v5803 = vunpack.c.h.b16 %v4428
          %v5804 = vunpack.c.l.b16 %v4429
          %v5805 = vunpack.c.h.b16 %v4429
          %v5806 = vunpack.c.l.b16 %v4430
          %v5807 = vunpack.c.h.b16 %v4430
          %v5808 = vunpack.c.l.b16 %v4431
          %v5809 = vunpack.c.h.b16 %v4431
          %v5810 = vunpack.c.l.b16 %v4432
          %v5811 = vunpack.c.h.b16 %v4432
          %v5812 = vunpack.c.l.b16 %v4433
          %v5813 = vunpack.c.h.b16 %v4433
          %v5814 = vunpack.c.l.b16 %v4434
          %v5815 = vunpack.c.h.b16 %v4434
          %v5816 = vunpack.c.l.b16 %v4435
          %v5817 = vunpack.c.h.b16 %v4435
          %v5818 = vunpack.c.l.b16 %v4436
          %v5819 = vunpack.c.h.b16 %v4436
          %v5820 = vunpack.c.l.b16 %v4437
          %v5821 = vunpack.c.h.b16 %v4437
          %v5822 = vunpack.c.l.b16 %v4438
          %v5823 = vunpack.c.h.b16 %v4438
          %v5824 = vunpack.c.l.b16 %v4439
          %v5825 = vunpack.c.h.b16 %v4439
          %v5826 = vunpack.c.l.b16 %v4440
          %v5827 = vunpack.c.h.b16 %v4440
          %v5828 = vunpack.c.l.b16 %v4441
          %v5829 = vunpack.c.h.b16 %v4441
          %v5830 = vunpack.c.l.b16 %v4442
          %v5831 = vunpack.c.h.b16 %v4442
          %v5832 = vunpack.c.l.b16 %v4443
          %v5833 = vunpack.c.h.b16 %v4443
          %v5834 = vunpack.c.l.b16 %v4444
          %v5835 = vunpack.c.h.b16 %v4444
          %v5836 = vunpack.c.l.b16 %v4445
          %v5837 = vunpack.c.h.b16 %v4445
          %v5838 = vunpack.c.l.b16 %v4446
          %v5839 = vunpack.c.h.b16 %v4446
          %v5840 = vunpack.c.l.b16 %v4447
          %v5841 = vunpack.c.h.b16 %v4447
          %v5842 = vunpack.c.l.b16 %v4448
          %v5843 = vunpack.c.h.b16 %v4448
          %v5844 = vunpack.c.l.b16 %v4449
          %v5845 = vunpack.c.h.b16 %v4449
          %v5846 = vunpack.c.l.b16 %v4450
          %v5847 = vunpack.c.h.b16 %v4450
          %v5848 = vunpack.c.l.b16 %v4451
          %v5849 = vunpack.c.h.b16 %v4451
          %v5850 = vunpack.c.l.b16 %v4452
          %v5851 = vunpack.c.h.b16 %v4452
          %v5852 = vunpack.c.l.b16 %v4453
          %v5853 = vunpack.c.h.b16 %v4453
          %v5854 = vunpack.c.l.b16 %v4454
          %v5855 = vunpack.c.h.b16 %v4454
          %v5856 = vunpack.c.l.b16 %v4455
          %v5857 = vunpack.c.h.b16 %v4455
          %v5858 = vunpack.c.l.b16 %v4456
          %v5859 = vunpack.c.h.b16 %v4456
          %v5860 = vunpack.c.l.b16 %v4457
          %v5861 = vunpack.c.h.b16 %v4457
          %v5862 = vunpack.c.l.b16 %v4458
          %v5863 = vunpack.c.h.b16 %v4458
          %v5864 = vunpack.c.l.b16 %v4459
          %v5865 = vunpack.c.h.b16 %v4459
          %v5866 = vunpack.c.l.b16 %v4460
          %v5867 = vunpack.c.h.b16 %v4460
          %v5868 = vunpack.c.l.b16 %v4461
          %v5869 = vunpack.c.h.b16 %v4461
          %v5870 = vunpack.c.l.b16 %v4462
          %v5871 = vunpack.c.h.b16 %v4462
          %v5872 = vunpack.c.l.b16 %v4463
          %v5873 = vunpack.c.h.b16 %v4463
          %v5874 = vunpack.c.l.b16 %v4464
          %v5875 = vunpack.c.h.b16 %v4464
          %v5876 = vunpack.c.l.b16 %v4465
          %v5877 = vunpack.c.h.b16 %v4465
          %v5878 = vunpack.c.l.b16 %v4466
          %v5879 = vunpack.c.h.b16 %v4466
          %v5880 = vunpack.c.l.b16 %v4467
          %v5881 = vunpack.c.h.b16 %v4467
          %v5882 = vunpack.c.l.b16 %v4468
          %v5883 = vunpack.c.h.b16 %v4468
          %v5884 = vunpack.c.l.b16 %v4469
          %v5885 = vunpack.c.h.b16 %v4469
          %v5886 = vunpack.c.l.b16 %v4470
          %v5887 = vunpack.c.h.b16 %v4470
          %v5888 = vunpack.c.l.b16 %v4471
          %v5889 = vunpack.c.h.b16 %v4471
          %v5890 = vunpack.c.l.b16 %v4472
          %v5891 = vunpack.c.h.b16 %v4472
          %v5892 = vunpack.c.l.b16 %v4473
          %v5893 = vunpack.c.h.b16 %v4473
          %v5894 = vunpack.c.l.b16 %v4474
          %v5895 = vunpack.c.h.b16 %v4474
          %v5896 = vunpack.c.l.b16 %v4475
          %v5897 = vunpack.c.h.b16 %v4475
          %v5898 = vunpack.c.l.b16 %v4476
          %v5899 = vunpack.c.h.b16 %v4476
          %v5900 = vunpack.c.l.b16 %v4477
          %v5901 = vunpack.c.h.b16 %v4477
          %v5902 = vunpack.c.l.b16 %v4478
          %v5903 = vunpack.c.h.b16 %v4478
          %v5904 = vunpack.c.l.b16 %v4479
          %v5905 = vunpack.c.h.b16 %v4479
          %v5906 = vunpack.c.l.b16 %v4480
          %v5907 = vunpack.c.h.b16 %v4480
          %v5908 = vunpack.c.l.b16 %v4481
          %v5909 = vunpack.c.h.b16 %v4481
          %v5910 = vunpack.c.l.b16 %v4482
          %v5911 = vunpack.c.h.b16 %v4482
          %v5912 = vunpack.c.l.b16 %v4483
          %v5913 = vunpack.c.h.b16 %v4483
          %v5914 = vunpack.c.l.b16 %v4484
          %v5915 = vunpack.c.h.b16 %v4484
          %v5916 = vunpack.c.l.b16 %v4485
          %v5917 = vunpack.c.h.b16 %v4485
          %v5918 = vunpack.c.l.b16 %v4486
          %v5919 = vunpack.c.h.b16 %v4486
          %v5920 = vunpack.c.l.b16 %v4487
          %v5921 = vunpack.c.h.b16 %v4487
          %v5922 = vunpack.c.l.b16 %v4488
          %v5923 = vunpack.c.h.b16 %v4488
          %v5924 = vunpack.c.l.b16 %v4489
          %v5925 = vunpack.c.h.b16 %v4489
          %v5926 = vunpack.c.l.b16 %v4490
          %v5927 = vunpack.c.h.b16 %v4490
          %v5928 = vunpack.c.l.b16 %v4491
          %v5929 = vunpack.c.h.b16 %v4491
          %v5930 = vunpack.c.l.b16 %v4492
          %v5931 = vunpack.c.h.b16 %v4492
          %v5932 = vunpack.c.l.b16 %v4493
          %v5933 = vunpack.c.h.b16 %v4493
          %v5934 = vunpack.c.l.b16 %v4494
          %v5935 = vunpack.c.h.b16 %v4494
          %v5936 = vunpack.c.l.b16 %v4495
          %v5937 = vunpack.c.h.b16 %v4495
          %v5938 = vunpack.c.l.b16 %v4496
          %v5939 = vunpack.c.h.b16 %v4496
          %v5940 = vunpack.c.l.b16 %v4497
          %v5941 = vunpack.c.h.b16 %v4497
          %v5942 = vunpack.c.l.b16 %v4498
          %v5943 = vunpack.c.h.b16 %v4498
          %v5944 = vunpack.c.l.b16 %v4499
          %v5945 = vunpack.c.h.b16 %v4499
          %v5946 = vunpack.c.l.b16 %v4500
          %v5947 = vunpack.c.h.b16 %v4500
          %v5948 = vunpack.c.l.b16 %v4501
          %v5949 = vunpack.c.h.b16 %v4501
          %v5950 = vunpack.c.l.b16 %v4502
          %v5951 = vunpack.c.h.b16 %v4502
          %v5952 = vunpack.c.l.b16 %v4503
          %v5953 = vunpack.c.h.b16 %v4503
          %v5954 = vunpack.c.l.b16 %v4504
          %v5955 = vunpack.c.h.b16 %v4504
          %v5956 = vunpack.c.l.b16 %v4505
          %v5957 = vunpack.c.h.b16 %v4505
          %v5958 = vunpack.c.l.b16 %v4506
          %v5959 = vunpack.c.h.b16 %v4506
          %v5960 = vunpack.c.l.b16 %v4507
          %v5961 = vunpack.c.h.b16 %v4507
          %v5962 = vunpack.c.l.b16 %v4508
          %v5963 = vunpack.c.h.b16 %v4508
          %v5964 = vunpack.c.l.b16 %v4509
          %v5965 = vunpack.c.h.b16 %v4509
          %v5966 = vunpack.c.l.b16 %v4510
          %v5967 = vunpack.c.h.b16 %v4510
          %v5968 = vunpack.c.l.b16 %v4511
          %v5969 = vunpack.c.h.b16 %v4511
          %v5970 = vunpack.c.l.b16 %v4512
          %v5971 = vunpack.c.h.b16 %v4512
          %v5972 = vunpack.c.l.b16 %v4513
          %v5973 = vunpack.c.h.b16 %v4513
          %v5974 = vunpack.c.l.b16 %v4514
          %v5975 = vunpack.c.h.b16 %v4514
          %v5976 = vunpack.c.l.b16 %v4515
          %v5977 = vunpack.c.h.b16 %v4515
          %v5978 = vunpack.c.l.b16 %v4516
          %v5979 = vunpack.c.h.b16 %v4516
          %v5980 = vunpack.c.l.b16 %v4517
          %v5981 = vunpack.c.h.b16 %v4517
          %v5982 = vunpack.c.l.b16 %v4518
          %v5983 = vunpack.c.h.b16 %v4518
          %v5984 = vunpack.c.l.b16 %v4519
          %v5985 = vunpack.c.h.b16 %v4519
          %v5986 = vunpack.c.l.b16 %v4520
          %v5987 = vunpack.c.h.b16 %v4520
          %v5988 = vunpack.c.l.b16 %v4521
          %v5989 = vunpack.c.h.b16 %v4521
          %v5990 = vunpack.c.l.b16 %v4522
          %v5991 = vunpack.c.h.b16 %v4522
          %v5992 = vunpack.c.l.b16 %v4523
          %v5993 = vunpack.c.h.b16 %v4523
          %v5994 = vunpack.c.l.b16 %v4524
          %v5995 = vunpack.c.h.b16 %v4524
          %v5996 = vunpack.c.l.b16 %v4525
          %v5997 = vunpack.c.h.b16 %v4525
          %v5998 = vunpack.c.l.b16 %v4526
          %v5999 = vunpack.c.h.b16 %v4526
          %v6000 = vunpack.c.l.b16 %v4527
          %v6001 = vunpack.c.h.b16 %v4527
          %v6002 = vunpack.c.l.b16 %v4528
          %v6003 = vunpack.c.h.b16 %v4528
          %v6004 = vunpack.c.l.b16 %v4529
          %v6005 = vunpack.c.h.b16 %v4529
          %v6006 = vunpack.c.l.b16 %v4530
          %v6007 = vunpack.c.h.b16 %v4530
          %v6008 = vunpack.c.l.b16 %v4531
          %v6009 = vunpack.c.h.b16 %v4531
          %v6010 = vunpack.c.l.b16 %v4532
          %v6011 = vunpack.c.h.b16 %v4532
          %v6012 = vunpack.c.l.b16 %v4533
          %v6013 = vunpack.c.h.b16 %v4533
          %v6014 = vunpack.c.l.b16 %v4534
          %v6015 = vunpack.c.h.b16 %v4534
          %v6016 = vunpack.c.l.b16 %v4535
          %v6017 = vunpack.c.h.b16 %v4535
          %v6018 = vunpack.c.l.b16 %v4536
          %v6019 = vunpack.c.h.b16 %v4536
          %v6020 = vunpack.c.l.b16 %v4537
          %v6021 = vunpack.c.h.b16 %v4537
          %v6022 = vunpack.c.l.b16 %v4538
          %v6023 = vunpack.c.h.b16 %v4538
          %v6024 = vunpack.c.l.b16 %v4539
          %v6025 = vunpack.c.h.b16 %v4539
          %v6026 = vunpack.c.l.b16 %v4540
          %v6027 = vunpack.c.h.b16 %v4540
          %v6028 = vunpack.c.l.b16 %v4541
          %v6029 = vunpack.c.h.b16 %v4541
          %v6030 = vunpack.c.l.b16 %v4542
          %v6031 = vunpack.c.h.b16 %v4542
          %v6032 = vunpack.c.l.b16 %v4543
          %v6033 = vunpack.c.h.b16 %v4543
          %v6034 = vunpack.c.l.b16 %v4544
          %v6035 = vunpack.c.h.b16 %v4544
          %v6036 = vunpack.c.l.b16 %v4545
          %v6037 = vunpack.c.h.b16 %v4545
          %v6038 = vunpack.c.l.b16 %v4546
          %v6039 = vunpack.c.h.b16 %v4546
          %v6040 = vunpack.c.l.b16 %v4547
          %v6041 = vunpack.c.h.b16 %v4547
          %v6042 = vunpack.c.l.b16 %v4548
          %v6043 = vunpack.c.h.b16 %v4548
          %v6044 = vunpack.c.l.b16 %v4549
          %v6045 = vunpack.c.h.b16 %v4549
          %v6046 = vunpack.c.l.b16 %v4550
          %v6047 = vunpack.c.h.b16 %v4550
          %v6048 = vunpack.c.l.b16 %v4551
          %v6049 = vunpack.c.h.b16 %v4551
          %v6050 = vunpack.c.l.b16 %v4552
          %v6051 = vunpack.c.h.b16 %v4552
          %v6052 = vunpack.c.l.b16 %v4553
          %v6053 = vunpack.c.h.b16 %v4553
          %v6054 = vunpack.c.l.b16 %v4554
          %v6055 = vunpack.c.h.b16 %v4554
          %v6056 = vunpack.c.l.b16 %v4555
          %v6057 = vunpack.c.h.b16 %v4555
          %v6058 = vunpack.c.l.b16 %v4556
          %v6059 = vunpack.c.h.b16 %v4556
          %v6060 = vunpack.c.l.b16 %v4557
          %v6061 = vunpack.c.h.b16 %v4557
          %v6062 = vunpack.c.l.b16 %v4558
          %v6063 = vunpack.c.h.b16 %v4558
          %v6064 = vunpack.c.l.b16 %v4559
          %v6065 = vunpack.c.h.b16 %v4559
          %v6066 = vunpack.c.l.b16 %v4560
          %v6067 = vunpack.c.h.b16 %v4560
          %v6068 = vunpack.c.l.b16 %v4561
          %v6069 = vunpack.c.h.b16 %v4561
          %v6070 = vunpack.c.l.b16 %v4562
          %v6071 = vunpack.c.h.b16 %v4562
          %v6072 = vunpack.c.l.b16 %v4563
          %v6073 = vunpack.c.h.b16 %v4563
          %v6074 = vunpack.c.l.b16 %v4564
          %v6075 = vunpack.c.h.b16 %v4564
          %v6076 = vunpack.c.l.b16 %v4565
          %v6077 = vunpack.c.h.b16 %v4565
          %v6078 = vunpack.c.l.b16 %v4566
          %v6079 = vunpack.c.h.b16 %v4566
          %v6080 = vunpack.c.l.b16 %v4567
          %v6081 = vunpack.c.h.b16 %v4567
          %v6082 = vunpack.c.l.b16 %v4568
          %v6083 = vunpack.c.h.b16 %v4568
          %v6084 = vunpack.c.l.b16 %v4569
          %v6085 = vunpack.c.h.b16 %v4569
          %v6086 = vunpack.c.l.b16 %v4570
          %v6087 = vunpack.c.h.b16 %v4570
          %v6088 = vunpack.c.l.b16 %v4571
          %v6089 = vunpack.c.h.b16 %v4571
          %v6090 = vunpack.c.l.b16 %v4572
          %v6091 = vunpack.c.h.b16 %v4572
          %v6092 = vunpack.c.l.b16 %v4573
          %v6093 = vunpack.c.h.b16 %v4573
          %v6094 = vunpack.c.l.b16 %v4574
          %v6095 = vunpack.c.h.b16 %v4574
          %v6096 = vunpack.c.l.b16 %v4575
          %v6097 = vunpack.c.h.b16 %v4575
          %v6098 = vunpack.c.l.b16 %v4576
          %v6099 = vunpack.c.h.b16 %v4576
          %v6100 = vunpack.c.l.b16 %v4577
          %v6101 = vunpack.c.h.b16 %v4577
          %v6102 = vunpack.c.l.b16 %v4578
          %v6103 = vunpack.c.h.b16 %v4578
          %v6104 = vunpack.c.l.b16 %v4579
          %v6105 = vunpack.c.h.b16 %v4579
          %v6106 = vunpack.c.l.b16 %v4580
          %v6107 = vunpack.c.h.b16 %v4580
          %v6108 = vunpack.c.l.b16 %v4581
          %v6109 = vunpack.c.h.b16 %v4581
          %v6110 = vunpack.c.l.b16 %v4582
          %v6111 = vunpack.c.h.b16 %v4582
          %v6112 = vunpack.c.l.b16 %v4583
          %v6113 = vunpack.c.h.b16 %v4583
          %v6114 = vunpack.c.l.b16 %v4584
          %v6115 = vunpack.c.h.b16 %v4584
          %v6116 = vunpack.c.l.b16 %v4585
          %v6117 = vunpack.c.h.b16 %v4585
          %v6118 = vunpack.c.l.b16 %v4586
          %v6119 = vunpack.c.h.b16 %v4586
          %v6120 = vunpack.c.l.b16 %v4587
          %v6121 = vunpack.c.h.b16 %v4587
          %v6122 = vunpack.c.l.b16 %v4588
          %v6123 = vunpack.c.h.b16 %v4588
          %v6124 = vunpack.c.l.b16 %v4589
          %v6125 = vunpack.c.h.b16 %v4589
          %v6126 = vunpack.c.l.b16 %v4590
          %v6127 = vunpack.c.h.b16 %v4590
          %v6128 = vunpack.c.l.b16 %v4591
          %v6129 = vunpack.c.h.b16 %v4591
          %v6130 = vunpack.c.l.b16 %v4592
          %v6131 = vunpack.c.h.b16 %v4592
          %v6132 = vunpack.c.l.b16 %v4593
          %v6133 = vunpack.c.h.b16 %v4593
          %v6134 = vpack.c.b16 %v5142, %v5110
          %v6135 = vpack.c.b16 %v5143, %v5111
          %v6136 = vpack.c.b16 %v5144, %v5112
          %v6137 = vpack.c.b16 %v5145, %v5113
          %v6138 = vpack.c.b16 %v5146, %v5114
          %v6139 = vpack.c.b16 %v5147, %v5115
          %v6140 = vpack.c.b16 %v5148, %v5116
          %v6141 = vpack.c.b16 %v5149, %v5117
          %v6142 = vpack.c.b16 %v5150, %v5118
          %v6143 = vpack.c.b16 %v5151, %v5119
          %v6144 = vpack.c.b16 %v5152, %v5120
          %v6145 = vpack.c.b16 %v5153, %v5121
          %v6146 = vpack.c.b16 %v5154, %v5122
          %v6147 = vpack.c.b16 %v5155, %v5123
          %v6148 = vpack.c.b16 %v5156, %v5124
          %v6149 = vpack.c.b16 %v5157, %v5125
          %v6150 = vpack.c.b16 %v5158, %v5126
          %v6151 = vpack.c.b16 %v5159, %v5127
          %v6152 = vpack.c.b16 %v5160, %v5128
          %v6153 = vpack.c.b16 %v5161, %v5129
          %v6154 = vpack.c.b16 %v5162, %v5130
          %v6155 = vpack.c.b16 %v5163, %v5131
          %v6156 = vpack.c.b16 %v5164, %v5132
          %v6157 = vpack.c.b16 %v5165, %v5133
          %v6158 = vpack.c.b16 %v5166, %v5134
          %v6159 = vpack.c.b16 %v5167, %v5135
          %v6160 = vpack.c.b16 %v5168, %v5136
          %v6161 = vpack.c.b16 %v5169, %v5137
          %v6162 = vpack.c.b16 %v5170, %v5138
          %v6163 = vpack.c.b16 %v5171, %v5139
          %v6164 = vpack.c.b16 %v5172, %v5140
          %v6165 = vpack.c.b16 %v5173, %v5141
          %v6166 = vpack.c.b16 %v5206, %v5174
          %v6167 = vpack.c.b16 %v5207, %v5175
          %v6168 = vpack.c.b16 %v5208, %v5176
          %v6169 = vpack.c.b16 %v5209, %v5177
          %v6170 = vpack.c.b16 %v5210, %v5178
          %v6171 = vpack.c.b16 %v5211, %v5179
          %v6172 = vpack.c.b16 %v5212, %v5180
          %v6173 = vpack.c.b16 %v5213, %v5181
          %v6174 = vpack.c.b16 %v5214, %v5182
          %v6175 = vpack.c.b16 %v5215, %v5183
          %v6176 = vpack.c.b16 %v5216, %v5184
          %v6177 = vpack.c.b16 %v5217, %v5185
          %v6178 = vpack.c.b16 %v5218, %v5186
          %v6179 = vpack.c.b16 %v5219, %v5187
          %v6180 = vpack.c.b16 %v5220, %v5188
          %v6181 = vpack.c.b16 %v5221, %v5189
          %v6182 = vpack.c.b16 %v5222, %v5190
          %v6183 = vpack.c.b16 %v5223, %v5191
          %v6184 = vpack.c.b16 %v5224, %v5192
          %v6185 = vpack.c.b16 %v5225, %v5193
          %v6186 = vpack.c.b16 %v5226, %v5194
          %v6187 = vpack.c.b16 %v5227, %v5195
          %v6188 = vpack.c.b16 %v5228, %v5196
          %v6189 = vpack.c.b16 %v5229, %v5197
          %v6190 = vpack.c.b16 %v5230, %v5198
          %v6191 = vpack.c.b16 %v5231, %v5199
          %v6192 = vpack.c.b16 %v5232, %v5200
          %v6193 = vpack.c.b16 %v5233, %v5201
          %v6194 = vpack.c.b16 %v5234, %v5202
          %v6195 = vpack.c.b16 %v5235, %v5203
          %v6196 = vpack.c.b16 %v5236, %v5204
          %v6197 = vpack.c.b16 %v5237, %v5205
          %v6198 = vpack.c.b16 %v5270, %v5238
          %v6199 = vpack.c.b16 %v5271, %v5239
          %v6200 = vpack.c.b16 %v5272, %v5240
          %v6201 = vpack.c.b16 %v5273, %v5241
          %v6202 = vpack.c.b16 %v5274, %v5242
          %v6203 = vpack.c.b16 %v5275, %v5243
          %v6204 = vpack.c.b16 %v5276, %v5244
          %v6205 = vpack.c.b16 %v5277, %v5245
          %v6206 = vpack.c.b16 %v5278, %v5246
          %v6207 = vpack.c.b16 %v5279, %v5247
          %v6208 = vpack.c.b16 %v5280, %v5248
          %v6209 = vpack.c.b16 %v5281, %v5249
          %v6210 = vpack.c.b16 %v5282, %v5250
          %v6211 = vpack.c.b16 %v5283, %v5251
          %v6212 = vpack.c.b16 %v5284, %v5252
          %v6213 = vpack.c.b16 %v5285, %v5253
          %v6214 = vpack.c.b16 %v5286, %v5254
          %v6215 = vpack.c.b16 %v5287, %v5255
          %v6216 = vpack.c.b16 %v5288, %v5256
          %v6217 = vpack.c.b16 %v5289, %v5257
          %v6218 = vpack.c.b16 %v5290, %v5258
          %v6219 = vpack.c.b16 %v5291, %v5259
          %v6220 = vpack.c.b16 %v5292, %v5260
          %v6221 = vpack.c.b16 %v5293, %v5261
          %v6222 = vpack.c.b16 %v5294, %v5262
          %v6223 = vpack.c.b16 %v5295, %v5263
          %v6224 = vpack.c.b16 %v5296, %v5264
          %v6225 = vpack.c.b16 %v5297, %v5265
          %v6226 = vpack.c.b16 %v5298, %v5266
          %v6227 = vpack.c.b16 %v5299, %v5267
          %v6228 = vpack.c.b16 %v5300, %v5268
          %v6229 = vpack.c.b16 %v5301, %v5269
          %v6230 = vpack.c.b16 %v5334, %v5302
          %v6231 = vpack.c.b16 %v5335, %v5303
          %v6232 = vpack.c.b16 %v5336, %v5304
          %v6233 = vpack.c.b16 %v5337, %v5305
          %v6234 = vpack.c.b16 %v5338, %v5306
          %v6235 = vpack.c.b16 %v5339, %v5307
          %v6236 = vpack.c.b16 %v5340, %v5308
          %v6237 = vpack.c.b16 %v5341, %v5309
          %v6238 = vpack.c.b16 %v5342, %v5310
          %v6239 = vpack.c.b16 %v5343, %v5311
          %v6240 = vpack.c.b16 %v5344, %v5312
          %v6241 = vpack.c.b16 %v5345, %v5313
          %v6242 = vpack.c.b16 %v5346, %v5314
          %v6243 = vpack.c.b16 %v5347, %v5315
          %v6244 = vpack.c.b16 %v5348, %v5316
          %v6245 = vpack.c.b16 %v5349, %v5317
          %v6246 = vpack.c.b16 %v5350, %v5318
          %v6247 = vpack.c.b16 %v5351, %v5319
          %v6248 = vpack.c.b16 %v5352, %v5320
          %v6249 = vpack.c.b16 %v5353, %v5321
          %v6250 = vpack.c.b16 %v5354, %v5322
          %v6251 = vpack.c.b16 %v5355, %v5323
          %v6252 = vpack.c.b16 %v5356, %v5324
          %v6253 = vpack.c.b16 %v5357, %v5325
          %v6254 = vpack.c.b16 %v5358, %v5326
          %v6255 = vpack.c.b16 %v5359, %v5327
          %v6256 = vpack.c.b16 %v5360, %v5328
          %v6257 = vpack.c.b16 %v5361, %v5329
          %v6258 = vpack.c.b16 %v5362, %v5330
          %v6259 = vpack.c.b16 %v5363, %v5331
          %v6260 = vpack.c.b16 %v5364, %v5332
          %v6261 = vpack.c.b16 %v5365, %v5333
          %v6262 = vpack.c.b16 %v5398, %v5366
          %v6263 = vpack.c.b16 %v5399, %v5367
          %v6264 = vpack.c.b16 %v5400, %v5368
          %v6265 = vpack.c.b16 %v5401, %v5369
          %v6266 = vpack.c.b16 %v5402, %v5370
          %v6267 = vpack.c.b16 %v5403, %v5371
          %v6268 = vpack.c.b16 %v5404, %v5372
          %v6269 = vpack.c.b16 %v5405, %v5373
          %v6270 = vpack.c.b16 %v5406, %v5374
          %v6271 = vpack.c.b16 %v5407, %v5375
          %v6272 = vpack.c.b16 %v5408, %v5376
          %v6273 = vpack.c.b16 %v5409, %v5377
          %v6274 = vpack.c.b16 %v5410, %v5378
          %v6275 = vpack.c.b16 %v5411, %v5379
          %v6276 = vpack.c.b16 %v5412, %v5380
          %v6277 = vpack.c.b16 %v5413, %v5381
          %v6278 = vpack.c.b16 %v5414, %v5382
          %v6279 = vpack.c.b16 %v5415, %v5383
          %v6280 = vpack.c.b16 %v5416, %v5384
          %v6281 = vpack.c.b16 %v5417, %v5385
          %v6282 = vpack.c.b16 %v5418, %v5386
          %v6283 = vpack.c.b16 %v5419, %v5387
          %v6284 = vpack.c.b16 %v5420, %v5388
          %v6285 = vpack.c.b16 %v5421, %v5389
          %v6286 = vpack.c.b16 %v5422, %v5390
          %v6287 = vpack.c.b16 %v5423, %v5391
          %v6288 = vpack.c.b16 %v5424, %v5392
          %v6289 = vpack.c.b16 %v5425, %v5393
          %v6290 = vpack.c.b16 %v5426, %v5394
          %v6291 = vpack.c.b16 %v5427, %v5395
          %v6292 = vpack.c.b16 %v5428, %v5396
          %v6293 = vpack.c.b16 %v5429, %v5397
          %v6294 = vpack.c.b16 %v5462, %v5430
          %v6295 = vpack.c.b16 %v5463, %v5431
          %v6296 = vpack.c.b16 %v5464, %v5432
          %v6297 = vpack.c.b16 %v5465, %v5433
          %v6298 = vpack.c.b16 %v5466, %v5434
          %v6299 = vpack.c.b16 %v5467, %v5435
          %v6300 = vpack.c.b16 %v5468, %v5436
          %v6301 = vpack.c.b16 %v5469, %v5437
          %v6302 = vpack.c.b16 %v5470, %v5438
          %v6303 = vpack.c.b16 %v5471, %v5439
          %v6304 = vpack.c.b16 %v5472, %v5440
          %v6305 = vpack.c.b16 %v5473, %v5441
          %v6306 = vpack.c.b16 %v5474, %v5442
          %v6307 = vpack.c.b16 %v5475, %v5443
          %v6308 = vpack.c.b16 %v5476, %v5444
          %v6309 = vpack.c.b16 %v5477, %v5445
          %v6310 = vpack.c.b16 %v5478, %v5446
          %v6311 = vpack.c.b16 %v5479, %v5447
          %v6312 = vpack.c.b16 %v5480, %v5448
          %v6313 = vpack.c.b16 %v5481, %v5449
          %v6314 = vpack.c.b16 %v5482, %v5450
          %v6315 = vpack.c.b16 %v5483, %v5451
          %v6316 = vpack.c.b16 %v5484, %v5452
          %v6317 = vpack.c.b16 %v5485, %v5453
          %v6318 = vpack.c.b16 %v5486, %v5454
          %v6319 = vpack.c.b16 %v5487, %v5455
          %v6320 = vpack.c.b16 %v5488, %v5456
          %v6321 = vpack.c.b16 %v5489, %v5457
          %v6322 = vpack.c.b16 %v5490, %v5458
          %v6323 = vpack.c.b16 %v5491, %v5459
          %v6324 = vpack.c.b16 %v5492, %v5460
          %v6325 = vpack.c.b16 %v5493, %v5461
          %v6326 = vpack.c.b16 %v5526, %v5494
          %v6327 = vpack.c.b16 %v5527, %v5495
          %v6328 = vpack.c.b16 %v5528, %v5496
          %v6329 = vpack.c.b16 %v5529, %v5497
          %v6330 = vpack.c.b16 %v5530, %v5498
          %v6331 = vpack.c.b16 %v5531, %v5499
          %v6332 = vpack.c.b16 %v5532, %v5500
          %v6333 = vpack.c.b16 %v5533, %v5501
          %v6334 = vpack.c.b16 %v5534, %v5502
          %v6335 = vpack.c.b16 %v5535, %v5503
          %v6336 = vpack.c.b16 %v5536, %v5504
          %v6337 = vpack.c.b16 %v5537, %v5505
          %v6338 = vpack.c.b16 %v5538, %v5506
          %v6339 = vpack.c.b16 %v5539, %v5507
          %v6340 = vpack.c.b16 %v5540, %v5508
          %v6341 = vpack.c.b16 %v5541, %v5509
          %v6342 = vpack.c.b16 %v5542, %v5510
          %v6343 = vpack.c.b16 %v5543, %v5511
          %v6344 = vpack.c.b16 %v5544, %v5512
          %v6345 = vpack.c.b16 %v5545, %v5513
          %v6346 = vpack.c.b16 %v5546, %v5514
          %v6347 = vpack.c.b16 %v5547, %v5515
          %v6348 = vpack.c.b16 %v5548, %v5516
          %v6349 = vpack.c.b16 %v5549, %v5517
          %v6350 = vpack.c.b16 %v5550, %v5518
          %v6351 = vpack.c.b16 %v5551, %v5519
          %v6352 = vpack.c.b16 %v5552, %v5520
          %v6353 = vpack.c.b16 %v5553, %v5521
          %v6354 = vpack.c.b16 %v5554, %v5522
          %v6355 = vpack.c.b16 %v5555, %v5523
          %v6356 = vpack.c.b16 %v5556, %v5524
          %v6357 = vpack.c.b16 %v5557, %v5525
          %v6358 = vpack.c.b16 %v5590, %v5558
          %v6359 = vpack.c.b16 %v5591, %v5559
          %v6360 = vpack.c.b16 %v5592, %v5560
          %v6361 = vpack.c.b16 %v5593, %v5561
          %v6362 = vpack.c.b16 %v5594, %v5562
          %v6363 = vpack.c.b16 %v5595, %v5563
          %v6364 = vpack.c.b16 %v5596, %v5564
          %v6365 = vpack.c.b16 %v5597, %v5565
          %v6366 = vpack.c.b16 %v5598, %v5566
          %v6367 = vpack.c.b16 %v5599, %v5567
          %v6368 = vpack.c.b16 %v5600, %v5568
          %v6369 = vpack.c.b16 %v5601, %v5569
          %v6370 = vpack.c.b16 %v5602, %v5570
          %v6371 = vpack.c.b16 %v5603, %v5571
          %v6372 = vpack.c.b16 %v5604, %v5572
          %v6373 = vpack.c.b16 %v5605, %v5573
          %v6374 = vpack.c.b16 %v5606, %v5574
          %v6375 = vpack.c.b16 %v5607, %v5575
          %v6376 = vpack.c.b16 %v5608, %v5576
          %v6377 = vpack.c.b16 %v5609, %v5577
          %v6378 = vpack.c.b16 %v5610, %v5578
          %v6379 = vpack.c.b16 %v5611, %v5579
          %v6380 = vpack.c.b16 %v5612, %v5580
          %v6381 = vpack.c.b16 %v5613, %v5581
          %v6382 = vpack.c.b16 %v5614, %v5582
          %v6383 = vpack.c.b16 %v5615, %v5583
          %v6384 = vpack.c.b16 %v5616, %v5584
          %v6385 = vpack.c.b16 %v5617, %v5585
          %v6386 = vpack.c.b16 %v5618, %v5586
          %v6387 = vpack.c.b16 %v5619, %v5587
          %v6388 = vpack.c.b16 %v5620, %v5588
          %v6389 = vpack.c.b16 %v5621, %v5589
          %v6390 = vpack.c.b16 %v5654, %v5622
          %v6391 = vpack.c.b16 %v5655, %v5623
          %v6392 = vpack.c.b16 %v5656, %v5624
          %v6393 = vpack.c.b16 %v5657, %v5625
          %v6394 = vpack.c.b16 %v5658, %v5626
          %v6395 = vpack.c.b16 %v5659, %v5627
          %v6396 = vpack.c.b16 %v5660, %v5628
          %v6397 = vpack.c.b16 %v5661, %v5629
          %v6398 = vpack.c.b16 %v5662, %v5630
          %v6399 = vpack.c.b16 %v5663, %v5631
          %v6400 = vpack.c.b16 %v5664, %v5632
          %v6401 = vpack.c.b16 %v5665, %v5633
          %v6402 = vpack.c.b16 %v5666, %v5634
          %v6403 = vpack.c.b16 %v5667, %v5635
          %v6404 = vpack.c.b16 %v5668, %v5636
          %v6405 = vpack.c.b16 %v5669, %v5637
          %v6406 = vpack.c.b16 %v5670, %v5638
          %v6407 = vpack.c.b16 %v5671, %v5639
          %v6408 = vpack.c.b16 %v5672, %v5640
          %v6409 = vpack.c.b16 %v5673, %v5641
          %v6410 = vpack.c.b16 %v5674, %v5642
          %v6411 = vpack.c.b16 %v5675, %v5643
          %v6412 = vpack.c.b16 %v5676, %v5644
          %v6413 = vpack.c.b16 %v5677, %v5645
          %v6414 = vpack.c.b16 %v5678, %v5646
          %v6415 = vpack.c.b16 %v5679, %v5647
          %v6416 = vpack.c.b16 %v5680, %v5648
          %v6417 = vpack.c.b16 %v5681, %v5649
          %v6418 = vpack.c.b16 %v5682, %v5650
          %v6419 = vpack.c.b16 %v5683, %v5651
          %v6420 = vpack.c.b16 %v5684, %v5652
          %v6421 = vpack.c.b16 %v5685, %v5653
          %v6422 = vpack.c.b16 %v5718, %v5686
          %v6423 = vpack.c.b16 %v5719, %v5687
          %v6424 = vpack.c.b16 %v5720, %v5688
          %v6425 = vpack.c.b16 %v5721, %v5689
          %v6426 = vpack.c.b16 %v5722, %v5690
          %v6427 = vpack.c.b16 %v5723, %v5691
          %v6428 = vpack.c.b16 %v5724, %v5692
          %v6429 = vpack.c.b16 %v5725, %v5693
          %v6430 = vpack.c.b16 %v5726, %v5694
          %v6431 = vpack.c.b16 %v5727, %v5695
          %v6432 = vpack.c.b16 %v5728, %v5696
          %v6433 = vpack.c.b16 %v5729, %v5697
          %v6434 = vpack.c.b16 %v5730, %v5698
          %v6435 = vpack.c.b16 %v5731, %v5699
          %v6436 = vpack.c.b16 %v5732, %v5700
          %v6437 = vpack.c.b16 %v5733, %v5701
          %v6438 = vpack.c.b16 %v5734, %v5702
          %v6439 = vpack.c.b16 %v5735, %v5703
          %v6440 = vpack.c.b16 %v5736, %v5704
          %v6441 = vpack.c.b16 %v5737, %v5705
          %v6442 = vpack.c.b16 %v5738, %v5706
          %v6443 = vpack.c.b16 %v5739, %v5707
          %v6444 = vpack.c.b16 %v5740, %v5708
          %v6445 = vpack.c.b16 %v5741, %v5709
          %v6446 = vpack.c.b16 %v5742, %v5710
          %v6447 = vpack.c.b16 %v5743, %v5711
          %v6448 = vpack.c.b16 %v5744, %v5712
          %v6449 = vpack.c.b16 %v5745, %v5713
          %v6450 = vpack.c.b16 %v5746, %v5714
          %v6451 = vpack.c.b16 %v5747, %v5715
          %v6452 = vpack.c.b16 %v5748, %v5716
          %v6453 = vpack.c.b16 %v5749, %v5717
          %v6454 = vpack.c.b16 %v5782, %v5750
          %v6455 = vpack.c.b16 %v5783, %v5751
          %v6456 = vpack.c.b16 %v5784, %v5752
          %v6457 = vpack.c.b16 %v5785, %v5753
          %v6458 = vpack.c.b16 %v5786, %v5754
          %v6459 = vpack.c.b16 %v5787, %v5755
          %v6460 = vpack.c.b16 %v5788, %v5756
          %v6461 = vpack.c.b16 %v5789, %v5757
          %v6462 = vpack.c.b16 %v5790, %v5758
          %v6463 = vpack.c.b16 %v5791, %v5759
          %v6464 = vpack.c.b16 %v5792, %v5760
          %v6465 = vpack.c.b16 %v5793, %v5761
          %v6466 = vpack.c.b16 %v5794, %v5762
          %v6467 = vpack.c.b16 %v5795, %v5763
          %v6468 = vpack.c.b16 %v5796, %v5764
          %v6469 = vpack.c.b16 %v5797, %v5765
          %v6470 = vpack.c.b16 %v5798, %v5766
          %v6471 = vpack.c.b16 %v5799, %v5767
          %v6472 = vpack.c.b16 %v5800, %v5768
          %v6473 = vpack.c.b16 %v5801, %v5769
          %v6474 = vpack.c.b16 %v5802, %v5770
          %v6475 = vpack.c.b16 %v5803, %v5771
          %v6476 = vpack.c.b16 %v5804, %v5772
          %v6477 = vpack.c.b16 %v5805, %v5773
          %v6478 = vpack.c.b16 %v5806, %v5774
          %v6479 = vpack.c.b16 %v5807, %v5775
          %v6480 = vpack.c.b16 %v5808, %v5776
          %v6481 = vpack.c.b16 %v5809, %v5777
          %v6482 = vpack.c.b16 %v5810, %v5778
          %v6483 = vpack.c.b16 %v5811, %v5779
          %v6484 = vpack.c.b16 %v5812, %v5780
          %v6485 = vpack.c.b16 %v5813, %v5781
          %v6486 = vpack.c.b16 %v5846, %v5814
          %v6487 = vpack.c.b16 %v5847, %v5815
          %v6488 = vpack.c.b16 %v5848, %v5816
          %v6489 = vpack.c.b16 %v5849, %v5817
          %v6490 = vpack.c.b16 %v5850, %v5818
          %v6491 = vpack.c.b16 %v5851, %v5819
          %v6492 = vpack.c.b16 %v5852, %v5820
          %v6493 = vpack.c.b16 %v5853, %v5821
          %v6494 = vpack.c.b16 %v5854, %v5822
          %v6495 = vpack.c.b16 %v5855, %v5823
          %v6496 = vpack.c.b16 %v5856, %v5824
          %v6497 = vpack.c.b16 %v5857, %v5825
          %v6498 = vpack.c.b16 %v5858, %v5826
          %v6499 = vpack.c.b16 %v5859, %v5827
          %v6500 = vpack.c.b16 %v5860, %v5828
          %v6501 = vpack.c.b16 %v5861, %v5829
          %v6502 = vpack.c.b16 %v5862, %v5830
          %v6503 = vpack.c.b16 %v5863, %v5831
          %v6504 = vpack.c.b16 %v5864, %v5832
          %v6505 = vpack.c.b16 %v5865, %v5833
          %v6506 = vpack.c.b16 %v5866, %v5834
          %v6507 = vpack.c.b16 %v5867, %v5835
          %v6508 = vpack.c.b16 %v5868, %v5836
          %v6509 = vpack.c.b16 %v5869, %v5837
          %v6510 = vpack.c.b16 %v5870, %v5838
          %v6511 = vpack.c.b16 %v5871, %v5839
          %v6512 = vpack.c.b16 %v5872, %v5840
          %v6513 = vpack.c.b16 %v5873, %v5841
          %v6514 = vpack.c.b16 %v5874, %v5842
          %v6515 = vpack.c.b16 %v5875, %v5843
          %v6516 = vpack.c.b16 %v5876, %v5844
          %v6517 = vpack.c.b16 %v5877, %v5845
          %v6518 = vpack.c.b16 %v5910, %v5878
          %v6519 = vpack.c.b16 %v5911, %v5879
          %v6520 = vpack.c.b16 %v5912, %v5880
          %v6521 = vpack.c.b16 %v5913, %v5881
          %v6522 = vpack.c.b16 %v5914, %v5882
          %v6523 = vpack.c.b16 %v5915, %v5883
          %v6524 = vpack.c.b16 %v5916, %v5884
          %v6525 = vpack.c.b16 %v5917, %v5885
          %v6526 = vpack.c.b16 %v5918, %v5886
          %v6527 = vpack.c.b16 %v5919, %v5887
          %v6528 = vpack.c.b16 %v5920, %v5888
          %v6529 = vpack.c.b16 %v5921, %v5889
          %v6530 = vpack.c.b16 %v5922, %v5890
          %v6531 = vpack.c.b16 %v5923, %v5891
          %v6532 = vpack.c.b16 %v5924, %v5892
          %v6533 = vpack.c.b16 %v5925, %v5893
          %v6534 = vpack.c.b16 %v5926, %v5894
          %v6535 = vpack.c.b16 %v5927, %v5895
          %v6536 = vpack.c.b16 %v5928, %v5896
          %v6537 = vpack.c.b16 %v5929, %v5897
          %v6538 = vpack.c.b16 %v5930, %v5898
          %v6539 = vpack.c.b16 %v5931, %v5899
          %v6540 = vpack.c.b16 %v5932, %v5900
          %v6541 = vpack.c.b16 %v5933, %v5901
          %v6542 = vpack.c.b16 %v5934, %v5902
          %v6543 = vpack.c.b16 %v5935, %v5903
          %v6544 = vpack.c.b16 %v5936, %v5904
          %v6545 = vpack.c.b16 %v5937, %v5905
          %v6546 = vpack.c.b16 %v5938, %v5906
          %v6547 = vpack.c.b16 %v5939, %v5907
          %v6548 = vpack.c.b16 %v5940, %v5908
          %v6549 = vpack.c.b16 %v5941, %v5909
          %v6550 = vpack.c.b16 %v5974, %v5942
          %v6551 = vpack.c.b16 %v5975, %v5943
          %v6552 = vpack.c.b16 %v5976, %v5944
          %v6553 = vpack.c.b16 %v5977, %v5945
          %v6554 = vpack.c.b16 %v5978, %v5946
          %v6555 = vpack.c.b16 %v5979, %v5947
          %v6556 = vpack.c.b16 %v5980, %v5948
          %v6557 = vpack.c.b16 %v5981, %v5949
          %v6558 = vpack.c.b16 %v5982, %v5950
          %v6559 = vpack.c.b16 %v5983, %v5951
          %v6560 = vpack.c.b16 %v5984, %v5952
          %v6561 = vpack.c.b16 %v5985, %v5953
          %v6562 = vpack.c.b16 %v5986, %v5954
          %v6563 = vpack.c.b16 %v5987, %v5955
          %v6564 = vpack.c.b16 %v5988, %v5956
          %v6565 = vpack.c.b16 %v5989, %v5957
          %v6566 = vpack.c.b16 %v5990, %v5958
          %v6567 = vpack.c.b16 %v5991, %v5959
          %v6568 = vpack.c.b16 %v5992, %v5960
          %v6569 = vpack.c.b16 %v5993, %v5961
          %v6570 = vpack.c.b16 %v5994, %v5962
          %v6571 = vpack.c.b16 %v5995, %v5963
          %v6572 = vpack.c.b16 %v5996, %v5964
          %v6573 = vpack.c.b16 %v5997, %v5965
          %v6574 = vpack.c.b16 %v5998, %v5966
          %v6575 = vpack.c.b16 %v5999, %v5967
          %v6576 = vpack.c.b16 %v6000, %v5968
          %v6577 = vpack.c.b16 %v6001, %v5969
          %v6578 = vpack.c.b16 %v6002, %v5970
          %v6579 = vpack.c.b16 %v6003, %v5971
          %v6580 = vpack.c.b16 %v6004, %v5972
          %v6581 = vpack.c.b16 %v6005, %v5973
          %v6582 = vpack.c.b16 %v6038, %v6006
          %v6583 = vpack.c.b16 %v6039, %v6007
          %v6584 = vpack.c.b16 %v6040, %v6008
          %v6585 = vpack.c.b16 %v6041, %v6009
          %v6586 = vpack.c.b16 %v6042, %v6010
          %v6587 = vpack.c.b16 %v6043, %v6011
          %v6588 = vpack.c.b16 %v6044, %v6012
          %v6589 = vpack.c.b16 %v6045, %v6013
          %v6590 = vpack.c.b16 %v6046, %v6014
          %v6591 = vpack.c.b16 %v6047, %v6015
          %v6592 = vpack.c.b16 %v6048, %v6016
          %v6593 = vpack.c.b16 %v6049, %v6017
          %v6594 = vpack.c.b16 %v6050, %v6018
          %v6595 = vpack.c.b16 %v6051, %v6019
          %v6596 = vpack.c.b16 %v6052, %v6020
          %v6597 = vpack.c.b16 %v6053, %v6021
          %v6598 = vpack.c.b16 %v6054, %v6022
          %v6599 = vpack.c.b16 %v6055, %v6023
          %v6600 = vpack.c.b16 %v6056, %v6024
          %v6601 = vpack.c.b16 %v6057, %v6025
          %v6602 = vpack.c.b16 %v6058, %v6026
          %v6603 = vpack.c.b16 %v6059, %v6027
          %v6604 = vpack.c.b16 %v6060, %v6028
          %v6605 = vpack.c.b16 %v6061, %v6029
          %v6606 = vpack.c.b16 %v6062, %v6030
          %v6607 = vpack.c.b16 %v6063, %v6031
          %v6608 = vpack.c.b16 %v6064, %v6032
          %v6609 = vpack.c.b16 %v6065, %v6033
          %v6610 = vpack.c.b16 %v6066, %v6034
          %v6611 = vpack.c.b16 %v6067, %v6035
          %v6612 = vpack.c.b16 %v6068, %v6036
          %v6613 = vpack.c.b16 %v6069, %v6037
          %v6614 = vpack.c.b16 %v6102, %v6070
          %v6615 = vpack.c.b16 %v6103, %v6071
          %v6616 = vpack.c.b16 %v6104, %v6072
          %v6617 = vpack.c.b16 %v6105, %v6073
          %v6618 = vpack.c.b16 %v6106, %v6074
          %v6619 = vpack.c.b16 %v6107, %v6075
          %v6620 = vpack.c.b16 %v6108, %v6076
          %v6621 = vpack.c.b16 %v6109, %v6077
          %v6622 = vpack.c.b16 %v6110, %v6078
          %v6623 = vpack.c.b16 %v6111, %v6079
          %v6624 = vpack.c.b16 %v6112, %v6080
          %v6625 = vpack.c.b16 %v6113, %v6081
          %v6626 = vpack.c.b16 %v6114, %v6082
          %v6627 = vpack.c.b16 %v6115, %v6083
          %v6628 = vpack.c.b16 %v6116, %v6084
          %v6629 = vpack.c.b16 %v6117, %v6085
          %v6630 = vpack.c.b16 %v6118, %v6086
          %v6631 = vpack.c.b16 %v6119, %v6087
          %v6632 = vpack.c.b16 %v6120, %v6088
          %v6633 = vpack.c.b16 %v6121, %v6089
          %v6634 = vpack.c.b16 %v6122, %v6090
          %v6635 = vpack.c.b16 %v6123, %v6091
          %v6636 = vpack.c.b16 %v6124, %v6092
          %v6637 = vpack.c.b16 %v6125, %v6093
          %v6638 = vpack.c.b16 %v6126, %v6094
          %v6639 = vpack.c.b16 %v6127, %v6095
          %v6640 = vpack.c.b16 %v6128, %v6096
          %v6641 = vpack.c.b16 %v6129, %v6097
          %v6642 = vpack.c.b16 %v6130, %v6098
          %v6643 = vpack.c.b16 %v6131, %v6099
          %v6644 = vpack.c.b16 %v6132, %v6100
          %v6645 = vpack.c.b16 %v6133, %v6101
          %v7162 = vlaneseq
          %v7163 = vshrl.u32 %v7162, 7
          %v7164 = vsub.s32 0, %v7163
          %v7165 = vrot.slane %v4594, %v7164
          %v7166 = vlaneseq
          %v7167 = vshrl.u32 %v7166, 7
          %v7168 = vsub.s32 1, %v7167
          %v7169 = vrot.slane %v4594, %v7168
          %v7170 = vlaneseq
          %v7171 = vshrl.u32 %v7170, 7
          %v7172 = vsub.s32 2, %v7171
          %v7173 = vrot.slane %v4594, %v7172
          %v7174 = vlaneseq
          %v7175 = vshrl.u32 %v7174, 7
          %v7176 = vsub.s32 3, %v7175
          %v7177 = vrot.slane %v4594, %v7176
          %v7178 = vlaneseq
          %v7179 = vshrl.u32 %v7178, 7
          %v7180 = vsub.s32 4, %v7179
          %v7181 = vrot.slane %v4594, %v7180
          %v7182 = vlaneseq
          %v7183 = vshrl.u32 %v7182, 7
          %v7184 = vsub.s32 5, %v7183
          %v7185 = vrot.slane %v4594, %v7184
          %v7186 = vlaneseq
          %v7187 = vshrl.u32 %v7186, 7
          %v7188 = vsub.s32 6, %v7187
          %v7189 = vrot.slane %v4594, %v7188
          %v7190 = vlaneseq
          %v7191 = vshrl.u32 %v7190, 7
          %v7192 = vsub.s32 7, %v7191
          %v7193 = vrot.slane %v4594, %v7192
          %v7194 = vlaneseq
          %v7195 = vshrl.u32 %v7194, 7
          %v7196 = vsub.s32 0, %v7195
          %v7197 = vrot.slane %v4595, %v7196
          %v7198 = vlaneseq
          %v7199 = vshrl.u32 %v7198, 7
          %v7200 = vsub.s32 1, %v7199
          %v7201 = vrot.slane %v4595, %v7200
          %v7202 = vlaneseq
          %v7203 = vshrl.u32 %v7202, 7
          %v7204 = vsub.s32 2, %v7203
          %v7205 = vrot.slane %v4595, %v7204
          %v7206 = vlaneseq
          %v7207 = vshrl.u32 %v7206, 7
          %v7208 = vsub.s32 3, %v7207
          %v7209 = vrot.slane %v4595, %v7208
          %v7210 = vlaneseq
          %v7211 = vshrl.u32 %v7210, 7
          %v7212 = vsub.s32 4, %v7211
          %v7213 = vrot.slane %v4595, %v7212
          %v7214 = vlaneseq
          %v7215 = vshrl.u32 %v7214, 7
          %v7216 = vsub.s32 5, %v7215
          %v7217 = vrot.slane %v4595, %v7216
          %v7218 = vlaneseq
          %v7219 = vshrl.u32 %v7218, 7
          %v7220 = vsub.s32 6, %v7219
          %v7221 = vrot.slane %v4595, %v7220
          %v7222 = vlaneseq
          %v7223 = vshrl.u32 %v7222, 7
          %v7224 = vsub.s32 7, %v7223
          %v7225 = vrot.slane %v4595, %v7224
          %v7226 = vlaneseq
          %v7227 = vshrl.u32 %v7226, 7
          %v7228 = vsub.s32 0, %v7227
          %v7229 = vrot.slane %v4596, %v7228
          %v7230 = vlaneseq
          %v7231 = vshrl.u32 %v7230, 7
          %v7232 = vsub.s32 1, %v7231
          %v7233 = vrot.slane %v4596, %v7232
          %v7234 = vlaneseq
          %v7235 = vshrl.u32 %v7234, 7
          %v7236 = vsub.s32 2, %v7235
          %v7237 = vrot.slane %v4596, %v7236
          %v7238 = vlaneseq
          %v7239 = vshrl.u32 %v7238, 7
          %v7240 = vsub.s32 3, %v7239
          %v7241 = vrot.slane %v4596, %v7240
          %v7242 = vlaneseq
          %v7243 = vshrl.u32 %v7242, 7
          %v7244 = vsub.s32 4, %v7243
          %v7245 = vrot.slane %v4596, %v7244
          %v7246 = vlaneseq
          %v7247 = vshrl.u32 %v7246, 7
          %v7248 = vsub.s32 5, %v7247
          %v7249 = vrot.slane %v4596, %v7248
          %v7250 = vlaneseq
          %v7251 = vshrl.u32 %v7250, 7
          %v7252 = vsub.s32 6, %v7251
          %v7253 = vrot.slane %v4596, %v7252
          %v7254 = vlaneseq
          %v7255 = vshrl.u32 %v7254, 7
          %v7256 = vsub.s32 7, %v7255
          %v7257 = vrot.slane %v4596, %v7256
          %v7258 = vlaneseq
          %v7259 = vshrl.u32 %v7258, 7
          %v7260 = vsub.s32 0, %v7259
          %v7261 = vrot.slane %v4597, %v7260
          %v7262 = vlaneseq
          %v7263 = vshrl.u32 %v7262, 7
          %v7264 = vsub.s32 1, %v7263
          %v7265 = vrot.slane %v4597, %v7264
          %v7266 = vlaneseq
          %v7267 = vshrl.u32 %v7266, 7
          %v7268 = vsub.s32 2, %v7267
          %v7269 = vrot.slane %v4597, %v7268
          %v7270 = vlaneseq
          %v7271 = vshrl.u32 %v7270, 7
          %v7272 = vsub.s32 3, %v7271
          %v7273 = vrot.slane %v4597, %v7272
          %v7274 = vlaneseq
          %v7275 = vshrl.u32 %v7274, 7
          %v7276 = vsub.s32 4, %v7275
          %v7277 = vrot.slane %v4597, %v7276
          %v7278 = vlaneseq
          %v7279 = vshrl.u32 %v7278, 7
          %v7280 = vsub.s32 5, %v7279
          %v7281 = vrot.slane %v4597, %v7280
          %v7282 = vlaneseq
          %v7283 = vshrl.u32 %v7282, 7
          %v7284 = vsub.s32 6, %v7283
          %v7285 = vrot.slane %v4597, %v7284
          %v7286 = vlaneseq
          %v7287 = vshrl.u32 %v7286, 7
          %v7288 = vsub.s32 7, %v7287
          %v7289 = vrot.slane %v4597, %v7288
          %7322 = vmatprep.subr.bf16.mxu0 %v6135
          %7323 = vmatpush1.bf16.msra.mxu0 %v6134
          %7324 = vmatprep.subr.bf16.mxu0 %v6167
          %7325 = vmatpush1.bf16.msra.mxu0 %v6166
          %7326 = vmatprep.subr.bf16.mxu0 %v6199
          %7327 = vmatpush1.bf16.msra.mxu0 %v6198
          %7328 = vmatprep.subr.bf16.mxu0 %v6231
          %7329 = vmatpush1.bf16.msra.mxu0 %v6230
          %7330 = vmatprep.subr.bf16.mxu0 %v6263
          %7331 = vmatpush1.bf16.msra.mxu0 %v6262
          %7332 = vmatprep.subr.bf16.mxu0 %v6295
          %7333 = vmatpush1.bf16.msra.mxu0 %v6294
          %7334 = vmatprep.subr.bf16.mxu0 %v6327
          %7335 = vmatpush1.bf16.msra.mxu0 %v6326
          %7336 = vmatprep.subr.bf16.mxu0 %v6359
          %7337 = vmatpush1.bf16.msra.mxu0 %v6358
          %7338 = vmatprep.subr.bf16.mxu0 %v6391
          %7339 = vmatpush1.bf16.msra.mxu0 %v6390
          %7340 = vmatprep.subr.bf16.mxu0 %v6423
          %7341 = vmatpush1.bf16.msra.mxu0 %v6422
          %7342 = vmatprep.subr.bf16.mxu0 %v6455
          %7343 = vmatpush1.bf16.msra.mxu0 %v6454
          %7344 = vmatprep.subr.bf16.mxu0 %v6487
          %7345 = vmatpush1.bf16.msra.mxu0 %v6486
          %7346 = vmatprep.subr.bf16.mxu0 %v6519
          %7347 = vmatpush1.bf16.msra.mxu0 %v6518
          %7348 = vmatprep.subr.bf16.mxu0 %v6551
          %7349 = vmatpush1.bf16.msra.mxu0 %v6550
          %7350 = vmatprep.subr.bf16.mxu0 %v6583
          %7351 = vmatpush1.bf16.msra.mxu0 %v6582
          %7352 = vmatprep.subr.bf16.mxu0 %v6615
          %7353 = vmatpush1.bf16.msra.mxu0 %v6614
          %7354 = vmatprep.mubr.bf16.mxu0 %v4081
          %7355 = vmatmul.mubr.bf16.gmra.mrb[0].mxu0 %v4080
          %v7356 = vpop.f32.mrb[0].mxu0
          %v7357 = vadd.f32 %v7165, %v7356
          %v7358 = vpop.f32.mrb[0].mxu0
          %v7359 = vadd.f32 %v7169, %v7358
          %v7360 = vpop.f32.mrb[0].mxu0
          %v7361 = vpop.f32.mrb[0].mxu0
          %7362 = vdwg.mxu0
          %7363 = vmatprep.subr.bf16.mxu0 %v6137
          %7364 = vmatpush1.bf16.msra.mxu0 %v6136
          %7365 = vmatprep.subr.bf16.mxu0 %v6169
          %7366 = vmatpush1.bf16.msra.mxu0 %v6168
          %7367 = vmatprep.subr.bf16.mxu0 %v6201
          %7368 = vmatpush1.bf16.msra.mxu0 %v6200
          %7369 = vmatprep.subr.bf16.mxu0 %v6233
          %7370 = vmatpush1.bf16.msra.mxu0 %v6232
          %7371 = vmatprep.subr.bf16.mxu0 %v6265
          %7372 = vmatpush1.bf16.msra.mxu0 %v6264
          %7373 = vmatprep.subr.bf16.mxu0 %v6297
          %7374 = vmatpush1.bf16.msra.mxu0 %v6296
          %7375 = vmatprep.subr.bf16.mxu0 %v6329
          %7376 = vmatpush1.bf16.msra.mxu0 %v6328
          %7377 = vmatprep.subr.bf16.mxu0 %v6361
          %7378 = vmatpush1.bf16.msra.mxu0 %v6360
          %7379 = vmatprep.subr.bf16.mxu0 %v6393
          %7380 = vmatpush1.bf16.msra.mxu0 %v6392
          %7381 = vmatprep.subr.bf16.mxu0 %v6425
          %7382 = vmatpush1.bf16.msra.mxu0 %v6424
          %7383 = vmatprep.subr.bf16.mxu0 %v6457
          %7384 = vmatpush1.bf16.msra.mxu0 %v6456
          %7385 = vmatprep.subr.bf16.mxu0 %v6489
          %7386 = vmatpush1.bf16.msra.mxu0 %v6488
          %7387 = vmatprep.subr.bf16.mxu0 %v6521
          %7388 = vmatpush1.bf16.msra.mxu0 %v6520
          %7389 = vmatprep.subr.bf16.mxu0 %v6553
          %7390 = vmatpush1.bf16.msra.mxu0 %v6552
          %7391 = vmatprep.subr.bf16.mxu0 %v6585
          %7392 = vmatpush1.bf16.msra.mxu0 %v6584
          %7393 = vmatprep.subr.bf16.mxu0 %v6617
          %7394 = vmatpush1.bf16.msra.mxu0 %v6616
          %7395 = vmatprep.mubr.bf16.mxu0 %v4081
          %7396 = vmatmul.mubr.bf16.gmra.mrb[0].mxu0 %v4080
          %v7397 = vpop.f32.mrb[0].mxu0
          %v7398 = vadd.f32 %v7173, %v7397
          %v7399 = vpop.f32.mrb[0].mxu0
          %v7400 = vadd.f32 %v7177, %v7399
          %v7401 = vpop.f32.mrb[0].mxu0
          %v7402 = vpop.f32.mrb[0].mxu0
          %7403 = vdwg.mxu0
          %7404 = vmatprep.subr.bf16.mxu0 %v6139
          %7405 = vmatpush1.bf16.msra.mxu0 %v6138
          %7406 = vmatprep.subr.bf16.mxu0 %v6171
          %7407 = vmatpush1.bf16.msra.mxu0 %v6170
          %7408 = vmatprep.subr.bf16.mxu0 %v6203
          %7409 = vmatpush1.bf16.msra.mxu0 %v6202
          %7410 = vmatprep.subr.bf16.mxu0 %v6235
          %7411 = vmatpush1.bf16.msra.mxu0 %v6234
          %7412 = vmatprep.subr.bf16.mxu0 %v6267
          %7413 = vmatpush1.bf16.msra.mxu0 %v6266
          %7414 = vmatprep.subr.bf16.mxu0 %v6299
          %7415 = vmatpush1.bf16.msra.mxu0 %v6298
          %7416 = vmatprep.subr.bf16.mxu0 %v6331
          %7417 = vmatpush1.bf16.msra.mxu0 %v6330
          %7418 = vmatprep.subr.bf16.mxu0 %v6363
          %7419 = vmatpush1.bf16.msra.mxu0 %v6362
          %7420 = vmatprep.subr.bf16.mxu0 %v6395
          %7421 = vmatpush1.bf16.msra.mxu0 %v6394
          %7422 = vmatprep.subr.bf16.mxu0 %v6427
          %7423 = vmatpush1.bf16.msra.mxu0 %v6426
          %7424 = vmatprep.subr.bf16.mxu0 %v6459
          %7425 = vmatpush1.bf16.msra.mxu0 %v6458
          %7426 = vmatprep.subr.bf16.mxu0 %v6491
          %7427 = vmatpush1.bf16.msra.mxu0 %v6490
          %7428 = vmatprep.subr.bf16.mxu0 %v6523
          %7429 = vmatpush1.bf16.msra.mxu0 %v6522
          %7430 = vmatprep.subr.bf16.mxu0 %v6555
          %7431 = vmatpush1.bf16.msra.mxu0 %v6554
          %7432 = vmatprep.subr.bf16.mxu0 %v6587
          %7433 = vmatpush1.bf16.msra.mxu0 %v6586
          %7434 = vmatprep.subr.bf16.mxu0 %v6619
          %7435 = vmatpush1.bf16.msra.mxu0 %v6618
          %7436 = vmatprep.mubr.bf16.mxu0 %v4081
          %7437 = vmatmul.mubr.bf16.gmra.mrb[0].mxu0 %v4080
          %v7438 = vpop.f32.mrb[0].mxu0
          %v7439 = vadd.f32 %v7181, %v7438
          %v7440 = vpop.f32.mrb[0].mxu0
          %v7441 = vadd.f32 %v7185, %v7440
          %v7442 = vpop.f32.mrb[0].mxu0
          %v7443 = vpop.f32.mrb[0].mxu0
          %7444 = vdwg.mxu0
          %7445 = vmatprep.subr.bf16.mxu0 %v6141
          %7446 = vmatpush1.bf16.msra.mxu0 %v6140
          %7447 = vmatprep.subr.bf16.mxu0 %v6173
          %7448 = vmatpush1.bf16.msra.mxu0 %v6172
          %7449 = vmatprep.subr.bf16.mxu0 %v6205
          %7450 = vmatpush1.bf16.msra.mxu0 %v6204
          %7451 = vmatprep.subr.bf16.mxu0 %v6237
          %7452 = vmatpush1.bf16.msra.mxu0 %v6236
          %7453 = vmatprep.subr.bf16.mxu0 %v6269
          %7454 = vmatpush1.bf16.msra.mxu0 %v6268
          %7455 = vmatprep.subr.bf16.mxu0 %v6301
          %7456 = vmatpush1.bf16.msra.mxu0 %v6300
          %7457 = vmatprep.subr.bf16.mxu0 %v6333
          %7458 = vmatpush1.bf16.msra.mxu0 %v6332
          %7459 = vmatprep.subr.bf16.mxu0 %v6365
          %7460 = vmatpush1.bf16.msra.mxu0 %v6364
          %7461 = vmatprep.subr.bf16.mxu0 %v6397
          %7462 = vmatpush1.bf16.msra.mxu0 %v6396
          %7463 = vmatprep.subr.bf16.mxu0 %v6429
          %7464 = vmatpush1.bf16.msra.mxu0 %v6428
          %7465 = vmatprep.subr.bf16.mxu0 %v6461
          %7466 = vmatpush1.bf16.msra.mxu0 %v6460
          %7467 = vmatprep.subr.bf16.mxu0 %v6493
          %7468 = vmatpush1.bf16.msra.mxu0 %v6492
          %7469 = vmatprep.subr.bf16.mxu0 %v6525
          %7470 = vmatpush1.bf16.msra.mxu0 %v6524
          %7471 = vmatprep.subr.bf16.mxu0 %v6557
          %7472 = vmatpush1.bf16.msra.mxu0 %v6556
          %7473 = vmatprep.subr.bf16.mxu0 %v6589
          %7474 = vmatpush1.bf16.msra.mxu0 %v6588
          %7475 = vmatprep.subr.bf16.mxu0 %v6621
          %7476 = vmatpush1.bf16.msra.mxu0 %v6620
          %7477 = vmatprep.mubr.bf16.mxu0 %v4081
          %7478 = vmatmul.mubr.bf16.gmra.mrb[0].mxu0 %v4080
          %v7479 = vpop.f32.mrb[0].mxu0
          %v7480 = vadd.f32 %v7189, %v7479
          %v7481 = vpop.f32.mrb[0].mxu0
          %v7482 = vadd.f32 %v7193, %v7481
          %v7483 = vpop.f32.mrb[0].mxu0
          %v7484 = vpop.f32.mrb[0].mxu0
          %7485 = vdwg.mxu0
          %7486 = vmatprep.subr.bf16.mxu0 %v6143
          %7487 = vmatpush1.bf16.msra.mxu0 %v6142
          %7488 = vmatprep.subr.bf16.mxu0 %v6175
          %7489 = vmatpush1.bf16.msra.mxu0 %v6174
          %7490 = vmatprep.subr.bf16.mxu0 %v6207
          %7491 = vmatpush1.bf16.msra.mxu0 %v6206
          %7492 = vmatprep.subr.bf16.mxu0 %v6239
          %7493 = vmatpush1.bf16.msra.mxu0 %v6238
          %7494 = vmatprep.subr.bf16.mxu0 %v6271
          %7495 = vmatpush1.bf16.msra.mxu0 %v6270
          %7496 = vmatprep.subr.bf16.mxu0 %v6303
          %7497 = vmatpush1.bf16.msra.mxu0 %v6302
          %7498 = vmatprep.subr.bf16.mxu0 %v6335
          %7499 = vmatpush1.bf16.msra.mxu0 %v6334
          %7500 = vmatprep.subr.bf16.mxu0 %v6367
          %7501 = vmatpush1.bf16.msra.mxu0 %v6366
          %7502 = vmatprep.subr.bf16.mxu0 %v6399
          %7503 = vmatpush1.bf16.msra.mxu0 %v6398
          %7504 = vmatprep.subr.bf16.mxu0 %v6431
          %7505 = vmatpush1.bf16.msra.mxu0 %v6430
          %7506 = vmatprep.subr.bf16.mxu0 %v6463
          %7507 = vmatpush1.bf16.msra.mxu0 %v6462
          %7508 = vmatprep.subr.bf16.mxu0 %v6495
          %7509 = vmatpush1.bf16.msra.mxu0 %v6494
          %7510 = vmatprep.subr.bf16.mxu0 %v6527
          %7511 = vmatpush1.bf16.msra.mxu0 %v6526
          %7512 = vmatprep.subr.bf16.mxu0 %v6559
          %7513 = vmatpush1.bf16.msra.mxu0 %v6558
          %7514 = vmatprep.subr.bf16.mxu0 %v6591
          %7515 = vmatpush1.bf16.msra.mxu0 %v6590
          %7516 = vmatprep.subr.bf16.mxu0 %v6623
          %7517 = vmatpush1.bf16.msra.mxu0 %v6622
          %7518 = vmatprep.mubr.bf16.mxu0 %v4081
          %7519 = vmatmul.mubr.bf16.gmra.mrb[0].mxu0 %v4080
          %v7520 = vpop.f32.mrb[0].mxu0
          %v7521 = vadd.f32 %v7197, %v7520
          %v7522 = vpop.f32.mrb[0].mxu0
          %v7523 = vadd.f32 %v7201, %v7522
          %v7524 = vpop.f32.mrb[0].mxu0
          %v7525 = vpop.f32.mrb[0].mxu0
          %7526 = vdwg.mxu0
          %7527 = vmatprep.subr.bf16.mxu0 %v6145
          %7528 = vmatpush1.bf16.msra.mxu0 %v6144
          %7529 = vmatprep.subr.bf16.mxu0 %v6177
          %7530 = vmatpush1.bf16.msra.mxu0 %v6176
          %7531 = vmatprep.subr.bf16.mxu0 %v6209
          %7532 = vmatpush1.bf16.msra.mxu0 %v6208
          %7533 = vmatprep.subr.bf16.mxu0 %v6241
          %7534 = vmatpush1.bf16.msra.mxu0 %v6240
          %7535 = vmatprep.subr.bf16.mxu0 %v6273
          %7536 = vmatpush1.bf16.msra.mxu0 %v6272
          %7537 = vmatprep.subr.bf16.mxu0 %v6305
          %7538 = vmatpush1.bf16.msra.mxu0 %v6304
          %7539 = vmatprep.subr.bf16.mxu0 %v6337
          %7540 = vmatpush1.bf16.msra.mxu0 %v6336
          %7541 = vmatprep.subr.bf16.mxu0 %v6369
          %7542 = vmatpush1.bf16.msra.mxu0 %v6368
          %7543 = vmatprep.subr.bf16.mxu0 %v6401
          %7544 = vmatpush1.bf16.msra.mxu0 %v6400
          %7545 = vmatprep.subr.bf16.mxu0 %v6433
          %7546 = vmatpush1.bf16.msra.mxu0 %v6432
          %7547 = vmatprep.subr.bf16.mxu0 %v6465
          %7548 = vmatpush1.bf16.msra.mxu0 %v6464
          %7549 = vmatprep.subr.bf16.mxu0 %v6497
          %7550 = vmatpush1.bf16.msra.mxu0 %v6496
          %7551 = vmatprep.subr.bf16.mxu0 %v6529
          %7552 = vmatpush1.bf16.msra.mxu0 %v6528
          %7553 = vmatprep.subr.bf16.mxu0 %v6561
          %7554 = vmatpush1.bf16.msra.mxu0 %v6560
          %7555 = vmatprep.subr.bf16.mxu0 %v6593
          %7556 = vmatpush1.bf16.msra.mxu0 %v6592
          %7557 = vmatprep.subr.bf16.mxu0 %v6625
          %7558 = vmatpush1.bf16.msra.mxu0 %v6624
          %7559 = vmatprep.mubr.bf16.mxu0 %v4081
          %7560 = vmatmul.mubr.bf16.gmra.mrb[0].mxu0 %v4080
          %v7561 = vpop.f32.mrb[0].mxu0
          %v7562 = vadd.f32 %v7205, %v7561
          %v7563 = vpop.f32.mrb[0].mxu0
          %v7564 = vadd.f32 %v7209, %v7563
          %v7565 = vpop.f32.mrb[0].mxu0
          %v7566 = vpop.f32.mrb[0].mxu0
          %7567 = vdwg.mxu0
          %7568 = vmatprep.subr.bf16.mxu0 %v6147
          %7569 = vmatpush1.bf16.msra.mxu0 %v6146
          %7570 = vmatprep.subr.bf16.mxu0 %v6179
          %7571 = vmatpush1.bf16.msra.mxu0 %v6178
          %7572 = vmatprep.subr.bf16.mxu0 %v6211
          %7573 = vmatpush1.bf16.msra.mxu0 %v6210
          %7574 = vmatprep.subr.bf16.mxu0 %v6243
          %7575 = vmatpush1.bf16.msra.mxu0 %v6242
          %7576 = vmatprep.subr.bf16.mxu0 %v6275
          %7577 = vmatpush1.bf16.msra.mxu0 %v6274
          %7578 = vmatprep.subr.bf16.mxu0 %v6307
          %7579 = vmatpush1.bf16.msra.mxu0 %v6306
          %7580 = vmatprep.subr.bf16.mxu0 %v6339
          %7581 = vmatpush1.bf16.msra.mxu0 %v6338
          %7582 = vmatprep.subr.bf16.mxu0 %v6371
          %7583 = vmatpush1.bf16.msra.mxu0 %v6370
          %7584 = vmatprep.subr.bf16.mxu0 %v6403
          %7585 = vmatpush1.bf16.msra.mxu0 %v6402
          %7586 = vmatprep.subr.bf16.mxu0 %v6435
          %7587 = vmatpush1.bf16.msra.mxu0 %v6434
          %7588 = vmatprep.subr.bf16.mxu0 %v6467
          %7589 = vmatpush1.bf16.msra.mxu0 %v6466
          %7590 = vmatprep.subr.bf16.mxu0 %v6499
          %7591 = vmatpush1.bf16.msra.mxu0 %v6498
          %7592 = vmatprep.subr.bf16.mxu0 %v6531
          %7593 = vmatpush1.bf16.msra.mxu0 %v6530
          %7594 = vmatprep.subr.bf16.mxu0 %v6563
          %7595 = vmatpush1.bf16.msra.mxu0 %v6562
          %7596 = vmatprep.subr.bf16.mxu0 %v6595
          %7597 = vmatpush1.bf16.msra.mxu0 %v6594
          %7598 = vmatprep.subr.bf16.mxu0 %v6627
          %7599 = vmatpush1.bf16.msra.mxu0 %v6626
          %7600 = vmatprep.mubr.bf16.mxu0 %v4081
          %7601 = vmatmul.mubr.bf16.gmra.mrb[0].mxu0 %v4080
          %v7602 = vpop.f32.mrb[0].mxu0
          %v7603 = vadd.f32 %v7213, %v7602
          %v7604 = vpop.f32.mrb[0].mxu0
          %v7605 = vadd.f32 %v7217, %v7604
          %v7606 = vpop.f32.mrb[0].mxu0
          %v7607 = vpop.f32.mrb[0].mxu0
          %7608 = vdwg.mxu0
          %7609 = vmatprep.subr.bf16.mxu0 %v6149
          %7610 = vmatpush1.bf16.msra.mxu0 %v6148
          %7611 = vmatprep.subr.bf16.mxu0 %v6181
          %7612 = vmatpush1.bf16.msra.mxu0 %v6180
          %7613 = vmatprep.subr.bf16.mxu0 %v6213
          %7614 = vmatpush1.bf16.msra.mxu0 %v6212
          %7615 = vmatprep.subr.bf16.mxu0 %v6245
          %7616 = vmatpush1.bf16.msra.mxu0 %v6244
          %7617 = vmatprep.subr.bf16.mxu0 %v6277
          %7618 = vmatpush1.bf16.msra.mxu0 %v6276
          %7619 = vmatprep.subr.bf16.mxu0 %v6309
          %7620 = vmatpush1.bf16.msra.mxu0 %v6308
          %7621 = vmatprep.subr.bf16.mxu0 %v6341
          %7622 = vmatpush1.bf16.msra.mxu0 %v6340
          %7623 = vmatprep.subr.bf16.mxu0 %v6373
          %7624 = vmatpush1.bf16.msra.mxu0 %v6372
          %7625 = vmatprep.subr.bf16.mxu0 %v6405
          %7626 = vmatpush1.bf16.msra.mxu0 %v6404
          %7627 = vmatprep.subr.bf16.mxu0 %v6437
          %7628 = vmatpush1.bf16.msra.mxu0 %v6436
          %7629 = vmatprep.subr.bf16.mxu0 %v6469
          %7630 = vmatpush1.bf16.msra.mxu0 %v6468
          %7631 = vmatprep.subr.bf16.mxu0 %v6501
          %7632 = vmatpush1.bf16.msra.mxu0 %v6500
          %7633 = vmatprep.subr.bf16.mxu0 %v6533
          %7634 = vmatpush1.bf16.msra.mxu0 %v6532
          %7635 = vmatprep.subr.bf16.mxu0 %v6565
          %7636 = vmatpush1.bf16.msra.mxu0 %v6564
          %7637 = vmatprep.subr.bf16.mxu0 %v6597
          %7638 = vmatpush1.bf16.msra.mxu0 %v6596
          %7639 = vmatprep.subr.bf16.mxu0 %v6629
          %7640 = vmatpush1.bf16.msra.mxu0 %v6628
          %7641 = vmatprep.mubr.bf16.mxu0 %v4081
          %7642 = vmatmul.mubr.bf16.gmra.mrb[0].mxu0 %v4080
          %v7643 = vpop.f32.mrb[0].mxu0
          %v7644 = vadd.f32 %v7221, %v7643
          %v7645 = vpop.f32.mrb[0].mxu0
          %v7646 = vadd.f32 %v7225, %v7645
          %v7647 = vpop.f32.mrb[0].mxu0
          %v7648 = vpop.f32.mrb[0].mxu0
          %7649 = vdwg.mxu0
          %7650 = vmatprep.subr.bf16.mxu0 %v6151
          %7651 = vmatpush1.bf16.msra.mxu0 %v6150
          %7652 = vmatprep.subr.bf16.mxu0 %v6183
          %7653 = vmatpush1.bf16.msra.mxu0 %v6182
          %7654 = vmatprep.subr.bf16.mxu0 %v6215
          %7655 = vmatpush1.bf16.msra.mxu0 %v6214
          %7656 = vmatprep.subr.bf16.mxu0 %v6247
          %7657 = vmatpush1.bf16.msra.mxu0 %v6246
          %7658 = vmatprep.subr.bf16.mxu0 %v6279
          %7659 = vmatpush1.bf16.msra.mxu0 %v6278
          %7660 = vmatprep.subr.bf16.mxu0 %v6311
          %7661 = vmatpush1.bf16.msra.mxu0 %v6310
          %7662 = vmatprep.subr.bf16.mxu0 %v6343
          %7663 = vmatpush1.bf16.msra.mxu0 %v6342
          %7664 = vmatprep.subr.bf16.mxu0 %v6375
          %7665 = vmatpush1.bf16.msra.mxu0 %v6374
          %7666 = vmatprep.subr.bf16.mxu0 %v6407
          %7667 = vmatpush1.bf16.msra.mxu0 %v6406
          %7668 = vmatprep.subr.bf16.mxu0 %v6439
          %7669 = vmatpush1.bf16.msra.mxu0 %v6438
          %7670 = vmatprep.subr.bf16.mxu0 %v6471
          %7671 = vmatpush1.bf16.msra.mxu0 %v6470
          %7672 = vmatprep.subr.bf16.mxu0 %v6503
          %7673 = vmatpush1.bf16.msra.mxu0 %v6502
          %7674 = vmatprep.subr.bf16.mxu0 %v6535
          %7675 = vmatpush1.bf16.msra.mxu0 %v6534
          %7676 = vmatprep.subr.bf16.mxu0 %v6567
          %7677 = vmatpush1.bf16.msra.mxu0 %v6566
          %7678 = vmatprep.subr.bf16.mxu0 %v6599
          %7679 = vmatpush1.bf16.msra.mxu0 %v6598
          %7680 = vmatprep.subr.bf16.mxu0 %v6631
          %7681 = vmatpush1.bf16.msra.mxu0 %v6630
          %7682 = vmatprep.mubr.bf16.mxu0 %v4081
          %7683 = vmatmul.mubr.bf16.gmra.mrb[0].mxu0 %v4080
          %v7684 = vpop.f32.mrb[0].mxu0
          %v7685 = vadd.f32 %v7229, %v7684
          %v7686 = vpop.f32.mrb[0].mxu0
          %v7687 = vadd.f32 %v7233, %v7686
          %v7688 = vpop.f32.mrb[0].mxu0
          %v7689 = vpop.f32.mrb[0].mxu0
          %7690 = vdwg.mxu0
          %7691 = vmatprep.subr.bf16.mxu0 %v6153
          %7692 = vmatpush1.bf16.msra.mxu0 %v6152
          %7693 = vmatprep.subr.bf16.mxu0 %v6185
          %7694 = vmatpush1.bf16.msra.mxu0 %v6184
          %7695 = vmatprep.subr.bf16.mxu0 %v6217
          %7696 = vmatpush1.bf16.msra.mxu0 %v6216
          %7697 = vmatprep.subr.bf16.mxu0 %v6249
          %7698 = vmatpush1.bf16.msra.mxu0 %v6248
          %7699 = vmatprep.subr.bf16.mxu0 %v6281
          %7700 = vmatpush1.bf16.msra.mxu0 %v6280
          %7701 = vmatprep.subr.bf16.mxu0 %v6313
          %7702 = vmatpush1.bf16.msra.mxu0 %v6312
          %7703 = vmatprep.subr.bf16.mxu0 %v6345
          %7704 = vmatpush1.bf16.msra.mxu0 %v6344
          %7705 = vmatprep.subr.bf16.mxu0 %v6377
          %7706 = vmatpush1.bf16.msra.mxu0 %v6376
          %7707 = vmatprep.subr.bf16.mxu0 %v6409
          %7708 = vmatpush1.bf16.msra.mxu0 %v6408
          %7709 = vmatprep.subr.bf16.mxu0 %v6441
          %7710 = vmatpush1.bf16.msra.mxu0 %v6440
          %7711 = vmatprep.subr.bf16.mxu0 %v6473
          %7712 = vmatpush1.bf16.msra.mxu0 %v6472
          %7713 = vmatprep.subr.bf16.mxu0 %v6505
          %7714 = vmatpush1.bf16.msra.mxu0 %v6504
          %7715 = vmatprep.subr.bf16.mxu0 %v6537
          %7716 = vmatpush1.bf16.msra.mxu0 %v6536
          %7717 = vmatprep.subr.bf16.mxu0 %v6569
          %7718 = vmatpush1.bf16.msra.mxu0 %v6568
          %7719 = vmatprep.subr.bf16.mxu0 %v6601
          %7720 = vmatpush1.bf16.msra.mxu0 %v6600
          %7721 = vmatprep.subr.bf16.mxu0 %v6633
          %7722 = vmatpush1.bf16.msra.mxu0 %v6632
          %7723 = vmatprep.mubr.bf16.mxu0 %v4081
          %7724 = vmatmul.mubr.bf16.gmra.mrb[0].mxu0 %v4080
          %v7725 = vpop.f32.mrb[0].mxu0
          %v7726 = vadd.f32 %v7237, %v7725
          %v7727 = vpop.f32.mrb[0].mxu0
          %v7728 = vadd.f32 %v7241, %v7727
          %v7729 = vpop.f32.mrb[0].mxu0
          %v7730 = vpop.f32.mrb[0].mxu0
          %7731 = vdwg.mxu0
          %7732 = vmatprep.subr.bf16.mxu0 %v6155
          %7733 = vmatpush1.bf16.msra.mxu0 %v6154
          %7734 = vmatprep.subr.bf16.mxu0 %v6187
          %7735 = vmatpush1.bf16.msra.mxu0 %v6186
          %7736 = vmatprep.subr.bf16.mxu0 %v6219
          %7737 = vmatpush1.bf16.msra.mxu0 %v6218
          %7738 = vmatprep.subr.bf16.mxu0 %v6251
          %7739 = vmatpush1.bf16.msra.mxu0 %v6250
          %7740 = vmatprep.subr.bf16.mxu0 %v6283
          %7741 = vmatpush1.bf16.msra.mxu0 %v6282
          %7742 = vmatprep.subr.bf16.mxu0 %v6315
          %7743 = vmatpush1.bf16.msra.mxu0 %v6314
          %7744 = vmatprep.subr.bf16.mxu0 %v6347
          %7745 = vmatpush1.bf16.msra.mxu0 %v6346
          %7746 = vmatprep.subr.bf16.mxu0 %v6379
          %7747 = vmatpush1.bf16.msra.mxu0 %v6378
          %7748 = vmatprep.subr.bf16.mxu0 %v6411
          %7749 = vmatpush1.bf16.msra.mxu0 %v6410
          %7750 = vmatprep.subr.bf16.mxu0 %v6443
          %7751 = vmatpush1.bf16.msra.mxu0 %v6442
          %7752 = vmatprep.subr.bf16.mxu0 %v6475
          %7753 = vmatpush1.bf16.msra.mxu0 %v6474
          %7754 = vmatprep.subr.bf16.mxu0 %v6507
          %7755 = vmatpush1.bf16.msra.mxu0 %v6506
          %7756 = vmatprep.subr.bf16.mxu0 %v6539
          %7757 = vmatpush1.bf16.msra.mxu0 %v6538
          %7758 = vmatprep.subr.bf16.mxu0 %v6571
          %7759 = vmatpush1.bf16.msra.mxu0 %v6570
          %7760 = vmatprep.subr.bf16.mxu0 %v6603
          %7761 = vmatpush1.bf16.msra.mxu0 %v6602
          %7762 = vmatprep.subr.bf16.mxu0 %v6635
          %7763 = vmatpush1.bf16.msra.mxu0 %v6634
          %7764 = vmatprep.mubr.bf16.mxu0 %v4081
          %7765 = vmatmul.mubr.bf16.gmra.mrb[0].mxu0 %v4080
          %v7766 = vpop.f32.mrb[0].mxu0
          %v7767 = vadd.f32 %v7245, %v7766
          %v7768 = vpop.f32.mrb[0].mxu0
          %v7769 = vadd.f32 %v7249, %v7768
          %v7770 = vpop.f32.mrb[0].mxu0
          %v7771 = vpop.f32.mrb[0].mxu0
          %7772 = vdwg.mxu0
          %7773 = vmatprep.subr.bf16.mxu0 %v6157
          %7774 = vmatpush1.bf16.msra.mxu0 %v6156
          %7775 = vmatprep.subr.bf16.mxu0 %v6189
          %7776 = vmatpush1.bf16.msra.mxu0 %v6188
          %7777 = vmatprep.subr.bf16.mxu0 %v6221
          %7778 = vmatpush1.bf16.msra.mxu0 %v6220
          %7779 = vmatprep.subr.bf16.mxu0 %v6253
          %7780 = vmatpush1.bf16.msra.mxu0 %v6252
          %7781 = vmatprep.subr.bf16.mxu0 %v6285
          %7782 = vmatpush1.bf16.msra.mxu0 %v6284
          %7783 = vmatprep.subr.bf16.mxu0 %v6317
          %7784 = vmatpush1.bf16.msra.mxu0 %v6316
          %7785 = vmatprep.subr.bf16.mxu0 %v6349
          %7786 = vmatpush1.bf16.msra.mxu0 %v6348
          %7787 = vmatprep.subr.bf16.mxu0 %v6381
          %7788 = vmatpush1.bf16.msra.mxu0 %v6380
          %7789 = vmatprep.subr.bf16.mxu0 %v6413
          %7790 = vmatpush1.bf16.msra.mxu0 %v6412
          %7791 = vmatprep.subr.bf16.mxu0 %v6445
          %7792 = vmatpush1.bf16.msra.mxu0 %v6444
          %7793 = vmatprep.subr.bf16.mxu0 %v6477
          %7794 = vmatpush1.bf16.msra.mxu0 %v6476
          %7795 = vmatprep.subr.bf16.mxu0 %v6509
          %7796 = vmatpush1.bf16.msra.mxu0 %v6508
          %7797 = vmatprep.subr.bf16.mxu0 %v6541
          %7798 = vmatpush1.bf16.msra.mxu0 %v6540
          %7799 = vmatprep.subr.bf16.mxu0 %v6573
          %7800 = vmatpush1.bf16.msra.mxu0 %v6572
          %7801 = vmatprep.subr.bf16.mxu0 %v6605
          %7802 = vmatpush1.bf16.msra.mxu0 %v6604
          %7803 = vmatprep.subr.bf16.mxu0 %v6637
          %7804 = vmatpush1.bf16.msra.mxu0 %v6636
          %7805 = vmatprep.mubr.bf16.mxu0 %v4081
          %7806 = vmatmul.mubr.bf16.gmra.mrb[0].mxu0 %v4080
          %v7807 = vpop.f32.mrb[0].mxu0
          %v7808 = vadd.f32 %v7253, %v7807
          %v7809 = vpop.f32.mrb[0].mxu0
          %v7810 = vadd.f32 %v7257, %v7809
          %v7811 = vpop.f32.mrb[0].mxu0
          %v7812 = vpop.f32.mrb[0].mxu0
          %7813 = vdwg.mxu0
          %7814 = vmatprep.subr.bf16.mxu0 %v6159
          %7815 = vmatpush1.bf16.msra.mxu0 %v6158
          %7816 = vmatprep.subr.bf16.mxu0 %v6191
          %7817 = vmatpush1.bf16.msra.mxu0 %v6190
          %7818 = vmatprep.subr.bf16.mxu0 %v6223
          %7819 = vmatpush1.bf16.msra.mxu0 %v6222
          %7820 = vmatprep.subr.bf16.mxu0 %v6255
          %7821 = vmatpush1.bf16.msra.mxu0 %v6254
          %7822 = vmatprep.subr.bf16.mxu0 %v6287
          %7823 = vmatpush1.bf16.msra.mxu0 %v6286
          %7824 = vmatprep.subr.bf16.mxu0 %v6319
          %7825 = vmatpush1.bf16.msra.mxu0 %v6318
          %7826 = vmatprep.subr.bf16.mxu0 %v6351
          %7827 = vmatpush1.bf16.msra.mxu0 %v6350
          %7828 = vmatprep.subr.bf16.mxu0 %v6383
          %7829 = vmatpush1.bf16.msra.mxu0 %v6382
          %7830 = vmatprep.subr.bf16.mxu0 %v6415
          %7831 = vmatpush1.bf16.msra.mxu0 %v6414
          %7832 = vmatprep.subr.bf16.mxu0 %v6447
          %7833 = vmatpush1.bf16.msra.mxu0 %v6446
          %7834 = vmatprep.subr.bf16.mxu0 %v6479
          %7835 = vmatpush1.bf16.msra.mxu0 %v6478
          %7836 = vmatprep.subr.bf16.mxu0 %v6511
          %7837 = vmatpush1.bf16.msra.mxu0 %v6510
          %7838 = vmatprep.subr.bf16.mxu0 %v6543
          %7839 = vmatpush1.bf16.msra.mxu0 %v6542
          %7840 = vmatprep.subr.bf16.mxu0 %v6575
          %7841 = vmatpush1.bf16.msra.mxu0 %v6574
          %7842 = vmatprep.subr.bf16.mxu0 %v6607
          %7843 = vmatpush1.bf16.msra.mxu0 %v6606
          %7844 = vmatprep.subr.bf16.mxu0 %v6639
          %7845 = vmatpush1.bf16.msra.mxu0 %v6638
          %7846 = vmatprep.mubr.bf16.mxu0 %v4081
          %7847 = vmatmul.mubr.bf16.gmra.mrb[0].mxu0 %v4080
          %v7848 = vpop.f32.mrb[0].mxu0
          %v7849 = vadd.f32 %v7261, %v7848
          %v7850 = vpop.f32.mrb[0].mxu0
          %v7851 = vadd.f32 %v7265, %v7850
          %v7852 = vpop.f32.mrb[0].mxu0
          %v7853 = vpop.f32.mrb[0].mxu0
          %7854 = vdwg.mxu0
          %7855 = vmatprep.subr.bf16.mxu0 %v6161
          %7856 = vmatpush1.bf16.msra.mxu0 %v6160
          %7857 = vmatprep.subr.bf16.mxu0 %v6193
          %7858 = vmatpush1.bf16.msra.mxu0 %v6192
          %7859 = vmatprep.subr.bf16.mxu0 %v6225
          %7860 = vmatpush1.bf16.msra.mxu0 %v6224
          %7861 = vmatprep.subr.bf16.mxu0 %v6257
          %7862 = vmatpush1.bf16.msra.mxu0 %v6256
          %7863 = vmatprep.subr.bf16.mxu0 %v6289
          %7864 = vmatpush1.bf16.msra.mxu0 %v6288
          %7865 = vmatprep.subr.bf16.mxu0 %v6321
          %7866 = vmatpush1.bf16.msra.mxu0 %v6320
          %7867 = vmatprep.subr.bf16.mxu0 %v6353
          %7868 = vmatpush1.bf16.msra.mxu0 %v6352
          %7869 = vmatprep.subr.bf16.mxu0 %v6385
          %7870 = vmatpush1.bf16.msra.mxu0 %v6384
          %7871 = vmatprep.subr.bf16.mxu0 %v6417
          %7872 = vmatpush1.bf16.msra.mxu0 %v6416
          %7873 = vmatprep.subr.bf16.mxu0 %v6449
          %7874 = vmatpush1.bf16.msra.mxu0 %v6448
          %7875 = vmatprep.subr.bf16.mxu0 %v6481
          %7876 = vmatpush1.bf16.msra.mxu0 %v6480
          %7877 = vmatprep.subr.bf16.mxu0 %v6513
          %7878 = vmatpush1.bf16.msra.mxu0 %v6512
          %7879 = vmatprep.subr.bf16.mxu0 %v6545
          %7880 = vmatpush1.bf16.msra.mxu0 %v6544
          %7881 = vmatprep.subr.bf16.mxu0 %v6577
          %7882 = vmatpush1.bf16.msra.mxu0 %v6576
          %7883 = vmatprep.subr.bf16.mxu0 %v6609
          %7884 = vmatpush1.bf16.msra.mxu0 %v6608
          %7885 = vmatprep.subr.bf16.mxu0 %v6641
          %7886 = vmatpush1.bf16.msra.mxu0 %v6640
          %7887 = vmatprep.mubr.bf16.mxu0 %v4081
          %7888 = vmatmul.mubr.bf16.gmra.mrb[0].mxu0 %v4080
          %v7889 = vpop.f32.mrb[0].mxu0
          %v7890 = vadd.f32 %v7269, %v7889
          %v7891 = vpop.f32.mrb[0].mxu0
          %v7892 = vadd.f32 %v7273, %v7891
          %v7893 = vpop.f32.mrb[0].mxu0
          %v7894 = vpop.f32.mrb[0].mxu0
          %7895 = vdwg.mxu0
          %7896 = vmatprep.subr.bf16.mxu0 %v6163
          %7897 = vmatpush1.bf16.msra.mxu0 %v6162
          %7898 = vmatprep.subr.bf16.mxu0 %v6195
          %7899 = vmatpush1.bf16.msra.mxu0 %v6194
          %7900 = vmatprep.subr.bf16.mxu0 %v6227
          %7901 = vmatpush1.bf16.msra.mxu0 %v6226
          %7902 = vmatprep.subr.bf16.mxu0 %v6259
          %7903 = vmatpush1.bf16.msra.mxu0 %v6258
          %7904 = vmatprep.subr.bf16.mxu0 %v6291
          %7905 = vmatpush1.bf16.msra.mxu0 %v6290
          %7906 = vmatprep.subr.bf16.mxu0 %v6323
          %7907 = vmatpush1.bf16.msra.mxu0 %v6322
          %7908 = vmatprep.subr.bf16.mxu0 %v6355
          %7909 = vmatpush1.bf16.msra.mxu0 %v6354
          %7910 = vmatprep.subr.bf16.mxu0 %v6387
          %7911 = vmatpush1.bf16.msra.mxu0 %v6386
          %7912 = vmatprep.subr.bf16.mxu0 %v6419
          %7913 = vmatpush1.bf16.msra.mxu0 %v6418
          %7914 = vmatprep.subr.bf16.mxu0 %v6451
          %7915 = vmatpush1.bf16.msra.mxu0 %v6450
          %7916 = vmatprep.subr.bf16.mxu0 %v6483
          %7917 = vmatpush1.bf16.msra.mxu0 %v6482
          %7918 = vmatprep.subr.bf16.mxu0 %v6515
          %7919 = vmatpush1.bf16.msra.mxu0 %v6514
          %7920 = vmatprep.subr.bf16.mxu0 %v6547
          %7921 = vmatpush1.bf16.msra.mxu0 %v6546
          %7922 = vmatprep.subr.bf16.mxu0 %v6579
          %7923 = vmatpush1.bf16.msra.mxu0 %v6578
          %7924 = vmatprep.subr.bf16.mxu0 %v6611
          %7925 = vmatpush1.bf16.msra.mxu0 %v6610
          %7926 = vmatprep.subr.bf16.mxu0 %v6643
          %7927 = vmatpush1.bf16.msra.mxu0 %v6642
          %7928 = vmatprep.mubr.bf16.mxu0 %v4081
          %7929 = vmatmul.mubr.bf16.gmra.mrb[0].mxu0 %v4080
          %v7930 = vpop.f32.mrb[0].mxu0
          %v7931 = vadd.f32 %v7277, %v7930
          %v7932 = vpop.f32.mrb[0].mxu0
          %v7933 = vadd.f32 %v7281, %v7932
          %v7934 = vpop.f32.mrb[0].mxu0
          %v7935 = vpop.f32.mrb[0].mxu0
          %7936 = vdwg.mxu0
          %7937 = vmatprep.subr.bf16.mxu0 %v6165
          %7938 = vmatpush1.bf16.msra.mxu0 %v6164
          %7939 = vmatprep.subr.bf16.mxu0 %v6197
          %7940 = vmatpush1.bf16.msra.mxu0 %v6196
          %7941 = vmatprep.subr.bf16.mxu0 %v6229
          %7942 = vmatpush1.bf16.msra.mxu0 %v6228
          %7943 = vmatprep.subr.bf16.mxu0 %v6261
          %7944 = vmatpush1.bf16.msra.mxu0 %v6260
          %7945 = vmatprep.subr.bf16.mxu0 %v6293
          %7946 = vmatpush1.bf16.msra.mxu0 %v6292
          %7947 = vmatprep.subr.bf16.mxu0 %v6325
          %7948 = vmatpush1.bf16.msra.mxu0 %v6324
          %7949 = vmatprep.subr.bf16.mxu0 %v6357
          %7950 = vmatpush1.bf16.msra.mxu0 %v6356
          %7951 = vmatprep.subr.bf16.mxu0 %v6389
          %7952 = vmatpush1.bf16.msra.mxu0 %v6388
          %7953 = vmatprep.subr.bf16.mxu0 %v6421
          %7954 = vmatpush1.bf16.msra.mxu0 %v6420
          %7955 = vmatprep.subr.bf16.mxu0 %v6453
          %7956 = vmatpush1.bf16.msra.mxu0 %v6452
          %7957 = vmatprep.subr.bf16.mxu0 %v6485
          %7958 = vmatpush1.bf16.msra.mxu0 %v6484
          %7959 = vmatprep.subr.bf16.mxu0 %v6517
          %7960 = vmatpush1.bf16.msra.mxu0 %v6516
          %7961 = vmatprep.subr.bf16.mxu0 %v6549
          %7962 = vmatpush1.bf16.msra.mxu0 %v6548
          %7963 = vmatprep.subr.bf16.mxu0 %v6581
          %7964 = vmatpush1.bf16.msra.mxu0 %v6580
          %7965 = vmatprep.subr.bf16.mxu0 %v6613
          %7966 = vmatpush1.bf16.msra.mxu0 %v6612
          %7967 = vmatprep.subr.bf16.mxu0 %v6645
          %7968 = vmatpush1.bf16.msra.mxu0 %v6644
          %7969 = vmatprep.mubr.bf16.mxu0 %v4081
          %7970 = vmatmul.mubr.bf16.gmra.mrb[0].mxu0 %v4080
          %v7971 = vpop.f32.mrb[0].mxu0
          %v7972 = vadd.f32 %v7285, %v7971
          %v7973 = vpop.f32.mrb[0].mxu0
          %v7974 = vadd.f32 %v7289, %v7973
          %v7975 = vpop.f32.mrb[0].mxu0
          %v7976 = vpop.f32.mrb[0].mxu0
          %7977 = vdwg.mxu0
          %v8010 = vcombine.low %v7357, %v7359
          %v8011 = vcombine.low %v7398, %v7400
          %v8012 = vcombine.low %v7439, %v7441
          %v8013 = vcombine.low %v7480, %v7482
          %v8015 = vunpack.c.l.s4 1966171168
          %v8016 = vunpack.c.0.s8 %v8015
          %v8017 = vlaneseq
          %v8018 = vshrl.u32 %v8017, 7
          %v8019 = vsub.s32 %v8016, %v8018
          %v8020 = vrot.slane %v8010, %v8019
          %v8022 = vunpack.c.l.s4 1966171168
          %v8023 = vunpack.c.0.s8 %v8022
          %v8024 = vlaneseq
          %v8025 = vshrl.u32 %v8024, 7
          %v8026 = vsub.s32 %v8023, %v8025
          %v8027 = vrot.slane %v8011, %v8026
          %v8029 = vunpack.c.l.s4 1966171168
          %v8030 = vunpack.c.0.s8 %v8029
          %v8031 = vlaneseq
          %v8032 = vshrl.u32 %v8031, 7
          %v8033 = vsub.s32 %v8030, %v8032
          %v8034 = vrot.slane %v8012, %v8033
          %v8036 = vunpack.c.l.s4 1966171168
          %v8037 = vunpack.c.0.s8 %v8036
          %v8038 = vlaneseq
          %v8039 = vshrl.u32 %v8038, 7
          %v8040 = vsub.s32 %v8037, %v8039
          %v8041 = vrot.slane %v8013, %v8040
          %v8042 = vcombine.low %v8020, %v8027
          %v8043 = vcombine.low %v8034, %v8041
          %v8045 = vunpack.c.l.s4 1966171168
          %v8046 = vunpack.c.0.s8 %v8045
          %v8047 = vlaneseq
          %v8048 = vshrl.u32 %v8047, 7
          %v8049 = vsub.s32 %v8046, %v8048
          %v8050 = vrot.slane %v8042, %v8049
          %v8052 = vunpack.c.l.s4 1966171168
          %v8053 = vunpack.c.0.s8 %v8052
          %v8054 = vlaneseq
          %v8055 = vshrl.u32 %v8054, 7
          %v8056 = vsub.s32 %v8053, %v8055
          %v8057 = vrot.slane %v8043, %v8056
          %v8058 = vcombine.low %v8050, %v8057
          %v8059 = vcombine.low %v7521, %v7523
          %v8060 = vcombine.low %v7562, %v7564
          %v8061 = vcombine.low %v7603, %v7605
          %v8062 = vcombine.low %v7644, %v7646
          %v8064 = vunpack.c.l.s4 1966171168
          %v8065 = vunpack.c.0.s8 %v8064
          %v8066 = vlaneseq
          %v8067 = vshrl.u32 %v8066, 7
          %v8068 = vsub.s32 %v8065, %v8067
          %v8069 = vrot.slane %v8059, %v8068
          %v8071 = vunpack.c.l.s4 1966171168
          %v8072 = vunpack.c.0.s8 %v8071
          %v8073 = vlaneseq
          %v8074 = vshrl.u32 %v8073, 7
          %v8075 = vsub.s32 %v8072, %v8074
          %v8076 = vrot.slane %v8060, %v8075
          %v8078 = vunpack.c.l.s4 1966171168
          %v8079 = vunpack.c.0.s8 %v8078
          %v8080 = vlaneseq
          %v8081 = vshrl.u32 %v8080, 7
          %v8082 = vsub.s32 %v8079, %v8081
          %v8083 = vrot.slane %v8061, %v8082
          %v8085 = vunpack.c.l.s4 1966171168
          %v8086 = vunpack.c.0.s8 %v8085
          %v8087 = vlaneseq
          %v8088 = vshrl.u32 %v8087, 7
          %v8089 = vsub.s32 %v8086, %v8088
          %v8090 = vrot.slane %v8062, %v8089
          %v8091 = vcombine.low %v8069, %v8076
          %v8092 = vcombine.low %v8083, %v8090
          %v8094 = vunpack.c.l.s4 1966171168
          %v8095 = vunpack.c.0.s8 %v8094
          %v8096 = vlaneseq
          %v8097 = vshrl.u32 %v8096, 7
          %v8098 = vsub.s32 %v8095, %v8097
          %v8099 = vrot.slane %v8091, %v8098
          %v8101 = vunpack.c.l.s4 1966171168
          %v8102 = vunpack.c.0.s8 %v8101
          %v8103 = vlaneseq
          %v8104 = vshrl.u32 %v8103, 7
          %v8105 = vsub.s32 %v8102, %v8104
          %v8106 = vrot.slane %v8092, %v8105
          %v8107 = vcombine.low %v8099, %v8106
          %v8108 = vcombine.low %v7685, %v7687
          %v8109 = vcombine.low %v7726, %v7728
          %v8110 = vcombine.low %v7767, %v7769
          %v8111 = vcombine.low %v7808, %v7810
          %v8113 = vunpack.c.l.s4 1966171168
          %v8114 = vunpack.c.0.s8 %v8113
          %v8115 = vlaneseq
          %v8116 = vshrl.u32 %v8115, 7
          %v8117 = vsub.s32 %v8114, %v8116
          %v8118 = vrot.slane %v8108, %v8117
          %v8120 = vunpack.c.l.s4 1966171168
          %v8121 = vunpack.c.0.s8 %v8120
          %v8122 = vlaneseq
          %v8123 = vshrl.u32 %v8122, 7
          %v8124 = vsub.s32 %v8121, %v8123
          %v8125 = vrot.slane %v8109, %v8124
          %v8127 = vunpack.c.l.s4 1966171168
          %v8128 = vunpack.c.0.s8 %v8127
          %v8129 = vlaneseq
          %v8130 = vshrl.u32 %v8129, 7
          %v8131 = vsub.s32 %v8128, %v8130
          %v8132 = vrot.slane %v8110, %v8131
          %v8134 = vunpack.c.l.s4 1966171168
          %v8135 = vunpack.c.0.s8 %v8134
          %v8136 = vlaneseq
          %v8137 = vshrl.u32 %v8136, 7
          %v8138 = vsub.s32 %v8135, %v8137
          %v8139 = vrot.slane %v8111, %v8138
          %v8140 = vcombine.low %v8118, %v8125
          %v8141 = vcombine.low %v8132, %v8139
          %v8143 = vunpack.c.l.s4 1966171168
          %v8144 = vunpack.c.0.s8 %v8143
          %v8145 = vlaneseq
          %v8146 = vshrl.u32 %v8145, 7
          %v8147 = vsub.s32 %v8144, %v8146
          %v8148 = vrot.slane %v8140, %v8147
          %v8150 = vunpack.c.l.s4 1966171168
          %v8151 = vunpack.c.0.s8 %v8150
          %v8152 = vlaneseq
          %v8153 = vshrl.u32 %v8152, 7
          %v8154 = vsub.s32 %v8151, %v8153
          %v8155 = vrot.slane %v8141, %v8154
          %v8156 = vcombine.low %v8148, %v8155
          %v8157 = vcombine.low %v7849, %v7851
          %v8158 = vcombine.low %v7890, %v7892
          %v8159 = vcombine.low %v7931, %v7933
          %v8160 = vcombine.low %v7972, %v7974
          %v8162 = vunpack.c.l.s4 1966171168
          %v8163 = vunpack.c.0.s8 %v8162
          %v8164 = vlaneseq
          %v8165 = vshrl.u32 %v8164, 7
          %v8166 = vsub.s32 %v8163, %v8165
          %v8167 = vrot.slane %v8157, %v8166
          %v8169 = vunpack.c.l.s4 1966171168
          %v8170 = vunpack.c.0.s8 %v8169
          %v8171 = vlaneseq
          %v8172 = vshrl.u32 %v8171, 7
          %v8173 = vsub.s32 %v8170, %v8172
          %v8174 = vrot.slane %v8158, %v8173
          %v8176 = vunpack.c.l.s4 1966171168
          %v8177 = vunpack.c.0.s8 %v8176
          %v8178 = vlaneseq
          %v8179 = vshrl.u32 %v8178, 7
          %v8180 = vsub.s32 %v8177, %v8179
          %v8181 = vrot.slane %v8159, %v8180
          %v8183 = vunpack.c.l.s4 1966171168
          %v8184 = vunpack.c.0.s8 %v8183
          %v8185 = vlaneseq
          %v8186 = vshrl.u32 %v8185, 7
          %v8187 = vsub.s32 %v8184, %v8186
          %v8188 = vrot.slane %v8160, %v8187
          %v8189 = vcombine.low %v8167, %v8174
          %v8190 = vcombine.low %v8181, %v8188
          %v8192 = vunpack.c.l.s4 1966171168
          %v8193 = vunpack.c.0.s8 %v8192
          %v8194 = vlaneseq
          %v8195 = vshrl.u32 %v8194, 7
          %v8196 = vsub.s32 %v8193, %v8195
          %v8197 = vrot.slane %v8189, %v8196
          %v8199 = vunpack.c.l.s4 1966171168
          %v8200 = vunpack.c.0.s8 %v8199
          %v8201 = vlaneseq
          %v8202 = vshrl.u32 %v8201, 7
          %v8203 = vsub.s32 %v8200, %v8202
          %v8204 = vrot.slane %v8190, %v8203
          %v8205 = vcombine.low %v8197, %v8204
          %8210 = vst [vmem:[%s636] sm:$0xff] %v8058
          %8211 = vst [vmem:[%s636 + $0x8] sm:$0xff] %v8107
          %8212 = vst [vmem:[%s636 + $0x10] sm:$0xff] %v8156
          %8213 = vst [vmem:[%s636 + $0x18] sm:$0xff] %v8205
        $region136: #{tpu_custom_call.1} parent=71 // pred_fallthru
          _
        %s8214 = sand.u32 %s336, 1
        %s8215 = scalar_lea.sflag [#allocation5], %s8214
        %s8216 = sand.u32 %s336, 1
        %s8217 = smul.addr %s8216, 32
        %s8218 = scalar_lea.vmem [#allocation24], %s8217
        // Predicated region
        $region137: #{tpu_custom_call.1} parent=71 // pred_check
          %p8219 = pneg %p346
        $region138: #{tpu_custom_call.1} parent=71 // pred_check_branch
          %8221 = sbr.rel (%p8219) target = $region140
        $region139: #{tpu_custom_call.1} parent=71 // pred_region
          %s8223 = ssub.s32 512, 512
          %8224 = vsyncadd %s8215, %s8223
          %s8225 = smul.addr %s40, 32
          %s8226 = smul.addr %s8225, 16
          %s8227 = scalar_lea.hbm %s13, %s8226
          %s8229 = sshll.u32 %s8218, 4
          %s8230 = int_to_ptr.vmem [resolvable:$true] %s8229
          %8232 = dma.vmem_to_hbm [thread:$0]  %s8230, 512, %s8227, %s8215
        $region140: #{tpu_custom_call.1} parent=71 // pred_fallthru
          _
      $region72: #{tpu_custom_call.1} parent=5 // pred_fallthru
        _
      %p8233 = scmp.le.s32.totalorder 2, %s31
      // Predicated region
      $region141: #{tpu_custom_call.1} parent=5 // pred_check
        %p8234 = pneg %p8233
      $region142: #{tpu_custom_call.1} parent=5 // pred_check_branch
        %8236 = sbr.rel (%p8234) target = $region144
      $region143: #{tpu_custom_call.1} parent=5 // pred_region
        %s8237 = ssub.s32 %s31, 2
        // Predicated region
        $region145: #{tpu_custom_call.1} parent=143 // pred_check
          %p8238 = pneg %p352
        $region146: #{tpu_custom_call.1} parent=143 // pred_check_branch
          %8240 = sbr.rel (%p8238) target = $region148
        $region147: #{tpu_custom_call.1} parent=143 // pred_region
          %s8241 = sand.u32 %s337, 1
          %s8242 = scalar_lea.sflag [#allocation5], %s8241
          %s8243 = sand.u32 %s337, 1
          %s8244 = smul.addr %s8243, 32
          %s8245 = scalar_lea.vmem [#allocation24], %s8244
          %8246 = dma.done %s8242, 512
        $region148: #{tpu_custom_call.1} parent=143 // pred_fallthru
          _
      $region144: #{tpu_custom_call.1} parent=5 // pred_fallthru
        _
    $region6: #{tpu_custom_call.1} parent=1 // loop_footer
      %s35 = sadd.s32 1, %s31
    $region7: #{tpu_custom_call.1} parent=1 // loop_footer_branch
      %30 = sbr.rel target = $region3
    $region8: #{tpu_custom_call.1} parent=1 // loop_exit
      _
    %8247 = vsyncpa [#allocation4], 1
    %s8248 = scalar_lea.sflag [#allocation4], 1
    %8249 = vsyncpa %s8248, 1
    %8250 = vsyncpa [#allocation7], 1
    %8251 = vsyncpa [#allocation10], 1
    %8252 = vsyncpa [#allocation13], 1
    %8253 = vsyncpa [#allocation16], 1
    %8254 = vsyncpa [#allocation19], 1
    %8255 = vsyncpa [#allocation22], 1
    %8256 = vsyncpa [#allocation5], 1
    %s8257 = scalar_lea.sflag [#allocation5], 1
    %8258 = vsyncpa %s8257, 1

</llo_original>
